<compile_context>
chip_gen: v7x
topology: tpu7x:2x2x1
jax: 0.10.0
libtpu: 0.0.40
codegen_flags: <defaults>
</compile_context>

<pallas_src>
from functools import partial

import jax
import jax.numpy as jnp
from jax import lax
from jax.experimental import pallas as pl
from jax.experimental.pallas import tpu as pltpu

# Keep <= 32 MiB so identical tiling fits v7x (64 MiB physical / 32 MiB scoped
# default).  On v5e/v6e this could be raised together with tk for deeper
# weight-stream pipelining.
VMEM_LIMIT = 32 * 1024 * 1024


def _pick_tile(total, prefer):
    """Largest preferred divisor that still leaves >=2 tiles (keeps both v7x TCs busy)."""
    for c in prefer:
        if total % c == 0 and total // c >= 2:
            return c
    return total


# ----------------------------------------------------------------------------
# Stage 1: conv(3x3,s2)+ReLU on im2col patches — tiled matmul kernel.
# ----------------------------------------------------------------------------
def _conv_relu_kernel(p_ref, w_ref, b_ref, o_ref):
    y = jnp.dot(p_ref[...], w_ref[...], preferred_element_type=jnp.float32)
    o_ref[...] = jnp.maximum(y + b_ref[...], 0.0).astype(o_ref.dtype)


def pallas_conv_relu(patches_bf16, w_conv, b_conv):
    rows, kc = patches_bf16.shape
    cout = w_conv.shape[1]
    tm = _pick_tile(rows, (2048, 1024, 512, 256, 128, 64, 32, 16, 8))
    return pl.pallas_call(
        _conv_relu_kernel,
        out_shape=jax.ShapeDtypeStruct((rows, cout), jnp.bfloat16),
        grid_spec=pltpu.PrefetchScalarGridSpec(
            num_scalar_prefetch=0,
            grid=(rows // tm,),
            in_specs=[
                pl.BlockSpec((tm, kc), lambda i: (i, 0)),
                pl.BlockSpec((kc, cout), lambda i: (0, 0)),   # VMEM-resident
                pl.BlockSpec((1, cout), lambda i: (0, 0)),
            ],
            out_specs=pl.BlockSpec((tm, cout), lambda i: (i, 0)),
        ),
        compiler_params=pltpu.CompilerParams(
            dimension_semantics=("parallel",),
            vmem_limit_bytes=VMEM_LIMIT),
    )(patches_bf16, w_conv, b_conv)


# ----------------------------------------------------------------------------
# Stage 2: embedding projection with int8 weights, f32 accumulator,
# N-parallel x K-arbitrary grid (K innermost for accumulation correctness).
# ----------------------------------------------------------------------------
def _embed_kernel(x_ref, wq_ref, sc_ref, b_ref, o_ref, acc_ref):
    k = pl.program_id(1)

    @pl.when(k == 0)
    def _():
        acc_ref[...] = jnp.zeros_like(acc_ref)

    # int8 -> bf16 dequant happens lazily per K-tile; scale folded in epilogue.
    acc_ref[...] += jnp.dot(x_ref[...], wq_ref[...].astype(jnp.bfloat16),
                            preferred_element_type=jnp.float32)

    @pl.when(k == pl.num_programs(1) - 1)
    def _():
        o_ref[...] = (acc_ref[...] * sc_ref[...] + b_ref[...]).astype(o_ref.dtype)


def pallas_embed(flat_bf16, w_emb_q, emb_scale, b_emb):
    m, kdim = flat_bf16.shape
    n = w_emb_q.shape[1]
    tn = _pick_tile(n, (256, 128))                       # >=2 parallel N tiles (v7x)
    tk = _pick_tile(kdim, (2048, 1024, 512, 256, 128))
    return pl.pallas_call(
        _embed_kernel,
        out_shape=jax.ShapeDtypeStruct((m, n), jnp.float32),
        grid_spec=pltpu.PrefetchScalarGridSpec(
            num_scalar_prefetch=0,
            grid=(n // tn, kdim // tk),                  # K innermost
            in_specs=[
                pl.BlockSpec((m, tk), lambda j, k: (0, k)),
                pl.BlockSpec((tk, tn), lambda j, k: (k, j)),
                pl.BlockSpec((1, tn), lambda j, k: (0, j)),
                pl.BlockSpec((1, tn), lambda j, k: (0, j)),
            ],
            out_specs=pl.BlockSpec((m, tn), lambda j, k: (0, j)),
            scratch_shapes=[pltpu.VMEM((m, tn), jnp.float32)],
        ),
        compiler_params=pltpu.CompilerParams(
            dimension_semantics=("parallel", "arbitrary"),
            vmem_limit_bytes=VMEM_LIMIT),
    )(flat_bf16, w_emb_q, emb_scale, b_emb)


# ----------------------------------------------------------------------------
# Stage 3: fused GRU (time loop inside kernel) + fc1/ReLU/(Dropout=id)/fc2.
# Gate layout: each gate (r, z, n) occupies its own 128-lane block; hidden is
# zero-padded 32 -> 128.  Padding is value-preserving (padded lanes stay 0).
# ----------------------------------------------------------------------------
def _gru_head_kernel(emb_ref, wih0_ref, bih0_ref, wih_ref, bih_ref,
                     whh_ref, bhh_ref, w1_ref, b1_ref, w2_ref, b2_ref,
                     o_ref, gx_scr, *, depth, num_layer, hp):
    HP = hp
    B = o_ref.shape[0]

    # ---- preamble (runs once): hoist layer-0 input projections for all steps.
    # TODO(synk): for large depth, replace the static unroll with pl.loop.
    for d in range(depth):
        gx_scr[d] = (jnp.dot(emb_ref[d].astype(jnp.bfloat16), wih0_ref[...],
                             preferred_element_type=jnp.float32) + bih0_ref[...])

    def step(t, h_all):                      # h_all: (L, B, HP) f32, fori_loop carry
        # Batched hidden projections for ALL layers at once — independent of the
        # sequential layer chain below (all h_l(t-1) already available).
        gh_all = (jnp.einsum('lbh,lhg->lbg', h_all.astype(jnp.bfloat16),
                             whh_ref[...], preferred_element_type=jnp.float32)
                  + bhh_ref[...])            # (L, B, 3*HP)
        gx = gx_scr[t]                       # (B, 3*HP), hoisted layer-0 projection
        new_h = []
        h_prev = None
        for l in range(num_layer):
            if l > 0:
                gx = (jnp.dot(h_prev.astype(jnp.bfloat16), wih_ref[l - 1],
                              preferred_element_type=jnp.float32) + bih_ref[l - 1])
            gh = gh_all[l]
            h_old = h_all[l]
            # PyTorch gate order (r, z, n); n uses r * (W_hn h + b_hn).
            r = jax.nn.sigmoid(gx[:, 0:HP] + gh[:, 0:HP])
            z = jax.nn.sigmoid(gx[:, HP:2 * HP] + gh[:, HP:2 * HP])
            n = jnp.tanh(gx[:, 2 * HP:3 * HP] + r * gh[:, 2 * HP:3 * HP])
            h_prev = (1.0 - z) * n + z * h_old
            new_h.append(h_prev)
        return jnp.stack(new_h, axis=0)

    h_final = lax.fori_loop(0, depth, step,
                            jnp.zeros((num_layer, B, HP), jnp.float32))  # init_hidden = 0

    # ---- head: fc1 + ReLU + (Dropout = identity, eval mode) + fc2 ----
    h_last = h_final[num_layer - 1]
    fc1 = jnp.maximum(
        jnp.dot(h_last.astype(jnp.bfloat16), w1_ref[...],
                preferred_element_type=jnp.float32) + b1_ref[...], 0.0)
    out = jnp.dot(fc1.astype(jnp.bfloat16), w2_ref[...],
                  preferred_element_type=jnp.float32) + b2_ref[...]
    o_ref[...] = out.astype(o_ref.dtype)


def pallas_gru_head(emb_seq, wih0, bih0, wih_rest, bih_rest, whh, bhh,
                    w_fc1, b_fc1, w_fc2, b_fc2):
    D, B, E = emb_seq.shape
    L, HP, GXP = whh.shape
    lr = wih_rest.shape[0]
    nc = w_fc2.shape[1]
    kern = partial(_gru_head_kernel, depth=D, num_layer=L, hp=HP)
    return pl.pallas_call(
        kern,
        out_shape=jax.ShapeDtypeStruct((B, nc), jnp.float32),
        grid_spec=pltpu.PrefetchScalarGridSpec(
            num_scalar_prefetch=0,
            grid=(1,),                                   # whole recurrence in one launch
            in_specs=[
                pl.BlockSpec((D, B, E), lambda i: (0, 0, 0)),
                pl.BlockSpec((E, GXP), lambda i: (0, 0)),
                pl.BlockSpec((1, GXP), lambda i: (0, 0)),
                pl.BlockSpec((lr, HP, GXP), lambda i: (0, 0, 0)),
                pl.BlockSpec((lr, 1, GXP), lambda i: (0, 0, 0)),
                pl.BlockSpec((L, HP, GXP), lambda i: (0, 0, 0)),
                pl.BlockSpec((L, 1, GXP), lambda i: (0, 0, 0)),
                pl.BlockSpec((HP, w_fc1.shape[1]), lambda i: (0, 0)),
                pl.BlockSpec((1, b_fc1.shape[1]), lambda i: (0, 0)),
                pl.BlockSpec((w_fc2.shape[0], nc), lambda i: (0, 0)),
                pl.BlockSpec((1, nc), lambda i: (0, 0)),
            ],
            out_specs=pl.BlockSpec((B, nc), lambda i: (0, 0)),
            scratch_shapes=[pltpu.VMEM((D, B, GXP), jnp.float32)],
        ),
        compiler_params=pltpu.CompilerParams(
            dimension_semantics=("arbitrary",),
            vmem_limit_bytes=VMEM_LIMIT),
    )(emb_seq, wih0, bih0, wih_rest, bih_rest, whh, bhh, w_fc1, b_fc1, w_fc2, b_fc2)


# ----------------------------------------------------------------------------
# Glue: im2col over all depth frames at once, rows ordered (d, b, oh, ow),
# columns ordered (kh, kw, cin). Kept in XLA (see TODO at top).
# ----------------------------------------------------------------------------
def im2col_frames(data, k=3, stride=2, pad=1):
    B, C, D, H, W = data.shape
    xp = jnp.pad(data, ((0, 0), (0, 0), (0, 0), (pad, pad), (pad, pad)))
    OH = (H + 2 * pad - k) // stride + 1
    OW = (W + 2 * pad - k) // stride + 1
    taps = []
    for i in range(k):
        for j in range(k):
            taps.append(xp[:, :, :, i:i + stride * OH:stride, j:j + stride * OW:stride])
    p = jnp.stack(taps, axis=-1)                    # (B, C, D, OH, OW, k*k)
    p = p.transpose(2, 0, 3, 4, 5, 1)               # (D, B, OH, OW, k*k, C)
    return p.reshape(D * B * OH * OW, k * k * C), OH, OW


# ----------------------------------------------------------------------------
# CNNNet forward.
# ----------------------------------------------------------------------------
def cnn_net_forward(data, params):
    B, C, D, H, W = data.shape

    # frozen per-frame feature extractor (stand-in), all frames batched
    patches, OH, OW = im2col_frames(data)                        # (D*B*OH*OW, C*9)
    conv = pallas_conv_relu(patches.astype(jnp.bfloat16),
                            params["w_conv"], params["b_conv"])  # (D*B*OH*OW, Cout) bf16
    cout = params["w_conv"].shape[1]
    flat = conv.reshape(D * B, OH * OW * cout)                   # contiguous reshape

    # embedding -> pre_out (int8 weight stream, dequant in epilogue)
    emb = pallas_embed(flat, params["w_emb_q"], params["emb_scale"],
                       params["b_emb"])                          # (D*B, 512) f32
    emb_seq = emb.reshape(D, B, emb.shape[-1])

    # fused 3-layer GRU over time + fc1/ReLU/(Dropout=id)/fc2 head
    return pallas_gru_head(emb_seq,
                           params["wih0_pad"], params["bih0_pad"],
                           params["gru_wih_rest"], params["gru_bih_rest"],
                           params["gru_whh"], params["gru_bhh"],
                           params["w_fc1"], params["b_fc1"],
                           params["w_fc2"], params["b_fc2"])


# ----------------------------------------------------------------------------
# Pure-JAX f32 reference (same math, same padded/quantized weights).
# ----------------------------------------------------------------------------
def reference_forward(data, params):
    B, C, D, H, W = data.shape
    patches, OH, OW = im2col_frames(data)
    w_conv = params["w_conv"].astype(jnp.float32)
    conv = jnp.maximum(patches @ w_conv + params["b_conv"], 0.0)
    flat = conv.reshape(D * B, OH * OW * w_conv.shape[1])
    w_emb = params["w_emb_q"].astype(jnp.float32) * params["emb_scale"]
    emb_seq = (flat @ w_emb + params["b_emb"]).reshape(D, B, -1)

    whh = params["gru_whh"].astype(jnp.float32)
    L, HP, GXP = whh.shape
    wih0 = params["wih0_pad"].astype(jnp.float32)
    wih_rest = params["gru_wih_rest"].astype(jnp.float32)
    h = jnp.zeros((L, B, HP), jnp.float32)
    for d in range(D):
        gx = emb_seq[d] @ wih0 + params["bih0_pad"]
        new_h = []
        for l in range(L):
            if l > 0:
                gx = new_h[-1] @ wih_rest[l - 1] + params["gru_bih_rest"][l - 1]
            gh = h[l] @ whh[l] + params["gru_bhh"][l]
            r = jax.nn.sigmoid(gx[:, 0:HP] + gh[:, 0:HP])
            z = jax.nn.sigmoid(gx[:, HP:2 * HP] + gh[:, HP:2 * HP])
            n = jnp.tanh(gx[:, 2 * HP:3 * HP] + r * gh[:, 2 * HP:3 * HP])
            new_h.append((1.0 - z) * n + z * h[l])
        h = jnp.stack(new_h)
    fc1 = jnp.maximum(h[-1] @ params["w_fc1"].astype(jnp.float32) + params["b_fc1"], 0.0)
    return fc1 @ params["w_fc2"].astype(jnp.float32) + params["b_fc2"]


# ----------------------------------------------------------------------------
# Parameter init. GRU weights stored (in, 3H) (transposed vs PyTorch's
# (3H, in)); gate order (r, z, n); each gate zero-padded 32 -> 128 lanes;
# hidden rows zero-padded 32 -> 128.  w_emb is int8 + per-column f32 scale.
# ----------------------------------------------------------------------------
def init_params(key, *, in_ch, conv_out, feat_dim, pre_out, hidden, num_layer,
                num_classes=2):
    Hn = hidden
    HP = pl.cdiv(Hn, 128) * 128
    GXP = 3 * HP
    bf = jnp.bfloat16
    s = 0.05
    ks = jax.random.split(key, 9)

    def rnd(k, shape):
        return jax.random.normal(k, shape, jnp.float32) * s

    def pad_gates(w):                        # (in, 3H) -> (in, GXP), zeros elsewhere
        out = jnp.zeros((w.shape[0], GXP), jnp.float32)
        for g in range(3):
            out = out.at[:, g * HP:g * HP + Hn].set(w[:, g * Hn:(g + 1) * Hn])
        return out

    def pad_rows(w):                         # (H, n) -> (HP, n), zero rows below
        return jnp.zeros((HP, w.shape[1]), jnp.float32).at[:Hn, :].set(w)

    # frozen feature extractor stand-in
    w_conv = rnd(ks[0], (in_ch * 9, conv_out)).astype(bf)
    b_conv = rnd(ks[1], (1, conv_out))

    # embedding projection weight: int8 + per-output-column scale
    w_emb = rnd(ks[2], (feat_dim, pre_out))
    emb_scale = jnp.maximum(jnp.max(jnp.abs(w_emb), axis=0, keepdims=True), 1e-6) / 127.0
    w_emb_q = jnp.clip(jnp.round(w_emb / emb_scale), -127, 127).astype(jnp.int8)
    b_emb = rnd(ks[3], (1, pre_out))

    # GRU
    kg = jax.random.split(ks[4], num_layer * 4)
    wih0_pad = pad_gates(rnd(kg[0], (pre_out, 3 * Hn))).astype(bf)
    bih0_pad = pad_gates(rnd(kg[1], (1, 3 * Hn)))
    wih_rest, bih_rest = [], []
    for l in range(1, num_layer):
        wih_rest.append(pad_rows(pad_gates(rnd(kg[4 * l + 0], (Hn, 3 * Hn)))))
        bih_rest.append(pad_gates(rnd(kg[4 * l + 1], (1, 3 * Hn))))
    if wih_rest:
        wih_rest = jnp.stack(wih_rest).astype(bf)
        bih_rest = jnp.stack(bih_rest)
    else:
        wih_rest = jnp.zeros((1, HP, GXP), bf)
        bih_rest = jnp.zeros((1, 1, GXP), jnp.float32)
    whh = jnp.stack([pad_rows(pad_gates(rnd(kg[4 * l + 2], (Hn, 3 * Hn))))
                     for l in range(num_layer)]).astype(bf)
    bhh = jnp.stack([pad_gates(rnd(kg[4 * l + 3], (1, 3 * Hn)))
                     for l in range(num_layer)])

    # head
    w_fc1 = pad_rows(rnd(ks[5], (Hn, 128))).astype(bf)
    b_fc1 = rnd(ks[6], (1, 128))
    w_fc2 = rnd(ks[7], (128, num_classes)).astype(bf)
    b_fc2 = rnd(ks[8], (1, num_classes))

    return {
        "w_conv": w_conv, "b_conv": b_conv,
        "w_emb_q": w_emb_q, "emb_scale": emb_scale, "b_emb": b_emb,
        "wih0_pad": wih0_pad, "bih0_pad": bih0_pad,
        "gru_wih_rest": wih_rest, "gru_bih_rest": bih_rest,
        "gru_whh": whh, "gru_bhh": bhh,
        "w_fc1": w_fc1, "b_fc1": b_fc1, "w_fc2": w_fc2, "b_fc2": b_fc2,
    }


if __name__ == "__main__":
    # Small shapes consistent with the module's forward:
    # data: (batch=2, channels=3, depth=4, H=16, W=16); pre_out=512 (hardcoded),
    # hidden_size=32, num_layer=3, fc2 out = num_classes = 2.
    B, C, D, H, W = 2, 3, 4, 16, 16
    HIDDEN, NUM_LAYER, PRE_OUT, CONV_OUT, NUM_CLASSES = 32, 3, 512, 128, 2

    key = jax.random.PRNGKey(0)
    k_data, k_par = jax.random.split(key)
    data = jax.random.normal(k_data, (B, C, D, H, W), jnp.float32)

    OH = OW = H // 2  # conv k=3, stride=2, pad=1
    params = init_params(
        k_par, in_ch=C, conv_out=CONV_OUT, feat_dim=CONV_OUT * OH * OW,
        pre_out=PRE_OUT, hidden=HIDDEN, num_layer=NUM_LAYER,
        num_classes=NUM_CLASSES)

    fwd = jax.jit(cnn_net_forward)
    out = jax.block_until_ready(fwd(data, params))
    assert out.shape == (B, NUM_CLASSES) and out.dtype == jnp.float32

    # tolerance check vs a pure-JAX f32 reference (bf16 MXU operands -> loose tol)
    ref = reference_forward(data, params)
    assert jnp.allclose(out, ref, atol=5e-2, rtol=5e-2), (out, ref)

    print("KERNEL_OK")
</pallas_src>

<mosaic_0001>
module attributes {stable_mosaic.version = 11 : i64} {
  func.func @_conv_relu_kernel(%arg0: i32, %arg1: memref<256x27xbf16, #tpu.memory_space<vmem>>, %arg2: memref<27x128xbf16, #tpu.memory_space<vmem>>, %arg3: memref<1x128xf32, #tpu.memory_space<vmem>>, %arg4: memref<256x128xbf16, #tpu.memory_space<vmem>>) attributes {dimension_semantics = [#tpu.dimension_semantics<parallel>], iteration_bounds = array<i64: 2>, scalar_prefetch = 0 : i64, scratch_operands = 0 : i64, tpu.core_type = #tpu.core_type<tc>, window_params = [{transform_indices = @transform_0, window_bounds = array<i64: 256, 27>}, {pipeline_mode = #tpu.pipeline_mode<synchronous>, transform_indices = @transform_1, window_bounds = array<i64: 27, 128>}, {pipeline_mode = #tpu.pipeline_mode<synchronous>, transform_indices = @transform_2, window_bounds = array<i64: 1, 128>}, {transform_indices = @transform_3, window_bounds = array<i64: 256, 128>}]} {
    %c0 = arith.constant 0 : index
    %c0_0 = arith.constant 0 : index
    %0 = vector.load %arg1[%c0, %c0_0] : memref<256x27xbf16, #tpu.memory_space<vmem>>, vector<256x27xbf16>
    %c0_1 = arith.constant 0 : index
    %c0_2 = arith.constant 0 : index
    %1 = vector.load %arg2[%c0_1, %c0_2] : memref<27x128xbf16, #tpu.memory_space<vmem>>, vector<27x128xbf16>
    %cst = arith.constant dense<0.000000e+00> : vector<256x128xf32>
    %2 = tpu.matmul %0, %1, %cst {dimension_numbers = #tpu.dot_dimension_numbers<[1], [0], [0], [1], [0, 0, 1, 1], [], []>} : vector<256x27xbf16>, vector<27x128xbf16>, vector<256x128xf32> -> vector<256x128xf32>
    %c0_3 = arith.constant 0 : index
    %c0_4 = arith.constant 0 : index
    %3 = vector.load %arg3[%c0_3, %c0_4] : memref<1x128xf32, #tpu.memory_space<vmem>>, vector<1x128xf32>
    %4 = vector.broadcast %3 : vector<1x128xf32> to vector<256x128xf32>
    %5 = arith.addf %2, %4 : vector<256x128xf32>
    %cst_5 = arith.constant 0.000000e+00 : f32
    %6 = vector.broadcast %cst_5 : f32 to vector<256x128xf32>
    %7 = arith.maximumf %5, %6 : vector<256x128xf32>
    %8 = arith.truncf %7 : vector<256x128xf32> to vector<256x128xbf16>
    %c0_6 = arith.constant 0 : index
    %c0_7 = arith.constant 0 : index
    %9 = vector.load %arg4[%c0_6, %c0_7] : memref<256x128xbf16, #tpu.memory_space<vmem>>, vector<256x128xbf16>
    tpu.vector_store %arg4[%c0_6, %c0_7], %8 {strides = array<i32>} : memref<256x128xbf16, #tpu.memory_space<vmem>>, vector<256x128xbf16>,
    return
  }
  func.func @transform_0(%arg0: i32) -> (i32, i32) {
    %c0_i32 = arith.constant 0 : i32
    %c0_i32_0 = arith.constant 0 : i32
    return %arg0, %c0_i32 : i32, i32
  }
  func.func @transform_1(%arg0: i32) -> (i32, i32) {
    %c0_i32 = arith.constant 0 : i32
    %c0_i32_0 = arith.constant 0 : i32
    %c0_i32_1 = arith.constant 0 : i32
    return %c0_i32, %c0_i32_0 : i32, i32
  }
  func.func @transform_2(%arg0: i32) -> (i32, i32) {
    %c0_i32 = arith.constant 0 : i32
    %c0_i32_0 = arith.constant 0 : i32
    %c0_i32_1 = arith.constant 0 : i32
    return %c0_i32, %c0_i32_0 : i32, i32
  }
  func.func @transform_3(%arg0: i32) -> (i32, i32) {
    %c0_i32 = arith.constant 0 : i32
    %c0_i32_0 = arith.constant 0 : i32
    return %arg0, %c0_i32 : i32, i32
  }
}

module attributes {stable_mosaic.version = 11 : i64} {
  func.func @_embed_kernel(%arg0: i32, %arg1: i32, %arg2: memref<8x2048xbf16, #tpu.memory_space<vmem>>, %arg3: memref<2048x256xi8, #tpu.memory_space<vmem>>, %arg4: memref<1x256xf32, #tpu.memory_space<vmem>>, %arg5: memref<1x256xf32, #tpu.memory_space<vmem>>, %arg6: memref<8x256xf32, #tpu.memory_space<vmem>>, %arg7: memref<8x256xf32, #tpu.memory_space<vmem>>) attributes {dimension_semantics = [#tpu.dimension_semantics<parallel>, #tpu.dimension_semantics<arbitrary>], iteration_bounds = array<i64: 2, 4>, scalar_prefetch = 0 : i64, scratch_operands = 1 : i64, tpu.core_type = #tpu.core_type<tc>, window_params = [{transform_indices = @transform_0, window_bounds = array<i64: 8, 2048>}, {transform_indices = @transform_1, window_bounds = array<i64: 2048, 256>}, {transform_indices = @transform_2, window_bounds = array<i64: 1, 256>}, {transform_indices = @transform_3, window_bounds = array<i64: 1, 256>}, {transform_indices = @transform_4, window_bounds = array<i64: 8, 256>}]} {
    %c0_i32 = arith.constant 0 : i32
    %0 = arith.cmpi eq, %arg1, %c0_i32 : i32
    %1 = arith.extui %0 : i1 to i32
    %c0_i32_0 = arith.constant 0 : i32
    %2 = arith.cmpi ne, %1, %c0_i32_0 : i32
    scf.if %2 {
      %cst_9 = arith.constant 0.000000e+00 : f32
      %13 = vector.broadcast %cst_9 : f32 to vector<8x256xf32>
      %c0_10 = arith.constant 0 : index
      %c0_11 = arith.constant 0 : index
      %14 = vector.load %arg7[%c0_10, %c0_11] : memref<8x256xf32, #tpu.memory_space<vmem>>, vector<8x256xf32>
      tpu.vector_store %arg7[%c0_10, %c0_11], %13 {strides = array<i32>} : memref<8x256xf32, #tpu.memory_space<vmem>>, vector<8x256xf32>,
    } else {
    }
    %c0 = arith.constant 0 : index
    %c0_1 = arith.constant 0 : index
    %3 = vector.load %arg7[%c0, %c0_1] : memref<8x256xf32, #tpu.memory_space<vmem>>, vector<8x256xf32>
    %c0_2 = arith.constant 0 : index
    %c0_3 = arith.constant 0 : index
    %4 = vector.load %arg2[%c0_2, %c0_3] : memref<8x2048xbf16, #tpu.memory_space<vmem>>, vector<8x2048xbf16>
    %c0_4 = arith.constant 0 : index
    %c0_5 = arith.constant 0 : index
    %5 = vector.load %arg3[%c0_4, %c0_5] : memref<2048x256xi8, #tpu.memory_space<vmem>>, vector<2048x256xi8>
    %6 = arith.sitofp %5 : vector<2048x256xi8> to vector<2048x256xbf16>
    %cst = arith.constant dense<0.000000e+00> : vector<8x256xf32>
    %7 = tpu.matmul %4, %6, %cst {dimension_numbers = #tpu.dot_dimension_numbers<[1], [0], [0], [1], [0, 0, 1, 1], [], []>} : vector<8x2048xbf16>, vector<2048x256xbf16>, vector<8x256xf32> -> vector<8x256xf32>
    %8 = arith.addf %3, %7 : vector<8x256xf32>
    %c0_6 = arith.constant 0 : index
    %c0_7 = arith.constant 0 : index
    %9 = vector.load %arg7[%c0_6, %c0_7] : memref<8x256xf32, #tpu.memory_space<vmem>>, vector<8x256xf32>
    tpu.vector_store %arg7[%c0_6, %c0_7], %8 {strides = array<i32>} : memref<8x256xf32, #tpu.memory_space<vmem>>, vector<8x256xf32>,
    %c3_i32 = arith.constant 3 : i32
    %10 = arith.cmpi eq, %arg1, %c3_i32 : i32
    %11 = arith.extui %10 : i1 to i32
    %c0_i32_8 = arith.constant 0 : i32
    %12 = arith.cmpi ne, %11, %c0_i32_8 : i32
    scf.if %12 {
      %c0_9 = arith.constant 0 : index
      %c0_10 = arith.constant 0 : index
      %13 = vector.load %arg7[%c0_9, %c0_10] : memref<8x256xf32, #tpu.memory_space<vmem>>, vector<8x256xf32>
      %c0_11 = arith.constant 0 : index
      %c0_12 = arith.constant 0 : index
      %14 = vector.load %arg4[%c0_11, %c0_12] : memref<1x256xf32, #tpu.memory_space<vmem>>, vector<1x256xf32>
      %15 = vector.broadcast %14 : vector<1x256xf32> to vector<8x256xf32>
      %16 = arith.mulf %13, %15 : vector<8x256xf32>
      %c0_13 = arith.constant 0 : index
      %c0_14 = arith.constant 0 : index
      %17 = vector.load %arg5[%c0_13, %c0_14] : memref<1x256xf32, #tpu.memory_space<vmem>>, vector<1x256xf32>
      %18 = vector.broadcast %17 : vector<1x256xf32> to vector<8x256xf32>
      %19 = arith.addf %16, %18 : vector<8x256xf32>
      %c0_15 = arith.constant 0 : index
      %c0_16 = arith.constant 0 : index
      %20 = vector.load %arg6[%c0_15, %c0_16] : memref<8x256xf32, #tpu.memory_space<vmem>>, vector<8x256xf32>
      tpu.vector_store %arg6[%c0_15, %c0_16], %19 {strides = array<i32>} : memref<8x256xf32, #tpu.memory_space<vmem>>, vector<8x256xf32>,
    } else {
    }
    return
  }
  func.func @transform_0(%arg0: i32, %arg1: i32) -> (i32, i32) {
    %c0_i32 = arith.constant 0 : i32
    %c0_i32_0 = arith.constant 0 : i32
    return %c0_i32, %arg1 : i32, i32
  }
  func.func @transform_1(%arg0: i32, %arg1: i32) -> (i32, i32) {
    %c0_i32 = arith.constant 0 : i32
    return %arg1, %arg0 : i32, i32
  }
  func.func @transform_2(%arg0: i32, %arg1: i32) -> (i32, i32) {
    %c0_i32 = arith.constant 0 : i32
    %c0_i32_0 = arith.constant 0 : i32
    return %c0_i32, %arg0 : i32, i32
  }
  func.func @transform_3(%arg0: i32, %arg1: i32) -> (i32, i32) {
    %c0_i32 = arith.constant 0 : i32
    %c0_i32_0 = arith.constant 0 : i32
    return %c0_i32, %arg0 : i32, i32
  }
  func.func @transform_4(%arg0: i32, %arg1: i32) -> (i32, i32) {
    %c0_i32 = arith.constant 0 : i32
    %c0_i32_0 = arith.constant 0 : i32
    return %c0_i32, %arg0 : i32, i32
  }
}

module attributes {stable_mosaic.version = 11 : i64} {
  func.func @_gru_head_kernel(%arg0: i32, %arg1: memref<4x2x512xf32, #tpu.memory_space<vmem>>, %arg2: memref<512x384xbf16, #tpu.memory_space<vmem>>, %arg3: memref<1x384xf32, #tpu.memory_space<vmem>>, %arg4: memref<2x128x384xbf16, #tpu.memory_space<vmem>>, %arg5: memref<2x1x384xf32, #tpu.memory_space<vmem>>, %arg6: memref<3x128x384xbf16, #tpu.memory_space<vmem>>, %arg7: memref<3x1x384xf32, #tpu.memory_space<vmem>>, %arg8: memref<128x128xbf16, #tpu.memory_space<vmem>>, %arg9: memref<1x128xf32, #tpu.memory_space<vmem>>, %arg10: memref<128x2xbf16, #tpu.memory_space<vmem>>, %arg11: memref<1x2xf32, #tpu.memory_space<vmem>>, %arg12: memref<2x2xf32, #tpu.memory_space<vmem>>, %arg13: memref<4x2x384xf32, #tpu.memory_space<vmem>>) attributes {dimension_semantics = [#tpu.dimension_semantics<arbitrary>], iteration_bounds = array<i64: 1>, scalar_prefetch = 0 : i64, scratch_operands = 1 : i64, tpu.core_type = #tpu.core_type<tc>, window_params = [{pipeline_mode = #tpu.pipeline_mode<synchronous>, transform_indices = @transform_0, window_bounds = array<i64: 4, 2, 512>}, {pipeline_mode = #tpu.pipeline_mode<synchronous>, transform_indices = @transform_1, window_bounds = array<i64: 512, 384>}, {pipeline_mode = #tpu.pipeline_mode<synchronous>, transform_indices = @transform_2, window_bounds = array<i64: 1, 384>}, {pipeline_mode = #tpu.pipeline_mode<synchronous>, transform_indices = @transform_3, window_bounds = array<i64: 2, 128, 384>}, {pipeline_mode = #tpu.pipeline_mode<synchronous>, transform_indices = @transform_4, window_bounds = array<i64: 2, 1, 384>}, {pipeline_mode = #tpu.pipeline_mode<synchronous>, transform_indices = @transform_5, window_bounds = array<i64: 3, 128, 384>}, {pipeline_mode = #tpu.pipeline_mode<synchronous>, transform_indices = @transform_6, window_bounds = array<i64: 3, 1, 384>}, {pipeline_mode = #tpu.pipeline_mode<synchronous>, transform_indices = @transform_7, window_bounds = array<i64: 128, 128>}, {pipeline_mode = #tpu.pipeline_mode<synchronous>, transform_indices = @transform_8, window_bounds = array<i64: 1, 128>}, {pipeline_mode = #tpu.pipeline_mode<synchronous>, transform_indices = @transform_9, window_bounds = array<i64: 128, 2>}, {pipeline_mode = #tpu.pipeline_mode<synchronous>, transform_indices = @transform_10, window_bounds = array<i64: 1, 2>}, {pipeline_mode = #tpu.pipeline_mode<synchronous>, transform_indices = @transform_11, window_bounds = array<i64: 2, 2>}]} {
    %c0 = arith.constant 0 : index
    %c0_0 = arith.constant 0 : index
    %c0_1 = arith.constant 0 : index
    %0 = vector.load %arg1[%c0, %c0_0, %c0_1] : memref<4x2x512xf32, #tpu.memory_space<vmem>>, vector<1x2x512xf32>
    %1 = vector.shape_cast %0 : vector<1x2x512xf32> to vector<2x512xf32>
    %2 = arith.truncf %1 : vector<2x512xf32> to vector<2x512xbf16>
    %c0_2 = arith.constant 0 : index
    %c0_3 = arith.constant 0 : index
    %3 = vector.load %arg2[%c0_2, %c0_3] : memref<512x384xbf16, #tpu.memory_space<vmem>>, vector<512x384xbf16>
    %cst = arith.constant dense<0.000000e+00> : vector<2x384xf32>
    %4 = tpu.matmul %2, %3, %cst {dimension_numbers = #tpu.dot_dimension_numbers<[1], [0], [0], [1], [0, 0, 1, 1], [], []>} : vector<2x512xbf16>, vector<512x384xbf16>, vector<2x384xf32> -> vector<2x384xf32>
    %c0_4 = arith.constant 0 : index
    %c0_5 = arith.constant 0 : index
    %5 = vector.load %arg3[%c0_4, %c0_5] : memref<1x384xf32, #tpu.memory_space<vmem>>, vector<1x384xf32>
    %6 = vector.broadcast %5 : vector<1x384xf32> to vector<2x384xf32>
    %7 = arith.addf %4, %6 : vector<2x384xf32>
    %c0_6 = arith.constant 0 : index
    %c0_7 = arith.constant 0 : index
    %c0_8 = arith.constant 0 : index
    %8 = vector.load %arg13[%c0_6, %c0_7, %c0_8] : memref<4x2x384xf32, #tpu.memory_space<vmem>>, vector<1x2x384xf32>
    %9 = vector.shape_cast %8 : vector<1x2x384xf32> to vector<2x384xf32>
    %10 = vector.shape_cast %7 : vector<2x384xf32> to vector<1x2x384xf32>
    tpu.vector_store %arg13[%c0_6, %c0_7, %c0_8], %10 {strides = array<i32>} : memref<4x2x384xf32, #tpu.memory_space<vmem>>, vector<1x2x384xf32>,
    %c1 = arith.constant 1 : index
    %c0_9 = arith.constant 0 : index
    %c0_10 = arith.constant 0 : index
    %11 = vector.load %arg1[%c1, %c0_9, %c0_10] : memref<4x2x512xf32, #tpu.memory_space<vmem>>, vector<1x2x512xf32>
    %12 = vector.shape_cast %11 : vector<1x2x512xf32> to vector<2x512xf32>
    %13 = arith.truncf %12 : vector<2x512xf32> to vector<2x512xbf16>
    %c0_11 = arith.constant 0 : index
    %c0_12 = arith.constant 0 : index
    %14 = vector.load %arg2[%c0_11, %c0_12] : memref<512x384xbf16, #tpu.memory_space<vmem>>, vector<512x384xbf16>
    %cst_13 = arith.constant dense<0.000000e+00> : vector<2x384xf32>
    %15 = tpu.matmul %13, %14, %cst_13 {dimension_numbers = #tpu.dot_dimension_numbers<[1], [0], [0], [1], [0, 0, 1, 1], [], []>} : vector<2x512xbf16>, vector<512x384xbf16>, vector<2x384xf32> -> vector<2x384xf32>
    %c0_14 = arith.constant 0 : index
    %c0_15 = arith.constant 0 : index
    %16 = vector.load %arg3[%c0_14, %c0_15] : memref<1x384xf32, #tpu.memory_space<vmem>>, vector<1x384xf32>
    %17 = vector.broadcast %16 : vector<1x384xf32> to vector<2x384xf32>
    %18 = arith.addf %15, %17 : vector<2x384xf32>
    %c1_16 = arith.constant 1 : index
    %c0_17 = arith.constant 0 : index
    %c0_18 = arith.constant 0 : index
    %19 = vector.load %arg13[%c1_16, %c0_17, %c0_18] : memref<4x2x384xf32, #tpu.memory_space<vmem>>, vector<1x2x384xf32>
    %20 = vector.shape_cast %19 : vector<1x2x384xf32> to vector<2x384xf32>
    %21 = vector.shape_cast %18 : vector<2x384xf32> to vector<1x2x384xf32>
    tpu.vector_store %arg13[%c1_16, %c0_17, %c0_18], %21 {strides = array<i32>} : memref<4x2x384xf32, #tpu.memory_space<vmem>>, vector<1x2x384xf32>,
    %c2 = arith.constant 2 : index
    %c0_19 = arith.constant 0 : index
    %c0_20 = arith.constant 0 : index
    %22 = vector.load %arg1[%c2, %c0_19, %c0_20] : memref<4x2x512xf32, #tpu.memory_space<vmem>>, vector<1x2x512xf32>
    %23 = vector.shape_cast %22 : vector<1x2x512xf32> to vector<2x512xf32>
    %24 = arith.truncf %23 : vector<2x512xf32> to vector<2x512xbf16>
    %c0_21 = arith.constant 0 : index
    %c0_22 = arith.constant 0 : index
    %25 = vector.load %arg2[%c0_21, %c0_22] : memref<512x384xbf16, #tpu.memory_space<vmem>>, vector<512x384xbf16>
    %cst_23 = arith.constant dense<0.000000e+00> : vector<2x384xf32>
    %26 = tpu.matmul %24, %25, %cst_23 {dimension_numbers = #tpu.dot_dimension_numbers<[1], [0], [0], [1], [0, 0, 1, 1], [], []>} : vector<2x512xbf16>, vector<512x384xbf16>, vector<2x384xf32> -> vector<2x384xf32>
    %c0_24 = arith.constant 0 : index
    %c0_25 = arith.constant 0 : index
    %27 = vector.load %arg3[%c0_24, %c0_25] : memref<1x384xf32, #tpu.memory_space<vmem>>, vector<1x384xf32>
    %28 = vector.broadcast %27 : vector<1x384xf32> to vector<2x384xf32>
    %29 = arith.addf %26, %28 : vector<2x384xf32>
    %c2_26 = arith.constant 2 : index
    %c0_27 = arith.constant 0 : index
    %c0_28 = arith.constant 0 : index
    %30 = vector.load %arg13[%c2_26, %c0_27, %c0_28] : memref<4x2x384xf32, #tpu.memory_space<vmem>>, vector<1x2x384xf32>
    %31 = vector.shape_cast %30 : vector<1x2x384xf32> to vector<2x384xf32>
    %32 = vector.shape_cast %29 : vector<2x384xf32> to vector<1x2x384xf32>
    tpu.vector_store %arg13[%c2_26, %c0_27, %c0_28], %32 {strides = array<i32>} : memref<4x2x384xf32, #tpu.memory_space<vmem>>, vector<1x2x384xf32>,
    %c3 = arith.constant 3 : index
    %c0_29 = arith.constant 0 : index
    %c0_30 = arith.constant 0 : index
    %33 = vector.load %arg1[%c3, %c0_29, %c0_30] : memref<4x2x512xf32, #tpu.memory_space<vmem>>, vector<1x2x512xf32>
    %34 = vector.shape_cast %33 : vector<1x2x512xf32> to vector<2x512xf32>
    %35 = arith.truncf %34 : vector<2x512xf32> to vector<2x512xbf16>
    %c0_31 = arith.constant 0 : index
    %c0_32 = arith.constant 0 : index
    %36 = vector.load %arg2[%c0_31, %c0_32] : memref<512x384xbf16, #tpu.memory_space<vmem>>, vector<512x384xbf16>
    %cst_33 = arith.constant dense<0.000000e+00> : vector<2x384xf32>
    %37 = tpu.matmul %35, %36, %cst_33 {dimension_numbers = #tpu.dot_dimension_numbers<[1], [0], [0], [1], [0, 0, 1, 1], [], []>} : vector<2x512xbf16>, vector<512x384xbf16>, vector<2x384xf32> -> vector<2x384xf32>
    %c0_34 = arith.constant 0 : index
    %c0_35 = arith.constant 0 : index
    %38 = vector.load %arg3[%c0_34, %c0_35] : memref<1x384xf32, #tpu.memory_space<vmem>>, vector<1x384xf32>
    %39 = vector.broadcast %38 : vector<1x384xf32> to vector<2x384xf32>
    %40 = arith.addf %37, %39 : vector<2x384xf32>
    %c3_36 = arith.constant 3 : index
    %c0_37 = arith.constant 0 : index
    %c0_38 = arith.constant 0 : index
    %41 = vector.load %arg13[%c3_36, %c0_37, %c0_38] : memref<4x2x384xf32, #tpu.memory_space<vmem>>, vector<1x2x384xf32>
    %42 = vector.shape_cast %41 : vector<1x2x384xf32> to vector<2x384xf32>
    %43 = vector.shape_cast %40 : vector<2x384xf32> to vector<1x2x384xf32>
    tpu.vector_store %arg13[%c3_36, %c0_37, %c0_38], %43 {strides = array<i32>} : memref<4x2x384xf32, #tpu.memory_space<vmem>>, vector<1x2x384xf32>,
    %cst_39 = arith.constant 0.000000e+00 : f32
    %44 = vector.broadcast %cst_39 : f32 to vector<3x2x128xf32>
    %c0_i32 = arith.constant 0 : i32
    %c4_i32 = arith.constant 4 : i32
    %45 = arith.addi %c0_i32, %c4_i32 : i32
    %c1_i32 = arith.constant 1 : i32
    %46 = scf.for %arg14 = %c0_i32 to %45 step %c1_i32 iter_args(%arg15 = %44) -> (vector<3x2x128xf32>)  : i32 {
      %64 = arith.truncf %arg15 : vector<3x2x128xf32> to vector<3x2x128xbf16>
      %c0_54 = arith.constant 0 : index
      %c0_55 = arith.constant 0 : index
      %c0_56 = arith.constant 0 : index
      %65 = vector.load %arg6[%c0_54, %c0_55, %c0_56] : memref<3x128x384xbf16, #tpu.memory_space<vmem>>, vector<3x128x384xbf16>
      "tpu.trace_start"() <{level = 10 : i32, message = "lbh,lhg->lbg"}> : () -> ()
      %cst_57 = arith.constant dense<0.000000e+00> : vector<3x2x384xf32>
      %66 = tpu.matmul %64, %65, %cst_57 {dimension_numbers = #tpu.dot_dimension_numbers<[2], [1], [1], [2], [0, 0, 0, 1, 1, 2], [0], [0]>} : vector<3x2x128xbf16>, vector<3x128x384xbf16>, vector<3x2x384xf32> -> vector<3x2x384xf32>
      "tpu.trace_stop"() : () -> ()
      %c0_58 = arith.constant 0 : index
      %c0_59 = arith.constant 0 : index
      %c0_60 = arith.constant 0 : index
      %67 = vector.load %arg7[%c0_58, %c0_59, %c0_60] : memref<3x1x384xf32, #tpu.memory_space<vmem>>, vector<3x1x384xf32>
      %68 = vector.broadcast %67 : vector<3x1x384xf32> to vector<3x2x384xf32>
      %69 = arith.addf %66, %68 : vector<3x2x384xf32>
      %70 = arith.index_cast %arg14 : i32 to index
      %c0_61 = arith.constant 0 : index
      %c0_62 = arith.constant 0 : index
      %71 = vector.load %arg13[%70, %c0_61, %c0_62] : memref<4x2x384xf32, #tpu.memory_space<vmem>>, vector<1x2x384xf32>
      %72 = vector.shape_cast %71 : vector<1x2x384xf32> to vector<2x384xf32>
      %73 = vector.extract_strided_slice %69 {offsets = [0, 0, 0], sizes = [1, 2, 384], strides = [1, 1, 1]} : vector<3x2x384xf32> to vector<1x2x384xf32>
      %74 = vector.shape_cast %73 : vector<1x2x384xf32> to vector<2x384xf32>
      %75 = vector.extract_strided_slice %arg15 {offsets = [0, 0, 0], sizes = [1, 2, 128], strides = [1, 1, 1]} : vector<3x2x128xf32> to vector<1x2x128xf32>
      %76 = vector.shape_cast %75 : vector<1x2x128xf32> to vector<2x128xf32>
      %77 = vector.extract_strided_slice %72 {offsets = [0, 0], sizes = [2, 128], strides = [1, 1]} : vector<2x384xf32> to vector<2x128xf32>
      %78 = vector.extract_strided_slice %74 {offsets = [0, 0], sizes = [2, 128], strides = [1, 1]} : vector<2x384xf32> to vector<2x128xf32>
      %79 = arith.addf %77, %78 : vector<2x128xf32>
      %80 = arith.negf %79 : vector<2x128xf32>
      %81 = math.exp %80 : vector<2x128xf32>
      %cst_63 = arith.constant 1.000000e+00 : f32
      %82 = vector.broadcast %cst_63 : f32 to vector<2x128xf32>
      %83 = arith.addf %82, %81 : vector<2x128xf32>
      %84 = arith.divf %82, %83 : vector<2x128xf32>
      %85 = vector.extract_strided_slice %72 {offsets = [0, 128], sizes = [2, 128], strides = [1, 1]} : vector<2x384xf32> to vector<2x128xf32>
      %86 = vector.extract_strided_slice %74 {offsets = [0, 128], sizes = [2, 128], strides = [1, 1]} : vector<2x384xf32> to vector<2x128xf32>
      %87 = arith.addf %85, %86 : vector<2x128xf32>
      %88 = arith.negf %87 : vector<2x128xf32>
      %89 = math.exp %88 : vector<2x128xf32>
      %cst_64 = arith.constant 1.000000e+00 : f32
      %90 = vector.broadcast %cst_64 : f32 to vector<2x128xf32>
      %91 = arith.addf %90, %89 : vector<2x128xf32>
      %92 = arith.divf %90, %91 : vector<2x128xf32>
      %93 = vector.extract_strided_slice %72 {offsets = [0, 256], sizes = [2, 128], strides = [1, 1]} : vector<2x384xf32> to vector<2x128xf32>
      %94 = vector.extract_strided_slice %74 {offsets = [0, 256], sizes = [2, 128], strides = [1, 1]} : vector<2x384xf32> to vector<2x128xf32>
      %95 = arith.mulf %84, %94 : vector<2x128xf32>
      %96 = arith.addf %93, %95 : vector<2x128xf32>
      %97 = math.tanh %96 : vector<2x128xf32>
      %cst_65 = arith.constant 1.000000e+00 : f32
      %98 = vector.broadcast %cst_65 : f32 to vector<2x128xf32>
      %99 = arith.subf %98, %92 : vector<2x128xf32>
      %100 = arith.mulf %99, %97 : vector<2x128xf32>
      %101 = arith.mulf %92, %76 : vector<2x128xf32>
      %102 = arith.addf %100, %101 : vector<2x128xf32>
      %103 = arith.truncf %102 : vector<2x128xf32> to vector<2x128xbf16>
      %c0_66 = arith.constant 0 : index
      %c0_67 = arith.constant 0 : index
      %c0_68 = arith.constant 0 : index
      %104 = vector.load %arg4[%c0_66, %c0_67, %c0_68] : memref<2x128x384xbf16, #tpu.memory_space<vmem>>, vector<1x128x384xbf16>
      %105 = vector.shape_cast %104 : vector<1x128x384xbf16> to vector<128x384xbf16>
      %cst_69 = arith.constant dense<0.000000e+00> : vector<2x384xf32>
      %106 = tpu.matmul %103, %105, %cst_69 {dimension_numbers = #tpu.dot_dimension_numbers<[1], [0], [0], [1], [0, 0, 1, 1], [], []>} : vector<2x128xbf16>, vector<128x384xbf16>, vector<2x384xf32> -> vector<2x384xf32>
      %c0_70 = arith.constant 0 : index
      %c0_71 = arith.constant 0 : index
      %c0_72 = arith.constant 0 : index
      %107 = vector.load %arg5[%c0_70, %c0_71, %c0_72] : memref<2x1x384xf32, #tpu.memory_space<vmem>>, vector<1x1x384xf32>
      %108 = vector.shape_cast %107 : vector<1x1x384xf32> to vector<1x384xf32>
      %109 = vector.broadcast %108 : vector<1x384xf32> to vector<2x384xf32>
      %110 = arith.addf %106, %109 : vector<2x384xf32>
      %111 = vector.extract_strided_slice %69 {offsets = [1, 0, 0], sizes = [1, 2, 384], strides = [1, 1, 1]} : vector<3x2x384xf32> to vector<1x2x384xf32>
      %112 = vector.shape_cast %111 : vector<1x2x384xf32> to vector<2x384xf32>
      %113 = vector.extract_strided_slice %arg15 {offsets = [1, 0, 0], sizes = [1, 2, 128], strides = [1, 1, 1]} : vector<3x2x128xf32> to vector<1x2x128xf32>
      %114 = vector.shape_cast %113 : vector<1x2x128xf32> to vector<2x128xf32>
      %115 = vector.extract_strided_slice %110 {offsets = [0, 0], sizes = [2, 128], strides = [1, 1]} : vector<2x384xf32> to vector<2x128xf32>
      %116 = vector.extract_strided_slice %112 {offsets = [0, 0], sizes = [2, 128], strides = [1, 1]} : vector<2x384xf32> to vector<2x128xf32>
      %117 = arith.addf %115, %116 : vector<2x128xf32>
      %118 = arith.negf %117 : vector<2x128xf32>
      %119 = math.exp %118 : vector<2x128xf32>
      %cst_73 = arith.constant 1.000000e+00 : f32
      %120 = vector.broadcast %cst_73 : f32 to vector<2x128xf32>
      %121 = arith.addf %120, %119 : vector<2x128xf32>
      %122 = arith.divf %120, %121 : vector<2x128xf32>
      %123 = vector.extract_strided_slice %110 {offsets = [0, 128], sizes = [2, 128], strides = [1, 1]} : vector<2x384xf32> to vector<2x128xf32>
      %124 = vector.extract_strided_slice %112 {offsets = [0, 128], sizes = [2, 128], strides = [1, 1]} : vector<2x384xf32> to vector<2x128xf32>
      %125 = arith.addf %123, %124 : vector<2x128xf32>
      %126 = arith.negf %125 : vector<2x128xf32>
      %127 = math.exp %126 : vector<2x128xf32>
      %cst_74 = arith.constant 1.000000e+00 : f32
      %128 = vector.broadcast %cst_74 : f32 to vector<2x128xf32>
      %129 = arith.addf %128, %127 : vector<2x128xf32>
      %130 = arith.divf %128, %129 : vector<2x128xf32>
      %131 = vector.extract_strided_slice %110 {offsets = [0, 256], sizes = [2, 128], strides = [1, 1]} : vector<2x384xf32> to vector<2x128xf32>
      %132 = vector.extract_strided_slice %112 {offsets = [0, 256], sizes = [2, 128], strides = [1, 1]} : vector<2x384xf32> to vector<2x128xf32>
      %133 = arith.mulf %122, %132 : vector<2x128xf32>
      %134 = arith.addf %131, %133 : vector<2x128xf32>
      %135 = math.tanh %134 : vector<2x128xf32>
      %cst_75 = arith.constant 1.000000e+00 : f32
      %136 = vector.broadcast %cst_75 : f32 to vector<2x128xf32>
      %137 = arith.subf %136, %130 : vector<2x128xf32>
      %138 = arith.mulf %137, %135 : vector<2x128xf32>
      %139 = arith.mulf %130, %114 : vector<2x128xf32>
      %140 = arith.addf %138, %139 : vector<2x128xf32>
      %141 = arith.truncf %140 : vector<2x128xf32> to vector<2x128xbf16>
      %c1_76 = arith.constant 1 : index
      %c0_77 = arith.constant 0 : index
      %c0_78 = arith.constant 0 : index
      %142 = vector.load %arg4[%c1_76, %c0_77, %c0_78] : memref<2x128x384xbf16, #tpu.memory_space<vmem>>, vector<1x128x384xbf16>
      %143 = vector.shape_cast %142 : vector<1x128x384xbf16> to vector<128x384xbf16>
      %cst_79 = arith.constant dense<0.000000e+00> : vector<2x384xf32>
      %144 = tpu.matmul %141, %143, %cst_79 {dimension_numbers = #tpu.dot_dimension_numbers<[1], [0], [0], [1], [0, 0, 1, 1], [], []>} : vector<2x128xbf16>, vector<128x384xbf16>, vector<2x384xf32> -> vector<2x384xf32>
      %c1_80 = arith.constant 1 : index
      %c0_81 = arith.constant 0 : index
      %c0_82 = arith.constant 0 : index
      %145 = vector.load %arg5[%c1_80, %c0_81, %c0_82] : memref<2x1x384xf32, #tpu.memory_space<vmem>>, vector<1x1x384xf32>
      %146 = vector.shape_cast %145 : vector<1x1x384xf32> to vector<1x384xf32>
      %147 = vector.broadcast %146 : vector<1x384xf32> to vector<2x384xf32>
      %148 = arith.addf %144, %147 : vector<2x384xf32>
      %149 = vector.extract_strided_slice %69 {offsets = [2, 0, 0], sizes = [1, 2, 384], strides = [1, 1, 1]} : vector<3x2x384xf32> to vector<1x2x384xf32>
      %150 = vector.shape_cast %149 : vector<1x2x384xf32> to vector<2x384xf32>
      %151 = vector.extract_strided_slice %arg15 {offsets = [2, 0, 0], sizes = [1, 2, 128], strides = [1, 1, 1]} : vector<3x2x128xf32> to vector<1x2x128xf32>
      %152 = vector.shape_cast %151 : vector<1x2x128xf32> to vector<2x128xf32>
      %153 = vector.extract_strided_slice %148 {offsets = [0, 0], sizes = [2, 128], strides = [1, 1]} : vector<2x384xf32> to vector<2x128xf32>
      %154 = vector.extract_strided_slice %150 {offsets = [0, 0], sizes = [2, 128], strides = [1, 1]} : vector<2x384xf32> to vector<2x128xf32>
      %155 = arith.addf %153, %154 : vector<2x128xf32>
      %156 = arith.negf %155 : vector<2x128xf32>
      %157 = math.exp %156 : vector<2x128xf32>
      %cst_83 = arith.constant 1.000000e+00 : f32
      %158 = vector.broadcast %cst_83 : f32 to vector<2x128xf32>
      %159 = arith.addf %158, %157 : vector<2x128xf32>
      %160 = arith.divf %158, %159 : vector<2x128xf32>
      %161 = vector.extract_strided_slice %148 {offsets = [0, 128], sizes = [2, 128], strides = [1, 1]} : vector<2x384xf32> to vector<2x128xf32>
      %162 = vector.extract_strided_slice %150 {offsets = [0, 128], sizes = [2, 128], strides = [1, 1]} : vector<2x384xf32> to vector<2x128xf32>
      %163 = arith.addf %161, %162 : vector<2x128xf32>
      %164 = arith.negf %163 : vector<2x128xf32>
      %165 = math.exp %164 : vector<2x128xf32>
      %cst_84 = arith.constant 1.000000e+00 : f32
      %166 = vector.broadcast %cst_84 : f32 to vector<2x128xf32>
      %167 = arith.addf %166, %165 : vector<2x128xf32>
      %168 = arith.divf %166, %167 : vector<2x128xf32>
      %169 = vector.extract_strided_slice %148 {offsets = [0, 256], sizes = [2, 128], strides = [1, 1]} : vector<2x384xf32> to vector<2x128xf32>
      %170 = vector.extract_strided_slice %150 {offsets = [0, 256], sizes = [2, 128], strides = [1, 1]} : vector<2x384xf32> to vector<2x128xf32>
      %171 = arith.mulf %160, %170 : vector<2x128xf32>
      %172 = arith.addf %169, %171 : vector<2x128xf32>
      %173 = math.tanh %172 : vector<2x128xf32>
      %cst_85 = arith.constant 1.000000e+00 : f32
      %174 = vector.broadcast %cst_85 : f32 to vector<2x128xf32>
      %175 = arith.subf %174, %168 : vector<2x128xf32>
      %176 = arith.mulf %175, %173 : vector<2x128xf32>
      %177 = arith.mulf %168, %152 : vector<2x128xf32>
      %178 = arith.addf %176, %177 : vector<2x128xf32>
      %179 = vector.shape_cast %102 : vector<2x128xf32> to vector<1x2x128xf32>
      %180 = vector.shape_cast %140 : vector<2x128xf32> to vector<1x2x128xf32>
      %181 = vector.shape_cast %178 : vector<2x128xf32> to vector<1x2x128xf32>
      %182 = tpu.concatenate %179, %180, %181 in 0 : vector<1x2x128xf32>, vector<1x2x128xf32>, vector<1x2x128xf32> -> vector<3x2x128xf32>
      scf.yield %182 : vector<3x2x128xf32>
    }
    %c4_i32_40 = arith.constant 4 : i32
    %47 = vector.extract_strided_slice %46 {offsets = [2, 0, 0], sizes = [1, 2, 128], strides = [1, 1, 1]} : vector<3x2x128xf32> to vector<1x2x128xf32>
    %48 = vector.shape_cast %47 : vector<1x2x128xf32> to vector<2x128xf32>
    %49 = arith.truncf %48 : vector<2x128xf32> to vector<2x128xbf16>
    %c0_41 = arith.constant 0 : index
    %c0_42 = arith.constant 0 : index
    %50 = vector.load %arg8[%c0_41, %c0_42] : memref<128x128xbf16, #tpu.memory_space<vmem>>, vector<128x128xbf16>
    %cst_43 = arith.constant dense<0.000000e+00> : vector<2x128xf32>
    %51 = tpu.matmul %49, %50, %cst_43 {dimension_numbers = #tpu.dot_dimension_numbers<[1], [0], [0], [1], [0, 0, 1, 1], [], []>} : vector<2x128xbf16>, vector<128x128xbf16>, vector<2x128xf32> -> vector<2x128xf32>
    %c0_44 = arith.constant 0 : index
    %c0_45 = arith.constant 0 : index
    %52 = vector.load %arg9[%c0_44, %c0_45] : memref<1x128xf32, #tpu.memory_space<vmem>>, vector<1x128xf32>
    %53 = vector.broadcast %52 : vector<1x128xf32> to vector<2x128xf32>
    %54 = arith.addf %51, %53 : vector<2x128xf32>
    %cst_46 = arith.constant 0.000000e+00 : f32
    %55 = vector.broadcast %cst_46 : f32 to vector<2x128xf32>
    %56 = arith.maximumf %54, %55 : vector<2x128xf32>
    %57 = arith.truncf %56 : vector<2x128xf32> to vector<2x128xbf16>
    %c0_47 = arith.constant 0 : index
    %c0_48 = arith.constant 0 : index
    %58 = vector.load %arg10[%c0_47, %c0_48] : memref<128x2xbf16, #tpu.memory_space<vmem>>, vector<128x2xbf16>
    %cst_49 = arith.constant dense<0.000000e+00> : vector<2x2xf32>
    %59 = tpu.matmul %57, %58, %cst_49 {dimension_numbers = #tpu.dot_dimension_numbers<[1], [0], [0], [1], [0, 0, 1, 1], [], []>} : vector<2x128xbf16>, vector<128x2xbf16>, vector<2x2xf32> -> vector<2x2xf32>
    %c0_50 = arith.constant 0 : index
    %c0_51 = arith.constant 0 : index
    %60 = vector.load %arg11[%c0_50, %c0_51] : memref<1x2xf32, #tpu.memory_space<vmem>>, vector<1x2xf32>
    %61 = vector.broadcast %60 : vector<1x2xf32> to vector<2x2xf32>
    %62 = arith.addf %59, %61 : vector<2x2xf32>
    %c0_52 = arith.constant 0 : index
    %c0_53 = arith.constant 0 : index
    %63 = vector.load %arg12[%c0_52, %c0_53] : memref<2x2xf32, #tpu.memory_space<vmem>>, vector<2x2xf32>
    tpu.vector_store %arg12[%c0_52, %c0_53], %62 {strides = array<i32>} : memref<2x2xf32, #tpu.memory_space<vmem>>, vector<2x2xf32>,
    return
  }
  func.func @transform_0(%arg0: i32) -> (i32, i32, i32) {
    %c0_i32 = arith.constant 0 : i32
    %c0_i32_0 = arith.constant 0 : i32
    %c0_i32_1 = arith.constant 0 : i32
    %c0_i32_2 = arith.constant 0 : i32
    return %c0_i32, %c0_i32_0, %c0_i32_1 : i32, i32, i32
  }
  func.func @transform_1(%arg0: i32) -> (i32, i32) {
    %c0_i32 = arith.constant 0 : i32
    %c0_i32_0 = arith.constant 0 : i32
    %c0_i32_1 = arith.constant 0 : i32
    return %c0_i32, %c0_i32_0 : i32, i32
  }
  func.func @transform_2(%arg0: i32) -> (i32, i32) {
    %c0_i32 = arith.constant 0 : i32
    %c0_i32_0 = arith.constant 0 : i32
    %c0_i32_1 = arith.constant 0 : i32
    return %c0_i32, %c0_i32_0 : i32, i32
  }
  func.func @transform_3(%arg0: i32) -> (i32, i32, i32) {
    %c0_i32 = arith.constant 0 : i32
    %c0_i32_0 = arith.constant 0 : i32
    %c0_i32_1 = arith.constant 0 : i32
    %c0_i32_2 = arith.constant 0 : i32
    return %c0_i32, %c0_i32_0, %c0_i32_1 : i32, i32, i32
  }
  func.func @transform_4(%arg0: i32) -> (i32, i32, i32) {
    %c0_i32 = arith.constant 0 : i32
    %c0_i32_0 = arith.constant 0 : i32
    %c0_i32_1 = arith.constant 0 : i32
    %c0_i32_2 = arith.constant 0 : i32
    return %c0_i32, %c0_i32_0, %c0_i32_1 : i32, i32, i32
  }
  func.func @transform_5(%arg0: i32) -> (i32, i32, i32) {
    %c0_i32 = arith.constant 0 : i32
    %c0_i32_0 = arith.constant 0 : i32
    %c0_i32_1 = arith.constant 0 : i32
    %c0_i32_2 = arith.constant 0 : i32
    return %c0_i32, %c0_i32_0, %c0_i32_1 : i32, i32, i32
  }
  func.func @transform_6(%arg0: i32) -> (i32, i32, i32) {
    %c0_i32 = arith.constant 0 : i32
    %c0_i32_0 = arith.constant 0 : i32
    %c0_i32_1 = arith.constant 0 : i32
    %c0_i32_2 = arith.constant 0 : i32
    return %c0_i32, %c0_i32_0, %c0_i32_1 : i32, i32, i32
  }
  func.func @transform_7(%arg0: i32) -> (i32, i32) {
    %c0_i32 = arith.constant 0 : i32
    %c0_i32_0 = arith.constant 0 : i32
    %c0_i32_1 = arith.constant 0 : i32
    return %c0_i32, %c0_i32_0 : i32, i32
  }
  func.func @transform_8(%arg0: i32) -> (i32, i32) {
    %c0_i32 = arith.constant 0 : i32
    %c0_i32_0 = arith.constant 0 : i32
    %c0_i32_1 = arith.constant 0 : i32
    return %c0_i32, %c0_i32_0 : i32, i32
  }
  func.func @transform_9(%arg0: i32) -> (i32, i32) {
    %c0_i32 = arith.constant 0 : i32
    %c0_i32_0 = arith.constant 0 : i32
    %c0_i32_1 = arith.constant 0 : i32
    return %c0_i32, %c0_i32_0 : i32, i32
  }
  func.func @transform_10(%arg0: i32) -> (i32, i32) {
    %c0_i32 = arith.constant 0 : i32
    %c0_i32_0 = arith.constant 0 : i32
    %c0_i32_1 = arith.constant 0 : i32
    return %c0_i32, %c0_i32_0 : i32, i32
  }
  func.func @transform_11(%arg0: i32) -> (i32, i32) {
    %c0_i32 = arith.constant 0 : i32
    %c0_i32_0 = arith.constant 0 : i32
    %c0_i32_1 = arith.constant 0 : i32
    return %c0_i32, %c0_i32_0 : i32, i32
  }
}

</mosaic_0001>

<llo_original>
// kernel: cnn_net_forward.3
$region0: #{cnn_net_forward.3}
  #allocation0 [shape = 'u32[]', space=smem, size = 0x4, offset = 0x4, fixed_abs, tag = 'smem constant byte address 0x4 - core index']
  #allocation1 [shape = 'u32[144,128]{1,0:T(1,128)}', space=vmem, size = 0x12000, scoped, tag = 'internal scratch']
  %s0 = inlined_call_operand.vmem [shape: bf16[512,27], index: 0, kind: input, shape index: {}]
  %s1 = inlined_call_operand.hbm [shape: bf16[27,128], index: 1, kind: input, shape index: {}]
  %s2 = inlined_call_operand.hbm [shape: f32[1,128], index: 2, kind: input, shape index: {}]
  %s3 = inlined_call_operand.vmem [shape: bf16[512,128], index: 3, kind: output, shape index: {}]
  %s4 = sld [smem:[#allocation0]]
  $region53: #{cnn_net_forward.3} parent=0
    _
  %s6 = ssub.s32 1, %s4
  %s7 = scalar_select 0, %s6, %s4
  $region1: #{cnn_net_forward.3} parent=0
    #allocation2 [shape = 'u8[8192]{0}', space=vmem, size = 0x2000, scoped, tag = 'input window, operand 1, single buffered']
    #allocation3 [shape = 's32[2]{0}', space=sflag, size = 0x8, scoped, tag = 'scoped memory for cnn_net_forward.3']
    #allocation4 [shape = 'u8[512]{0}', space=vmem, size = 0x400, scoped, tag = 'input window, operand 2, single buffered']
    #allocation5 [shape = 's32[1]{0}', space=sflag, size = 0x4, scoped, tag = 'scoped memory for cnn_net_forward.3']
    %8 = vsyncpa [#allocation3], 0
    %9 = vsyncpa [#allocation5], 0
    loop: start=0, step=1, limit=4
    $region2: #{cnn_net_forward.3} parent=1 // loop_pre_header
      _
    $region3: #{cnn_net_forward.3} parent=1 // loop_header
      %s11 = sphi 0, %s15
      %p12 = scmp.ge.s32.totalorder %s11, 4
      %s21 = sphi 0, %s23
      %s24 = sphi 0, %s21
      %s25 = sphi 0, %s24
      %s41 = sphi 0, %s25
      %s45 = sphi 0, %s45
      %s47 = sphi 0, %s45
      %s48 = sphi 0, %s47
      %s62 = sphi 0, %s48
      %s66 = sphi 0, %s66
      %s68 = sphi 0, %s66
      %s69 = sphi 0, %s68
      %s83 = sphi 0, %s69
      %s89 = sphi 0, %s91
      %s92 = sphi 0, %s89
      %s93 = sphi 0, %s92
      %s109 = sphi 0, %s93
    $region4: #{cnn_net_forward.3} parent=1 // loop_header_branch
      %14 = sbr.rel (%p12) target = $region8
    $region5: #{cnn_net_forward.3} parent=1 // loop_body
      %s16 = ssub.s32 %s11, 1
      %s17 = ssub.s32 %s11, 2
      %s18 = sadd.s32 %s11, 1
      %s19 = ssub.s32 %s11, %s18
      %p20 = scmp.eq.s32.totalorder %s19, 0
      %s22 = sadd.s32 %s21, 1
      %s23 = scalar_select %p20, %s21, %s22
      %p26 = pneg %p20
      %p27 = scmp.eq.s32.totalorder %s11, 1
      %p28 = por %p26, %p27
      %p29 = scmp.ne.s32.totalorder %s21, %s24
      %p30 = scmp.eq.s32.totalorder %s11, 0
      %p31 = por %p29, %p30
      %p32 = scmp.ne.s32.totalorder %s21, %s24
      %p33 = scmp.eq.s32.totalorder %s16, 1
      %p34 = por %p32, %p33
      %p35 = scmp.ne.s32.totalorder %s24, %s25
      %p36 = scmp.eq.s32.totalorder %s16, 0
      %p37 = por %p35, %p36
      %p38 = scmp.ne.s32.totalorder %s24, %s25
      %p39 = scmp.eq.s32.totalorder %s17, 1
      %p40 = por %p38, %p39
      %p42 = scmp.ne.s32.totalorder %s25, %s41
      %p43 = scmp.eq.s32.totalorder %s17, 0
      %p44 = por %p42, %p43
      %s46 = sadd.s32 %s45, 1
      %p49 = scmp.eq.s32.totalorder %s11, 1
      %p50 = scmp.ne.s32.totalorder %s45, %s47
      %p51 = scmp.eq.s32.totalorder %s11, 0
      %p52 = por %p50, %p51
      %p53 = scmp.ne.s32.totalorder %s45, %s47
      %p54 = scmp.eq.s32.totalorder %s16, 1
      %p55 = por %p53, %p54
      %p56 = scmp.ne.s32.totalorder %s47, %s48
      %p57 = scmp.eq.s32.totalorder %s16, 0
      %p58 = por %p56, %p57
      %p59 = scmp.ne.s32.totalorder %s47, %s48
      %p60 = scmp.eq.s32.totalorder %s17, 1
      %p61 = por %p59, %p60
      %p63 = scmp.ne.s32.totalorder %s48, %s62
      %p64 = scmp.eq.s32.totalorder %s17, 0
      %p65 = por %p63, %p64
      %s67 = sadd.s32 %s66, 1
      %p70 = scmp.eq.s32.totalorder %s11, 1
      %p71 = scmp.ne.s32.totalorder %s66, %s68
      %p72 = scmp.eq.s32.totalorder %s11, 0
      %p73 = por %p71, %p72
      %p74 = scmp.ne.s32.totalorder %s66, %s68
      %p75 = scmp.eq.s32.totalorder %s16, 1
      %p76 = por %p74, %p75
      %p77 = scmp.ne.s32.totalorder %s68, %s69
      %p78 = scmp.eq.s32.totalorder %s16, 0
      %p79 = por %p77, %p78
      %p80 = scmp.ne.s32.totalorder %s68, %s69
      %p81 = scmp.eq.s32.totalorder %s17, 1
      %p82 = por %p80, %p81
      %p84 = scmp.ne.s32.totalorder %s69, %s83
      %p85 = scmp.eq.s32.totalorder %s17, 0
      %p86 = por %p84, %p85
      %s87 = ssub.s32 %s11, %s18
      %p88 = scmp.eq.s32.totalorder %s87, 0
      %s90 = sadd.s32 %s89, 1
      %s91 = scalar_select %p88, %s89, %s90
      %p94 = pneg %p88
      %p95 = scmp.eq.s32.totalorder %s11, 1
      %p96 = por %p94, %p95
      %p97 = scmp.ne.s32.totalorder %s89, %s92
      %p98 = scmp.eq.s32.totalorder %s11, 0
      %p99 = por %p97, %p98
      %p100 = scmp.ne.s32.totalorder %s89, %s92
      %p101 = scmp.eq.s32.totalorder %s16, 1
      %p102 = por %p100, %p101
      %p103 = scmp.ne.s32.totalorder %s92, %s93
      %p104 = scmp.eq.s32.totalorder %s16, 0
      %p105 = por %p103, %p104
      %p106 = scmp.ne.s32.totalorder %s92, %s93
      %p107 = scmp.eq.s32.totalorder %s17, 1
      %p108 = por %p106, %p107
      %p110 = scmp.ne.s32.totalorder %s93, %s109
      %p111 = scmp.eq.s32.totalorder %s17, 0
      %p112 = por %p110, %p111
      %p113 = scmp.le.s32.totalorder 1, %s11
      %p114 = scmp.lt.s32.totalorder %s11, 3
      %p115 = pnand %p113, %p114
      %p116 = pneg %p115
      // Predicated region
      $region9: #{cnn_net_forward.3} parent=5 // pred_check
        _
      $region10: #{cnn_net_forward.3} parent=5 // pred_check_branch
        %118 = sbr.rel (%p115) target = $region12
      $region11: #{cnn_net_forward.3} parent=5 // pred_region
        %s119 = ssub.s32 %s11, 1
        // Predicated region
        $region13: #{cnn_net_forward.3} parent=11 // pred_check
          %p120 = pneg %p58
        $region14: #{cnn_net_forward.3} parent=11 // pred_check_branch
          %122 = sbr.rel (%p120) target = $region16
        $region15: #{cnn_net_forward.3} parent=11 // pred_region
          %s124 = ssub.s32 256, 256
          %125 = vsyncadd [#allocation3], %s124
          %s126 = sshll.u32 [#allocation2], 4
          %s127 = int_to_ptr.vmem [resolvable:$true] %s126
          %132 = dma.hbm_to_vmem [thread:$0]  %s1, 256, %s127, [#allocation3], 64, 64, 4
        $region16: #{cnn_net_forward.3} parent=11 // pred_fallthru
          _
        // Predicated region
        $region17: #{cnn_net_forward.3} parent=11 // pred_check
          %p133 = pneg %p79
        $region18: #{cnn_net_forward.3} parent=11 // pred_check_branch
          %135 = sbr.rel (%p133) target = $region20
        $region19: #{cnn_net_forward.3} parent=11 // pred_region
          %s137 = ssub.s32 16, 16
          %138 = vsyncadd [#allocation5], %s137
          %s140 = sshll.u32 [#allocation4], 4
          %s141 = int_to_ptr.vmem [resolvable:$true] %s140
          %143 = dma.hbm_to_vmem [thread:$0]  %s2, 16, %s141, [#allocation5]
        $region20: #{cnn_net_forward.3} parent=11 // pred_fallthru
          _
      $region12: #{cnn_net_forward.3} parent=5 // pred_fallthru
        _
      %p144 = scmp.lt.s32.totalorder %s11, 2
      // Predicated region
      $region21: #{cnn_net_forward.3} parent=5 // pred_check
        %p145 = pneg %p144
      $region22: #{cnn_net_forward.3} parent=5 // pred_check_branch
        %147 = sbr.rel (%p145) target = $region24
      $region23: #{cnn_net_forward.3} parent=5 // pred_region
        // Predicated region
        $region25: #{cnn_net_forward.3} parent=23 // pred_check
          %p148 = pneg %p31
        $region26: #{cnn_net_forward.3} parent=23 // pred_check_branch
          %150 = sbr.rel (%p148) target = $region28
        $region27: #{cnn_net_forward.3} parent=23 // pred_region
          %s151 = smul.u32 32, %s11
          %p152 = scmp.lt.s32.totalorder %s151, 63
          %s153 = scalar_select %p152, %s151, 63
          %s154 = smul.addr %s153, 4
          %s155 = scalar_lea.vmem %s0, %s154
          %s156 = smul.u32 32, %s11
        $region28: #{cnn_net_forward.3} parent=23 // pred_fallthru
          _
      $region24: #{cnn_net_forward.3} parent=5 // pred_fallthru
        _
      %p157 = scmp.le.s32.totalorder 1, %s11
      %p158 = scmp.lt.s32.totalorder %s11, 3
      %p159 = pnand %p157, %p158
      %p160 = pneg %p159
      // Predicated region
      $region29: #{cnn_net_forward.3} parent=5 // pred_check
        _
      $region30: #{cnn_net_forward.3} parent=5 // pred_check_branch
        %162 = sbr.rel (%p159) target = $region32
      $region31: #{cnn_net_forward.3} parent=5 // pred_region
        %s163 = ssub.s32 %s11, 1
        // Predicated region
        $region33: #{cnn_net_forward.3} parent=31 // pred_check
          %p164 = pneg %p58
        $region34: #{cnn_net_forward.3} parent=31 // pred_check_branch
          %166 = sbr.rel (%p164) target = $region36
        $region35: #{cnn_net_forward.3} parent=31 // pred_region
          %167 = dma.done [#allocation3], 256
        $region36: #{cnn_net_forward.3} parent=31 // pred_fallthru
          _
        // Predicated region
        $region37: #{cnn_net_forward.3} parent=31 // pred_check
          %p168 = pneg %p79
        $region38: #{cnn_net_forward.3} parent=31 // pred_check_branch
          %170 = sbr.rel (%p168) target = $region40
        $region39: #{cnn_net_forward.3} parent=31 // pred_region
          %171 = dma.done [#allocation5], 16
        $region40: #{cnn_net_forward.3} parent=31 // pred_fallthru
          _
        %s172 = smul.u32 32, %s16
        %p173 = scmp.lt.s32.totalorder %s172, 63
        %s174 = scalar_select %p173, %s172, 63
        %s175 = smul.addr %s174, 4
        %s176 = scalar_lea.vmem %s0, %s175
        %p177 = pneg %p37
        %p178 = pneg %p34
        %p179 = pneg %p58
        %p180 = pneg %p55
        %p181 = pneg %p79
        %p182 = pneg %p76
        %p183 = pneg %p105
        %p184 = pneg %p102
        %s185 = smul.u32 32, %s16
        %p186 = scmp.lt.s32.totalorder %s185, 63
        %s187 = scalar_select %p186, %s185, 63
        %s188 = smul.addr %s187, 4
        %s189 = scalar_lea.vmem %s3, %s188
        %s190 = smul.u32 32, %s16
        %p191 = scmp.lt.s32.totalorder %s190, 63
        %s192 = scalar_select %p191, %s190, 63
        %s193 = smul.addr %s192, 4
        %s194 = scalar_lea.vmem %s0, %s193
        %s195 = smul.u32 32, %s16
        %s196 = smul.u32 32, %s16
        %p197 = scmp.lt.s32.totalorder %s196, 63
        %s198 = scalar_select %p197, %s196, 63
        %s199 = smul.addr %s198, 4
        %s200 = scalar_lea.vmem %s3, %s199
        %s201 = smul.u32 32, %s16
        %v203 = vld [vmem:[%s194] sm:$0xf]
        %v204 = vld [vmem:[%s194 + $0x4] sm:$0xf]
        %v205 = vld [vmem:[%s194 + $0x8] sm:$0xf]
        %v206 = vld [vmem:[%s194 + $0xc] sm:$0xf]
        %v207 = vld [vmem:[%s194 + $0x10] sm:$0xf]
        %v208 = vld [vmem:[%s194 + $0x14] sm:$0xf]
        %v209 = vld [vmem:[%s194 + $0x18] sm:$0xf]
        %v210 = vld [vmem:[%s194 + $0x1c] sm:$0xf]
        %v211 = vld [vmem:[%s194 + $0x20] sm:$0xf]
        %v212 = vld [vmem:[%s194 + $0x24] sm:$0xf]
        %v213 = vld [vmem:[%s194 + $0x28] sm:$0xf]
        %v214 = vld [vmem:[%s194 + $0x2c] sm:$0xf]
        %v215 = vld [vmem:[%s194 + $0x30] sm:$0xf]
        %v216 = vld [vmem:[%s194 + $0x34] sm:$0xf]
        %v217 = vld [vmem:[%s194 + $0x38] sm:$0xf]
        %v218 = vld [vmem:[%s194 + $0x3c] sm:$0xf]
        %v219 = vld [vmem:[%s194 + $0x40] sm:$0xf]
        %v220 = vld [vmem:[%s194 + $0x44] sm:$0xf]
        %v221 = vld [vmem:[%s194 + $0x48] sm:$0xf]
        %v222 = vld [vmem:[%s194 + $0x4c] sm:$0xf]
        %v223 = vld [vmem:[%s194 + $0x50] sm:$0xf]
        %v224 = vld [vmem:[%s194 + $0x54] sm:$0xf]
        %v225 = vld [vmem:[%s194 + $0x58] sm:$0xf]
        %v226 = vld [vmem:[%s194 + $0x5c] sm:$0xf]
        %v227 = vld [vmem:[%s194 + $0x60] sm:$0xf]
        %v228 = vld [vmem:[%s194 + $0x64] sm:$0xf]
        %v229 = vld [vmem:[%s194 + $0x68] sm:$0xf]
        %v230 = vld [vmem:[%s194 + $0x6c] sm:$0xf]
        %v231 = vld [vmem:[%s194 + $0x70] sm:$0xf]
        %v232 = vld [vmem:[%s194 + $0x74] sm:$0xf]
        %v233 = vld [vmem:[%s194 + $0x78] sm:$0xf]
        %v234 = vld [vmem:[%s194 + $0x7c] sm:$0xf]
        %v235 = vld [vmem:[#allocation2] sm:$0xf]
        %v236 = vld [vmem:[#allocation2 + $0x4] sm:$0xf]
        %v237 = vld [vmem:[#allocation2 + $0x8] sm:$0xf]
        %v238 = vld [vmem:[#allocation2 + $0xc] sm:$0x3]
        %v239 = vld [vmem:[#allocation4] sm:$0x1]
        %v241 = vlaneseq
        %v242 = vshrl.u32 %v241, 7
        %v243 = vsub.s32 0, %v242
        %v244 = vrot.slane %v239, %v243
        %v278 = vunpack.c.l.b16 %v203
        %v279 = vunpack.c.l.b16 %v204
        %v280 = vunpack.c.l.b16 %v205
        %v281 = vunpack.c.l.b16 %v206
        %v282 = vunpack.c.l.b16 %v207
        %v283 = vunpack.c.l.b16 %v208
        %v284 = vunpack.c.l.b16 %v209
        %v285 = vunpack.c.l.b16 %v210
        %v286 = vunpack.c.l.b16 %v211
        %v287 = vunpack.c.l.b16 %v212
        %v288 = vunpack.c.l.b16 %v213
        %v289 = vunpack.c.l.b16 %v214
        %v290 = vunpack.c.l.b16 %v215
        %v291 = vunpack.c.l.b16 %v216
        %v292 = vunpack.c.l.b16 %v217
        %v293 = vunpack.c.l.b16 %v218
        %v294 = vunpack.c.l.b16 %v219
        %v295 = vunpack.c.l.b16 %v220
        %v296 = vunpack.c.l.b16 %v221
        %v297 = vunpack.c.l.b16 %v222
        %v298 = vunpack.c.l.b16 %v223
        %v299 = vunpack.c.l.b16 %v224
        %v300 = vunpack.c.l.b16 %v225
        %v301 = vunpack.c.l.b16 %v226
        %v302 = vunpack.c.l.b16 %v227
        %v303 = vunpack.c.l.b16 %v228
        %v304 = vunpack.c.l.b16 %v229
        %v305 = vunpack.c.l.b16 %v230
        %v306 = vunpack.c.l.b16 %v231
        %v307 = vunpack.c.l.b16 %v232
        %v308 = vunpack.c.l.b16 %v233
        %v309 = vunpack.c.l.b16 %v234
        %v310 = vpack.c.b16 %v279, %v278
        %v311 = vpack.c.b16 %v281, %v280
        %v312 = vpack.c.b16 %v283, %v282
        %v313 = vpack.c.b16 %v285, %v284
        %v314 = vpack.c.b16 %v287, %v286
        %v315 = vpack.c.b16 %v289, %v288
        %v316 = vpack.c.b16 %v291, %v290
        %v317 = vpack.c.b16 %v293, %v292
        %v318 = vpack.c.b16 %v295, %v294
        %v319 = vpack.c.b16 %v297, %v296
        %v320 = vpack.c.b16 %v299, %v298
        %v321 = vpack.c.b16 %v301, %v300
        %v322 = vpack.c.b16 %v303, %v302
        %v323 = vpack.c.b16 %v305, %v304
        %v324 = vpack.c.b16 %v307, %v306
        %v325 = vpack.c.b16 %v309, %v308
        %v330 = vunpack.c.l.b16 %v235
        %v331 = vunpack.c.l.b16 %v236
        %v332 = vunpack.c.l.b16 %v237
        %v333 = vunpack.c.l.b16 %v238
        %v334 = vpack.c.b16 %v331, %v330
        %v335 = vpack.c.b16 %v333, %v332
        %vm337 = vcmask 220160
        %v339 = vsel %vm337, %v310, 0
        %v342 = vsel %vm337, %v311, 0
        %v345 = vsel %vm337, %v312, 0
        %v348 = vsel %vm337, %v313, 0
        %v351 = vsel %vm337, %v314, 0
        %v354 = vsel %vm337, %v315, 0
        %v357 = vsel %vm337, %v316, 0
        %v360 = vsel %vm337, %v317, 0
        %v363 = vsel %vm337, %v318, 0
        %v366 = vsel %vm337, %v319, 0
        %v369 = vsel %vm337, %v320, 0
        %v372 = vsel %vm337, %v321, 0
        %v375 = vsel %vm337, %v322, 0
        %v378 = vsel %vm337, %v323, 0
        %v381 = vsel %vm337, %v324, 0
        %v384 = vsel %vm337, %v325, 0
        %vm386 = vcmask 1044480
        %vm387 = vcmask 1045504
        %v388 = vsel %vm386, 4294967295, 65535
        %v389 = vsel %vm387, %v388, 0
        %v391 = vand.u32 %v335, %v389
        %393 = vmatprep.subr.bf16.mxu0 0
        %394 = vmatpush1.bf16.msra.mxu0 %v334
        %395 = vmatprep.subr.bf16.mxu0 0
        %396 = vmatpush1.bf16.msra.mxu0 %v391
        %397 = vmatprep.subr.bf16.mxu0 0
        %398 = vmatpush1.bf16.msra.mxu0 0
        %399 = vmatprep.subr.bf16.mxu0 0
        %400 = vmatpush1.bf16.msra.mxu0 0
        %401 = vmatprep.subr.bf16.mxu0 0
        %402 = vmatpush1.bf16.msra.mxu0 0
        %403 = vmatprep.subr.bf16.mxu0 0
        %404 = vmatpush1.bf16.msra.mxu0 0
        %405 = vmatprep.subr.bf16.mxu0 0
        %406 = vmatpush1.bf16.msra.mxu0 0
        %407 = vmatprep.subr.bf16.mxu0 0
        %408 = vmatpush1.bf16.msra.mxu0 0
        %409 = vmatprep.subr.bf16.mxu0 0
        %410 = vmatpush1.bf16.msra.mxu0 0
        %411 = vmatprep.subr.bf16.mxu0 0
        %412 = vmatpush1.bf16.msra.mxu0 0
        %413 = vmatprep.subr.bf16.mxu0 0
        %414 = vmatpush1.bf16.msra.mxu0 0
        %415 = vmatprep.subr.bf16.mxu0 0
        %416 = vmatpush1.bf16.msra.mxu0 0
        %417 = vmatprep.subr.bf16.mxu0 0
        %418 = vmatpush1.bf16.msra.mxu0 0
        %419 = vmatprep.subr.bf16.mxu0 0
        %420 = vmatpush1.bf16.msra.mxu0 0
        %421 = vmatprep.subr.bf16.mxu0 0
        %422 = vmatpush1.bf16.msra.mxu0 0
        %423 = vmatprep.subr.bf16.mxu0 0
        %424 = vmatpush1.bf16.msra.mxu0 0
        %425 = vmatprep.mubr.bf16.mxu0 0
        %426 = vmatmul.mubr.bf16.gmra.mrb[0].mxu0 %v339
        %v427 = vpop.f32.mrb[0].mxu0
        %v428 = vadd.f32 %v244, %v427
        %v429 = vpop.f32.mrb[0].mxu0
        %v430 = vpop.f32.mrb[0].mxu0
        %v431 = vadd.f32 %v244, %v430
        %v432 = vpop.f32.mrb[0].mxu0
        %433 = vmatprep.mubr.bf16.mxu0 0
        %434 = vmatmul.mubr.bf16.gmra.mrb[0].mxu0 %v342
        %v435 = vpop.f32.mrb[0].mxu0
        %v436 = vadd.f32 %v244, %v435
        %v437 = vpop.f32.mrb[0].mxu0
        %v438 = vpop.f32.mrb[0].mxu0
        %v439 = vadd.f32 %v244, %v438
        %v440 = vpop.f32.mrb[0].mxu0
        %441 = vmatprep.mubr.bf16.mxu0 0
        %442 = vmatmul.mubr.bf16.gmra.mrb[0].mxu0 %v345
        %v443 = vpop.f32.mrb[0].mxu0
        %v444 = vadd.f32 %v244, %v443
        %v445 = vpop.f32.mrb[0].mxu0
        %v446 = vpop.f32.mrb[0].mxu0
        %v447 = vadd.f32 %v244, %v446
        %v448 = vpop.f32.mrb[0].mxu0
        %449 = vmatprep.mubr.bf16.mxu0 0
        %450 = vmatmul.mubr.bf16.gmra.mrb[0].mxu0 %v348
        %v451 = vpop.f32.mrb[0].mxu0
        %v452 = vadd.f32 %v244, %v451
        %v453 = vpop.f32.mrb[0].mxu0
        %v454 = vpop.f32.mrb[0].mxu0
        %v455 = vadd.f32 %v244, %v454
        %v456 = vpop.f32.mrb[0].mxu0
        %457 = vmatprep.mubr.bf16.mxu0 0
        %458 = vmatmul.mubr.bf16.gmra.mrb[0].mxu0 %v351
        %v459 = vpop.f32.mrb[0].mxu0
        %v460 = vadd.f32 %v244, %v459
        %v461 = vpop.f32.mrb[0].mxu0
        %v462 = vpop.f32.mrb[0].mxu0
        %v463 = vadd.f32 %v244, %v462
        %v464 = vpop.f32.mrb[0].mxu0
        %465 = vmatprep.mubr.bf16.mxu0 0
        %466 = vmatmul.mubr.bf16.gmra.mrb[0].mxu0 %v354
        %v467 = vpop.f32.mrb[0].mxu0
        %v468 = vadd.f32 %v244, %v467
        %v469 = vpop.f32.mrb[0].mxu0
        %v470 = vpop.f32.mrb[0].mxu0
        %v471 = vadd.f32 %v244, %v470
        %v472 = vpop.f32.mrb[0].mxu0
        %473 = vmatprep.mubr.bf16.mxu0 0
        %474 = vmatmul.mubr.bf16.gmra.mrb[0].mxu0 %v357
        %v475 = vpop.f32.mrb[0].mxu0
        %v476 = vadd.f32 %v244, %v475
        %v477 = vpop.f32.mrb[0].mxu0
        %v478 = vpop.f32.mrb[0].mxu0
        %v479 = vadd.f32 %v244, %v478
        %v480 = vpop.f32.mrb[0].mxu0
        %481 = vmatprep.mubr.bf16.mxu0 0
        %482 = vmatmul.mubr.bf16.gmra.mrb[0].mxu0 %v360
        %v483 = vpop.f32.mrb[0].mxu0
        %v484 = vadd.f32 %v244, %v483
        %v485 = vpop.f32.mrb[0].mxu0
        %v486 = vpop.f32.mrb[0].mxu0
        %v487 = vadd.f32 %v244, %v486
        %v488 = vpop.f32.mrb[0].mxu0
        %489 = vmatprep.mubr.bf16.mxu0 0
        %490 = vmatmul.mubr.bf16.gmra.mrb[0].mxu0 %v363
        %v491 = vpop.f32.mrb[0].mxu0
        %v492 = vadd.f32 %v244, %v491
        %v493 = vpop.f32.mrb[0].mxu0
        %v494 = vpop.f32.mrb[0].mxu0
        %v495 = vadd.f32 %v244, %v494
        %v496 = vpop.f32.mrb[0].mxu0
        %497 = vmatprep.mubr.bf16.mxu0 0
        %498 = vmatmul.mubr.bf16.gmra.mrb[0].mxu0 %v366
        %v499 = vpop.f32.mrb[0].mxu0
        %v500 = vadd.f32 %v244, %v499
        %v501 = vpop.f32.mrb[0].mxu0
        %v502 = vpop.f32.mrb[0].mxu0
        %v503 = vadd.f32 %v244, %v502
        %v504 = vpop.f32.mrb[0].mxu0
        %505 = vmatprep.mubr.bf16.mxu0 0
        %506 = vmatmul.mubr.bf16.gmra.mrb[0].mxu0 %v369
        %v507 = vpop.f32.mrb[0].mxu0
        %v508 = vadd.f32 %v244, %v507
        %v509 = vpop.f32.mrb[0].mxu0
        %v510 = vpop.f32.mrb[0].mxu0
        %v511 = vadd.f32 %v244, %v510
        %v512 = vpop.f32.mrb[0].mxu0
        %513 = vmatprep.mubr.bf16.mxu0 0
        %514 = vmatmul.mubr.bf16.gmra.mrb[0].mxu0 %v372
        %v515 = vpop.f32.mrb[0].mxu0
        %v516 = vadd.f32 %v244, %v515
        %v517 = vpop.f32.mrb[0].mxu0
        %v518 = vpop.f32.mrb[0].mxu0
        %v519 = vadd.f32 %v244, %v518
        %v520 = vpop.f32.mrb[0].mxu0
        %521 = vmatprep.mubr.bf16.mxu0 0
        %522 = vmatmul.mubr.bf16.gmra.mrb[0].mxu0 %v375
        %v523 = vpop.f32.mrb[0].mxu0
        %v524 = vadd.f32 %v244, %v523
        %v525 = vpop.f32.mrb[0].mxu0
        %v526 = vpop.f32.mrb[0].mxu0
        %v527 = vadd.f32 %v244, %v526
        %v528 = vpop.f32.mrb[0].mxu0
        %529 = vmatprep.mubr.bf16.mxu0 0
        %530 = vmatmul.mubr.bf16.gmra.mrb[0].mxu0 %v378
        %v531 = vpop.f32.mrb[0].mxu0
        %v532 = vadd.f32 %v244, %v531
        %v533 = vpop.f32.mrb[0].mxu0
        %v534 = vpop.f32.mrb[0].mxu0
        %v535 = vadd.f32 %v244, %v534
        %v536 = vpop.f32.mrb[0].mxu0
        %537 = vmatprep.mubr.bf16.mxu0 0
        %538 = vmatmul.mubr.bf16.gmra.mrb[0].mxu0 %v381
        %v539 = vpop.f32.mrb[0].mxu0
        %v540 = vadd.f32 %v244, %v539
        %v541 = vpop.f32.mrb[0].mxu0
        %v542 = vpop.f32.mrb[0].mxu0
        %v543 = vadd.f32 %v244, %v542
        %v544 = vpop.f32.mrb[0].mxu0
        %545 = vmatprep.mubr.bf16.mxu0 0
        %546 = vmatmul.mubr.bf16.gmra.mrb[0].mxu0 %v384
        %v547 = vpop.f32.mrb[0].mxu0
        %v548 = vadd.f32 %v244, %v547
        %v549 = vpop.f32.mrb[0].mxu0
        %v550 = vpop.f32.mrb[0].mxu0
        %v551 = vadd.f32 %v244, %v550
        %v552 = vpop.f32.mrb[0].mxu0
        %553 = vdwg.mxu0
        %v554 = vmax.f32 %v428, 0.0
        %v555 = vmax.f32 %v431, 0.0
        %v556 = vmax.f32 %v436, 0.0
        %v557 = vmax.f32 %v439, 0.0
        %v558 = vmax.f32 %v444, 0.0
        %v559 = vmax.f32 %v447, 0.0
        %v560 = vmax.f32 %v452, 0.0
        %v561 = vmax.f32 %v455, 0.0
        %v562 = vmax.f32 %v460, 0.0
        %v563 = vmax.f32 %v463, 0.0
        %v564 = vmax.f32 %v468, 0.0
        %v565 = vmax.f32 %v471, 0.0
        %v566 = vmax.f32 %v476, 0.0
        %v567 = vmax.f32 %v479, 0.0
        %v568 = vmax.f32 %v484, 0.0
        %v569 = vmax.f32 %v487, 0.0
        %v570 = vmax.f32 %v492, 0.0
        %v571 = vmax.f32 %v495, 0.0
        %v572 = vmax.f32 %v500, 0.0
        %v573 = vmax.f32 %v503, 0.0
        %v574 = vmax.f32 %v508, 0.0
        %v575 = vmax.f32 %v511, 0.0
        %v576 = vmax.f32 %v516, 0.0
        %v577 = vmax.f32 %v519, 0.0
        %v578 = vmax.f32 %v524, 0.0
        %v579 = vmax.f32 %v527, 0.0
        %v580 = vmax.f32 %v532, 0.0
        %v581 = vmax.f32 %v535, 0.0
        %v582 = vmax.f32 %v540, 0.0
        %v583 = vmax.f32 %v543, 0.0
        %v584 = vmax.f32 %v548, 0.0
        %v585 = vmax.f32 %v551, 0.0
        %v586 = vpack.c.bf16 %v555, %v554
        %v587 = vpack.c.bf16 %v557, %v556
        %v588 = vpack.c.bf16 %v559, %v558
        %v589 = vpack.c.bf16 %v561, %v560
        %v590 = vpack.c.bf16 %v563, %v562
        %v591 = vpack.c.bf16 %v565, %v564
        %v592 = vpack.c.bf16 %v567, %v566
        %v593 = vpack.c.bf16 %v569, %v568
        %v594 = vpack.c.bf16 %v571, %v570
        %v595 = vpack.c.bf16 %v573, %v572
        %v596 = vpack.c.bf16 %v575, %v574
        %v597 = vpack.c.bf16 %v577, %v576
        %v598 = vpack.c.bf16 %v579, %v578
        %v599 = vpack.c.bf16 %v581, %v580
        %v600 = vpack.c.bf16 %v583, %v582
        %v601 = vpack.c.bf16 %v585, %v584
        %v618 = vunpack.c.l.b16 %v586
        %v619 = vunpack.c.h.b16 %v586
        %v620 = vunpack.c.l.b16 %v587
        %v621 = vunpack.c.h.b16 %v587
        %v622 = vunpack.c.l.b16 %v588
        %v623 = vunpack.c.h.b16 %v588
        %v624 = vunpack.c.l.b16 %v589
        %v625 = vunpack.c.h.b16 %v589
        %v626 = vunpack.c.l.b16 %v590
        %v627 = vunpack.c.h.b16 %v590
        %v628 = vunpack.c.l.b16 %v591
        %v629 = vunpack.c.h.b16 %v591
        %v630 = vunpack.c.l.b16 %v592
        %v631 = vunpack.c.h.b16 %v592
        %v632 = vunpack.c.l.b16 %v593
        %v633 = vunpack.c.h.b16 %v593
        %v634 = vunpack.c.l.b16 %v594
        %v635 = vunpack.c.h.b16 %v594
        %v636 = vunpack.c.l.b16 %v595
        %v637 = vunpack.c.h.b16 %v595
        %v638 = vunpack.c.l.b16 %v596
        %v639 = vunpack.c.h.b16 %v596
        %v640 = vunpack.c.l.b16 %v597
        %v641 = vunpack.c.h.b16 %v597
        %v642 = vunpack.c.l.b16 %v598
        %v643 = vunpack.c.h.b16 %v598
        %v644 = vunpack.c.l.b16 %v599
        %v645 = vunpack.c.h.b16 %v599
        %v646 = vunpack.c.l.b16 %v600
        %v647 = vunpack.c.h.b16 %v600
        %v648 = vunpack.c.l.b16 %v601
        %v649 = vunpack.c.h.b16 %v601
        %v650 = vpack.c.b16 %v618, %v618
        %v651 = vpack.c.b16 %v619, %v619
        %v652 = vpack.c.b16 %v620, %v620
        %v653 = vpack.c.b16 %v621, %v621
        %v654 = vpack.c.b16 %v622, %v622
        %v655 = vpack.c.b16 %v623, %v623
        %v656 = vpack.c.b16 %v624, %v624
        %v657 = vpack.c.b16 %v625, %v625
        %v658 = vpack.c.b16 %v626, %v626
        %v659 = vpack.c.b16 %v627, %v627
        %v660 = vpack.c.b16 %v628, %v628
        %v661 = vpack.c.b16 %v629, %v629
        %v662 = vpack.c.b16 %v630, %v630
        %v663 = vpack.c.b16 %v631, %v631
        %v664 = vpack.c.b16 %v632, %v632
        %v665 = vpack.c.b16 %v633, %v633
        %v666 = vpack.c.b16 %v634, %v634
        %v667 = vpack.c.b16 %v635, %v635
        %v668 = vpack.c.b16 %v636, %v636
        %v669 = vpack.c.b16 %v637, %v637
        %v670 = vpack.c.b16 %v638, %v638
        %v671 = vpack.c.b16 %v639, %v639
        %v672 = vpack.c.b16 %v640, %v640
        %v673 = vpack.c.b16 %v641, %v641
        %v674 = vpack.c.b16 %v642, %v642
        %v675 = vpack.c.b16 %v643, %v643
        %v676 = vpack.c.b16 %v644, %v644
        %v677 = vpack.c.b16 %v645, %v645
        %v678 = vpack.c.b16 %v646, %v646
        %v679 = vpack.c.b16 %v647, %v647
        %v680 = vpack.c.b16 %v648, %v648
        %v681 = vpack.c.b16 %v649, %v649
        %714 = vst [vmem:[%s200] sm:$0xf] %v650
        %715 = vst [vmem:[%s200 + $0x4] sm:$0xf] %v651
        %716 = vst [vmem:[%s200 + $0x8] sm:$0xf] %v652
        %717 = vst [vmem:[%s200 + $0xc] sm:$0xf] %v653
        %718 = vst [vmem:[%s200 + $0x10] sm:$0xf] %v654
        %719 = vst [vmem:[%s200 + $0x14] sm:$0xf] %v655
        %720 = vst [vmem:[%s200 + $0x18] sm:$0xf] %v656
        %721 = vst [vmem:[%s200 + $0x1c] sm:$0xf] %v657
        %722 = vst [vmem:[%s200 + $0x20] sm:$0xf] %v658
        %723 = vst [vmem:[%s200 + $0x24] sm:$0xf] %v659
        %724 = vst [vmem:[%s200 + $0x28] sm:$0xf] %v660
        %725 = vst [vmem:[%s200 + $0x2c] sm:$0xf] %v661
        %726 = vst [vmem:[%s200 + $0x30] sm:$0xf] %v662
        %727 = vst [vmem:[%s200 + $0x34] sm:$0xf] %v663
        %728 = vst [vmem:[%s200 + $0x38] sm:$0xf] %v664
        %729 = vst [vmem:[%s200 + $0x3c] sm:$0xf] %v665
        %730 = vst [vmem:[%s200 + $0x40] sm:$0xf] %v666
        %731 = vst [vmem:[%s200 + $0x44] sm:$0xf] %v667
        %732 = vst [vmem:[%s200 + $0x48] sm:$0xf] %v668
        %733 = vst [vmem:[%s200 + $0x4c] sm:$0xf] %v669
        %734 = vst [vmem:[%s200 + $0x50] sm:$0xf] %v670
        %735 = vst [vmem:[%s200 + $0x54] sm:$0xf] %v671
        %736 = vst [vmem:[%s200 + $0x58] sm:$0xf] %v672
        %737 = vst [vmem:[%s200 + $0x5c] sm:$0xf] %v673
        %738 = vst [vmem:[%s200 + $0x60] sm:$0xf] %v674
        %739 = vst [vmem:[%s200 + $0x64] sm:$0xf] %v675
        %740 = vst [vmem:[%s200 + $0x68] sm:$0xf] %v676
        %741 = vst [vmem:[%s200 + $0x6c] sm:$0xf] %v677
        %742 = vst [vmem:[%s200 + $0x70] sm:$0xf] %v678
        %743 = vst [vmem:[%s200 + $0x74] sm:$0xf] %v679
        %744 = vst [vmem:[%s200 + $0x78] sm:$0xf] %v680
        %745 = vst [vmem:[%s200 + $0x7c] sm:$0xf] %v681
        %s746 = smul.u32 32, %s16
        %p747 = scmp.lt.s32.totalorder %s746, 63
        %s748 = scalar_select %p747, %s746, 63
        %s749 = smul.addr %s748, 4
        %s750 = scalar_lea.vmem %s3, %s749
        // Predicated region
        $region41: #{cnn_net_forward.3} parent=31 // pred_check
          %p751 = pneg %p102
        $region42: #{cnn_net_forward.3} parent=31 // pred_check_branch
          %753 = sbr.rel (%p751) target = $region44
        $region43: #{cnn_net_forward.3} parent=31 // pred_region
          %s754 = smul.u32 32, %s16
        $region44: #{cnn_net_forward.3} parent=31 // pred_fallthru
          _
      $region32: #{cnn_net_forward.3} parent=5 // pred_fallthru
        _
      %p755 = scmp.le.s32.totalorder 2, %s11
      // Predicated region
      $region45: #{cnn_net_forward.3} parent=5 // pred_check
        %p756 = pneg %p755
      $region46: #{cnn_net_forward.3} parent=5 // pred_check_branch
        %758 = sbr.rel (%p756) target = $region48
      $region47: #{cnn_net_forward.3} parent=5 // pred_region
        %s759 = ssub.s32 %s11, 2
        // Predicated region
        $region49: #{cnn_net_forward.3} parent=47 // pred_check
          %p760 = pneg %p108
        $region50: #{cnn_net_forward.3} parent=47 // pred_check_branch
          %762 = sbr.rel (%p760) target = $region52
        $region51: #{cnn_net_forward.3} parent=47 // pred_region
          %s763 = smul.u32 32, %s17
          %p764 = scmp.lt.s32.totalorder %s763, 63
          %s765 = scalar_select %p764, %s763, 63
          %s766 = smul.addr %s765, 4
          %s767 = scalar_lea.vmem %s3, %s766
        $region52: #{cnn_net_forward.3} parent=47 // pred_fallthru
          _
      $region48: #{cnn_net_forward.3} parent=5 // pred_fallthru
        _
    $region6: #{cnn_net_forward.3} parent=1 // loop_footer
      %s15 = sadd.s32 1, %s11
    $region7: #{cnn_net_forward.3} parent=1 // loop_footer_branch
      %10 = sbr.rel target = $region3
    $region8: #{cnn_net_forward.3} parent=1 // loop_exit
      _
    %768 = vsyncpa [#allocation3], 1
    %s769 = scalar_lea.sflag [#allocation3], 1
    %770 = vsyncpa %s769, 1
    %771 = vsyncpa [#allocation5], 1

// kernel: cnn_net_forward.4
$region0: #{cnn_net_forward.4}
  #allocation0 [shape = 'u32[]', space=smem, size = 0x4, offset = 0x4, fixed_abs, tag = 'smem constant byte address 0x4 - core index']
  #allocation1 [shape = 'u32[144,128]{1,0:T(1,128)}', space=vmem, size = 0x12000, scoped, tag = 'internal scratch']
  #allocation2 [shape = 'f32[8,256]{1,0:T(8,128)}', space=vmem, size = 0x2000, scoped, tag = 'scratch operand']
  %s0 = inlined_call_operand.vmem [shape: bf16[8,8192], index: 0, kind: input, shape index: {}]
  %s1 = inlined_call_operand.hbm [shape: s8[8192,512], index: 1, kind: input, shape index: {}]
  %s2 = inlined_call_operand.vmem [shape: f32[1,512], index: 2, kind: input, shape index: {}]
  %s3 = inlined_call_operand.vmem [shape: f32[1,512], index: 3, kind: input, shape index: {}]
  %s4 = inlined_call_operand.vmem [shape: f32[8,512], index: 4, kind: output, shape index: {}]
  %s5 = sld [smem:[#allocation0]]
  $region61: #{cnn_net_forward.4} parent=0
    _
  %s7 = ssub.s32 1, %s5
  %s8 = scalar_select 0, %s7, %s5
  $region1: #{cnn_net_forward.4} parent=0
    #allocation3 [shape = 'u8[1048576]{0}', space=vmem, size = 0x100000, scoped, tag = 'input window, operand 1']
    #allocation4 [shape = 's32[2]{0}', space=sflag, size = 0x8, scoped, tag = 'scoped memory for cnn_net_forward.4']
    %9 = vsyncpa [#allocation4], 0
    %s10 = scalar_lea.sflag [#allocation4], 1
    %11 = vsyncpa %s10, 0
    loop: start=0, step=1, limit=10
    $region2: #{cnn_net_forward.4} parent=1 // loop_pre_header
      _
    $region3: #{cnn_net_forward.4} parent=1 // loop_header
      %s13 = sphi 0, %s17
      %p14 = scmp.ge.s32.totalorder %s13, 10
      %s20 = sphi 0, %s32
      %s21 = sphi 0, %s28
      %s22 = sphi 0, %s20
      %s23 = sphi 0, %s21
      %s24 = sphi 0, %s22
      %s25 = sphi 0, %s23
      %s35 = sphi 0, %s37
      %s38 = sphi 0, %s35
      %s39 = sphi 0, %s38
      %s55 = sphi 0, %s39
      %s63 = sphi 0, %s65
      %s66 = sphi 0, %s63
      %s67 = sphi 0, %s66
      %s83 = sphi 0, %s67
      %s89 = sphi 0, %s91
      %s92 = sphi 0, %s89
      %s93 = sphi 0, %s92
      %s109 = sphi 0, %s93
      %s115 = sphi 0, %s117
      %s118 = sphi 0, %s115
      %s119 = sphi 0, %s118
      %s135 = sphi 0, %s119
      %s141 = sphi 0, %s143
      %s144 = sphi 0, %s141
      %s145 = sphi 0, %s144
      %s161 = sphi 0, %s145
    $region4: #{cnn_net_forward.4} parent=1 // loop_header_branch
      %16 = sbr.rel (%p14) target = $region8
    $region5: #{cnn_net_forward.4} parent=1 // loop_body
      %s18 = ssub.s32 %s13, 1
      %s19 = ssub.s32 %s13, 2
      %s26 = sadd.s32 1, %s21
      %p27 = scmp.ge.s32.totalorder %s26, 4
      %s28 = scalar_select %p27, 0, %s26
      %s29 = sadd.s32 1, %s20
      %s30 = scalar_select %p27, %s29, %s20
      %p31 = scmp.ge.s32.totalorder %s30, 2
      %s32 = scalar_select %p31, 0, %s30
      %s33 = ssub.s32 %s21, %s28
      %p34 = scmp.eq.s32.totalorder %s33, 0
      %s36 = sadd.s32 %s35, 1
      %s37 = scalar_select %p34, %s35, %s36
      %p40 = pneg %p34
      %p41 = scmp.eq.s32.totalorder %s13, 7
      %p42 = por %p40, %p41
      %p43 = scmp.ne.s32.totalorder %s35, %s38
      %p44 = scmp.eq.s32.totalorder %s13, 0
      %p45 = por %p43, %p44
      %p46 = scmp.ne.s32.totalorder %s35, %s38
      %p47 = scmp.eq.s32.totalorder %s18, 7
      %p48 = por %p46, %p47
      %p49 = scmp.ne.s32.totalorder %s38, %s39
      %p50 = scmp.eq.s32.totalorder %s18, 0
      %p51 = por %p49, %p50
      %p52 = scmp.ne.s32.totalorder %s38, %s39
      %p53 = scmp.eq.s32.totalorder %s19, 7
      %p54 = por %p52, %p53
      %p56 = scmp.ne.s32.totalorder %s39, %s55
      %p57 = scmp.eq.s32.totalorder %s19, 0
      %p58 = por %p56, %p57
      %s59 = ssub.s32 %s21, %s28
      %s60 = ssub.s32 %s20, %s32
      %s61 = sor.u32 %s59, %s60
      %p62 = scmp.eq.s32.totalorder %s61, 0
      %s64 = sadd.s32 %s63, 1
      %s65 = scalar_select %p62, %s63, %s64
      %p68 = pneg %p62
      %p69 = scmp.eq.s32.totalorder %s13, 7
      %p70 = por %p68, %p69
      %p71 = scmp.ne.s32.totalorder %s63, %s66
      %p72 = scmp.eq.s32.totalorder %s13, 0
      %p73 = por %p71, %p72
      %p74 = scmp.ne.s32.totalorder %s63, %s66
      %p75 = scmp.eq.s32.totalorder %s18, 7
      %p76 = por %p74, %p75
      %p77 = scmp.ne.s32.totalorder %s66, %s67
      %p78 = scmp.eq.s32.totalorder %s18, 0
      %p79 = por %p77, %p78
      %p80 = scmp.ne.s32.totalorder %s66, %s67
      %p81 = scmp.eq.s32.totalorder %s19, 7
      %p82 = por %p80, %p81
      %p84 = scmp.ne.s32.totalorder %s67, %s83
      %p85 = scmp.eq.s32.totalorder %s19, 0
      %p86 = por %p84, %p85
      %s87 = ssub.s32 %s20, %s32
      %p88 = scmp.eq.s32.totalorder %s87, 0
      %s90 = sadd.s32 %s89, 1
      %s91 = scalar_select %p88, %s89, %s90
      %p94 = pneg %p88
      %p95 = scmp.eq.s32.totalorder %s13, 7
      %p96 = por %p94, %p95
      %p97 = scmp.ne.s32.totalorder %s89, %s92
      %p98 = scmp.eq.s32.totalorder %s13, 0
      %p99 = por %p97, %p98
      %p100 = scmp.ne.s32.totalorder %s89, %s92
      %p101 = scmp.eq.s32.totalorder %s18, 7
      %p102 = por %p100, %p101
      %p103 = scmp.ne.s32.totalorder %s92, %s93
      %p104 = scmp.eq.s32.totalorder %s18, 0
      %p105 = por %p103, %p104
      %p106 = scmp.ne.s32.totalorder %s92, %s93
      %p107 = scmp.eq.s32.totalorder %s19, 7
      %p108 = por %p106, %p107
      %p110 = scmp.ne.s32.totalorder %s93, %s109
      %p111 = scmp.eq.s32.totalorder %s19, 0
      %p112 = por %p110, %p111
      %s113 = ssub.s32 %s20, %s32
      %p114 = scmp.eq.s32.totalorder %s113, 0
      %s116 = sadd.s32 %s115, 1
      %s117 = scalar_select %p114, %s115, %s116
      %p120 = pneg %p114
      %p121 = scmp.eq.s32.totalorder %s13, 7
      %p122 = por %p120, %p121
      %p123 = scmp.ne.s32.totalorder %s115, %s118
      %p124 = scmp.eq.s32.totalorder %s13, 0
      %p125 = por %p123, %p124
      %p126 = scmp.ne.s32.totalorder %s115, %s118
      %p127 = scmp.eq.s32.totalorder %s18, 7
      %p128 = por %p126, %p127
      %p129 = scmp.ne.s32.totalorder %s118, %s119
      %p130 = scmp.eq.s32.totalorder %s18, 0
      %p131 = por %p129, %p130
      %p132 = scmp.ne.s32.totalorder %s118, %s119
      %p133 = scmp.eq.s32.totalorder %s19, 7
      %p134 = por %p132, %p133
      %p136 = scmp.ne.s32.totalorder %s119, %s135
      %p137 = scmp.eq.s32.totalorder %s19, 0
      %p138 = por %p136, %p137
      %s139 = ssub.s32 %s20, %s32
      %p140 = scmp.eq.s32.totalorder %s139, 0
      %s142 = sadd.s32 %s141, 1
      %s143 = scalar_select %p140, %s141, %s142
      %p146 = pneg %p140
      %p147 = scmp.eq.s32.totalorder %s13, 7
      %p148 = por %p146, %p147
      %p149 = scmp.ne.s32.totalorder %s141, %s144
      %p150 = scmp.eq.s32.totalorder %s13, 0
      %p151 = por %p149, %p150
      %p152 = scmp.ne.s32.totalorder %s141, %s144
      %p153 = scmp.eq.s32.totalorder %s18, 7
      %p154 = por %p152, %p153
      %p155 = scmp.ne.s32.totalorder %s144, %s145
      %p156 = scmp.eq.s32.totalorder %s18, 0
      %p157 = por %p155, %p156
      %p158 = scmp.ne.s32.totalorder %s144, %s145
      %p159 = scmp.eq.s32.totalorder %s19, 7
      %p160 = por %p158, %p159
      %p162 = scmp.ne.s32.totalorder %s145, %s161
      %p163 = scmp.eq.s32.totalorder %s19, 0
      %p164 = por %p162, %p163
      %p165 = scmp.le.s32.totalorder 1, %s13
      %p166 = scmp.lt.s32.totalorder %s13, 9
      %p167 = pnand %p165, %p166
      %p168 = pneg %p167
      // Predicated region
      $region9: #{cnn_net_forward.4} parent=5 // pred_check
        _
      $region10: #{cnn_net_forward.4} parent=5 // pred_check_branch
        %170 = sbr.rel (%p167) target = $region12
      $region11: #{cnn_net_forward.4} parent=5 // pred_region
        %s171 = ssub.s32 %s13, 1
      $region12: #{cnn_net_forward.4} parent=5 // pred_fallthru
        _
      %p172 = scmp.lt.s32.totalorder %s13, 8
      // Predicated region
      $region13: #{cnn_net_forward.4} parent=5 // pred_check
        %p173 = pneg %p172
      $region14: #{cnn_net_forward.4} parent=5 // pred_check_branch
        %175 = sbr.rel (%p173) target = $region16
      $region15: #{cnn_net_forward.4} parent=5 // pred_region
        // Predicated region
        $region17: #{cnn_net_forward.4} parent=15 // pred_check
          %p176 = pneg %p45
        $region18: #{cnn_net_forward.4} parent=15 // pred_check_branch
          %178 = sbr.rel (%p176) target = $region20
        $region19: #{cnn_net_forward.4} parent=15 // pred_region
          %s179 = smul.u32 16, %s21
          %p180 = scmp.lt.s32.totalorder %s179, 63
          %s181 = scalar_select %p180, %s179, 63
          %s182 = smul.addr %s181, 4
          %s183 = scalar_lea.vmem %s0, %s182
          %s184 = smul.u32 16, %s21
        $region20: #{cnn_net_forward.4} parent=15 // pred_fallthru
          _
        // Predicated region
        $region21: #{cnn_net_forward.4} parent=15 // pred_check
          %p185 = pneg %p73
        $region22: #{cnn_net_forward.4} parent=15 // pred_check_branch
          %187 = sbr.rel (%p185) target = $region24
        $region23: #{cnn_net_forward.4} parent=15 // pred_region
          %s188 = sand.u32 %s63, 1
          %s189 = scalar_lea.sflag [#allocation4], %s188
          %s190 = sand.u32 %s63, 1
          %s191 = smul.addr %s190, 1024
          %s192 = scalar_lea.vmem [#allocation3], %s191
          %s193 = smul.u32 64, %s21
          %s194 = smul.u32 2, %s20
          %s196 = ssub.s32 16384, 16384
          %197 = vsyncadd %s189, %s196
          %s198 = smul.addr %s193, 4
          %s199 = sadd.s32 %s194, %s198
          %s200 = smul.addr %s199, 128
          %s201 = scalar_lea.hbm %s1, %s200
          %s202 = sshll.u32 %s192, 4
          %s203 = int_to_ptr.vmem [resolvable:$true] %s202
          %208 = dma.hbm_to_vmem [thread:$0]  %s201, 16384, %s203, %s189, 512, 256, 16
        $region24: #{cnn_net_forward.4} parent=15 // pred_fallthru
          _
        // Predicated region
        $region25: #{cnn_net_forward.4} parent=15 // pred_check
          %p209 = pneg %p99
        $region26: #{cnn_net_forward.4} parent=15 // pred_check_branch
          %211 = sbr.rel (%p209) target = $region28
        $region27: #{cnn_net_forward.4} parent=15 // pred_region
          %s212 = smul.u32 2, %s20
          %p213 = scmp.lt.s32.totalorder %s212, 3
          %s214 = scalar_select %p213, %s212, 3
          %s215 = scalar_lea.vmem %s2, %s214
          %s216 = smul.u32 2, %s20
        $region28: #{cnn_net_forward.4} parent=15 // pred_fallthru
          _
        // Predicated region
        $region29: #{cnn_net_forward.4} parent=15 // pred_check
          %p217 = pneg %p125
        $region30: #{cnn_net_forward.4} parent=15 // pred_check_branch
          %219 = sbr.rel (%p217) target = $region32
        $region31: #{cnn_net_forward.4} parent=15 // pred_region
          %s220 = smul.u32 2, %s20
          %p221 = scmp.lt.s32.totalorder %s220, 3
          %s222 = scalar_select %p221, %s220, 3
          %s223 = scalar_lea.vmem %s3, %s222
          %s224 = smul.u32 2, %s20
        $region32: #{cnn_net_forward.4} parent=15 // pred_fallthru
          _
      $region16: #{cnn_net_forward.4} parent=5 // pred_fallthru
        _
      %p225 = scmp.le.s32.totalorder 1, %s13
      %p226 = scmp.lt.s32.totalorder %s13, 9
      %p227 = pnand %p225, %p226
      %p228 = pneg %p227
      // Predicated region
      $region33: #{cnn_net_forward.4} parent=5 // pred_check
        _
      $region34: #{cnn_net_forward.4} parent=5 // pred_check_branch
        %230 = sbr.rel (%p227) target = $region36
      $region35: #{cnn_net_forward.4} parent=5 // pred_region
        %s231 = ssub.s32 %s13, 1
        %s232 = sand.u32 %s66, 1
        %s233 = scalar_lea.sflag [#allocation4], %s232
        %s234 = sand.u32 %s66, 1
        %s235 = smul.addr %s234, 1024
        %s236 = scalar_lea.vmem [#allocation3], %s235
        // Predicated region
        $region37: #{cnn_net_forward.4} parent=35 // pred_check
          %p237 = pneg %p79
        $region38: #{cnn_net_forward.4} parent=35 // pred_check_branch
          %239 = sbr.rel (%p237) target = $region40
        $region39: #{cnn_net_forward.4} parent=35 // pred_region
          %240 = dma.done %s233, 16384
        $region40: #{cnn_net_forward.4} parent=35 // pred_fallthru
          _
        %s241 = smul.u32 16, %s23
        %p242 = scmp.lt.s32.totalorder %s241, 63
        %s243 = scalar_select %p242, %s241, 63
        %s244 = smul.addr %s243, 4
        %s245 = scalar_lea.vmem %s0, %s244
        %p246 = pneg %p51
        %p247 = pneg %p48
        %s248 = sand.u32 %s66, 1
        %s249 = scalar_lea.sflag [#allocation4], %s248
        %s250 = sand.u32 %s66, 1
        %s251 = smul.addr %s250, 1024
        %s252 = scalar_lea.vmem [#allocation3], %s251
        %p253 = pneg %p79
        %p254 = pneg %p76
        %s255 = smul.u32 2, %s22
        %p256 = scmp.lt.s32.totalorder %s255, 3
        %s257 = scalar_select %p256, %s255, 3
        %s258 = scalar_lea.vmem %s2, %s257
        %p259 = pneg %p105
        %p260 = pneg %p102
        %s261 = smul.u32 2, %s22
        %p262 = scmp.lt.s32.totalorder %s261, 3
        %s263 = scalar_select %p262, %s261, 3
        %s264 = scalar_lea.vmem %s3, %s263
        %p265 = pneg %p131
        %p266 = pneg %p128
        %p267 = pneg %p157
        %p268 = pneg %p154
        %s269 = smul.u32 2, %s22
        %p270 = scmp.lt.s32.totalorder %s269, 3
        %s271 = scalar_select %p270, %s269, 3
        %s272 = smul.addr %s271, 8
        %s273 = scalar_lea.vmem %s4, %s272
        %s274 = smul.u32 16, %s23
        %p275 = scmp.lt.s32.totalorder %s274, 63
        %s276 = scalar_select %p275, %s274, 63
        %s277 = smul.addr %s276, 4
        %s278 = scalar_lea.vmem %s0, %s277
        %s279 = smul.u32 16, %s23
        %s280 = smul.u32 64, %s23
        %s281 = smul.u32 2, %s22
        %s282 = smul.u32 2, %s22
        %p283 = scmp.lt.s32.totalorder %s282, 3
        %s284 = scalar_select %p283, %s282, 3
        %s285 = scalar_lea.vmem %s2, %s284
        %s286 = smul.u32 2, %s22
        %s287 = smul.u32 2, %s22
        %p288 = scmp.lt.s32.totalorder %s287, 3
        %s289 = scalar_select %p288, %s287, 3
        %s290 = scalar_lea.vmem %s3, %s289
        %s291 = smul.u32 2, %s22
        %s292 = smul.u32 2, %s22
        %p293 = scmp.lt.s32.totalorder %s292, 3
        %s294 = scalar_select %p293, %s292, 3
        %s295 = smul.addr %s294, 8
        %s296 = scalar_lea.vmem %s4, %s295
        %s297 = smul.u32 2, %s22
        %p298 = scmp.eq.s32.totalorder %s23, 0
        // Predicated region
        $region41: #{cnn_net_forward.4} parent=35 // pred_check
          %p299 = pneg %p298
        $region42: #{cnn_net_forward.4} parent=35 // pred_check_branch
          %301 = sbr.rel (%p299) target = $region44
        $region43: #{cnn_net_forward.4} parent=35 // pred_region
          %302 = vst [vmem:[#allocation2] sm:$0xff] 0.0
          %303 = vst [vmem:[#allocation2 + $0x8] sm:$0xff] 0.0
        $region44: #{cnn_net_forward.4} parent=35 // pred_fallthru
          _
        %v304 = vld [vmem:[#allocation2] sm:$0xff]
        %v305 = vld [vmem:[#allocation2 + $0x8] sm:$0xff]
        %v306 = vld [vmem:[%s278] sm:$0xff]
        %v307 = vld [vmem:[%s278 + $0x8] sm:$0xff]
        %v308 = vld [vmem:[%s278 + $0x10] sm:$0xff]
        %v309 = vld [vmem:[%s278 + $0x18] sm:$0xff]
        %v310 = vld [vmem:[%s278 + $0x20] sm:$0xff]
        %v311 = vld [vmem:[%s278 + $0x28] sm:$0xff]
        %v312 = vld [vmem:[%s278 + $0x30] sm:$0xff]
        %v313 = vld [vmem:[%s278 + $0x38] sm:$0xff]
        %v314 = vld [vmem:[%s236] sm:$0xff]
        %v315 = vld [vmem:[%s236 + $0x8] sm:$0xff]
        %v316 = vld [vmem:[%s236 + $0x10] sm:$0xff]
        %v317 = vld [vmem:[%s236 + $0x18] sm:$0xff]
        %v318 = vld [vmem:[%s236 + $0x20] sm:$0xff]
        %v319 = vld [vmem:[%s236 + $0x28] sm:$0xff]
        %v320 = vld [vmem:[%s236 + $0x30] sm:$0xff]
        %v321 = vld [vmem:[%s236 + $0x38] sm:$0xff]
        %v322 = vld [vmem:[%s236 + $0x40] sm:$0xff]
        %v323 = vld [vmem:[%s236 + $0x48] sm:$0xff]
        %v324 = vld [vmem:[%s236 + $0x50] sm:$0xff]
        %v325 = vld [vmem:[%s236 + $0x58] sm:$0xff]
        %v326 = vld [vmem:[%s236 + $0x60] sm:$0xff]
        %v327 = vld [vmem:[%s236 + $0x68] sm:$0xff]
        %v328 = vld [vmem:[%s236 + $0x70] sm:$0xff]
        %v329 = vld [vmem:[%s236 + $0x78] sm:$0xff]
        %v330 = vld [vmem:[%s236 + $0x80] sm:$0xff]
        %v331 = vld [vmem:[%s236 + $0x88] sm:$0xff]
        %v332 = vld [vmem:[%s236 + $0x90] sm:$0xff]
        %v333 = vld [vmem:[%s236 + $0x98] sm:$0xff]
        %v334 = vld [vmem:[%s236 + $0xa0] sm:$0xff]
        %v335 = vld [vmem:[%s236 + $0xa8] sm:$0xff]
        %v336 = vld [vmem:[%s236 + $0xb0] sm:$0xff]
        %v337 = vld [vmem:[%s236 + $0xb8] sm:$0xff]
        %v338 = vld [vmem:[%s236 + $0xc0] sm:$0xff]
        %v339 = vld [vmem:[%s236 + $0xc8] sm:$0xff]
        %v340 = vld [vmem:[%s236 + $0xd0] sm:$0xff]
        %v341 = vld [vmem:[%s236 + $0xd8] sm:$0xff]
        %v342 = vld [vmem:[%s236 + $0xe0] sm:$0xff]
        %v343 = vld [vmem:[%s236 + $0xe8] sm:$0xff]
        %v344 = vld [vmem:[%s236 + $0xf0] sm:$0xff]
        %v345 = vld [vmem:[%s236 + $0xf8] sm:$0xff]
        %v346 = vld [vmem:[%s236 + $0x100] sm:$0xff]
        %v347 = vld [vmem:[%s236 + $0x108] sm:$0xff]
        %v348 = vld [vmem:[%s236 + $0x110] sm:$0xff]
        %v349 = vld [vmem:[%s236 + $0x118] sm:$0xff]
        %v350 = vld [vmem:[%s236 + $0x120] sm:$0xff]
        %v351 = vld [vmem:[%s236 + $0x128] sm:$0xff]
        %v352 = vld [vmem:[%s236 + $0x130] sm:$0xff]
        %v353 = vld [vmem:[%s236 + $0x138] sm:$0xff]
        %v354 = vld [vmem:[%s236 + $0x140] sm:$0xff]
        %v355 = vld [vmem:[%s236 + $0x148] sm:$0xff]
        %v356 = vld [vmem:[%s236 + $0x150] sm:$0xff]
        %v357 = vld [vmem:[%s236 + $0x158] sm:$0xff]
        %v358 = vld [vmem:[%s236 + $0x160] sm:$0xff]
        %v359 = vld [vmem:[%s236 + $0x168] sm:$0xff]
        %v360 = vld [vmem:[%s236 + $0x170] sm:$0xff]
        %v361 = vld [vmem:[%s236 + $0x178] sm:$0xff]
        %v362 = vld [vmem:[%s236 + $0x180] sm:$0xff]
        %v363 = vld [vmem:[%s236 + $0x188] sm:$0xff]
        %v364 = vld [vmem:[%s236 + $0x190] sm:$0xff]
        %v365 = vld [vmem:[%s236 + $0x198] sm:$0xff]
        %v366 = vld [vmem:[%s236 + $0x1a0] sm:$0xff]
        %v367 = vld [vmem:[%s236 + $0x1a8] sm:$0xff]
        %v368 = vld [vmem:[%s236 + $0x1b0] sm:$0xff]
        %v369 = vld [vmem:[%s236 + $0x1b8] sm:$0xff]
        %v370 = vld [vmem:[%s236 + $0x1c0] sm:$0xff]
        %v371 = vld [vmem:[%s236 + $0x1c8] sm:$0xff]
        %v372 = vld [vmem:[%s236 + $0x1d0] sm:$0xff]
        %v373 = vld [vmem:[%s236 + $0x1d8] sm:$0xff]
        %v374 = vld [vmem:[%s236 + $0x1e0] sm:$0xff]
        %v375 = vld [vmem:[%s236 + $0x1e8] sm:$0xff]
        %v376 = vld [vmem:[%s236 + $0x1f0] sm:$0xff]
        %v377 = vld [vmem:[%s236 + $0x1f8] sm:$0xff]
        %v378 = vld [vmem:[%s236 + $0x200] sm:$0xff]
        %v379 = vld [vmem:[%s236 + $0x208] sm:$0xff]
        %v380 = vld [vmem:[%s236 + $0x210] sm:$0xff]
        %v381 = vld [vmem:[%s236 + $0x218] sm:$0xff]
        %v382 = vld [vmem:[%s236 + $0x220] sm:$0xff]
        %v383 = vld [vmem:[%s236 + $0x228] sm:$0xff]
        %v384 = vld [vmem:[%s236 + $0x230] sm:$0xff]
        %v385 = vld [vmem:[%s236 + $0x238] sm:$0xff]
        %v386 = vld [vmem:[%s236 + $0x240] sm:$0xff]
        %v387 = vld [vmem:[%s236 + $0x248] sm:$0xff]
        %v388 = vld [vmem:[%s236 + $0x250] sm:$0xff]
        %v389 = vld [vmem:[%s236 + $0x258] sm:$0xff]
        %v390 = vld [vmem:[%s236 + $0x260] sm:$0xff]
        %v391 = vld [vmem:[%s236 + $0x268] sm:$0xff]
        %v392 = vld [vmem:[%s236 + $0x270] sm:$0xff]
        %v393 = vld [vmem:[%s236 + $0x278] sm:$0xff]
        %v394 = vld [vmem:[%s236 + $0x280] sm:$0xff]
        %v395 = vld [vmem:[%s236 + $0x288] sm:$0xff]
        %v396 = vld [vmem:[%s236 + $0x290] sm:$0xff]
        %v397 = vld [vmem:[%s236 + $0x298] sm:$0xff]
        %v398 = vld [vmem:[%s236 + $0x2a0] sm:$0xff]
        %v399 = vld [vmem:[%s236 + $0x2a8] sm:$0xff]
        %v400 = vld [vmem:[%s236 + $0x2b0] sm:$0xff]
        %v401 = vld [vmem:[%s236 + $0x2b8] sm:$0xff]
        %v402 = vld [vmem:[%s236 + $0x2c0] sm:$0xff]
        %v403 = vld [vmem:[%s236 + $0x2c8] sm:$0xff]
        %v404 = vld [vmem:[%s236 + $0x2d0] sm:$0xff]
        %v405 = vld [vmem:[%s236 + $0x2d8] sm:$0xff]
        %v406 = vld [vmem:[%s236 + $0x2e0] sm:$0xff]
        %v407 = vld [vmem:[%s236 + $0x2e8] sm:$0xff]
        %v408 = vld [vmem:[%s236 + $0x2f0] sm:$0xff]
        %v409 = vld [vmem:[%s236 + $0x2f8] sm:$0xff]
        %v410 = vld [vmem:[%s236 + $0x300] sm:$0xff]
        %v411 = vld [vmem:[%s236 + $0x308] sm:$0xff]
        %v412 = vld [vmem:[%s236 + $0x310] sm:$0xff]
        %v413 = vld [vmem:[%s236 + $0x318] sm:$0xff]
        %v414 = vld [vmem:[%s236 + $0x320] sm:$0xff]
        %v415 = vld [vmem:[%s236 + $0x328] sm:$0xff]
        %v416 = vld [vmem:[%s236 + $0x330] sm:$0xff]
        %v417 = vld [vmem:[%s236 + $0x338] sm:$0xff]
        %v418 = vld [vmem:[%s236 + $0x340] sm:$0xff]
        %v419 = vld [vmem:[%s236 + $0x348] sm:$0xff]
        %v420 = vld [vmem:[%s236 + $0x350] sm:$0xff]
        %v421 = vld [vmem:[%s236 + $0x358] sm:$0xff]
        %v422 = vld [vmem:[%s236 + $0x360] sm:$0xff]
        %v423 = vld [vmem:[%s236 + $0x368] sm:$0xff]
        %v424 = vld [vmem:[%s236 + $0x370] sm:$0xff]
        %v425 = vld [vmem:[%s236 + $0x378] sm:$0xff]
        %v426 = vld [vmem:[%s236 + $0x380] sm:$0xff]
        %v427 = vld [vmem:[%s236 + $0x388] sm:$0xff]
        %v428 = vld [vmem:[%s236 + $0x390] sm:$0xff]
        %v429 = vld [vmem:[%s236 + $0x398] sm:$0xff]
        %v430 = vld [vmem:[%s236 + $0x3a0] sm:$0xff]
        %v431 = vld [vmem:[%s236 + $0x3a8] sm:$0xff]
        %v432 = vld [vmem:[%s236 + $0x3b0] sm:$0xff]
        %v433 = vld [vmem:[%s236 + $0x3b8] sm:$0xff]
        %v434 = vld [vmem:[%s236 + $0x3c0] sm:$0xff]
        %v435 = vld [vmem:[%s236 + $0x3c8] sm:$0xff]
        %v436 = vld [vmem:[%s236 + $0x3d0] sm:$0xff]
        %v437 = vld [vmem:[%s236 + $0x3d8] sm:$0xff]
        %v438 = vld [vmem:[%s236 + $0x3e0] sm:$0xff]
        %v439 = vld [vmem:[%s236 + $0x3e8] sm:$0xff]
        %v440 = vld [vmem:[%s236 + $0x3f0] sm:$0xff]
        %v441 = vld [vmem:[%s236 + $0x3f8] sm:$0xff]
        %v442 = vunpack.c.l.s8.bf16 %v314
        %v443 = vunpack.c.l.s8.bf16 %v315
        %v444 = vunpack.c.h.s8.bf16 %v314
        %v445 = vunpack.c.h.s8.bf16 %v315
        %v446 = vunpack.c.l.s8.bf16 %v316
        %v447 = vunpack.c.l.s8.bf16 %v317
        %v448 = vunpack.c.h.s8.bf16 %v316
        %v449 = vunpack.c.h.s8.bf16 %v317
        %v450 = vunpack.c.l.s8.bf16 %v318
        %v451 = vunpack.c.l.s8.bf16 %v319
        %v452 = vunpack.c.h.s8.bf16 %v318
        %v453 = vunpack.c.h.s8.bf16 %v319
        %v454 = vunpack.c.l.s8.bf16 %v320
        %v455 = vunpack.c.l.s8.bf16 %v321
        %v456 = vunpack.c.h.s8.bf16 %v320
        %v457 = vunpack.c.h.s8.bf16 %v321
        %v458 = vunpack.c.l.s8.bf16 %v322
        %v459 = vunpack.c.l.s8.bf16 %v323
        %v460 = vunpack.c.h.s8.bf16 %v322
        %v461 = vunpack.c.h.s8.bf16 %v323
        %v462 = vunpack.c.l.s8.bf16 %v324
        %v463 = vunpack.c.l.s8.bf16 %v325
        %v464 = vunpack.c.h.s8.bf16 %v324
        %v465 = vunpack.c.h.s8.bf16 %v325
        %v466 = vunpack.c.l.s8.bf16 %v326
        %v467 = vunpack.c.l.s8.bf16 %v327
        %v468 = vunpack.c.h.s8.bf16 %v326
        %v469 = vunpack.c.h.s8.bf16 %v327
        %v470 = vunpack.c.l.s8.bf16 %v328
        %v471 = vunpack.c.l.s8.bf16 %v329
        %v472 = vunpack.c.h.s8.bf16 %v328
        %v473 = vunpack.c.h.s8.bf16 %v329
        %v474 = vunpack.c.l.s8.bf16 %v330
        %v475 = vunpack.c.l.s8.bf16 %v331
        %v476 = vunpack.c.h.s8.bf16 %v330
        %v477 = vunpack.c.h.s8.bf16 %v331
        %v478 = vunpack.c.l.s8.bf16 %v332
        %v479 = vunpack.c.l.s8.bf16 %v333
        %v480 = vunpack.c.h.s8.bf16 %v332
        %v481 = vunpack.c.h.s8.bf16 %v333
        %v482 = vunpack.c.l.s8.bf16 %v334
        %v483 = vunpack.c.l.s8.bf16 %v335
        %v484 = vunpack.c.h.s8.bf16 %v334
        %v485 = vunpack.c.h.s8.bf16 %v335
        %v486 = vunpack.c.l.s8.bf16 %v336
        %v487 = vunpack.c.l.s8.bf16 %v337
        %v488 = vunpack.c.h.s8.bf16 %v336
        %v489 = vunpack.c.h.s8.bf16 %v337
        %v490 = vunpack.c.l.s8.bf16 %v338
        %v491 = vunpack.c.l.s8.bf16 %v339
        %v492 = vunpack.c.h.s8.bf16 %v338
        %v493 = vunpack.c.h.s8.bf16 %v339
        %v494 = vunpack.c.l.s8.bf16 %v340
        %v495 = vunpack.c.l.s8.bf16 %v341
        %v496 = vunpack.c.h.s8.bf16 %v340
        %v497 = vunpack.c.h.s8.bf16 %v341
        %v498 = vunpack.c.l.s8.bf16 %v342
        %v499 = vunpack.c.l.s8.bf16 %v343
        %v500 = vunpack.c.h.s8.bf16 %v342
        %v501 = vunpack.c.h.s8.bf16 %v343
        %v502 = vunpack.c.l.s8.bf16 %v344
        %v503 = vunpack.c.l.s8.bf16 %v345
        %v504 = vunpack.c.h.s8.bf16 %v344
        %v505 = vunpack.c.h.s8.bf16 %v345
        %v506 = vunpack.c.l.s8.bf16 %v346
        %v507 = vunpack.c.l.s8.bf16 %v347
        %v508 = vunpack.c.h.s8.bf16 %v346
        %v509 = vunpack.c.h.s8.bf16 %v347
        %v510 = vunpack.c.l.s8.bf16 %v348
        %v511 = vunpack.c.l.s8.bf16 %v349
        %v512 = vunpack.c.h.s8.bf16 %v348
        %v513 = vunpack.c.h.s8.bf16 %v349
        %v514 = vunpack.c.l.s8.bf16 %v350
        %v515 = vunpack.c.l.s8.bf16 %v351
        %v516 = vunpack.c.h.s8.bf16 %v350
        %v517 = vunpack.c.h.s8.bf16 %v351
        %v518 = vunpack.c.l.s8.bf16 %v352
        %v519 = vunpack.c.l.s8.bf16 %v353
        %v520 = vunpack.c.h.s8.bf16 %v352
        %v521 = vunpack.c.h.s8.bf16 %v353
        %v522 = vunpack.c.l.s8.bf16 %v354
        %v523 = vunpack.c.l.s8.bf16 %v355
        %v524 = vunpack.c.h.s8.bf16 %v354
        %v525 = vunpack.c.h.s8.bf16 %v355
        %v526 = vunpack.c.l.s8.bf16 %v356
        %v527 = vunpack.c.l.s8.bf16 %v357
        %v528 = vunpack.c.h.s8.bf16 %v356
        %v529 = vunpack.c.h.s8.bf16 %v357
        %v530 = vunpack.c.l.s8.bf16 %v358
        %v531 = vunpack.c.l.s8.bf16 %v359
        %v532 = vunpack.c.h.s8.bf16 %v358
        %v533 = vunpack.c.h.s8.bf16 %v359
        %v534 = vunpack.c.l.s8.bf16 %v360
        %v535 = vunpack.c.l.s8.bf16 %v361
        %v536 = vunpack.c.h.s8.bf16 %v360
        %v537 = vunpack.c.h.s8.bf16 %v361
        %v538 = vunpack.c.l.s8.bf16 %v362
        %v539 = vunpack.c.l.s8.bf16 %v363
        %v540 = vunpack.c.h.s8.bf16 %v362
        %v541 = vunpack.c.h.s8.bf16 %v363
        %v542 = vunpack.c.l.s8.bf16 %v364
        %v543 = vunpack.c.l.s8.bf16 %v365
        %v544 = vunpack.c.h.s8.bf16 %v364
        %v545 = vunpack.c.h.s8.bf16 %v365
        %v546 = vunpack.c.l.s8.bf16 %v366
        %v547 = vunpack.c.l.s8.bf16 %v367
        %v548 = vunpack.c.h.s8.bf16 %v366
        %v549 = vunpack.c.h.s8.bf16 %v367
        %v550 = vunpack.c.l.s8.bf16 %v368
        %v551 = vunpack.c.l.s8.bf16 %v369
        %v552 = vunpack.c.h.s8.bf16 %v368
        %v553 = vunpack.c.h.s8.bf16 %v369
        %v554 = vunpack.c.l.s8.bf16 %v370
        %v555 = vunpack.c.l.s8.bf16 %v371
        %v556 = vunpack.c.h.s8.bf16 %v370
        %v557 = vunpack.c.h.s8.bf16 %v371
        %v558 = vunpack.c.l.s8.bf16 %v372
        %v559 = vunpack.c.l.s8.bf16 %v373
        %v560 = vunpack.c.h.s8.bf16 %v372
        %v561 = vunpack.c.h.s8.bf16 %v373
        %v562 = vunpack.c.l.s8.bf16 %v374
        %v563 = vunpack.c.l.s8.bf16 %v375
        %v564 = vunpack.c.h.s8.bf16 %v374
        %v565 = vunpack.c.h.s8.bf16 %v375
        %v566 = vunpack.c.l.s8.bf16 %v376
        %v567 = vunpack.c.l.s8.bf16 %v377
        %v568 = vunpack.c.h.s8.bf16 %v376
        %v569 = vunpack.c.h.s8.bf16 %v377
        %v570 = vunpack.c.l.s8.bf16 %v378
        %v571 = vunpack.c.l.s8.bf16 %v379
        %v572 = vunpack.c.h.s8.bf16 %v378
        %v573 = vunpack.c.h.s8.bf16 %v379
        %v574 = vunpack.c.l.s8.bf16 %v380
        %v575 = vunpack.c.l.s8.bf16 %v381
        %v576 = vunpack.c.h.s8.bf16 %v380
        %v577 = vunpack.c.h.s8.bf16 %v381
        %v578 = vunpack.c.l.s8.bf16 %v382
        %v579 = vunpack.c.l.s8.bf16 %v383
        %v580 = vunpack.c.h.s8.bf16 %v382
        %v581 = vunpack.c.h.s8.bf16 %v383
        %v582 = vunpack.c.l.s8.bf16 %v384
        %v583 = vunpack.c.l.s8.bf16 %v385
        %v584 = vunpack.c.h.s8.bf16 %v384
        %v585 = vunpack.c.h.s8.bf16 %v385
        %v586 = vunpack.c.l.s8.bf16 %v386
        %v587 = vunpack.c.l.s8.bf16 %v387
        %v588 = vunpack.c.h.s8.bf16 %v386
        %v589 = vunpack.c.h.s8.bf16 %v387
        %v590 = vunpack.c.l.s8.bf16 %v388
        %v591 = vunpack.c.l.s8.bf16 %v389
        %v592 = vunpack.c.h.s8.bf16 %v388
        %v593 = vunpack.c.h.s8.bf16 %v389
        %v594 = vunpack.c.l.s8.bf16 %v390
        %v595 = vunpack.c.l.s8.bf16 %v391
        %v596 = vunpack.c.h.s8.bf16 %v390
        %v597 = vunpack.c.h.s8.bf16 %v391
        %v598 = vunpack.c.l.s8.bf16 %v392
        %v599 = vunpack.c.l.s8.bf16 %v393
        %v600 = vunpack.c.h.s8.bf16 %v392
        %v601 = vunpack.c.h.s8.bf16 %v393
        %v602 = vunpack.c.l.s8.bf16 %v394
        %v603 = vunpack.c.l.s8.bf16 %v395
        %v604 = vunpack.c.h.s8.bf16 %v394
        %v605 = vunpack.c.h.s8.bf16 %v395
        %v606 = vunpack.c.l.s8.bf16 %v396
        %v607 = vunpack.c.l.s8.bf16 %v397
        %v608 = vunpack.c.h.s8.bf16 %v396
        %v609 = vunpack.c.h.s8.bf16 %v397
        %v610 = vunpack.c.l.s8.bf16 %v398
        %v611 = vunpack.c.l.s8.bf16 %v399
        %v612 = vunpack.c.h.s8.bf16 %v398
        %v613 = vunpack.c.h.s8.bf16 %v399
        %v614 = vunpack.c.l.s8.bf16 %v400
        %v615 = vunpack.c.l.s8.bf16 %v401
        %v616 = vunpack.c.h.s8.bf16 %v400
        %v617 = vunpack.c.h.s8.bf16 %v401
        %v618 = vunpack.c.l.s8.bf16 %v402
        %v619 = vunpack.c.l.s8.bf16 %v403
        %v620 = vunpack.c.h.s8.bf16 %v402
        %v621 = vunpack.c.h.s8.bf16 %v403
        %v622 = vunpack.c.l.s8.bf16 %v404
        %v623 = vunpack.c.l.s8.bf16 %v405
        %v624 = vunpack.c.h.s8.bf16 %v404
        %v625 = vunpack.c.h.s8.bf16 %v405
        %v626 = vunpack.c.l.s8.bf16 %v406
        %v627 = vunpack.c.l.s8.bf16 %v407
        %v628 = vunpack.c.h.s8.bf16 %v406
        %v629 = vunpack.c.h.s8.bf16 %v407
        %v630 = vunpack.c.l.s8.bf16 %v408
        %v631 = vunpack.c.l.s8.bf16 %v409
        %v632 = vunpack.c.h.s8.bf16 %v408
        %v633 = vunpack.c.h.s8.bf16 %v409
        %v634 = vunpack.c.l.s8.bf16 %v410
        %v635 = vunpack.c.l.s8.bf16 %v411
        %v636 = vunpack.c.h.s8.bf16 %v410
        %v637 = vunpack.c.h.s8.bf16 %v411
        %v638 = vunpack.c.l.s8.bf16 %v412
        %v639 = vunpack.c.l.s8.bf16 %v413
        %v640 = vunpack.c.h.s8.bf16 %v412
        %v641 = vunpack.c.h.s8.bf16 %v413
        %v642 = vunpack.c.l.s8.bf16 %v414
        %v643 = vunpack.c.l.s8.bf16 %v415
        %v644 = vunpack.c.h.s8.bf16 %v414
        %v645 = vunpack.c.h.s8.bf16 %v415
        %v646 = vunpack.c.l.s8.bf16 %v416
        %v647 = vunpack.c.l.s8.bf16 %v417
        %v648 = vunpack.c.h.s8.bf16 %v416
        %v649 = vunpack.c.h.s8.bf16 %v417
        %v650 = vunpack.c.l.s8.bf16 %v418
        %v651 = vunpack.c.l.s8.bf16 %v419
        %v652 = vunpack.c.h.s8.bf16 %v418
        %v653 = vunpack.c.h.s8.bf16 %v419
        %v654 = vunpack.c.l.s8.bf16 %v420
        %v655 = vunpack.c.l.s8.bf16 %v421
        %v656 = vunpack.c.h.s8.bf16 %v420
        %v657 = vunpack.c.h.s8.bf16 %v421
        %v658 = vunpack.c.l.s8.bf16 %v422
        %v659 = vunpack.c.l.s8.bf16 %v423
        %v660 = vunpack.c.h.s8.bf16 %v422
        %v661 = vunpack.c.h.s8.bf16 %v423
        %v662 = vunpack.c.l.s8.bf16 %v424
        %v663 = vunpack.c.l.s8.bf16 %v425
        %v664 = vunpack.c.h.s8.bf16 %v424
        %v665 = vunpack.c.h.s8.bf16 %v425
        %v666 = vunpack.c.l.s8.bf16 %v426
        %v667 = vunpack.c.l.s8.bf16 %v427
        %v668 = vunpack.c.h.s8.bf16 %v426
        %v669 = vunpack.c.h.s8.bf16 %v427
        %v670 = vunpack.c.l.s8.bf16 %v428
        %v671 = vunpack.c.l.s8.bf16 %v429
        %v672 = vunpack.c.h.s8.bf16 %v428
        %v673 = vunpack.c.h.s8.bf16 %v429
        %v674 = vunpack.c.l.s8.bf16 %v430
        %v675 = vunpack.c.l.s8.bf16 %v431
        %v676 = vunpack.c.h.s8.bf16 %v430
        %v677 = vunpack.c.h.s8.bf16 %v431
        %v678 = vunpack.c.l.s8.bf16 %v432
        %v679 = vunpack.c.l.s8.bf16 %v433
        %v680 = vunpack.c.h.s8.bf16 %v432
        %v681 = vunpack.c.h.s8.bf16 %v433
        %v682 = vunpack.c.l.s8.bf16 %v434
        %v683 = vunpack.c.l.s8.bf16 %v435
        %v684 = vunpack.c.h.s8.bf16 %v434
        %v685 = vunpack.c.h.s8.bf16 %v435
        %v686 = vunpack.c.l.s8.bf16 %v436
        %v687 = vunpack.c.l.s8.bf16 %v437
        %v688 = vunpack.c.h.s8.bf16 %v436
        %v689 = vunpack.c.h.s8.bf16 %v437
        %v690 = vunpack.c.l.s8.bf16 %v438
        %v691 = vunpack.c.l.s8.bf16 %v439
        %v692 = vunpack.c.h.s8.bf16 %v438
        %v693 = vunpack.c.h.s8.bf16 %v439
        %v694 = vunpack.c.l.s8.bf16 %v440
        %v695 = vunpack.c.l.s8.bf16 %v441
        %v696 = vunpack.c.h.s8.bf16 %v440
        %v697 = vunpack.c.h.s8.bf16 %v441
        %v706 = vunpack.c.l.b16 %v306
        %v707 = vunpack.c.h.b16 %v306
        %v708 = vunpack.c.l.b16 %v307
        %v709 = vunpack.c.h.b16 %v307
        %v710 = vunpack.c.l.b16 %v308
        %v711 = vunpack.c.h.b16 %v308
        %v712 = vunpack.c.l.b16 %v309
        %v713 = vunpack.c.h.b16 %v309
        %v714 = vunpack.c.l.b16 %v310
        %v715 = vunpack.c.h.b16 %v310
        %v716 = vunpack.c.l.b16 %v311
        %v717 = vunpack.c.h.b16 %v311
        %v718 = vunpack.c.l.b16 %v312
        %v719 = vunpack.c.h.b16 %v312
        %v720 = vunpack.c.l.b16 %v313
        %v721 = vunpack.c.h.b16 %v313
        %v722 = vpack.c.b16 %v706, %v706
        %v723 = vpack.c.b16 %v707, %v707
        %v724 = vpack.c.b16 %v708, %v708
        %v725 = vpack.c.b16 %v709, %v709
        %v726 = vpack.c.b16 %v710, %v710
        %v727 = vpack.c.b16 %v711, %v711
        %v728 = vpack.c.b16 %v712, %v712
        %v729 = vpack.c.b16 %v713, %v713
        %v730 = vpack.c.b16 %v714, %v714
        %v731 = vpack.c.b16 %v715, %v715
        %v732 = vpack.c.b16 %v716, %v716
        %v733 = vpack.c.b16 %v717, %v717
        %v734 = vpack.c.b16 %v718, %v718
        %v735 = vpack.c.b16 %v719, %v719
        %v736 = vpack.c.b16 %v720, %v720
        %v737 = vpack.c.b16 %v721, %v721
        %754 = vmatprep.subr.bf16.mxu0 %v443
        %755 = vmatpush1.bf16.msra.mxu0 %v442
        %756 = vmatprep.subr.bf16.mxu0 %v445
        %757 = vmatpush1.bf16.msra.mxu0 %v444
        %758 = vmatprep.subr.bf16.mxu0 %v447
        %759 = vmatpush1.bf16.msra.mxu0 %v446
        %760 = vmatprep.subr.bf16.mxu0 %v449
        %761 = vmatpush1.bf16.msra.mxu0 %v448
        %762 = vmatprep.subr.bf16.mxu0 %v451
        %763 = vmatpush1.bf16.msra.mxu0 %v450
        %764 = vmatprep.subr.bf16.mxu0 %v453
        %765 = vmatpush1.bf16.msra.mxu0 %v452
        %766 = vmatprep.subr.bf16.mxu0 %v455
        %767 = vmatpush1.bf16.msra.mxu0 %v454
        %768 = vmatprep.subr.bf16.mxu0 %v457
        %769 = vmatpush1.bf16.msra.mxu0 %v456
        %770 = vmatprep.subr.bf16.mxu0 %v459
        %771 = vmatpush1.bf16.msra.mxu0 %v458
        %772 = vmatprep.subr.bf16.mxu0 %v461
        %773 = vmatpush1.bf16.msra.mxu0 %v460
        %774 = vmatprep.subr.bf16.mxu0 %v463
        %775 = vmatpush1.bf16.msra.mxu0 %v462
        %776 = vmatprep.subr.bf16.mxu0 %v465
        %777 = vmatpush1.bf16.msra.mxu0 %v464
        %778 = vmatprep.subr.bf16.mxu0 %v467
        %779 = vmatpush1.bf16.msra.mxu0 %v466
        %780 = vmatprep.subr.bf16.mxu0 %v469
        %781 = vmatpush1.bf16.msra.mxu0 %v468
        %782 = vmatprep.subr.bf16.mxu0 %v471
        %783 = vmatpush1.bf16.msra.mxu0 %v470
        %784 = vmatprep.subr.bf16.mxu0 %v473
        %785 = vmatpush1.bf16.msra.mxu0 %v472
        %786 = vmatprep.mubr.bf16.mxu0 %v723
        %787 = vmatmul.mubr.bf16.gmra.mrb[0].mxu0 %v722
        %v788 = vpop.f32.mrb[0].mxu0
        %v789 = vadd.f32 0.0, %v788
        %v790 = vpop.f32.mrb[0].mxu0
        %v791 = vadd.f32 0.0, %v790
        %v792 = vpop.f32.mrb[0].mxu0
        %v793 = vpop.f32.mrb[0].mxu0
        %794 = vdwg.mxu0
        %795 = vmatprep.subr.bf16.mxu0 %v475
        %796 = vmatpush1.bf16.msra.mxu0 %v474
        %797 = vmatprep.subr.bf16.mxu0 %v477
        %798 = vmatpush1.bf16.msra.mxu0 %v476
        %799 = vmatprep.subr.bf16.mxu0 %v479
        %800 = vmatpush1.bf16.msra.mxu0 %v478
        %801 = vmatprep.subr.bf16.mxu0 %v481
        %802 = vmatpush1.bf16.msra.mxu0 %v480
        %803 = vmatprep.subr.bf16.mxu0 %v483
        %804 = vmatpush1.bf16.msra.mxu0 %v482
        %805 = vmatprep.subr.bf16.mxu0 %v485
        %806 = vmatpush1.bf16.msra.mxu0 %v484
        %807 = vmatprep.subr.bf16.mxu0 %v487
        %808 = vmatpush1.bf16.msra.mxu0 %v486
        %809 = vmatprep.subr.bf16.mxu0 %v489
        %810 = vmatpush1.bf16.msra.mxu0 %v488
        %811 = vmatprep.subr.bf16.mxu0 %v491
        %812 = vmatpush1.bf16.msra.mxu0 %v490
        %813 = vmatprep.subr.bf16.mxu0 %v493
        %814 = vmatpush1.bf16.msra.mxu0 %v492
        %815 = vmatprep.subr.bf16.mxu0 %v495
        %816 = vmatpush1.bf16.msra.mxu0 %v494
        %817 = vmatprep.subr.bf16.mxu0 %v497
        %818 = vmatpush1.bf16.msra.mxu0 %v496
        %819 = vmatprep.subr.bf16.mxu0 %v499
        %820 = vmatpush1.bf16.msra.mxu0 %v498
        %821 = vmatprep.subr.bf16.mxu0 %v501
        %822 = vmatpush1.bf16.msra.mxu0 %v500
        %823 = vmatprep.subr.bf16.mxu0 %v503
        %824 = vmatpush1.bf16.msra.mxu0 %v502
        %825 = vmatprep.subr.bf16.mxu0 %v505
        %826 = vmatpush1.bf16.msra.mxu0 %v504
        %827 = vmatprep.mubr.bf16.mxu0 %v725
        %828 = vmatmul.mubr.bf16.gmra.mrb[0].mxu0 %v724
        %v829 = vpop.f32.mrb[0].mxu0
        %v830 = vadd.f32 %v789, %v829
        %v831 = vpop.f32.mrb[0].mxu0
        %v832 = vadd.f32 %v791, %v831
        %v833 = vpop.f32.mrb[0].mxu0
        %v834 = vpop.f32.mrb[0].mxu0
        %835 = vdwg.mxu0
        %836 = vmatprep.subr.bf16.mxu0 %v507
        %837 = vmatpush1.bf16.msra.mxu0 %v506
        %838 = vmatprep.subr.bf16.mxu0 %v509
        %839 = vmatpush1.bf16.msra.mxu0 %v508
        %840 = vmatprep.subr.bf16.mxu0 %v511
        %841 = vmatpush1.bf16.msra.mxu0 %v510
        %842 = vmatprep.subr.bf16.mxu0 %v513
        %843 = vmatpush1.bf16.msra.mxu0 %v512
        %844 = vmatprep.subr.bf16.mxu0 %v515
        %845 = vmatpush1.bf16.msra.mxu0 %v514
        %846 = vmatprep.subr.bf16.mxu0 %v517
        %847 = vmatpush1.bf16.msra.mxu0 %v516
        %848 = vmatprep.subr.bf16.mxu0 %v519
        %849 = vmatpush1.bf16.msra.mxu0 %v518
        %850 = vmatprep.subr.bf16.mxu0 %v521
        %851 = vmatpush1.bf16.msra.mxu0 %v520
        %852 = vmatprep.subr.bf16.mxu0 %v523
        %853 = vmatpush1.bf16.msra.mxu0 %v522
        %854 = vmatprep.subr.bf16.mxu0 %v525
        %855 = vmatpush1.bf16.msra.mxu0 %v524
        %856 = vmatprep.subr.bf16.mxu0 %v527
        %857 = vmatpush1.bf16.msra.mxu0 %v526
        %858 = vmatprep.subr.bf16.mxu0 %v529
        %859 = vmatpush1.bf16.msra.mxu0 %v528
        %860 = vmatprep.subr.bf16.mxu0 %v531
        %861 = vmatpush1.bf16.msra.mxu0 %v530
        %862 = vmatprep.subr.bf16.mxu0 %v533
        %863 = vmatpush1.bf16.msra.mxu0 %v532
        %864 = vmatprep.subr.bf16.mxu0 %v535
        %865 = vmatpush1.bf16.msra.mxu0 %v534
        %866 = vmatprep.subr.bf16.mxu0 %v537
        %867 = vmatpush1.bf16.msra.mxu0 %v536
        %868 = vmatprep.mubr.bf16.mxu0 %v727
        %869 = vmatmul.mubr.bf16.gmra.mrb[0].mxu0 %v726
        %v870 = vpop.f32.mrb[0].mxu0
        %v871 = vadd.f32 %v830, %v870
        %v872 = vpop.f32.mrb[0].mxu0
        %v873 = vadd.f32 %v832, %v872
        %v874 = vpop.f32.mrb[0].mxu0
        %v875 = vpop.f32.mrb[0].mxu0
        %876 = vdwg.mxu0
        %877 = vmatprep.subr.bf16.mxu0 %v539
        %878 = vmatpush1.bf16.msra.mxu0 %v538
        %879 = vmatprep.subr.bf16.mxu0 %v541
        %880 = vmatpush1.bf16.msra.mxu0 %v540
        %881 = vmatprep.subr.bf16.mxu0 %v543
        %882 = vmatpush1.bf16.msra.mxu0 %v542
        %883 = vmatprep.subr.bf16.mxu0 %v545
        %884 = vmatpush1.bf16.msra.mxu0 %v544
        %885 = vmatprep.subr.bf16.mxu0 %v547
        %886 = vmatpush1.bf16.msra.mxu0 %v546
        %887 = vmatprep.subr.bf16.mxu0 %v549
        %888 = vmatpush1.bf16.msra.mxu0 %v548
        %889 = vmatprep.subr.bf16.mxu0 %v551
        %890 = vmatpush1.bf16.msra.mxu0 %v550
        %891 = vmatprep.subr.bf16.mxu0 %v553
        %892 = vmatpush1.bf16.msra.mxu0 %v552
        %893 = vmatprep.subr.bf16.mxu0 %v555
        %894 = vmatpush1.bf16.msra.mxu0 %v554
        %895 = vmatprep.subr.bf16.mxu0 %v557
        %896 = vmatpush1.bf16.msra.mxu0 %v556
        %897 = vmatprep.subr.bf16.mxu0 %v559
        %898 = vmatpush1.bf16.msra.mxu0 %v558
        %899 = vmatprep.subr.bf16.mxu0 %v561
        %900 = vmatpush1.bf16.msra.mxu0 %v560
        %901 = vmatprep.subr.bf16.mxu0 %v563
        %902 = vmatpush1.bf16.msra.mxu0 %v562
        %903 = vmatprep.subr.bf16.mxu0 %v565
        %904 = vmatpush1.bf16.msra.mxu0 %v564
        %905 = vmatprep.subr.bf16.mxu0 %v567
        %906 = vmatpush1.bf16.msra.mxu0 %v566
        %907 = vmatprep.subr.bf16.mxu0 %v569
        %908 = vmatpush1.bf16.msra.mxu0 %v568
        %909 = vmatprep.mubr.bf16.mxu0 %v729
        %910 = vmatmul.mubr.bf16.gmra.mrb[0].mxu0 %v728
        %v911 = vpop.f32.mrb[0].mxu0
        %v912 = vadd.f32 %v871, %v911
        %v913 = vpop.f32.mrb[0].mxu0
        %v914 = vadd.f32 %v873, %v913
        %v915 = vpop.f32.mrb[0].mxu0
        %v916 = vpop.f32.mrb[0].mxu0
        %917 = vdwg.mxu0
        %918 = vmatprep.subr.bf16.mxu0 %v571
        %919 = vmatpush1.bf16.msra.mxu0 %v570
        %920 = vmatprep.subr.bf16.mxu0 %v573
        %921 = vmatpush1.bf16.msra.mxu0 %v572
        %922 = vmatprep.subr.bf16.mxu0 %v575
        %923 = vmatpush1.bf16.msra.mxu0 %v574
        %924 = vmatprep.subr.bf16.mxu0 %v577
        %925 = vmatpush1.bf16.msra.mxu0 %v576
        %926 = vmatprep.subr.bf16.mxu0 %v579
        %927 = vmatpush1.bf16.msra.mxu0 %v578
        %928 = vmatprep.subr.bf16.mxu0 %v581
        %929 = vmatpush1.bf16.msra.mxu0 %v580
        %930 = vmatprep.subr.bf16.mxu0 %v583
        %931 = vmatpush1.bf16.msra.mxu0 %v582
        %932 = vmatprep.subr.bf16.mxu0 %v585
        %933 = vmatpush1.bf16.msra.mxu0 %v584
        %934 = vmatprep.subr.bf16.mxu0 %v587
        %935 = vmatpush1.bf16.msra.mxu0 %v586
        %936 = vmatprep.subr.bf16.mxu0 %v589
        %937 = vmatpush1.bf16.msra.mxu0 %v588
        %938 = vmatprep.subr.bf16.mxu0 %v591
        %939 = vmatpush1.bf16.msra.mxu0 %v590
        %940 = vmatprep.subr.bf16.mxu0 %v593
        %941 = vmatpush1.bf16.msra.mxu0 %v592
        %942 = vmatprep.subr.bf16.mxu0 %v595
        %943 = vmatpush1.bf16.msra.mxu0 %v594
        %944 = vmatprep.subr.bf16.mxu0 %v597
        %945 = vmatpush1.bf16.msra.mxu0 %v596
        %946 = vmatprep.subr.bf16.mxu0 %v599
        %947 = vmatpush1.bf16.msra.mxu0 %v598
        %948 = vmatprep.subr.bf16.mxu0 %v601
        %949 = vmatpush1.bf16.msra.mxu0 %v600
        %950 = vmatprep.mubr.bf16.mxu0 %v731
        %951 = vmatmul.mubr.bf16.gmra.mrb[0].mxu0 %v730
        %v952 = vpop.f32.mrb[0].mxu0
        %v953 = vadd.f32 %v912, %v952
        %v954 = vpop.f32.mrb[0].mxu0
        %v955 = vadd.f32 %v914, %v954
        %v956 = vpop.f32.mrb[0].mxu0
        %v957 = vpop.f32.mrb[0].mxu0
        %958 = vdwg.mxu0
        %959 = vmatprep.subr.bf16.mxu0 %v603
        %960 = vmatpush1.bf16.msra.mxu0 %v602
        %961 = vmatprep.subr.bf16.mxu0 %v605
        %962 = vmatpush1.bf16.msra.mxu0 %v604
        %963 = vmatprep.subr.bf16.mxu0 %v607
        %964 = vmatpush1.bf16.msra.mxu0 %v606
        %965 = vmatprep.subr.bf16.mxu0 %v609
        %966 = vmatpush1.bf16.msra.mxu0 %v608
        %967 = vmatprep.subr.bf16.mxu0 %v611
        %968 = vmatpush1.bf16.msra.mxu0 %v610
        %969 = vmatprep.subr.bf16.mxu0 %v613
        %970 = vmatpush1.bf16.msra.mxu0 %v612
        %971 = vmatprep.subr.bf16.mxu0 %v615
        %972 = vmatpush1.bf16.msra.mxu0 %v614
        %973 = vmatprep.subr.bf16.mxu0 %v617
        %974 = vmatpush1.bf16.msra.mxu0 %v616
        %975 = vmatprep.subr.bf16.mxu0 %v619
        %976 = vmatpush1.bf16.msra.mxu0 %v618
        %977 = vmatprep.subr.bf16.mxu0 %v621
        %978 = vmatpush1.bf16.msra.mxu0 %v620
        %979 = vmatprep.subr.bf16.mxu0 %v623
        %980 = vmatpush1.bf16.msra.mxu0 %v622
        %981 = vmatprep.subr.bf16.mxu0 %v625
        %982 = vmatpush1.bf16.msra.mxu0 %v624
        %983 = vmatprep.subr.bf16.mxu0 %v627
        %984 = vmatpush1.bf16.msra.mxu0 %v626
        %985 = vmatprep.subr.bf16.mxu0 %v629
        %986 = vmatpush1.bf16.msra.mxu0 %v628
        %987 = vmatprep.subr.bf16.mxu0 %v631
        %988 = vmatpush1.bf16.msra.mxu0 %v630
        %989 = vmatprep.subr.bf16.mxu0 %v633
        %990 = vmatpush1.bf16.msra.mxu0 %v632
        %991 = vmatprep.mubr.bf16.mxu0 %v733
        %992 = vmatmul.mubr.bf16.gmra.mrb[0].mxu0 %v732
        %v993 = vpop.f32.mrb[0].mxu0
        %v994 = vadd.f32 %v953, %v993
        %v995 = vpop.f32.mrb[0].mxu0
        %v996 = vadd.f32 %v955, %v995
        %v997 = vpop.f32.mrb[0].mxu0
        %v998 = vpop.f32.mrb[0].mxu0
        %999 = vdwg.mxu0
        %1000 = vmatprep.subr.bf16.mxu0 %v635
        %1001 = vmatpush1.bf16.msra.mxu0 %v634
        %1002 = vmatprep.subr.bf16.mxu0 %v637
        %1003 = vmatpush1.bf16.msra.mxu0 %v636
        %1004 = vmatprep.subr.bf16.mxu0 %v639
        %1005 = vmatpush1.bf16.msra.mxu0 %v638
        %1006 = vmatprep.subr.bf16.mxu0 %v641
        %1007 = vmatpush1.bf16.msra.mxu0 %v640
        %1008 = vmatprep.subr.bf16.mxu0 %v643
        %1009 = vmatpush1.bf16.msra.mxu0 %v642
        %1010 = vmatprep.subr.bf16.mxu0 %v645
        %1011 = vmatpush1.bf16.msra.mxu0 %v644
        %1012 = vmatprep.subr.bf16.mxu0 %v647
        %1013 = vmatpush1.bf16.msra.mxu0 %v646
        %1014 = vmatprep.subr.bf16.mxu0 %v649
        %1015 = vmatpush1.bf16.msra.mxu0 %v648
        %1016 = vmatprep.subr.bf16.mxu0 %v651
        %1017 = vmatpush1.bf16.msra.mxu0 %v650
        %1018 = vmatprep.subr.bf16.mxu0 %v653
        %1019 = vmatpush1.bf16.msra.mxu0 %v652
        %1020 = vmatprep.subr.bf16.mxu0 %v655
        %1021 = vmatpush1.bf16.msra.mxu0 %v654
        %1022 = vmatprep.subr.bf16.mxu0 %v657
        %1023 = vmatpush1.bf16.msra.mxu0 %v656
        %1024 = vmatprep.subr.bf16.mxu0 %v659
        %1025 = vmatpush1.bf16.msra.mxu0 %v658
        %1026 = vmatprep.subr.bf16.mxu0 %v661
        %1027 = vmatpush1.bf16.msra.mxu0 %v660
        %1028 = vmatprep.subr.bf16.mxu0 %v663
        %1029 = vmatpush1.bf16.msra.mxu0 %v662
        %1030 = vmatprep.subr.bf16.mxu0 %v665
        %1031 = vmatpush1.bf16.msra.mxu0 %v664
        %1032 = vmatprep.mubr.bf16.mxu0 %v735
        %1033 = vmatmul.mubr.bf16.gmra.mrb[0].mxu0 %v734
        %v1034 = vpop.f32.mrb[0].mxu0
        %v1035 = vadd.f32 %v994, %v1034
        %v1036 = vpop.f32.mrb[0].mxu0
        %v1037 = vadd.f32 %v996, %v1036
        %v1038 = vpop.f32.mrb[0].mxu0
        %v1039 = vpop.f32.mrb[0].mxu0
        %1040 = vdwg.mxu0
        %1041 = vmatprep.subr.bf16.mxu0 %v667
        %1042 = vmatpush1.bf16.msra.mxu0 %v666
        %1043 = vmatprep.subr.bf16.mxu0 %v669
        %1044 = vmatpush1.bf16.msra.mxu0 %v668
        %1045 = vmatprep.subr.bf16.mxu0 %v671
        %1046 = vmatpush1.bf16.msra.mxu0 %v670
        %1047 = vmatprep.subr.bf16.mxu0 %v673
        %1048 = vmatpush1.bf16.msra.mxu0 %v672
        %1049 = vmatprep.subr.bf16.mxu0 %v675
        %1050 = vmatpush1.bf16.msra.mxu0 %v674
        %1051 = vmatprep.subr.bf16.mxu0 %v677
        %1052 = vmatpush1.bf16.msra.mxu0 %v676
        %1053 = vmatprep.subr.bf16.mxu0 %v679
        %1054 = vmatpush1.bf16.msra.mxu0 %v678
        %1055 = vmatprep.subr.bf16.mxu0 %v681
        %1056 = vmatpush1.bf16.msra.mxu0 %v680
        %1057 = vmatprep.subr.bf16.mxu0 %v683
        %1058 = vmatpush1.bf16.msra.mxu0 %v682
        %1059 = vmatprep.subr.bf16.mxu0 %v685
        %1060 = vmatpush1.bf16.msra.mxu0 %v684
        %1061 = vmatprep.subr.bf16.mxu0 %v687
        %1062 = vmatpush1.bf16.msra.mxu0 %v686
        %1063 = vmatprep.subr.bf16.mxu0 %v689
        %1064 = vmatpush1.bf16.msra.mxu0 %v688
        %1065 = vmatprep.subr.bf16.mxu0 %v691
        %1066 = vmatpush1.bf16.msra.mxu0 %v690
        %1067 = vmatprep.subr.bf16.mxu0 %v693
        %1068 = vmatpush1.bf16.msra.mxu0 %v692
        %1069 = vmatprep.subr.bf16.mxu0 %v695
        %1070 = vmatpush1.bf16.msra.mxu0 %v694
        %1071 = vmatprep.subr.bf16.mxu0 %v697
        %1072 = vmatpush1.bf16.msra.mxu0 %v696
        %1073 = vmatprep.mubr.bf16.mxu0 %v737
        %1074 = vmatmul.mubr.bf16.gmra.mrb[0].mxu0 %v736
        %v1075 = vpop.f32.mrb[0].mxu0
        %v1076 = vadd.f32 %v1035, %v1075
        %v1077 = vpop.f32.mrb[0].mxu0
        %v1078 = vadd.f32 %v1037, %v1077
        %v1079 = vpop.f32.mrb[0].mxu0
        %v1080 = vpop.f32.mrb[0].mxu0
        %1081 = vdwg.mxu0
        %v1082 = vadd.f32 %v304, %v1076
        %v1083 = vadd.f32 %v305, %v1078
        %1084 = vst [vmem:[#allocation2] sm:$0xff] %v1082
        %1085 = vst [vmem:[#allocation2 + $0x8] sm:$0xff] %v1083
        %p1086 = scmp.eq.s32.totalorder %s23, 3
        // Predicated region
        $region45: #{cnn_net_forward.4} parent=35 // pred_check
          %p1087 = pneg %p1086
        $region46: #{cnn_net_forward.4} parent=35 // pred_check_branch
          %1089 = sbr.rel (%p1087) target = $region48
        $region47: #{cnn_net_forward.4} parent=35 // pred_region
          %v1090 = vld [vmem:[#allocation2] sm:$0xff]
          %v1091 = vld [vmem:[#allocation2 + $0x8] sm:$0xff]
          %v1092 = vld [vmem:[%s285] sm:$0x3]
          %v1094 = vlaneseq
          %v1095 = vshrl.u32 %v1094, 7
          %v1096 = vsub.s32 0, %v1095
          %v1097 = vrot.slane %v1092, %v1096
          %v1098 = vlaneseq
          %v1099 = vshrl.u32 %v1098, 7
          %v1100 = vsub.s32 1, %v1099
          %v1101 = vrot.slane %v1092, %v1100
          %v1104 = vmul.f32 %v1090, %v1097
          %v1105 = vmul.f32 %v1091, %v1101
          %v1106 = vld [vmem:[%s290] sm:$0x3]
          %v1108 = vlaneseq
          %v1109 = vshrl.u32 %v1108, 7
          %v1110 = vsub.s32 0, %v1109
          %v1111 = vrot.slane %v1106, %v1110
          %v1112 = vlaneseq
          %v1113 = vshrl.u32 %v1112, 7
          %v1114 = vsub.s32 1, %v1113
          %v1115 = vrot.slane %v1106, %v1114
          %v1118 = vadd.f32 %v1104, %v1111
          %v1119 = vadd.f32 %v1105, %v1115
          %1120 = vst [vmem:[%s296] sm:$0xff] %v1118
          %1121 = vst [vmem:[%s296 + $0x8] sm:$0xff] %v1119
        $region48: #{cnn_net_forward.4} parent=35 // pred_fallthru
          _
        %s1122 = smul.u32 2, %s22
        %p1123 = scmp.lt.s32.totalorder %s1122, 3
        %s1124 = scalar_select %p1123, %s1122, 3
        %s1125 = smul.addr %s1124, 8
        %s1126 = scalar_lea.vmem %s4, %s1125
        // Predicated region
        $region49: #{cnn_net_forward.4} parent=35 // pred_check
          %p1127 = pneg %p154
        $region50: #{cnn_net_forward.4} parent=35 // pred_check_branch
          %1129 = sbr.rel (%p1127) target = $region52
        $region51: #{cnn_net_forward.4} parent=35 // pred_region
          %s1130 = smul.u32 2, %s22
        $region52: #{cnn_net_forward.4} parent=35 // pred_fallthru
          _
      $region36: #{cnn_net_forward.4} parent=5 // pred_fallthru
        _
      %p1131 = scmp.le.s32.totalorder 2, %s13
      // Predicated region
      $region53: #{cnn_net_forward.4} parent=5 // pred_check
        %p1132 = pneg %p1131
      $region54: #{cnn_net_forward.4} parent=5 // pred_check_branch
        %1134 = sbr.rel (%p1132) target = $region56
      $region55: #{cnn_net_forward.4} parent=5 // pred_region
        %s1135 = ssub.s32 %s13, 2
        // Predicated region
        $region57: #{cnn_net_forward.4} parent=55 // pred_check
          %p1136 = pneg %p160
        $region58: #{cnn_net_forward.4} parent=55 // pred_check_branch
          %1138 = sbr.rel (%p1136) target = $region60
        $region59: #{cnn_net_forward.4} parent=55 // pred_region
          %s1139 = smul.u32 2, %s24
          %p1140 = scmp.lt.s32.totalorder %s1139, 3
          %s1141 = scalar_select %p1140, %s1139, 3
          %s1142 = smul.addr %s1141, 8
          %s1143 = scalar_lea.vmem %s4, %s1142
        $region60: #{cnn_net_forward.4} parent=55 // pred_fallthru
          _
      $region56: #{cnn_net_forward.4} parent=5 // pred_fallthru
        _
    $region6: #{cnn_net_forward.4} parent=1 // loop_footer
      %s17 = sadd.s32 1, %s13
    $region7: #{cnn_net_forward.4} parent=1 // loop_footer_branch
      %12 = sbr.rel target = $region3
    $region8: #{cnn_net_forward.4} parent=1 // loop_exit
      _
    %1144 = vsyncpa [#allocation4], 1
    %s1145 = scalar_lea.sflag [#allocation4], 1
    %1146 = vsyncpa %s1145, 1

// kernel: cnn_net_forward.5
$region0: #{cnn_net_forward.5}
  #allocation0 [shape = 'u32[]', space=smem, size = 0x4, offset = 0x4, fixed_abs, tag = 'smem constant byte address 0x4 - core index']
  #allocation1 [shape = 'u32[144,128]{1,0:T(1,128)}', space=vmem, size = 0x12000, scoped, tag = 'internal scratch']
  #allocation2 [shape = 'f32[4,2,384]{2,1,0:T(2,128)}', space=vmem, size = 0x3000, scoped, tag = 'scratch operand']
  %s0 = inlined_call_operand.vmem [shape: f32[4,2,512], index: 0, kind: input, shape index: {}]
  %s1 = inlined_call_operand.vmem [shape: bf16[512,384], index: 1, kind: input, shape index: {}]
  %s2 = inlined_call_operand.vmem [shape: f32[1,384], index: 2, kind: input, shape index: {}]
  %s3 = inlined_call_operand.vmem [shape: bf16[2,128,384], index: 3, kind: input, shape index: {}]
  %s4 = inlined_call_operand.vmem [shape: f32[2,1,384], index: 4, kind: input, shape index: {}]
  %s5 = inlined_call_operand.vmem [shape: bf16[3,128,384], index: 5, kind: input, shape index: {}]
  %s6 = inlined_call_operand.vmem [shape: f32[3,1,384], index: 6, kind: input, shape index: {}]
  %s7 = inlined_call_operand.vmem [shape: bf16[128,128], index: 7, kind: input, shape index: {}]
  %s8 = inlined_call_operand.vmem [shape: f32[1,128], index: 8, kind: input, shape index: {}]
  %s9 = inlined_call_operand.vmem [shape: bf16[128,2], index: 9, kind: input, shape index: {}]
  %s10 = inlined_call_operand.vmem [shape: f32[1,2], index: 10, kind: input, shape index: {}]
  %s11 = inlined_call_operand.hbm [shape: f32[2,2], index: 11, kind: output, shape index: {}]
  %s12 = sld [smem:[#allocation0]]
  $region61: #{cnn_net_forward.5} parent=0
    _
  %s14 = ssub.s32 1, %s12
  %s15 = scalar_select 0, %s14, %s12
  $region1: #{cnn_net_forward.5} parent=0
    #allocation3 [shape = 'u8[1024]{0}', space=vmem, size = 0x400, scoped, tag = 'output window, operand 0, single buffered']
    #allocation4 [shape = 's32[1]{0}', space=sflag, size = 0x4, scoped, tag = 'scoped memory for cnn_net_forward.5']
    %16 = vsyncpa [#allocation4], 0
    // Predicated region
    $region2: #{cnn_net_forward.5} parent=1 // pred_check
      _
    $region3: #{cnn_net_forward.5} parent=1 // pred_check_branch
      %18 = sbr.rel (0) target = $region5
    $region4: #{cnn_net_forward.5} parent=1 // pred_region
      _
    $region5: #{cnn_net_forward.5} parent=1 // pred_fallthru
      _
    // Predicated region
    $region6: #{cnn_net_forward.5} parent=1 // pred_check
      _
    $region7: #{cnn_net_forward.5} parent=1 // pred_check_branch
      %20 = sbr.rel (0) target = $region9
    $region8: #{cnn_net_forward.5} parent=1 // pred_region
      _
    $region9: #{cnn_net_forward.5} parent=1 // pred_fallthru
      _
    // Predicated region
    $region10: #{cnn_net_forward.5} parent=1 // pred_check
      _
    $region11: #{cnn_net_forward.5} parent=1 // pred_check_branch
      %22 = sbr.rel (0) target = $region13
    $region12: #{cnn_net_forward.5} parent=1 // pred_region
      _
    $region13: #{cnn_net_forward.5} parent=1 // pred_fallthru
      _
    // Predicated region
    $region14: #{cnn_net_forward.5} parent=1 // pred_check
      _
    $region15: #{cnn_net_forward.5} parent=1 // pred_check_branch
      %24 = sbr.rel (0) target = $region17
    $region16: #{cnn_net_forward.5} parent=1 // pred_region
      _
    $region17: #{cnn_net_forward.5} parent=1 // pred_fallthru
      _
    // Predicated region
    $region18: #{cnn_net_forward.5} parent=1 // pred_check
      _
    $region19: #{cnn_net_forward.5} parent=1 // pred_check_branch
      %26 = sbr.rel (0) target = $region21
    $region20: #{cnn_net_forward.5} parent=1 // pred_region
      _
    $region21: #{cnn_net_forward.5} parent=1 // pred_fallthru
      _
    // Predicated region
    $region22: #{cnn_net_forward.5} parent=1 // pred_check
      _
    $region23: #{cnn_net_forward.5} parent=1 // pred_check_branch
      %28 = sbr.rel (0) target = $region25
    $region24: #{cnn_net_forward.5} parent=1 // pred_region
      _
    $region25: #{cnn_net_forward.5} parent=1 // pred_fallthru
      _
    // Predicated region
    $region26: #{cnn_net_forward.5} parent=1 // pred_check
      _
    $region27: #{cnn_net_forward.5} parent=1 // pred_check_branch
      %30 = sbr.rel (0) target = $region29
    $region28: #{cnn_net_forward.5} parent=1 // pred_region
      _
    $region29: #{cnn_net_forward.5} parent=1 // pred_fallthru
      _
    // Predicated region
    $region30: #{cnn_net_forward.5} parent=1 // pred_check
      _
    $region31: #{cnn_net_forward.5} parent=1 // pred_check_branch
      %32 = sbr.rel (0) target = $region33
    $region32: #{cnn_net_forward.5} parent=1 // pred_region
      _
    $region33: #{cnn_net_forward.5} parent=1 // pred_fallthru
      _
    // Predicated region
    $region34: #{cnn_net_forward.5} parent=1 // pred_check
      _
    $region35: #{cnn_net_forward.5} parent=1 // pred_check_branch
      %34 = sbr.rel (0) target = $region37
    $region36: #{cnn_net_forward.5} parent=1 // pred_region
      _
    $region37: #{cnn_net_forward.5} parent=1 // pred_fallthru
      _
    // Predicated region
    $region38: #{cnn_net_forward.5} parent=1 // pred_check
      _
    $region39: #{cnn_net_forward.5} parent=1 // pred_check_branch
      %36 = sbr.rel (0) target = $region41
    $region40: #{cnn_net_forward.5} parent=1 // pred_region
      _
    $region41: #{cnn_net_forward.5} parent=1 // pred_fallthru
      _
    // Predicated region
    $region42: #{cnn_net_forward.5} parent=1 // pred_check
      _
    $region43: #{cnn_net_forward.5} parent=1 // pred_check_branch
      %38 = sbr.rel (0) target = $region45
    $region44: #{cnn_net_forward.5} parent=1 // pred_region
      _
    $region45: #{cnn_net_forward.5} parent=1 // pred_fallthru
      _
    %v40 = vld [vmem:[%s0] sm:$0xff]
    %v42 = vcombine.high %v40, %v40
    %v44 = vunpack.c.l.s4 1983009808
    %v45 = vunpack.c.0.s8 %v44
    %v46 = vlaneseq
    %v47 = vshrl.u32 %v46, 7
    %v48 = vsub.s32 %v45, %v47
    %v49 = vrot.slane %v40, %v48
    %v51 = vunpack.c.l.s4 1983009808
    %v52 = vunpack.c.0.s8 %v51
    %v53 = vlaneseq
    %v54 = vshrl.u32 %v53, 7
    %v55 = vsub.s32 %v52, %v54
    %v56 = vrot.slane %v42, %v55
    %v57 = vcombine.high %v49, %v49
    %v58 = vcombine.high %v56, %v56
    %v63 = vpack.c.bf16 %v49, %v49
    %v64 = vpack.c.bf16 %v57, %v57
    %v65 = vpack.c.bf16 %v56, %v56
    %v66 = vpack.c.bf16 %v58, %v58
    %v67 = vld [vmem:[%s1] sm:$0xff]
    %v68 = vld [vmem:[%s1 + $0x8] sm:$0xf]
    %v69 = vld [vmem:[%s1 + $0xc] sm:$0xff]
    %v70 = vld [vmem:[%s1 + $0x14] sm:$0xf]
    %v71 = vld [vmem:[%s1 + $0x18] sm:$0xff]
    %v72 = vld [vmem:[%s1 + $0x20] sm:$0xf]
    %v73 = vld [vmem:[%s1 + $0x24] sm:$0xff]
    %v74 = vld [vmem:[%s1 + $0x2c] sm:$0xf]
    %v75 = vld [vmem:[%s1 + $0x30] sm:$0xff]
    %v76 = vld [vmem:[%s1 + $0x38] sm:$0xf]
    %v77 = vld [vmem:[%s1 + $0x3c] sm:$0xff]
    %v78 = vld [vmem:[%s1 + $0x44] sm:$0xf]
    %v79 = vld [vmem:[%s1 + $0x48] sm:$0xff]
    %v80 = vld [vmem:[%s1 + $0x50] sm:$0xf]
    %v81 = vld [vmem:[%s1 + $0x54] sm:$0xff]
    %v82 = vld [vmem:[%s1 + $0x5c] sm:$0xf]
    %v83 = vld [vmem:[%s1 + $0x60] sm:$0xff]
    %v84 = vld [vmem:[%s1 + $0x68] sm:$0xf]
    %v85 = vld [vmem:[%s1 + $0x6c] sm:$0xff]
    %v86 = vld [vmem:[%s1 + $0x74] sm:$0xf]
    %v87 = vld [vmem:[%s1 + $0x78] sm:$0xff]
    %v88 = vld [vmem:[%s1 + $0x80] sm:$0xf]
    %v89 = vld [vmem:[%s1 + $0x84] sm:$0xff]
    %v90 = vld [vmem:[%s1 + $0x8c] sm:$0xf]
    %v91 = vld [vmem:[%s1 + $0x90] sm:$0xff]
    %v92 = vld [vmem:[%s1 + $0x98] sm:$0xf]
    %v93 = vld [vmem:[%s1 + $0x9c] sm:$0xff]
    %v94 = vld [vmem:[%s1 + $0xa4] sm:$0xf]
    %v95 = vld [vmem:[%s1 + $0xa8] sm:$0xff]
    %v96 = vld [vmem:[%s1 + $0xb0] sm:$0xf]
    %v97 = vld [vmem:[%s1 + $0xb4] sm:$0xff]
    %v98 = vld [vmem:[%s1 + $0xbc] sm:$0xf]
    %v99 = vld [vmem:[%s1 + $0xc0] sm:$0xff]
    %v100 = vld [vmem:[%s1 + $0xc8] sm:$0xf]
    %v101 = vld [vmem:[%s1 + $0xcc] sm:$0xff]
    %v102 = vld [vmem:[%s1 + $0xd4] sm:$0xf]
    %v103 = vld [vmem:[%s1 + $0xd8] sm:$0xff]
    %v104 = vld [vmem:[%s1 + $0xe0] sm:$0xf]
    %v105 = vld [vmem:[%s1 + $0xe4] sm:$0xff]
    %v106 = vld [vmem:[%s1 + $0xec] sm:$0xf]
    %v107 = vld [vmem:[%s1 + $0xf0] sm:$0xff]
    %v108 = vld [vmem:[%s1 + $0xf8] sm:$0xf]
    %v109 = vld [vmem:[%s1 + $0xfc] sm:$0xff]
    %v110 = vld [vmem:[%s1 + $0x104] sm:$0xf]
    %v111 = vld [vmem:[%s1 + $0x108] sm:$0xff]
    %v112 = vld [vmem:[%s1 + $0x110] sm:$0xf]
    %v113 = vld [vmem:[%s1 + $0x114] sm:$0xff]
    %v114 = vld [vmem:[%s1 + $0x11c] sm:$0xf]
    %v115 = vld [vmem:[%s1 + $0x120] sm:$0xff]
    %v116 = vld [vmem:[%s1 + $0x128] sm:$0xf]
    %v117 = vld [vmem:[%s1 + $0x12c] sm:$0xff]
    %v118 = vld [vmem:[%s1 + $0x134] sm:$0xf]
    %v119 = vld [vmem:[%s1 + $0x138] sm:$0xff]
    %v120 = vld [vmem:[%s1 + $0x140] sm:$0xf]
    %v121 = vld [vmem:[%s1 + $0x144] sm:$0xff]
    %v122 = vld [vmem:[%s1 + $0x14c] sm:$0xf]
    %v123 = vld [vmem:[%s1 + $0x150] sm:$0xff]
    %v124 = vld [vmem:[%s1 + $0x158] sm:$0xf]
    %v125 = vld [vmem:[%s1 + $0x15c] sm:$0xff]
    %v126 = vld [vmem:[%s1 + $0x164] sm:$0xf]
    %v127 = vld [vmem:[%s1 + $0x168] sm:$0xff]
    %v128 = vld [vmem:[%s1 + $0x170] sm:$0xf]
    %v129 = vld [vmem:[%s1 + $0x174] sm:$0xff]
    %v130 = vld [vmem:[%s1 + $0x17c] sm:$0xf]
    %v131 = vld [vmem:[%s1 + $0x180] sm:$0xff]
    %v132 = vld [vmem:[%s1 + $0x188] sm:$0xf]
    %v133 = vld [vmem:[%s1 + $0x18c] sm:$0xff]
    %v134 = vld [vmem:[%s1 + $0x194] sm:$0xf]
    %v135 = vld [vmem:[%s1 + $0x198] sm:$0xff]
    %v136 = vld [vmem:[%s1 + $0x1a0] sm:$0xf]
    %v137 = vld [vmem:[%s1 + $0x1a4] sm:$0xff]
    %v138 = vld [vmem:[%s1 + $0x1ac] sm:$0xf]
    %v139 = vld [vmem:[%s1 + $0x1b0] sm:$0xff]
    %v140 = vld [vmem:[%s1 + $0x1b8] sm:$0xf]
    %v141 = vld [vmem:[%s1 + $0x1bc] sm:$0xff]
    %v142 = vld [vmem:[%s1 + $0x1c4] sm:$0xf]
    %v143 = vld [vmem:[%s1 + $0x1c8] sm:$0xff]
    %v144 = vld [vmem:[%s1 + $0x1d0] sm:$0xf]
    %v145 = vld [vmem:[%s1 + $0x1d4] sm:$0xff]
    %v146 = vld [vmem:[%s1 + $0x1dc] sm:$0xf]
    %v147 = vld [vmem:[%s1 + $0x1e0] sm:$0xff]
    %v148 = vld [vmem:[%s1 + $0x1e8] sm:$0xf]
    %v149 = vld [vmem:[%s1 + $0x1ec] sm:$0xff]
    %v150 = vld [vmem:[%s1 + $0x1f4] sm:$0xf]
    %v151 = vld [vmem:[%s1 + $0x1f8] sm:$0xff]
    %v152 = vld [vmem:[%s1 + $0x200] sm:$0xf]
    %v153 = vld [vmem:[%s1 + $0x204] sm:$0xff]
    %v154 = vld [vmem:[%s1 + $0x20c] sm:$0xf]
    %v155 = vld [vmem:[%s1 + $0x210] sm:$0xff]
    %v156 = vld [vmem:[%s1 + $0x218] sm:$0xf]
    %v157 = vld [vmem:[%s1 + $0x21c] sm:$0xff]
    %v158 = vld [vmem:[%s1 + $0x224] sm:$0xf]
    %v159 = vld [vmem:[%s1 + $0x228] sm:$0xff]
    %v160 = vld [vmem:[%s1 + $0x230] sm:$0xf]
    %v161 = vld [vmem:[%s1 + $0x234] sm:$0xff]
    %v162 = vld [vmem:[%s1 + $0x23c] sm:$0xf]
    %v163 = vld [vmem:[%s1 + $0x240] sm:$0xff]
    %v164 = vld [vmem:[%s1 + $0x248] sm:$0xf]
    %v165 = vld [vmem:[%s1 + $0x24c] sm:$0xff]
    %v166 = vld [vmem:[%s1 + $0x254] sm:$0xf]
    %v167 = vld [vmem:[%s1 + $0x258] sm:$0xff]
    %v168 = vld [vmem:[%s1 + $0x260] sm:$0xf]
    %v169 = vld [vmem:[%s1 + $0x264] sm:$0xff]
    %v170 = vld [vmem:[%s1 + $0x26c] sm:$0xf]
    %v171 = vld [vmem:[%s1 + $0x270] sm:$0xff]
    %v172 = vld [vmem:[%s1 + $0x278] sm:$0xf]
    %v173 = vld [vmem:[%s1 + $0x27c] sm:$0xff]
    %v174 = vld [vmem:[%s1 + $0x284] sm:$0xf]
    %v175 = vld [vmem:[%s1 + $0x288] sm:$0xff]
    %v176 = vld [vmem:[%s1 + $0x290] sm:$0xf]
    %v177 = vld [vmem:[%s1 + $0x294] sm:$0xff]
    %v178 = vld [vmem:[%s1 + $0x29c] sm:$0xf]
    %v179 = vld [vmem:[%s1 + $0x2a0] sm:$0xff]
    %v180 = vld [vmem:[%s1 + $0x2a8] sm:$0xf]
    %v181 = vld [vmem:[%s1 + $0x2ac] sm:$0xff]
    %v182 = vld [vmem:[%s1 + $0x2b4] sm:$0xf]
    %v183 = vld [vmem:[%s1 + $0x2b8] sm:$0xff]
    %v184 = vld [vmem:[%s1 + $0x2c0] sm:$0xf]
    %v185 = vld [vmem:[%s1 + $0x2c4] sm:$0xff]
    %v186 = vld [vmem:[%s1 + $0x2cc] sm:$0xf]
    %v187 = vld [vmem:[%s1 + $0x2d0] sm:$0xff]
    %v188 = vld [vmem:[%s1 + $0x2d8] sm:$0xf]
    %v189 = vld [vmem:[%s1 + $0x2dc] sm:$0xff]
    %v190 = vld [vmem:[%s1 + $0x2e4] sm:$0xf]
    %v191 = vld [vmem:[%s1 + $0x2e8] sm:$0xff]
    %v192 = vld [vmem:[%s1 + $0x2f0] sm:$0xf]
    %v193 = vld [vmem:[%s1 + $0x2f4] sm:$0xff]
    %v194 = vld [vmem:[%s1 + $0x2fc] sm:$0xf]
    %v195 = vld [vmem:[%s2] sm:$0x7]
    %v197 = vlaneseq
    %v198 = vshrl.u32 %v197, 7
    %v199 = vsub.s32 0, %v198
    %v200 = vrot.slane %v195, %v199
    %v201 = vlaneseq
    %v202 = vshrl.u32 %v201, 7
    %v203 = vsub.s32 1, %v202
    %v204 = vrot.slane %v195, %v203
    %v205 = vlaneseq
    %v206 = vshrl.u32 %v205, 7
    %v207 = vsub.s32 2, %v206
    %v208 = vrot.slane %v195, %v207
    %v340 = vunpack.c.l.b16 %v67
    %v341 = vunpack.c.h.b16 %v67
    %v342 = vunpack.c.l.b16 %v68
    %v343 = vunpack.c.l.b16 %v69
    %v344 = vunpack.c.h.b16 %v69
    %v345 = vunpack.c.l.b16 %v70
    %v346 = vunpack.c.l.b16 %v71
    %v347 = vunpack.c.h.b16 %v71
    %v348 = vunpack.c.l.b16 %v72
    %v349 = vunpack.c.l.b16 %v73
    %v350 = vunpack.c.h.b16 %v73
    %v351 = vunpack.c.l.b16 %v74
    %v352 = vunpack.c.l.b16 %v75
    %v353 = vunpack.c.h.b16 %v75
    %v354 = vunpack.c.l.b16 %v76
    %v355 = vunpack.c.l.b16 %v77
    %v356 = vunpack.c.h.b16 %v77
    %v357 = vunpack.c.l.b16 %v78
    %v358 = vunpack.c.l.b16 %v79
    %v359 = vunpack.c.h.b16 %v79
    %v360 = vunpack.c.l.b16 %v80
    %v361 = vunpack.c.l.b16 %v81
    %v362 = vunpack.c.h.b16 %v81
    %v363 = vunpack.c.l.b16 %v82
    %v364 = vunpack.c.l.b16 %v83
    %v365 = vunpack.c.h.b16 %v83
    %v366 = vunpack.c.l.b16 %v84
    %v367 = vunpack.c.l.b16 %v85
    %v368 = vunpack.c.h.b16 %v85
    %v369 = vunpack.c.l.b16 %v86
    %v370 = vunpack.c.l.b16 %v87
    %v371 = vunpack.c.h.b16 %v87
    %v372 = vunpack.c.l.b16 %v88
    %v373 = vunpack.c.l.b16 %v89
    %v374 = vunpack.c.h.b16 %v89
    %v375 = vunpack.c.l.b16 %v90
    %v376 = vunpack.c.l.b16 %v91
    %v377 = vunpack.c.h.b16 %v91
    %v378 = vunpack.c.l.b16 %v92
    %v379 = vunpack.c.l.b16 %v93
    %v380 = vunpack.c.h.b16 %v93
    %v381 = vunpack.c.l.b16 %v94
    %v382 = vunpack.c.l.b16 %v95
    %v383 = vunpack.c.h.b16 %v95
    %v384 = vunpack.c.l.b16 %v96
    %v385 = vunpack.c.l.b16 %v97
    %v386 = vunpack.c.h.b16 %v97
    %v387 = vunpack.c.l.b16 %v98
    %v388 = vunpack.c.l.b16 %v99
    %v389 = vunpack.c.h.b16 %v99
    %v390 = vunpack.c.l.b16 %v100
    %v391 = vunpack.c.l.b16 %v101
    %v392 = vunpack.c.h.b16 %v101
    %v393 = vunpack.c.l.b16 %v102
    %v394 = vunpack.c.l.b16 %v103
    %v395 = vunpack.c.h.b16 %v103
    %v396 = vunpack.c.l.b16 %v104
    %v397 = vunpack.c.l.b16 %v105
    %v398 = vunpack.c.h.b16 %v105
    %v399 = vunpack.c.l.b16 %v106
    %v400 = vunpack.c.l.b16 %v107
    %v401 = vunpack.c.h.b16 %v107
    %v402 = vunpack.c.l.b16 %v108
    %v403 = vunpack.c.l.b16 %v109
    %v404 = vunpack.c.h.b16 %v109
    %v405 = vunpack.c.l.b16 %v110
    %v406 = vunpack.c.l.b16 %v111
    %v407 = vunpack.c.h.b16 %v111
    %v408 = vunpack.c.l.b16 %v112
    %v409 = vunpack.c.l.b16 %v113
    %v410 = vunpack.c.h.b16 %v113
    %v411 = vunpack.c.l.b16 %v114
    %v412 = vunpack.c.l.b16 %v115
    %v413 = vunpack.c.h.b16 %v115
    %v414 = vunpack.c.l.b16 %v116
    %v415 = vunpack.c.l.b16 %v117
    %v416 = vunpack.c.h.b16 %v117
    %v417 = vunpack.c.l.b16 %v118
    %v418 = vunpack.c.l.b16 %v119
    %v419 = vunpack.c.h.b16 %v119
    %v420 = vunpack.c.l.b16 %v120
    %v421 = vunpack.c.l.b16 %v121
    %v422 = vunpack.c.h.b16 %v121
    %v423 = vunpack.c.l.b16 %v122
    %v424 = vunpack.c.l.b16 %v123
    %v425 = vunpack.c.h.b16 %v123
    %v426 = vunpack.c.l.b16 %v124
    %v427 = vunpack.c.l.b16 %v125
    %v428 = vunpack.c.h.b16 %v125
    %v429 = vunpack.c.l.b16 %v126
    %v430 = vunpack.c.l.b16 %v127
    %v431 = vunpack.c.h.b16 %v127
    %v432 = vunpack.c.l.b16 %v128
    %v433 = vunpack.c.l.b16 %v129
    %v434 = vunpack.c.h.b16 %v129
    %v435 = vunpack.c.l.b16 %v130
    %v436 = vunpack.c.l.b16 %v131
    %v437 = vunpack.c.h.b16 %v131
    %v438 = vunpack.c.l.b16 %v132
    %v439 = vunpack.c.l.b16 %v133
    %v440 = vunpack.c.h.b16 %v133
    %v441 = vunpack.c.l.b16 %v134
    %v442 = vunpack.c.l.b16 %v135
    %v443 = vunpack.c.h.b16 %v135
    %v444 = vunpack.c.l.b16 %v136
    %v445 = vunpack.c.l.b16 %v137
    %v446 = vunpack.c.h.b16 %v137
    %v447 = vunpack.c.l.b16 %v138
    %v448 = vunpack.c.l.b16 %v139
    %v449 = vunpack.c.h.b16 %v139
    %v450 = vunpack.c.l.b16 %v140
    %v451 = vunpack.c.l.b16 %v141
    %v452 = vunpack.c.h.b16 %v141
    %v453 = vunpack.c.l.b16 %v142
    %v454 = vunpack.c.l.b16 %v143
    %v455 = vunpack.c.h.b16 %v143
    %v456 = vunpack.c.l.b16 %v144
    %v457 = vunpack.c.l.b16 %v145
    %v458 = vunpack.c.h.b16 %v145
    %v459 = vunpack.c.l.b16 %v146
    %v460 = vunpack.c.l.b16 %v147
    %v461 = vunpack.c.h.b16 %v147
    %v462 = vunpack.c.l.b16 %v148
    %v463 = vunpack.c.l.b16 %v149
    %v464 = vunpack.c.h.b16 %v149
    %v465 = vunpack.c.l.b16 %v150
    %v466 = vunpack.c.l.b16 %v151
    %v467 = vunpack.c.h.b16 %v151
    %v468 = vunpack.c.l.b16 %v152
    %v469 = vunpack.c.l.b16 %v153
    %v470 = vunpack.c.h.b16 %v153
    %v471 = vunpack.c.l.b16 %v154
    %v472 = vunpack.c.l.b16 %v155
    %v473 = vunpack.c.h.b16 %v155
    %v474 = vunpack.c.l.b16 %v156
    %v475 = vunpack.c.l.b16 %v157
    %v476 = vunpack.c.h.b16 %v157
    %v477 = vunpack.c.l.b16 %v158
    %v478 = vunpack.c.l.b16 %v159
    %v479 = vunpack.c.h.b16 %v159
    %v480 = vunpack.c.l.b16 %v160
    %v481 = vunpack.c.l.b16 %v161
    %v482 = vunpack.c.h.b16 %v161
    %v483 = vunpack.c.l.b16 %v162
    %v484 = vunpack.c.l.b16 %v163
    %v485 = vunpack.c.h.b16 %v163
    %v486 = vunpack.c.l.b16 %v164
    %v487 = vunpack.c.l.b16 %v165
    %v488 = vunpack.c.h.b16 %v165
    %v489 = vunpack.c.l.b16 %v166
    %v490 = vunpack.c.l.b16 %v167
    %v491 = vunpack.c.h.b16 %v167
    %v492 = vunpack.c.l.b16 %v168
    %v493 = vunpack.c.l.b16 %v169
    %v494 = vunpack.c.h.b16 %v169
    %v495 = vunpack.c.l.b16 %v170
    %v496 = vunpack.c.l.b16 %v171
    %v497 = vunpack.c.h.b16 %v171
    %v498 = vunpack.c.l.b16 %v172
    %v499 = vunpack.c.l.b16 %v173
    %v500 = vunpack.c.h.b16 %v173
    %v501 = vunpack.c.l.b16 %v174
    %v502 = vunpack.c.l.b16 %v175
    %v503 = vunpack.c.h.b16 %v175
    %v504 = vunpack.c.l.b16 %v176
    %v505 = vunpack.c.l.b16 %v177
    %v506 = vunpack.c.h.b16 %v177
    %v507 = vunpack.c.l.b16 %v178
    %v508 = vunpack.c.l.b16 %v179
    %v509 = vunpack.c.h.b16 %v179
    %v510 = vunpack.c.l.b16 %v180
    %v511 = vunpack.c.l.b16 %v181
    %v512 = vunpack.c.h.b16 %v181
    %v513 = vunpack.c.l.b16 %v182
    %v514 = vunpack.c.l.b16 %v183
    %v515 = vunpack.c.h.b16 %v183
    %v516 = vunpack.c.l.b16 %v184
    %v517 = vunpack.c.l.b16 %v185
    %v518 = vunpack.c.h.b16 %v185
    %v519 = vunpack.c.l.b16 %v186
    %v520 = vunpack.c.l.b16 %v187
    %v521 = vunpack.c.h.b16 %v187
    %v522 = vunpack.c.l.b16 %v188
    %v523 = vunpack.c.l.b16 %v189
    %v524 = vunpack.c.h.b16 %v189
    %v525 = vunpack.c.l.b16 %v190
    %v526 = vunpack.c.l.b16 %v191
    %v527 = vunpack.c.h.b16 %v191
    %v528 = vunpack.c.l.b16 %v192
    %v529 = vunpack.c.l.b16 %v193
    %v530 = vunpack.c.h.b16 %v193
    %v531 = vunpack.c.l.b16 %v194
    %v532 = vpack.c.b16 %v343, %v340
    %v533 = vpack.c.b16 %v344, %v341
    %v534 = vpack.c.b16 %v345, %v342
    %v535 = vpack.c.b16 %v349, %v346
    %v536 = vpack.c.b16 %v350, %v347
    %v537 = vpack.c.b16 %v351, %v348
    %v538 = vpack.c.b16 %v355, %v352
    %v539 = vpack.c.b16 %v356, %v353
    %v540 = vpack.c.b16 %v357, %v354
    %v541 = vpack.c.b16 %v361, %v358
    %v542 = vpack.c.b16 %v362, %v359
    %v543 = vpack.c.b16 %v363, %v360
    %v544 = vpack.c.b16 %v367, %v364
    %v545 = vpack.c.b16 %v368, %v365
    %v546 = vpack.c.b16 %v369, %v366
    %v547 = vpack.c.b16 %v373, %v370
    %v548 = vpack.c.b16 %v374, %v371
    %v549 = vpack.c.b16 %v375, %v372
    %v550 = vpack.c.b16 %v379, %v376
    %v551 = vpack.c.b16 %v380, %v377
    %v552 = vpack.c.b16 %v381, %v378
    %v553 = vpack.c.b16 %v385, %v382
    %v554 = vpack.c.b16 %v386, %v383
    %v555 = vpack.c.b16 %v387, %v384
    %v556 = vpack.c.b16 %v391, %v388
    %v557 = vpack.c.b16 %v392, %v389
    %v558 = vpack.c.b16 %v393, %v390
    %v559 = vpack.c.b16 %v397, %v394
    %v560 = vpack.c.b16 %v398, %v395
    %v561 = vpack.c.b16 %v399, %v396
    %v562 = vpack.c.b16 %v403, %v400
    %v563 = vpack.c.b16 %v404, %v401
    %v564 = vpack.c.b16 %v405, %v402
    %v565 = vpack.c.b16 %v409, %v406
    %v566 = vpack.c.b16 %v410, %v407
    %v567 = vpack.c.b16 %v411, %v408
    %v568 = vpack.c.b16 %v415, %v412
    %v569 = vpack.c.b16 %v416, %v413
    %v570 = vpack.c.b16 %v417, %v414
    %v571 = vpack.c.b16 %v421, %v418
    %v572 = vpack.c.b16 %v422, %v419
    %v573 = vpack.c.b16 %v423, %v420
    %v574 = vpack.c.b16 %v427, %v424
    %v575 = vpack.c.b16 %v428, %v425
    %v576 = vpack.c.b16 %v429, %v426
    %v577 = vpack.c.b16 %v433, %v430
    %v578 = vpack.c.b16 %v434, %v431
    %v579 = vpack.c.b16 %v435, %v432
    %v580 = vpack.c.b16 %v439, %v436
    %v581 = vpack.c.b16 %v440, %v437
    %v582 = vpack.c.b16 %v441, %v438
    %v583 = vpack.c.b16 %v445, %v442
    %v584 = vpack.c.b16 %v446, %v443
    %v585 = vpack.c.b16 %v447, %v444
    %v586 = vpack.c.b16 %v451, %v448
    %v587 = vpack.c.b16 %v452, %v449
    %v588 = vpack.c.b16 %v453, %v450
    %v589 = vpack.c.b16 %v457, %v454
    %v590 = vpack.c.b16 %v458, %v455
    %v591 = vpack.c.b16 %v459, %v456
    %v592 = vpack.c.b16 %v463, %v460
    %v593 = vpack.c.b16 %v464, %v461
    %v594 = vpack.c.b16 %v465, %v462
    %v595 = vpack.c.b16 %v469, %v466
    %v596 = vpack.c.b16 %v470, %v467
    %v597 = vpack.c.b16 %v471, %v468
    %v598 = vpack.c.b16 %v475, %v472
    %v599 = vpack.c.b16 %v476, %v473
    %v600 = vpack.c.b16 %v477, %v474
    %v601 = vpack.c.b16 %v481, %v478
    %v602 = vpack.c.b16 %v482, %v479
    %v603 = vpack.c.b16 %v483, %v480
    %v604 = vpack.c.b16 %v487, %v484
    %v605 = vpack.c.b16 %v488, %v485
    %v606 = vpack.c.b16 %v489, %v486
    %v607 = vpack.c.b16 %v493, %v490
    %v608 = vpack.c.b16 %v494, %v491
    %v609 = vpack.c.b16 %v495, %v492
    %v610 = vpack.c.b16 %v499, %v496
    %v611 = vpack.c.b16 %v500, %v497
    %v612 = vpack.c.b16 %v501, %v498
    %v613 = vpack.c.b16 %v505, %v502
    %v614 = vpack.c.b16 %v506, %v503
    %v615 = vpack.c.b16 %v507, %v504
    %v616 = vpack.c.b16 %v511, %v508
    %v617 = vpack.c.b16 %v512, %v509
    %v618 = vpack.c.b16 %v513, %v510
    %v619 = vpack.c.b16 %v517, %v514
    %v620 = vpack.c.b16 %v518, %v515
    %v621 = vpack.c.b16 %v519, %v516
    %v622 = vpack.c.b16 %v523, %v520
    %v623 = vpack.c.b16 %v524, %v521
    %v624 = vpack.c.b16 %v525, %v522
    %v625 = vpack.c.b16 %v529, %v526
    %v626 = vpack.c.b16 %v530, %v527
    %v627 = vpack.c.b16 %v531, %v528
    %724 = vmatprep.subr.bf16.mxu0 %v533
    %725 = vmatpush1.bf16.msra.mxu0 %v532
    %726 = vmatprep.subr.bf16.mxu0 %v536
    %727 = vmatpush1.bf16.msra.mxu0 %v535
    %728 = vmatprep.subr.bf16.mxu0 %v539
    %729 = vmatpush1.bf16.msra.mxu0 %v538
    %730 = vmatprep.subr.bf16.mxu0 %v542
    %731 = vmatpush1.bf16.msra.mxu0 %v541
    %732 = vmatprep.subr.bf16.mxu0 %v545
    %733 = vmatpush1.bf16.msra.mxu0 %v544
    %734 = vmatprep.subr.bf16.mxu0 %v548
    %735 = vmatpush1.bf16.msra.mxu0 %v547
    %736 = vmatprep.subr.bf16.mxu0 %v551
    %737 = vmatpush1.bf16.msra.mxu0 %v550
    %738 = vmatprep.subr.bf16.mxu0 %v554
    %739 = vmatpush1.bf16.msra.mxu0 %v553
    %740 = vmatprep.subr.bf16.mxu0 %v557
    %741 = vmatpush1.bf16.msra.mxu0 %v556
    %742 = vmatprep.subr.bf16.mxu0 %v560
    %743 = vmatpush1.bf16.msra.mxu0 %v559
    %744 = vmatprep.subr.bf16.mxu0 %v563
    %745 = vmatpush1.bf16.msra.mxu0 %v562
    %746 = vmatprep.subr.bf16.mxu0 %v566
    %747 = vmatpush1.bf16.msra.mxu0 %v565
    %748 = vmatprep.subr.bf16.mxu0 %v569
    %749 = vmatpush1.bf16.msra.mxu0 %v568
    %750 = vmatprep.subr.bf16.mxu0 %v572
    %751 = vmatpush1.bf16.msra.mxu0 %v571
    %752 = vmatprep.subr.bf16.mxu0 %v575
    %753 = vmatpush1.bf16.msra.mxu0 %v574
    %754 = vmatprep.subr.bf16.mxu0 %v578
    %755 = vmatpush1.bf16.msra.mxu0 %v577
    %756 = vmatprep.mubr.bf16.mxu0 %v64
    %757 = vmatmul.mubr.bf16.gmra.mrb[0].mxu0 %v63
    %v758 = vpop.f32.mrb[0].mxu0
    %v759 = vadd.f32 %v200, %v758
    %v760 = vpop.f32.mrb[0].mxu0
    %v761 = vadd.f32 %v204, %v760
    %v762 = vpop.f32.mrb[0].mxu0
    %v763 = vpop.f32.mrb[0].mxu0
    %764 = vdwg.mxu0
    %765 = vmatprep.subr.bf16.mxu0 %v581
    %766 = vmatpush1.bf16.msra.mxu0 %v580
    %767 = vmatprep.subr.bf16.mxu0 %v584
    %768 = vmatpush1.bf16.msra.mxu0 %v583
    %769 = vmatprep.subr.bf16.mxu0 %v587
    %770 = vmatpush1.bf16.msra.mxu0 %v586
    %771 = vmatprep.subr.bf16.mxu0 %v590
    %772 = vmatpush1.bf16.msra.mxu0 %v589
    %773 = vmatprep.subr.bf16.mxu0 %v593
    %774 = vmatpush1.bf16.msra.mxu0 %v592
    %775 = vmatprep.subr.bf16.mxu0 %v596
    %776 = vmatpush1.bf16.msra.mxu0 %v595
    %777 = vmatprep.subr.bf16.mxu0 %v599
    %778 = vmatpush1.bf16.msra.mxu0 %v598
    %779 = vmatprep.subr.bf16.mxu0 %v602
    %780 = vmatpush1.bf16.msra.mxu0 %v601
    %781 = vmatprep.subr.bf16.mxu0 %v605
    %782 = vmatpush1.bf16.msra.mxu0 %v604
    %783 = vmatprep.subr.bf16.mxu0 %v608
    %784 = vmatpush1.bf16.msra.mxu0 %v607
    %785 = vmatprep.subr.bf16.mxu0 %v611
    %786 = vmatpush1.bf16.msra.mxu0 %v610
    %787 = vmatprep.subr.bf16.mxu0 %v614
    %788 = vmatpush1.bf16.msra.mxu0 %v613
    %789 = vmatprep.subr.bf16.mxu0 %v617
    %790 = vmatpush1.bf16.msra.mxu0 %v616
    %791 = vmatprep.subr.bf16.mxu0 %v620
    %792 = vmatpush1.bf16.msra.mxu0 %v619
    %793 = vmatprep.subr.bf16.mxu0 %v623
    %794 = vmatpush1.bf16.msra.mxu0 %v622
    %795 = vmatprep.subr.bf16.mxu0 %v626
    %796 = vmatpush1.bf16.msra.mxu0 %v625
    %797 = vmatprep.mubr.bf16.mxu0 %v66
    %798 = vmatmul.mubr.bf16.gmra.mrb[0].mxu0 %v65
    %v799 = vpop.f32.mrb[0].mxu0
    %v800 = vadd.f32 %v759, %v799
    %v801 = vpop.f32.mrb[0].mxu0
    %v802 = vadd.f32 %v761, %v801
    %v803 = vpop.f32.mrb[0].mxu0
    %v804 = vpop.f32.mrb[0].mxu0
    %805 = vdwg.mxu0
    %806 = vmatprep.subr.bf16.mxu0 0
    %807 = vmatpush1.bf16.msra.mxu0 %v534
    %808 = vmatprep.subr.bf16.mxu0 0
    %809 = vmatpush1.bf16.msra.mxu0 %v537
    %810 = vmatprep.subr.bf16.mxu0 0
    %811 = vmatpush1.bf16.msra.mxu0 %v540
    %812 = vmatprep.subr.bf16.mxu0 0
    %813 = vmatpush1.bf16.msra.mxu0 %v543
    %814 = vmatprep.subr.bf16.mxu0 0
    %815 = vmatpush1.bf16.msra.mxu0 %v546
    %816 = vmatprep.subr.bf16.mxu0 0
    %817 = vmatpush1.bf16.msra.mxu0 %v549
    %818 = vmatprep.subr.bf16.mxu0 0
    %819 = vmatpush1.bf16.msra.mxu0 %v552
    %820 = vmatprep.subr.bf16.mxu0 0
    %821 = vmatpush1.bf16.msra.mxu0 %v555
    %822 = vmatprep.subr.bf16.mxu0 0
    %823 = vmatpush1.bf16.msra.mxu0 %v558
    %824 = vmatprep.subr.bf16.mxu0 0
    %825 = vmatpush1.bf16.msra.mxu0 %v561
    %826 = vmatprep.subr.bf16.mxu0 0
    %827 = vmatpush1.bf16.msra.mxu0 %v564
    %828 = vmatprep.subr.bf16.mxu0 0
    %829 = vmatpush1.bf16.msra.mxu0 %v567
    %830 = vmatprep.subr.bf16.mxu0 0
    %831 = vmatpush1.bf16.msra.mxu0 %v570
    %832 = vmatprep.subr.bf16.mxu0 0
    %833 = vmatpush1.bf16.msra.mxu0 %v573
    %834 = vmatprep.subr.bf16.mxu0 0
    %835 = vmatpush1.bf16.msra.mxu0 %v576
    %836 = vmatprep.subr.bf16.mxu0 0
    %837 = vmatpush1.bf16.msra.mxu0 %v579
    %838 = vmatprep.mubr.bf16.mxu0 %v64
    %839 = vmatmul.mubr.bf16.gmra.mrb[0].mxu0 %v63
    %v840 = vpop.f32.mrb[0].mxu0
    %v841 = vadd.f32 %v208, %v840
    %v842 = vpop.f32.mrb[0].mxu0
    %v843 = vpop.f32.mrb[0].mxu0
    %v844 = vpop.f32.mrb[0].mxu0
    %845 = vdwg.mxu0
    %846 = vmatprep.subr.bf16.mxu0 0
    %847 = vmatpush1.bf16.msra.mxu0 %v582
    %848 = vmatprep.subr.bf16.mxu0 0
    %849 = vmatpush1.bf16.msra.mxu0 %v585
    %850 = vmatprep.subr.bf16.mxu0 0
    %851 = vmatpush1.bf16.msra.mxu0 %v588
    %852 = vmatprep.subr.bf16.mxu0 0
    %853 = vmatpush1.bf16.msra.mxu0 %v591
    %854 = vmatprep.subr.bf16.mxu0 0
    %855 = vmatpush1.bf16.msra.mxu0 %v594
    %856 = vmatprep.subr.bf16.mxu0 0
    %857 = vmatpush1.bf16.msra.mxu0 %v597
    %858 = vmatprep.subr.bf16.mxu0 0
    %859 = vmatpush1.bf16.msra.mxu0 %v600
    %860 = vmatprep.subr.bf16.mxu0 0
    %861 = vmatpush1.bf16.msra.mxu0 %v603
    %862 = vmatprep.subr.bf16.mxu0 0
    %863 = vmatpush1.bf16.msra.mxu0 %v606
    %864 = vmatprep.subr.bf16.mxu0 0
    %865 = vmatpush1.bf16.msra.mxu0 %v609
    %866 = vmatprep.subr.bf16.mxu0 0
    %867 = vmatpush1.bf16.msra.mxu0 %v612
    %868 = vmatprep.subr.bf16.mxu0 0
    %869 = vmatpush1.bf16.msra.mxu0 %v615
    %870 = vmatprep.subr.bf16.mxu0 0
    %871 = vmatpush1.bf16.msra.mxu0 %v618
    %872 = vmatprep.subr.bf16.mxu0 0
    %873 = vmatpush1.bf16.msra.mxu0 %v621
    %874 = vmatprep.subr.bf16.mxu0 0
    %875 = vmatpush1.bf16.msra.mxu0 %v624
    %876 = vmatprep.subr.bf16.mxu0 0
    %877 = vmatpush1.bf16.msra.mxu0 %v627
    %878 = vmatprep.mubr.bf16.mxu0 %v66
    %879 = vmatmul.mubr.bf16.gmra.mrb[0].mxu0 %v65
    %v880 = vpop.f32.mrb[0].mxu0
    %v881 = vadd.f32 %v841, %v880
    %v882 = vpop.f32.mrb[0].mxu0
    %v883 = vpop.f32.mrb[0].mxu0
    %v884 = vpop.f32.mrb[0].mxu0
    %885 = vdwg.mxu0
    %v889 = vcombine.low %v800, %v802
    %v891 = vunpack.c.l.s4 1983009808
    %v892 = vunpack.c.0.s8 %v891
    %v893 = vlaneseq
    %v894 = vshrl.u32 %v893, 7
    %v895 = vsub.s32 %v892, %v894
    %v896 = vrot.slane %v889, %v895
    %v898 = vunpack.c.l.s4 1983009808
    %v899 = vunpack.c.0.s8 %v898
    %v900 = vlaneseq
    %v901 = vshrl.u32 %v900, 7
    %v902 = vsub.s32 %v899, %v901
    %v903 = vrot.slane %v881, %v902
    %v904 = vcombine.low %v896, %v903
    %906 = vst [vmem:[#allocation2] sm:$0x3f] %v904
    %s907 = scalar_lea.vmem %s0, 8
    %v908 = vld [vmem:[%s907] sm:$0xff]
    %v910 = vcombine.high %v908, %v908
    %v912 = vunpack.c.l.s4 1983009808
    %v913 = vunpack.c.0.s8 %v912
    %v914 = vlaneseq
    %v915 = vshrl.u32 %v914, 7
    %v916 = vsub.s32 %v913, %v915
    %v917 = vrot.slane %v908, %v916
    %v919 = vunpack.c.l.s4 1983009808
    %v920 = vunpack.c.0.s8 %v919
    %v921 = vlaneseq
    %v922 = vshrl.u32 %v921, 7
    %v923 = vsub.s32 %v920, %v922
    %v924 = vrot.slane %v910, %v923
    %v925 = vcombine.high %v917, %v917
    %v926 = vcombine.high %v924, %v924
    %v931 = vpack.c.bf16 %v917, %v917
    %v932 = vpack.c.bf16 %v925, %v925
    %v933 = vpack.c.bf16 %v924, %v924
    %v934 = vpack.c.bf16 %v926, %v926
    %v935 = vld [vmem:[%s1] sm:$0xff]
    %v936 = vld [vmem:[%s1 + $0x8] sm:$0xf]
    %v937 = vld [vmem:[%s1 + $0xc] sm:$0xff]
    %v938 = vld [vmem:[%s1 + $0x14] sm:$0xf]
    %v939 = vld [vmem:[%s1 + $0x18] sm:$0xff]
    %v940 = vld [vmem:[%s1 + $0x20] sm:$0xf]
    %v941 = vld [vmem:[%s1 + $0x24] sm:$0xff]
    %v942 = vld [vmem:[%s1 + $0x2c] sm:$0xf]
    %v943 = vld [vmem:[%s1 + $0x30] sm:$0xff]
    %v944 = vld [vmem:[%s1 + $0x38] sm:$0xf]
    %v945 = vld [vmem:[%s1 + $0x3c] sm:$0xff]
    %v946 = vld [vmem:[%s1 + $0x44] sm:$0xf]
    %v947 = vld [vmem:[%s1 + $0x48] sm:$0xff]
    %v948 = vld [vmem:[%s1 + $0x50] sm:$0xf]
    %v949 = vld [vmem:[%s1 + $0x54] sm:$0xff]
    %v950 = vld [vmem:[%s1 + $0x5c] sm:$0xf]
    %v951 = vld [vmem:[%s1 + $0x60] sm:$0xff]
    %v952 = vld [vmem:[%s1 + $0x68] sm:$0xf]
    %v953 = vld [vmem:[%s1 + $0x6c] sm:$0xff]
    %v954 = vld [vmem:[%s1 + $0x74] sm:$0xf]
    %v955 = vld [vmem:[%s1 + $0x78] sm:$0xff]
    %v956 = vld [vmem:[%s1 + $0x80] sm:$0xf]
    %v957 = vld [vmem:[%s1 + $0x84] sm:$0xff]
    %v958 = vld [vmem:[%s1 + $0x8c] sm:$0xf]
    %v959 = vld [vmem:[%s1 + $0x90] sm:$0xff]
    %v960 = vld [vmem:[%s1 + $0x98] sm:$0xf]
    %v961 = vld [vmem:[%s1 + $0x9c] sm:$0xff]
    %v962 = vld [vmem:[%s1 + $0xa4] sm:$0xf]
    %v963 = vld [vmem:[%s1 + $0xa8] sm:$0xff]
    %v964 = vld [vmem:[%s1 + $0xb0] sm:$0xf]
    %v965 = vld [vmem:[%s1 + $0xb4] sm:$0xff]
    %v966 = vld [vmem:[%s1 + $0xbc] sm:$0xf]
    %v967 = vld [vmem:[%s1 + $0xc0] sm:$0xff]
    %v968 = vld [vmem:[%s1 + $0xc8] sm:$0xf]
    %v969 = vld [vmem:[%s1 + $0xcc] sm:$0xff]
    %v970 = vld [vmem:[%s1 + $0xd4] sm:$0xf]
    %v971 = vld [vmem:[%s1 + $0xd8] sm:$0xff]
    %v972 = vld [vmem:[%s1 + $0xe0] sm:$0xf]
    %v973 = vld [vmem:[%s1 + $0xe4] sm:$0xff]
    %v974 = vld [vmem:[%s1 + $0xec] sm:$0xf]
    %v975 = vld [vmem:[%s1 + $0xf0] sm:$0xff]
    %v976 = vld [vmem:[%s1 + $0xf8] sm:$0xf]
    %v977 = vld [vmem:[%s1 + $0xfc] sm:$0xff]
    %v978 = vld [vmem:[%s1 + $0x104] sm:$0xf]
    %v979 = vld [vmem:[%s1 + $0x108] sm:$0xff]
    %v980 = vld [vmem:[%s1 + $0x110] sm:$0xf]
    %v981 = vld [vmem:[%s1 + $0x114] sm:$0xff]
    %v982 = vld [vmem:[%s1 + $0x11c] sm:$0xf]
    %v983 = vld [vmem:[%s1 + $0x120] sm:$0xff]
    %v984 = vld [vmem:[%s1 + $0x128] sm:$0xf]
    %v985 = vld [vmem:[%s1 + $0x12c] sm:$0xff]
    %v986 = vld [vmem:[%s1 + $0x134] sm:$0xf]
    %v987 = vld [vmem:[%s1 + $0x138] sm:$0xff]
    %v988 = vld [vmem:[%s1 + $0x140] sm:$0xf]
    %v989 = vld [vmem:[%s1 + $0x144] sm:$0xff]
    %v990 = vld [vmem:[%s1 + $0x14c] sm:$0xf]
    %v991 = vld [vmem:[%s1 + $0x150] sm:$0xff]
    %v992 = vld [vmem:[%s1 + $0x158] sm:$0xf]
    %v993 = vld [vmem:[%s1 + $0x15c] sm:$0xff]
    %v994 = vld [vmem:[%s1 + $0x164] sm:$0xf]
    %v995 = vld [vmem:[%s1 + $0x168] sm:$0xff]
    %v996 = vld [vmem:[%s1 + $0x170] sm:$0xf]
    %v997 = vld [vmem:[%s1 + $0x174] sm:$0xff]
    %v998 = vld [vmem:[%s1 + $0x17c] sm:$0xf]
    %v999 = vld [vmem:[%s1 + $0x180] sm:$0xff]
    %v1000 = vld [vmem:[%s1 + $0x188] sm:$0xf]
    %v1001 = vld [vmem:[%s1 + $0x18c] sm:$0xff]
    %v1002 = vld [vmem:[%s1 + $0x194] sm:$0xf]
    %v1003 = vld [vmem:[%s1 + $0x198] sm:$0xff]
    %v1004 = vld [vmem:[%s1 + $0x1a0] sm:$0xf]
    %v1005 = vld [vmem:[%s1 + $0x1a4] sm:$0xff]
    %v1006 = vld [vmem:[%s1 + $0x1ac] sm:$0xf]
    %v1007 = vld [vmem:[%s1 + $0x1b0] sm:$0xff]
    %v1008 = vld [vmem:[%s1 + $0x1b8] sm:$0xf]
    %v1009 = vld [vmem:[%s1 + $0x1bc] sm:$0xff]
    %v1010 = vld [vmem:[%s1 + $0x1c4] sm:$0xf]
    %v1011 = vld [vmem:[%s1 + $0x1c8] sm:$0xff]
    %v1012 = vld [vmem:[%s1 + $0x1d0] sm:$0xf]
    %v1013 = vld [vmem:[%s1 + $0x1d4] sm:$0xff]
    %v1014 = vld [vmem:[%s1 + $0x1dc] sm:$0xf]
    %v1015 = vld [vmem:[%s1 + $0x1e0] sm:$0xff]
    %v1016 = vld [vmem:[%s1 + $0x1e8] sm:$0xf]
    %v1017 = vld [vmem:[%s1 + $0x1ec] sm:$0xff]
    %v1018 = vld [vmem:[%s1 + $0x1f4] sm:$0xf]
    %v1019 = vld [vmem:[%s1 + $0x1f8] sm:$0xff]
    %v1020 = vld [vmem:[%s1 + $0x200] sm:$0xf]
    %v1021 = vld [vmem:[%s1 + $0x204] sm:$0xff]
    %v1022 = vld [vmem:[%s1 + $0x20c] sm:$0xf]
    %v1023 = vld [vmem:[%s1 + $0x210] sm:$0xff]
    %v1024 = vld [vmem:[%s1 + $0x218] sm:$0xf]
    %v1025 = vld [vmem:[%s1 + $0x21c] sm:$0xff]
    %v1026 = vld [vmem:[%s1 + $0x224] sm:$0xf]
    %v1027 = vld [vmem:[%s1 + $0x228] sm:$0xff]
    %v1028 = vld [vmem:[%s1 + $0x230] sm:$0xf]
    %v1029 = vld [vmem:[%s1 + $0x234] sm:$0xff]
    %v1030 = vld [vmem:[%s1 + $0x23c] sm:$0xf]
    %v1031 = vld [vmem:[%s1 + $0x240] sm:$0xff]
    %v1032 = vld [vmem:[%s1 + $0x248] sm:$0xf]
    %v1033 = vld [vmem:[%s1 + $0x24c] sm:$0xff]
    %v1034 = vld [vmem:[%s1 + $0x254] sm:$0xf]
    %v1035 = vld [vmem:[%s1 + $0x258] sm:$0xff]
    %v1036 = vld [vmem:[%s1 + $0x260] sm:$0xf]
    %v1037 = vld [vmem:[%s1 + $0x264] sm:$0xff]
    %v1038 = vld [vmem:[%s1 + $0x26c] sm:$0xf]
    %v1039 = vld [vmem:[%s1 + $0x270] sm:$0xff]
    %v1040 = vld [vmem:[%s1 + $0x278] sm:$0xf]
    %v1041 = vld [vmem:[%s1 + $0x27c] sm:$0xff]
    %v1042 = vld [vmem:[%s1 + $0x284] sm:$0xf]
    %v1043 = vld [vmem:[%s1 + $0x288] sm:$0xff]
    %v1044 = vld [vmem:[%s1 + $0x290] sm:$0xf]
    %v1045 = vld [vmem:[%s1 + $0x294] sm:$0xff]
    %v1046 = vld [vmem:[%s1 + $0x29c] sm:$0xf]
    %v1047 = vld [vmem:[%s1 + $0x2a0] sm:$0xff]
    %v1048 = vld [vmem:[%s1 + $0x2a8] sm:$0xf]
    %v1049 = vld [vmem:[%s1 + $0x2ac] sm:$0xff]
    %v1050 = vld [vmem:[%s1 + $0x2b4] sm:$0xf]
    %v1051 = vld [vmem:[%s1 + $0x2b8] sm:$0xff]
    %v1052 = vld [vmem:[%s1 + $0x2c0] sm:$0xf]
    %v1053 = vld [vmem:[%s1 + $0x2c4] sm:$0xff]
    %v1054 = vld [vmem:[%s1 + $0x2cc] sm:$0xf]
    %v1055 = vld [vmem:[%s1 + $0x2d0] sm:$0xff]
    %v1056 = vld [vmem:[%s1 + $0x2d8] sm:$0xf]
    %v1057 = vld [vmem:[%s1 + $0x2dc] sm:$0xff]
    %v1058 = vld [vmem:[%s1 + $0x2e4] sm:$0xf]
    %v1059 = vld [vmem:[%s1 + $0x2e8] sm:$0xff]
    %v1060 = vld [vmem:[%s1 + $0x2f0] sm:$0xf]
    %v1061 = vld [vmem:[%s1 + $0x2f4] sm:$0xff]
    %v1062 = vld [vmem:[%s1 + $0x2fc] sm:$0xf]
    %v1063 = vld [vmem:[%s2] sm:$0x7]
    %v1065 = vlaneseq
    %v1066 = vshrl.u32 %v1065, 7
    %v1067 = vsub.s32 0, %v1066
    %v1068 = vrot.slane %v1063, %v1067
    %v1069 = vlaneseq
    %v1070 = vshrl.u32 %v1069, 7
    %v1071 = vsub.s32 1, %v1070
    %v1072 = vrot.slane %v1063, %v1071
    %v1073 = vlaneseq
    %v1074 = vshrl.u32 %v1073, 7
    %v1075 = vsub.s32 2, %v1074
    %v1076 = vrot.slane %v1063, %v1075
    %v1208 = vunpack.c.l.b16 %v935
    %v1209 = vunpack.c.h.b16 %v935
    %v1210 = vunpack.c.l.b16 %v936
    %v1211 = vunpack.c.l.b16 %v937
    %v1212 = vunpack.c.h.b16 %v937
    %v1213 = vunpack.c.l.b16 %v938
    %v1214 = vunpack.c.l.b16 %v939
    %v1215 = vunpack.c.h.b16 %v939
    %v1216 = vunpack.c.l.b16 %v940
    %v1217 = vunpack.c.l.b16 %v941
    %v1218 = vunpack.c.h.b16 %v941
    %v1219 = vunpack.c.l.b16 %v942
    %v1220 = vunpack.c.l.b16 %v943
    %v1221 = vunpack.c.h.b16 %v943
    %v1222 = vunpack.c.l.b16 %v944
    %v1223 = vunpack.c.l.b16 %v945
    %v1224 = vunpack.c.h.b16 %v945
    %v1225 = vunpack.c.l.b16 %v946
    %v1226 = vunpack.c.l.b16 %v947
    %v1227 = vunpack.c.h.b16 %v947
    %v1228 = vunpack.c.l.b16 %v948
    %v1229 = vunpack.c.l.b16 %v949
    %v1230 = vunpack.c.h.b16 %v949
    %v1231 = vunpack.c.l.b16 %v950
    %v1232 = vunpack.c.l.b16 %v951
    %v1233 = vunpack.c.h.b16 %v951
    %v1234 = vunpack.c.l.b16 %v952
    %v1235 = vunpack.c.l.b16 %v953
    %v1236 = vunpack.c.h.b16 %v953
    %v1237 = vunpack.c.l.b16 %v954
    %v1238 = vunpack.c.l.b16 %v955
    %v1239 = vunpack.c.h.b16 %v955
    %v1240 = vunpack.c.l.b16 %v956
    %v1241 = vunpack.c.l.b16 %v957
    %v1242 = vunpack.c.h.b16 %v957
    %v1243 = vunpack.c.l.b16 %v958
    %v1244 = vunpack.c.l.b16 %v959
    %v1245 = vunpack.c.h.b16 %v959
    %v1246 = vunpack.c.l.b16 %v960
    %v1247 = vunpack.c.l.b16 %v961
    %v1248 = vunpack.c.h.b16 %v961
    %v1249 = vunpack.c.l.b16 %v962
    %v1250 = vunpack.c.l.b16 %v963
    %v1251 = vunpack.c.h.b16 %v963
    %v1252 = vunpack.c.l.b16 %v964
    %v1253 = vunpack.c.l.b16 %v965
    %v1254 = vunpack.c.h.b16 %v965
    %v1255 = vunpack.c.l.b16 %v966
    %v1256 = vunpack.c.l.b16 %v967
    %v1257 = vunpack.c.h.b16 %v967
    %v1258 = vunpack.c.l.b16 %v968
    %v1259 = vunpack.c.l.b16 %v969
    %v1260 = vunpack.c.h.b16 %v969
    %v1261 = vunpack.c.l.b16 %v970
    %v1262 = vunpack.c.l.b16 %v971
    %v1263 = vunpack.c.h.b16 %v971
    %v1264 = vunpack.c.l.b16 %v972
    %v1265 = vunpack.c.l.b16 %v973
    %v1266 = vunpack.c.h.b16 %v973
    %v1267 = vunpack.c.l.b16 %v974
    %v1268 = vunpack.c.l.b16 %v975
    %v1269 = vunpack.c.h.b16 %v975
    %v1270 = vunpack.c.l.b16 %v976
    %v1271 = vunpack.c.l.b16 %v977
    %v1272 = vunpack.c.h.b16 %v977
    %v1273 = vunpack.c.l.b16 %v978
    %v1274 = vunpack.c.l.b16 %v979
    %v1275 = vunpack.c.h.b16 %v979
    %v1276 = vunpack.c.l.b16 %v980
    %v1277 = vunpack.c.l.b16 %v981
    %v1278 = vunpack.c.h.b16 %v981
    %v1279 = vunpack.c.l.b16 %v982
    %v1280 = vunpack.c.l.b16 %v983
    %v1281 = vunpack.c.h.b16 %v983
    %v1282 = vunpack.c.l.b16 %v984
    %v1283 = vunpack.c.l.b16 %v985
    %v1284 = vunpack.c.h.b16 %v985
    %v1285 = vunpack.c.l.b16 %v986
    %v1286 = vunpack.c.l.b16 %v987
    %v1287 = vunpack.c.h.b16 %v987
    %v1288 = vunpack.c.l.b16 %v988
    %v1289 = vunpack.c.l.b16 %v989
    %v1290 = vunpack.c.h.b16 %v989
    %v1291 = vunpack.c.l.b16 %v990
    %v1292 = vunpack.c.l.b16 %v991
    %v1293 = vunpack.c.h.b16 %v991
    %v1294 = vunpack.c.l.b16 %v992
    %v1295 = vunpack.c.l.b16 %v993
    %v1296 = vunpack.c.h.b16 %v993
    %v1297 = vunpack.c.l.b16 %v994
    %v1298 = vunpack.c.l.b16 %v995
    %v1299 = vunpack.c.h.b16 %v995
    %v1300 = vunpack.c.l.b16 %v996
    %v1301 = vunpack.c.l.b16 %v997
    %v1302 = vunpack.c.h.b16 %v997
    %v1303 = vunpack.c.l.b16 %v998
    %v1304 = vunpack.c.l.b16 %v999
    %v1305 = vunpack.c.h.b16 %v999
    %v1306 = vunpack.c.l.b16 %v1000
    %v1307 = vunpack.c.l.b16 %v1001
    %v1308 = vunpack.c.h.b16 %v1001
    %v1309 = vunpack.c.l.b16 %v1002
    %v1310 = vunpack.c.l.b16 %v1003
    %v1311 = vunpack.c.h.b16 %v1003
    %v1312 = vunpack.c.l.b16 %v1004
    %v1313 = vunpack.c.l.b16 %v1005
    %v1314 = vunpack.c.h.b16 %v1005
    %v1315 = vunpack.c.l.b16 %v1006
    %v1316 = vunpack.c.l.b16 %v1007
    %v1317 = vunpack.c.h.b16 %v1007
    %v1318 = vunpack.c.l.b16 %v1008
    %v1319 = vunpack.c.l.b16 %v1009
    %v1320 = vunpack.c.h.b16 %v1009
    %v1321 = vunpack.c.l.b16 %v1010
    %v1322 = vunpack.c.l.b16 %v1011
    %v1323 = vunpack.c.h.b16 %v1011
    %v1324 = vunpack.c.l.b16 %v1012
    %v1325 = vunpack.c.l.b16 %v1013
    %v1326 = vunpack.c.h.b16 %v1013
    %v1327 = vunpack.c.l.b16 %v1014
    %v1328 = vunpack.c.l.b16 %v1015
    %v1329 = vunpack.c.h.b16 %v1015
    %v1330 = vunpack.c.l.b16 %v1016
    %v1331 = vunpack.c.l.b16 %v1017
    %v1332 = vunpack.c.h.b16 %v1017
    %v1333 = vunpack.c.l.b16 %v1018
    %v1334 = vunpack.c.l.b16 %v1019
    %v1335 = vunpack.c.h.b16 %v1019
    %v1336 = vunpack.c.l.b16 %v1020
    %v1337 = vunpack.c.l.b16 %v1021
    %v1338 = vunpack.c.h.b16 %v1021
    %v1339 = vunpack.c.l.b16 %v1022
    %v1340 = vunpack.c.l.b16 %v1023
    %v1341 = vunpack.c.h.b16 %v1023
    %v1342 = vunpack.c.l.b16 %v1024
    %v1343 = vunpack.c.l.b16 %v1025
    %v1344 = vunpack.c.h.b16 %v1025
    %v1345 = vunpack.c.l.b16 %v1026
    %v1346 = vunpack.c.l.b16 %v1027
    %v1347 = vunpack.c.h.b16 %v1027
    %v1348 = vunpack.c.l.b16 %v1028
    %v1349 = vunpack.c.l.b16 %v1029
    %v1350 = vunpack.c.h.b16 %v1029
    %v1351 = vunpack.c.l.b16 %v1030
    %v1352 = vunpack.c.l.b16 %v1031
    %v1353 = vunpack.c.h.b16 %v1031
    %v1354 = vunpack.c.l.b16 %v1032
    %v1355 = vunpack.c.l.b16 %v1033
    %v1356 = vunpack.c.h.b16 %v1033
    %v1357 = vunpack.c.l.b16 %v1034
    %v1358 = vunpack.c.l.b16 %v1035
    %v1359 = vunpack.c.h.b16 %v1035
    %v1360 = vunpack.c.l.b16 %v1036
    %v1361 = vunpack.c.l.b16 %v1037
    %v1362 = vunpack.c.h.b16 %v1037
    %v1363 = vunpack.c.l.b16 %v1038
    %v1364 = vunpack.c.l.b16 %v1039
    %v1365 = vunpack.c.h.b16 %v1039
    %v1366 = vunpack.c.l.b16 %v1040
    %v1367 = vunpack.c.l.b16 %v1041
    %v1368 = vunpack.c.h.b16 %v1041
    %v1369 = vunpack.c.l.b16 %v1042
    %v1370 = vunpack.c.l.b16 %v1043
    %v1371 = vunpack.c.h.b16 %v1043
    %v1372 = vunpack.c.l.b16 %v1044
    %v1373 = vunpack.c.l.b16 %v1045
    %v1374 = vunpack.c.h.b16 %v1045
    %v1375 = vunpack.c.l.b16 %v1046
    %v1376 = vunpack.c.l.b16 %v1047
    %v1377 = vunpack.c.h.b16 %v1047
    %v1378 = vunpack.c.l.b16 %v1048
    %v1379 = vunpack.c.l.b16 %v1049
    %v1380 = vunpack.c.h.b16 %v1049
    %v1381 = vunpack.c.l.b16 %v1050
    %v1382 = vunpack.c.l.b16 %v1051
    %v1383 = vunpack.c.h.b16 %v1051
    %v1384 = vunpack.c.l.b16 %v1052
    %v1385 = vunpack.c.l.b16 %v1053
    %v1386 = vunpack.c.h.b16 %v1053
    %v1387 = vunpack.c.l.b16 %v1054
    %v1388 = vunpack.c.l.b16 %v1055
    %v1389 = vunpack.c.h.b16 %v1055
    %v1390 = vunpack.c.l.b16 %v1056
    %v1391 = vunpack.c.l.b16 %v1057
    %v1392 = vunpack.c.h.b16 %v1057
    %v1393 = vunpack.c.l.b16 %v1058
    %v1394 = vunpack.c.l.b16 %v1059
    %v1395 = vunpack.c.h.b16 %v1059
    %v1396 = vunpack.c.l.b16 %v1060
    %v1397 = vunpack.c.l.b16 %v1061
    %v1398 = vunpack.c.h.b16 %v1061
    %v1399 = vunpack.c.l.b16 %v1062
    %v1400 = vpack.c.b16 %v1211, %v1208
    %v1401 = vpack.c.b16 %v1212, %v1209
    %v1402 = vpack.c.b16 %v1213, %v1210
    %v1403 = vpack.c.b16 %v1217, %v1214
    %v1404 = vpack.c.b16 %v1218, %v1215
    %v1405 = vpack.c.b16 %v1219, %v1216
    %v1406 = vpack.c.b16 %v1223, %v1220
    %v1407 = vpack.c.b16 %v1224, %v1221
    %v1408 = vpack.c.b16 %v1225, %v1222
    %v1409 = vpack.c.b16 %v1229, %v1226
    %v1410 = vpack.c.b16 %v1230, %v1227
    %v1411 = vpack.c.b16 %v1231, %v1228
    %v1412 = vpack.c.b16 %v1235, %v1232
    %v1413 = vpack.c.b16 %v1236, %v1233
    %v1414 = vpack.c.b16 %v1237, %v1234
    %v1415 = vpack.c.b16 %v1241, %v1238
    %v1416 = vpack.c.b16 %v1242, %v1239
    %v1417 = vpack.c.b16 %v1243, %v1240
    %v1418 = vpack.c.b16 %v1247, %v1244
    %v1419 = vpack.c.b16 %v1248, %v1245
    %v1420 = vpack.c.b16 %v1249, %v1246
    %v1421 = vpack.c.b16 %v1253, %v1250
    %v1422 = vpack.c.b16 %v1254, %v1251
    %v1423 = vpack.c.b16 %v1255, %v1252
    %v1424 = vpack.c.b16 %v1259, %v1256
    %v1425 = vpack.c.b16 %v1260, %v1257
    %v1426 = vpack.c.b16 %v1261, %v1258
    %v1427 = vpack.c.b16 %v1265, %v1262
    %v1428 = vpack.c.b16 %v1266, %v1263
    %v1429 = vpack.c.b16 %v1267, %v1264
    %v1430 = vpack.c.b16 %v1271, %v1268
    %v1431 = vpack.c.b16 %v1272, %v1269
    %v1432 = vpack.c.b16 %v1273, %v1270
    %v1433 = vpack.c.b16 %v1277, %v1274
    %v1434 = vpack.c.b16 %v1278, %v1275
    %v1435 = vpack.c.b16 %v1279, %v1276
    %v1436 = vpack.c.b16 %v1283, %v1280
    %v1437 = vpack.c.b16 %v1284, %v1281
    %v1438 = vpack.c.b16 %v1285, %v1282
    %v1439 = vpack.c.b16 %v1289, %v1286
    %v1440 = vpack.c.b16 %v1290, %v1287
    %v1441 = vpack.c.b16 %v1291, %v1288
    %v1442 = vpack.c.b16 %v1295, %v1292
    %v1443 = vpack.c.b16 %v1296, %v1293
    %v1444 = vpack.c.b16 %v1297, %v1294
    %v1445 = vpack.c.b16 %v1301, %v1298
    %v1446 = vpack.c.b16 %v1302, %v1299
    %v1447 = vpack.c.b16 %v1303, %v1300
    %v1448 = vpack.c.b16 %v1307, %v1304
    %v1449 = vpack.c.b16 %v1308, %v1305
    %v1450 = vpack.c.b16 %v1309, %v1306
    %v1451 = vpack.c.b16 %v1313, %v1310
    %v1452 = vpack.c.b16 %v1314, %v1311
    %v1453 = vpack.c.b16 %v1315, %v1312
    %v1454 = vpack.c.b16 %v1319, %v1316
    %v1455 = vpack.c.b16 %v1320, %v1317
    %v1456 = vpack.c.b16 %v1321, %v1318
    %v1457 = vpack.c.b16 %v1325, %v1322
    %v1458 = vpack.c.b16 %v1326, %v1323
    %v1459 = vpack.c.b16 %v1327, %v1324
    %v1460 = vpack.c.b16 %v1331, %v1328
    %v1461 = vpack.c.b16 %v1332, %v1329
    %v1462 = vpack.c.b16 %v1333, %v1330
    %v1463 = vpack.c.b16 %v1337, %v1334
    %v1464 = vpack.c.b16 %v1338, %v1335
    %v1465 = vpack.c.b16 %v1339, %v1336
    %v1466 = vpack.c.b16 %v1343, %v1340
    %v1467 = vpack.c.b16 %v1344, %v1341
    %v1468 = vpack.c.b16 %v1345, %v1342
    %v1469 = vpack.c.b16 %v1349, %v1346
    %v1470 = vpack.c.b16 %v1350, %v1347
    %v1471 = vpack.c.b16 %v1351, %v1348
    %v1472 = vpack.c.b16 %v1355, %v1352
    %v1473 = vpack.c.b16 %v1356, %v1353
    %v1474 = vpack.c.b16 %v1357, %v1354
    %v1475 = vpack.c.b16 %v1361, %v1358
    %v1476 = vpack.c.b16 %v1362, %v1359
    %v1477 = vpack.c.b16 %v1363, %v1360
    %v1478 = vpack.c.b16 %v1367, %v1364
    %v1479 = vpack.c.b16 %v1368, %v1365
    %v1480 = vpack.c.b16 %v1369, %v1366
    %v1481 = vpack.c.b16 %v1373, %v1370
    %v1482 = vpack.c.b16 %v1374, %v1371
    %v1483 = vpack.c.b16 %v1375, %v1372
    %v1484 = vpack.c.b16 %v1379, %v1376
    %v1485 = vpack.c.b16 %v1380, %v1377
    %v1486 = vpack.c.b16 %v1381, %v1378
    %v1487 = vpack.c.b16 %v1385, %v1382
    %v1488 = vpack.c.b16 %v1386, %v1383
    %v1489 = vpack.c.b16 %v1387, %v1384
    %v1490 = vpack.c.b16 %v1391, %v1388
    %v1491 = vpack.c.b16 %v1392, %v1389
    %v1492 = vpack.c.b16 %v1393, %v1390
    %v1493 = vpack.c.b16 %v1397, %v1394
    %v1494 = vpack.c.b16 %v1398, %v1395
    %v1495 = vpack.c.b16 %v1399, %v1396
    %1592 = vmatprep.subr.bf16.mxu0 %v1401
    %1593 = vmatpush1.bf16.msra.mxu0 %v1400
    %1594 = vmatprep.subr.bf16.mxu0 %v1404
    %1595 = vmatpush1.bf16.msra.mxu0 %v1403
    %1596 = vmatprep.subr.bf16.mxu0 %v1407
    %1597 = vmatpush1.bf16.msra.mxu0 %v1406
    %1598 = vmatprep.subr.bf16.mxu0 %v1410
    %1599 = vmatpush1.bf16.msra.mxu0 %v1409
    %1600 = vmatprep.subr.bf16.mxu0 %v1413
    %1601 = vmatpush1.bf16.msra.mxu0 %v1412
    %1602 = vmatprep.subr.bf16.mxu0 %v1416
    %1603 = vmatpush1.bf16.msra.mxu0 %v1415
    %1604 = vmatprep.subr.bf16.mxu0 %v1419
    %1605 = vmatpush1.bf16.msra.mxu0 %v1418
    %1606 = vmatprep.subr.bf16.mxu0 %v1422
    %1607 = vmatpush1.bf16.msra.mxu0 %v1421
    %1608 = vmatprep.subr.bf16.mxu0 %v1425
    %1609 = vmatpush1.bf16.msra.mxu0 %v1424
    %1610 = vmatprep.subr.bf16.mxu0 %v1428
    %1611 = vmatpush1.bf16.msra.mxu0 %v1427
    %1612 = vmatprep.subr.bf16.mxu0 %v1431
    %1613 = vmatpush1.bf16.msra.mxu0 %v1430
    %1614 = vmatprep.subr.bf16.mxu0 %v1434
    %1615 = vmatpush1.bf16.msra.mxu0 %v1433
    %1616 = vmatprep.subr.bf16.mxu0 %v1437
    %1617 = vmatpush1.bf16.msra.mxu0 %v1436
    %1618 = vmatprep.subr.bf16.mxu0 %v1440
    %1619 = vmatpush1.bf16.msra.mxu0 %v1439
    %1620 = vmatprep.subr.bf16.mxu0 %v1443
    %1621 = vmatpush1.bf16.msra.mxu0 %v1442
    %1622 = vmatprep.subr.bf16.mxu0 %v1446
    %1623 = vmatpush1.bf16.msra.mxu0 %v1445
    %1624 = vmatprep.mubr.bf16.mxu0 %v932
    %1625 = vmatmul.mubr.bf16.gmra.mrb[0].mxu0 %v931
    %v1626 = vpop.f32.mrb[0].mxu0
    %v1627 = vadd.f32 %v1068, %v1626
    %v1628 = vpop.f32.mrb[0].mxu0
    %v1629 = vadd.f32 %v1072, %v1628
    %v1630 = vpop.f32.mrb[0].mxu0
    %v1631 = vpop.f32.mrb[0].mxu0
    %1632 = vdwg.mxu0
    %1633 = vmatprep.subr.bf16.mxu0 %v1449
    %1634 = vmatpush1.bf16.msra.mxu0 %v1448
    %1635 = vmatprep.subr.bf16.mxu0 %v1452
    %1636 = vmatpush1.bf16.msra.mxu0 %v1451
    %1637 = vmatprep.subr.bf16.mxu0 %v1455
    %1638 = vmatpush1.bf16.msra.mxu0 %v1454
    %1639 = vmatprep.subr.bf16.mxu0 %v1458
    %1640 = vmatpush1.bf16.msra.mxu0 %v1457
    %1641 = vmatprep.subr.bf16.mxu0 %v1461
    %1642 = vmatpush1.bf16.msra.mxu0 %v1460
    %1643 = vmatprep.subr.bf16.mxu0 %v1464
    %1644 = vmatpush1.bf16.msra.mxu0 %v1463
    %1645 = vmatprep.subr.bf16.mxu0 %v1467
    %1646 = vmatpush1.bf16.msra.mxu0 %v1466
    %1647 = vmatprep.subr.bf16.mxu0 %v1470
    %1648 = vmatpush1.bf16.msra.mxu0 %v1469
    %1649 = vmatprep.subr.bf16.mxu0 %v1473
    %1650 = vmatpush1.bf16.msra.mxu0 %v1472
    %1651 = vmatprep.subr.bf16.mxu0 %v1476
    %1652 = vmatpush1.bf16.msra.mxu0 %v1475
    %1653 = vmatprep.subr.bf16.mxu0 %v1479
    %1654 = vmatpush1.bf16.msra.mxu0 %v1478
    %1655 = vmatprep.subr.bf16.mxu0 %v1482
    %1656 = vmatpush1.bf16.msra.mxu0 %v1481
    %1657 = vmatprep.subr.bf16.mxu0 %v1485
    %1658 = vmatpush1.bf16.msra.mxu0 %v1484
    %1659 = vmatprep.subr.bf16.mxu0 %v1488
    %1660 = vmatpush1.bf16.msra.mxu0 %v1487
    %1661 = vmatprep.subr.bf16.mxu0 %v1491
    %1662 = vmatpush1.bf16.msra.mxu0 %v1490
    %1663 = vmatprep.subr.bf16.mxu0 %v1494
    %1664 = vmatpush1.bf16.msra.mxu0 %v1493
    %1665 = vmatprep.mubr.bf16.mxu0 %v934
    %1666 = vmatmul.mubr.bf16.gmra.mrb[0].mxu0 %v933
    %v1667 = vpop.f32.mrb[0].mxu0
    %v1668 = vadd.f32 %v1627, %v1667
    %v1669 = vpop.f32.mrb[0].mxu0
    %v1670 = vadd.f32 %v1629, %v1669
    %v1671 = vpop.f32.mrb[0].mxu0
    %v1672 = vpop.f32.mrb[0].mxu0
    %1673 = vdwg.mxu0
    %1674 = vmatprep.subr.bf16.mxu0 0
    %1675 = vmatpush1.bf16.msra.mxu0 %v1402
    %1676 = vmatprep.subr.bf16.mxu0 0
    %1677 = vmatpush1.bf16.msra.mxu0 %v1405
    %1678 = vmatprep.subr.bf16.mxu0 0
    %1679 = vmatpush1.bf16.msra.mxu0 %v1408
    %1680 = vmatprep.subr.bf16.mxu0 0
    %1681 = vmatpush1.bf16.msra.mxu0 %v1411
    %1682 = vmatprep.subr.bf16.mxu0 0
    %1683 = vmatpush1.bf16.msra.mxu0 %v1414
    %1684 = vmatprep.subr.bf16.mxu0 0
    %1685 = vmatpush1.bf16.msra.mxu0 %v1417
    %1686 = vmatprep.subr.bf16.mxu0 0
    %1687 = vmatpush1.bf16.msra.mxu0 %v1420
    %1688 = vmatprep.subr.bf16.mxu0 0
    %1689 = vmatpush1.bf16.msra.mxu0 %v1423
    %1690 = vmatprep.subr.bf16.mxu0 0
    %1691 = vmatpush1.bf16.msra.mxu0 %v1426
    %1692 = vmatprep.subr.bf16.mxu0 0
    %1693 = vmatpush1.bf16.msra.mxu0 %v1429
    %1694 = vmatprep.subr.bf16.mxu0 0
    %1695 = vmatpush1.bf16.msra.mxu0 %v1432
    %1696 = vmatprep.subr.bf16.mxu0 0
    %1697 = vmatpush1.bf16.msra.mxu0 %v1435
    %1698 = vmatprep.subr.bf16.mxu0 0
    %1699 = vmatpush1.bf16.msra.mxu0 %v1438
    %1700 = vmatprep.subr.bf16.mxu0 0
    %1701 = vmatpush1.bf16.msra.mxu0 %v1441
    %1702 = vmatprep.subr.bf16.mxu0 0
    %1703 = vmatpush1.bf16.msra.mxu0 %v1444
    %1704 = vmatprep.subr.bf16.mxu0 0
    %1705 = vmatpush1.bf16.msra.mxu0 %v1447
    %1706 = vmatprep.mubr.bf16.mxu0 %v932
    %1707 = vmatmul.mubr.bf16.gmra.mrb[0].mxu0 %v931
    %v1708 = vpop.f32.mrb[0].mxu0
    %v1709 = vadd.f32 %v1076, %v1708
    %v1710 = vpop.f32.mrb[0].mxu0
    %v1711 = vpop.f32.mrb[0].mxu0
    %v1712 = vpop.f32.mrb[0].mxu0
    %1713 = vdwg.mxu0
    %1714 = vmatprep.subr.bf16.mxu0 0
    %1715 = vmatpush1.bf16.msra.mxu0 %v1450
    %1716 = vmatprep.subr.bf16.mxu0 0
    %1717 = vmatpush1.bf16.msra.mxu0 %v1453
    %1718 = vmatprep.subr.bf16.mxu0 0
    %1719 = vmatpush1.bf16.msra.mxu0 %v1456
    %1720 = vmatprep.subr.bf16.mxu0 0
    %1721 = vmatpush1.bf16.msra.mxu0 %v1459
    %1722 = vmatprep.subr.bf16.mxu0 0
    %1723 = vmatpush1.bf16.msra.mxu0 %v1462
    %1724 = vmatprep.subr.bf16.mxu0 0
    %1725 = vmatpush1.bf16.msra.mxu0 %v1465
    %1726 = vmatprep.subr.bf16.mxu0 0
    %1727 = vmatpush1.bf16.msra.mxu0 %v1468
    %1728 = vmatprep.subr.bf16.mxu0 0
    %1729 = vmatpush1.bf16.msra.mxu0 %v1471
    %1730 = vmatprep.subr.bf16.mxu0 0
    %1731 = vmatpush1.bf16.msra.mxu0 %v1474
    %1732 = vmatprep.subr.bf16.mxu0 0
    %1733 = vmatpush1.bf16.msra.mxu0 %v1477
    %1734 = vmatprep.subr.bf16.mxu0 0
    %1735 = vmatpush1.bf16.msra.mxu0 %v1480
    %1736 = vmatprep.subr.bf16.mxu0 0
    %1737 = vmatpush1.bf16.msra.mxu0 %v1483
    %1738 = vmatprep.subr.bf16.mxu0 0
    %1739 = vmatpush1.bf16.msra.mxu0 %v1486
    %1740 = vmatprep.subr.bf16.mxu0 0
    %1741 = vmatpush1.bf16.msra.mxu0 %v1489
    %1742 = vmatprep.subr.bf16.mxu0 0
    %1743 = vmatpush1.bf16.msra.mxu0 %v1492
    %1744 = vmatprep.subr.bf16.mxu0 0
    %1745 = vmatpush1.bf16.msra.mxu0 %v1495
    %1746 = vmatprep.mubr.bf16.mxu0 %v934
    %1747 = vmatmul.mubr.bf16.gmra.mrb[0].mxu0 %v933
    %v1748 = vpop.f32.mrb[0].mxu0
    %v1749 = vadd.f32 %v1709, %v1748
    %v1750 = vpop.f32.mrb[0].mxu0
    %v1751 = vpop.f32.mrb[0].mxu0
    %v1752 = vpop.f32.mrb[0].mxu0
    %1753 = vdwg.mxu0
    %v1757 = vcombine.low %v1668, %v1670
    %v1759 = vunpack.c.l.s4 1983009808
    %v1760 = vunpack.c.0.s8 %v1759
    %v1761 = vlaneseq
    %v1762 = vshrl.u32 %v1761, 7
    %v1763 = vsub.s32 %v1760, %v1762
    %v1764 = vrot.slane %v1757, %v1763
    %v1766 = vunpack.c.l.s4 1983009808
    %v1767 = vunpack.c.0.s8 %v1766
    %v1768 = vlaneseq
    %v1769 = vshrl.u32 %v1768, 7
    %v1770 = vsub.s32 %v1767, %v1769
    %v1771 = vrot.slane %v1749, %v1770
    %v1772 = vcombine.low %v1764, %v1771
    %s1774 = scalar_lea.vmem [#allocation2], 6
    %1775 = vst [vmem:[%s1774] sm:$0x3f] %v1772
    %s1776 = scalar_lea.vmem %s0, 16
    %v1777 = vld [vmem:[%s1776] sm:$0xff]
    %v1779 = vcombine.high %v1777, %v1777
    %v1781 = vunpack.c.l.s4 1983009808
    %v1782 = vunpack.c.0.s8 %v1781
    %v1783 = vlaneseq
    %v1784 = vshrl.u32 %v1783, 7
    %v1785 = vsub.s32 %v1782, %v1784
    %v1786 = vrot.slane %v1777, %v1785
    %v1788 = vunpack.c.l.s4 1983009808
    %v1789 = vunpack.c.0.s8 %v1788
    %v1790 = vlaneseq
    %v1791 = vshrl.u32 %v1790, 7
    %v1792 = vsub.s32 %v1789, %v1791
    %v1793 = vrot.slane %v1779, %v1792
    %v1794 = vcombine.high %v1786, %v1786
    %v1795 = vcombine.high %v1793, %v1793
    %v1800 = vpack.c.bf16 %v1786, %v1786
    %v1801 = vpack.c.bf16 %v1794, %v1794
    %v1802 = vpack.c.bf16 %v1793, %v1793
    %v1803 = vpack.c.bf16 %v1795, %v1795
    %v1804 = vld [vmem:[%s1] sm:$0xff]
    %v1805 = vld [vmem:[%s1 + $0x8] sm:$0xf]
    %v1806 = vld [vmem:[%s1 + $0xc] sm:$0xff]
    %v1807 = vld [vmem:[%s1 + $0x14] sm:$0xf]
    %v1808 = vld [vmem:[%s1 + $0x18] sm:$0xff]
    %v1809 = vld [vmem:[%s1 + $0x20] sm:$0xf]
    %v1810 = vld [vmem:[%s1 + $0x24] sm:$0xff]
    %v1811 = vld [vmem:[%s1 + $0x2c] sm:$0xf]
    %v1812 = vld [vmem:[%s1 + $0x30] sm:$0xff]
    %v1813 = vld [vmem:[%s1 + $0x38] sm:$0xf]
    %v1814 = vld [vmem:[%s1 + $0x3c] sm:$0xff]
    %v1815 = vld [vmem:[%s1 + $0x44] sm:$0xf]
    %v1816 = vld [vmem:[%s1 + $0x48] sm:$0xff]
    %v1817 = vld [vmem:[%s1 + $0x50] sm:$0xf]
    %v1818 = vld [vmem:[%s1 + $0x54] sm:$0xff]
    %v1819 = vld [vmem:[%s1 + $0x5c] sm:$0xf]
    %v1820 = vld [vmem:[%s1 + $0x60] sm:$0xff]
    %v1821 = vld [vmem:[%s1 + $0x68] sm:$0xf]
    %v1822 = vld [vmem:[%s1 + $0x6c] sm:$0xff]
    %v1823 = vld [vmem:[%s1 + $0x74] sm:$0xf]
    %v1824 = vld [vmem:[%s1 + $0x78] sm:$0xff]
    %v1825 = vld [vmem:[%s1 + $0x80] sm:$0xf]
    %v1826 = vld [vmem:[%s1 + $0x84] sm:$0xff]
    %v1827 = vld [vmem:[%s1 + $0x8c] sm:$0xf]
    %v1828 = vld [vmem:[%s1 + $0x90] sm:$0xff]
    %v1829 = vld [vmem:[%s1 + $0x98] sm:$0xf]
    %v1830 = vld [vmem:[%s1 + $0x9c] sm:$0xff]
    %v1831 = vld [vmem:[%s1 + $0xa4] sm:$0xf]
    %v1832 = vld [vmem:[%s1 + $0xa8] sm:$0xff]
    %v1833 = vld [vmem:[%s1 + $0xb0] sm:$0xf]
    %v1834 = vld [vmem:[%s1 + $0xb4] sm:$0xff]
    %v1835 = vld [vmem:[%s1 + $0xbc] sm:$0xf]
    %v1836 = vld [vmem:[%s1 + $0xc0] sm:$0xff]
    %v1837 = vld [vmem:[%s1 + $0xc8] sm:$0xf]
    %v1838 = vld [vmem:[%s1 + $0xcc] sm:$0xff]
    %v1839 = vld [vmem:[%s1 + $0xd4] sm:$0xf]
    %v1840 = vld [vmem:[%s1 + $0xd8] sm:$0xff]
    %v1841 = vld [vmem:[%s1 + $0xe0] sm:$0xf]
    %v1842 = vld [vmem:[%s1 + $0xe4] sm:$0xff]
    %v1843 = vld [vmem:[%s1 + $0xec] sm:$0xf]
    %v1844 = vld [vmem:[%s1 + $0xf0] sm:$0xff]
    %v1845 = vld [vmem:[%s1 + $0xf8] sm:$0xf]
    %v1846 = vld [vmem:[%s1 + $0xfc] sm:$0xff]
    %v1847 = vld [vmem:[%s1 + $0x104] sm:$0xf]
    %v1848 = vld [vmem:[%s1 + $0x108] sm:$0xff]
    %v1849 = vld [vmem:[%s1 + $0x110] sm:$0xf]
    %v1850 = vld [vmem:[%s1 + $0x114] sm:$0xff]
    %v1851 = vld [vmem:[%s1 + $0x11c] sm:$0xf]
    %v1852 = vld [vmem:[%s1 + $0x120] sm:$0xff]
    %v1853 = vld [vmem:[%s1 + $0x128] sm:$0xf]
    %v1854 = vld [vmem:[%s1 + $0x12c] sm:$0xff]
    %v1855 = vld [vmem:[%s1 + $0x134] sm:$0xf]
    %v1856 = vld [vmem:[%s1 + $0x138] sm:$0xff]
    %v1857 = vld [vmem:[%s1 + $0x140] sm:$0xf]
    %v1858 = vld [vmem:[%s1 + $0x144] sm:$0xff]
    %v1859 = vld [vmem:[%s1 + $0x14c] sm:$0xf]
    %v1860 = vld [vmem:[%s1 + $0x150] sm:$0xff]
    %v1861 = vld [vmem:[%s1 + $0x158] sm:$0xf]
    %v1862 = vld [vmem:[%s1 + $0x15c] sm:$0xff]
    %v1863 = vld [vmem:[%s1 + $0x164] sm:$0xf]
    %v1864 = vld [vmem:[%s1 + $0x168] sm:$0xff]
    %v1865 = vld [vmem:[%s1 + $0x170] sm:$0xf]
    %v1866 = vld [vmem:[%s1 + $0x174] sm:$0xff]
    %v1867 = vld [vmem:[%s1 + $0x17c] sm:$0xf]
    %v1868 = vld [vmem:[%s1 + $0x180] sm:$0xff]
    %v1869 = vld [vmem:[%s1 + $0x188] sm:$0xf]
    %v1870 = vld [vmem:[%s1 + $0x18c] sm:$0xff]
    %v1871 = vld [vmem:[%s1 + $0x194] sm:$0xf]
    %v1872 = vld [vmem:[%s1 + $0x198] sm:$0xff]
    %v1873 = vld [vmem:[%s1 + $0x1a0] sm:$0xf]
    %v1874 = vld [vmem:[%s1 + $0x1a4] sm:$0xff]
    %v1875 = vld [vmem:[%s1 + $0x1ac] sm:$0xf]
    %v1876 = vld [vmem:[%s1 + $0x1b0] sm:$0xff]
    %v1877 = vld [vmem:[%s1 + $0x1b8] sm:$0xf]
    %v1878 = vld [vmem:[%s1 + $0x1bc] sm:$0xff]
    %v1879 = vld [vmem:[%s1 + $0x1c4] sm:$0xf]
    %v1880 = vld [vmem:[%s1 + $0x1c8] sm:$0xff]
    %v1881 = vld [vmem:[%s1 + $0x1d0] sm:$0xf]
    %v1882 = vld [vmem:[%s1 + $0x1d4] sm:$0xff]
    %v1883 = vld [vmem:[%s1 + $0x1dc] sm:$0xf]
    %v1884 = vld [vmem:[%s1 + $0x1e0] sm:$0xff]
    %v1885 = vld [vmem:[%s1 + $0x1e8] sm:$0xf]
    %v1886 = vld [vmem:[%s1 + $0x1ec] sm:$0xff]
    %v1887 = vld [vmem:[%s1 + $0x1f4] sm:$0xf]
    %v1888 = vld [vmem:[%s1 + $0x1f8] sm:$0xff]
    %v1889 = vld [vmem:[%s1 + $0x200] sm:$0xf]
    %v1890 = vld [vmem:[%s1 + $0x204] sm:$0xff]
    %v1891 = vld [vmem:[%s1 + $0x20c] sm:$0xf]
    %v1892 = vld [vmem:[%s1 + $0x210] sm:$0xff]
    %v1893 = vld [vmem:[%s1 + $0x218] sm:$0xf]
    %v1894 = vld [vmem:[%s1 + $0x21c] sm:$0xff]
    %v1895 = vld [vmem:[%s1 + $0x224] sm:$0xf]
    %v1896 = vld [vmem:[%s1 + $0x228] sm:$0xff]
    %v1897 = vld [vmem:[%s1 + $0x230] sm:$0xf]
    %v1898 = vld [vmem:[%s1 + $0x234] sm:$0xff]
    %v1899 = vld [vmem:[%s1 + $0x23c] sm:$0xf]
    %v1900 = vld [vmem:[%s1 + $0x240] sm:$0xff]
    %v1901 = vld [vmem:[%s1 + $0x248] sm:$0xf]
    %v1902 = vld [vmem:[%s1 + $0x24c] sm:$0xff]
    %v1903 = vld [vmem:[%s1 + $0x254] sm:$0xf]
    %v1904 = vld [vmem:[%s1 + $0x258] sm:$0xff]
    %v1905 = vld [vmem:[%s1 + $0x260] sm:$0xf]
    %v1906 = vld [vmem:[%s1 + $0x264] sm:$0xff]
    %v1907 = vld [vmem:[%s1 + $0x26c] sm:$0xf]
    %v1908 = vld [vmem:[%s1 + $0x270] sm:$0xff]
    %v1909 = vld [vmem:[%s1 + $0x278] sm:$0xf]
    %v1910 = vld [vmem:[%s1 + $0x27c] sm:$0xff]
    %v1911 = vld [vmem:[%s1 + $0x284] sm:$0xf]
    %v1912 = vld [vmem:[%s1 + $0x288] sm:$0xff]
    %v1913 = vld [vmem:[%s1 + $0x290] sm:$0xf]
    %v1914 = vld [vmem:[%s1 + $0x294] sm:$0xff]
    %v1915 = vld [vmem:[%s1 + $0x29c] sm:$0xf]
    %v1916 = vld [vmem:[%s1 + $0x2a0] sm:$0xff]
    %v1917 = vld [vmem:[%s1 + $0x2a8] sm:$0xf]
    %v1918 = vld [vmem:[%s1 + $0x2ac] sm:$0xff]
    %v1919 = vld [vmem:[%s1 + $0x2b4] sm:$0xf]
    %v1920 = vld [vmem:[%s1 + $0x2b8] sm:$0xff]
    %v1921 = vld [vmem:[%s1 + $0x2c0] sm:$0xf]
    %v1922 = vld [vmem:[%s1 + $0x2c4] sm:$0xff]
    %v1923 = vld [vmem:[%s1 + $0x2cc] sm:$0xf]
    %v1924 = vld [vmem:[%s1 + $0x2d0] sm:$0xff]
    %v1925 = vld [vmem:[%s1 + $0x2d8] sm:$0xf]
    %v1926 = vld [vmem:[%s1 + $0x2dc] sm:$0xff]
    %v1927 = vld [vmem:[%s1 + $0x2e4] sm:$0xf]
    %v1928 = vld [vmem:[%s1 + $0x2e8] sm:$0xff]
    %v1929 = vld [vmem:[%s1 + $0x2f0] sm:$0xf]
    %v1930 = vld [vmem:[%s1 + $0x2f4] sm:$0xff]
    %v1931 = vld [vmem:[%s1 + $0x2fc] sm:$0xf]
    %v1932 = vld [vmem:[%s2] sm:$0x7]
    %v1934 = vlaneseq
    %v1935 = vshrl.u32 %v1934, 7
    %v1936 = vsub.s32 0, %v1935
    %v1937 = vrot.slane %v1932, %v1936
    %v1938 = vlaneseq
    %v1939 = vshrl.u32 %v1938, 7
    %v1940 = vsub.s32 1, %v1939
    %v1941 = vrot.slane %v1932, %v1940
    %v1942 = vlaneseq
    %v1943 = vshrl.u32 %v1942, 7
    %v1944 = vsub.s32 2, %v1943
    %v1945 = vrot.slane %v1932, %v1944
    %v2077 = vunpack.c.l.b16 %v1804
    %v2078 = vunpack.c.h.b16 %v1804
    %v2079 = vunpack.c.l.b16 %v1805
    %v2080 = vunpack.c.l.b16 %v1806
    %v2081 = vunpack.c.h.b16 %v1806
    %v2082 = vunpack.c.l.b16 %v1807
    %v2083 = vunpack.c.l.b16 %v1808
    %v2084 = vunpack.c.h.b16 %v1808
    %v2085 = vunpack.c.l.b16 %v1809
    %v2086 = vunpack.c.l.b16 %v1810
    %v2087 = vunpack.c.h.b16 %v1810
    %v2088 = vunpack.c.l.b16 %v1811
    %v2089 = vunpack.c.l.b16 %v1812
    %v2090 = vunpack.c.h.b16 %v1812
    %v2091 = vunpack.c.l.b16 %v1813
    %v2092 = vunpack.c.l.b16 %v1814
    %v2093 = vunpack.c.h.b16 %v1814
    %v2094 = vunpack.c.l.b16 %v1815
    %v2095 = vunpack.c.l.b16 %v1816
    %v2096 = vunpack.c.h.b16 %v1816
    %v2097 = vunpack.c.l.b16 %v1817
    %v2098 = vunpack.c.l.b16 %v1818
    %v2099 = vunpack.c.h.b16 %v1818
    %v2100 = vunpack.c.l.b16 %v1819
    %v2101 = vunpack.c.l.b16 %v1820
    %v2102 = vunpack.c.h.b16 %v1820
    %v2103 = vunpack.c.l.b16 %v1821
    %v2104 = vunpack.c.l.b16 %v1822
    %v2105 = vunpack.c.h.b16 %v1822
    %v2106 = vunpack.c.l.b16 %v1823
    %v2107 = vunpack.c.l.b16 %v1824
    %v2108 = vunpack.c.h.b16 %v1824
    %v2109 = vunpack.c.l.b16 %v1825
    %v2110 = vunpack.c.l.b16 %v1826
    %v2111 = vunpack.c.h.b16 %v1826
    %v2112 = vunpack.c.l.b16 %v1827
    %v2113 = vunpack.c.l.b16 %v1828
    %v2114 = vunpack.c.h.b16 %v1828
    %v2115 = vunpack.c.l.b16 %v1829
    %v2116 = vunpack.c.l.b16 %v1830
    %v2117 = vunpack.c.h.b16 %v1830
    %v2118 = vunpack.c.l.b16 %v1831
    %v2119 = vunpack.c.l.b16 %v1832
    %v2120 = vunpack.c.h.b16 %v1832
    %v2121 = vunpack.c.l.b16 %v1833
    %v2122 = vunpack.c.l.b16 %v1834
    %v2123 = vunpack.c.h.b16 %v1834
    %v2124 = vunpack.c.l.b16 %v1835
    %v2125 = vunpack.c.l.b16 %v1836
    %v2126 = vunpack.c.h.b16 %v1836
    %v2127 = vunpack.c.l.b16 %v1837
    %v2128 = vunpack.c.l.b16 %v1838
    %v2129 = vunpack.c.h.b16 %v1838
    %v2130 = vunpack.c.l.b16 %v1839
    %v2131 = vunpack.c.l.b16 %v1840
    %v2132 = vunpack.c.h.b16 %v1840
    %v2133 = vunpack.c.l.b16 %v1841
    %v2134 = vunpack.c.l.b16 %v1842
    %v2135 = vunpack.c.h.b16 %v1842
    %v2136 = vunpack.c.l.b16 %v1843
    %v2137 = vunpack.c.l.b16 %v1844
    %v2138 = vunpack.c.h.b16 %v1844
    %v2139 = vunpack.c.l.b16 %v1845
    %v2140 = vunpack.c.l.b16 %v1846
    %v2141 = vunpack.c.h.b16 %v1846
    %v2142 = vunpack.c.l.b16 %v1847
    %v2143 = vunpack.c.l.b16 %v1848
    %v2144 = vunpack.c.h.b16 %v1848
    %v2145 = vunpack.c.l.b16 %v1849
    %v2146 = vunpack.c.l.b16 %v1850
    %v2147 = vunpack.c.h.b16 %v1850
    %v2148 = vunpack.c.l.b16 %v1851
    %v2149 = vunpack.c.l.b16 %v1852
    %v2150 = vunpack.c.h.b16 %v1852
    %v2151 = vunpack.c.l.b16 %v1853
    %v2152 = vunpack.c.l.b16 %v1854
    %v2153 = vunpack.c.h.b16 %v1854
    %v2154 = vunpack.c.l.b16 %v1855
    %v2155 = vunpack.c.l.b16 %v1856
    %v2156 = vunpack.c.h.b16 %v1856
    %v2157 = vunpack.c.l.b16 %v1857
    %v2158 = vunpack.c.l.b16 %v1858
    %v2159 = vunpack.c.h.b16 %v1858
    %v2160 = vunpack.c.l.b16 %v1859
    %v2161 = vunpack.c.l.b16 %v1860
    %v2162 = vunpack.c.h.b16 %v1860
    %v2163 = vunpack.c.l.b16 %v1861
    %v2164 = vunpack.c.l.b16 %v1862
    %v2165 = vunpack.c.h.b16 %v1862
    %v2166 = vunpack.c.l.b16 %v1863
    %v2167 = vunpack.c.l.b16 %v1864
    %v2168 = vunpack.c.h.b16 %v1864
    %v2169 = vunpack.c.l.b16 %v1865
    %v2170 = vunpack.c.l.b16 %v1866
    %v2171 = vunpack.c.h.b16 %v1866
    %v2172 = vunpack.c.l.b16 %v1867
    %v2173 = vunpack.c.l.b16 %v1868
    %v2174 = vunpack.c.h.b16 %v1868
    %v2175 = vunpack.c.l.b16 %v1869
    %v2176 = vunpack.c.l.b16 %v1870
    %v2177 = vunpack.c.h.b16 %v1870
    %v2178 = vunpack.c.l.b16 %v1871
    %v2179 = vunpack.c.l.b16 %v1872
    %v2180 = vunpack.c.h.b16 %v1872
    %v2181 = vunpack.c.l.b16 %v1873
    %v2182 = vunpack.c.l.b16 %v1874
    %v2183 = vunpack.c.h.b16 %v1874
    %v2184 = vunpack.c.l.b16 %v1875
    %v2185 = vunpack.c.l.b16 %v1876
    %v2186 = vunpack.c.h.b16 %v1876
    %v2187 = vunpack.c.l.b16 %v1877
    %v2188 = vunpack.c.l.b16 %v1878
    %v2189 = vunpack.c.h.b16 %v1878
    %v2190 = vunpack.c.l.b16 %v1879
    %v2191 = vunpack.c.l.b16 %v1880
    %v2192 = vunpack.c.h.b16 %v1880
    %v2193 = vunpack.c.l.b16 %v1881
    %v2194 = vunpack.c.l.b16 %v1882
    %v2195 = vunpack.c.h.b16 %v1882
    %v2196 = vunpack.c.l.b16 %v1883
    %v2197 = vunpack.c.l.b16 %v1884
    %v2198 = vunpack.c.h.b16 %v1884
    %v2199 = vunpack.c.l.b16 %v1885
    %v2200 = vunpack.c.l.b16 %v1886
    %v2201 = vunpack.c.h.b16 %v1886
    %v2202 = vunpack.c.l.b16 %v1887
    %v2203 = vunpack.c.l.b16 %v1888
    %v2204 = vunpack.c.h.b16 %v1888
    %v2205 = vunpack.c.l.b16 %v1889
    %v2206 = vunpack.c.l.b16 %v1890
    %v2207 = vunpack.c.h.b16 %v1890
    %v2208 = vunpack.c.l.b16 %v1891
    %v2209 = vunpack.c.l.b16 %v1892
    %v2210 = vunpack.c.h.b16 %v1892
    %v2211 = vunpack.c.l.b16 %v1893
    %v2212 = vunpack.c.l.b16 %v1894
    %v2213 = vunpack.c.h.b16 %v1894
    %v2214 = vunpack.c.l.b16 %v1895
    %v2215 = vunpack.c.l.b16 %v1896
    %v2216 = vunpack.c.h.b16 %v1896
    %v2217 = vunpack.c.l.b16 %v1897
    %v2218 = vunpack.c.l.b16 %v1898
    %v2219 = vunpack.c.h.b16 %v1898
    %v2220 = vunpack.c.l.b16 %v1899
    %v2221 = vunpack.c.l.b16 %v1900
    %v2222 = vunpack.c.h.b16 %v1900
    %v2223 = vunpack.c.l.b16 %v1901
    %v2224 = vunpack.c.l.b16 %v1902
    %v2225 = vunpack.c.h.b16 %v1902
    %v2226 = vunpack.c.l.b16 %v1903
    %v2227 = vunpack.c.l.b16 %v1904
    %v2228 = vunpack.c.h.b16 %v1904
    %v2229 = vunpack.c.l.b16 %v1905
    %v2230 = vunpack.c.l.b16 %v1906
    %v2231 = vunpack.c.h.b16 %v1906
    %v2232 = vunpack.c.l.b16 %v1907
    %v2233 = vunpack.c.l.b16 %v1908
    %v2234 = vunpack.c.h.b16 %v1908
    %v2235 = vunpack.c.l.b16 %v1909
    %v2236 = vunpack.c.l.b16 %v1910
    %v2237 = vunpack.c.h.b16 %v1910
    %v2238 = vunpack.c.l.b16 %v1911
    %v2239 = vunpack.c.l.b16 %v1912
    %v2240 = vunpack.c.h.b16 %v1912
    %v2241 = vunpack.c.l.b16 %v1913
    %v2242 = vunpack.c.l.b16 %v1914
    %v2243 = vunpack.c.h.b16 %v1914
    %v2244 = vunpack.c.l.b16 %v1915
    %v2245 = vunpack.c.l.b16 %v1916
    %v2246 = vunpack.c.h.b16 %v1916
    %v2247 = vunpack.c.l.b16 %v1917
    %v2248 = vunpack.c.l.b16 %v1918
    %v2249 = vunpack.c.h.b16 %v1918
    %v2250 = vunpack.c.l.b16 %v1919
    %v2251 = vunpack.c.l.b16 %v1920
    %v2252 = vunpack.c.h.b16 %v1920
    %v2253 = vunpack.c.l.b16 %v1921
    %v2254 = vunpack.c.l.b16 %v1922
    %v2255 = vunpack.c.h.b16 %v1922
    %v2256 = vunpack.c.l.b16 %v1923
    %v2257 = vunpack.c.l.b16 %v1924
    %v2258 = vunpack.c.h.b16 %v1924
    %v2259 = vunpack.c.l.b16 %v1925
    %v2260 = vunpack.c.l.b16 %v1926
    %v2261 = vunpack.c.h.b16 %v1926
    %v2262 = vunpack.c.l.b16 %v1927
    %v2263 = vunpack.c.l.b16 %v1928
    %v2264 = vunpack.c.h.b16 %v1928
    %v2265 = vunpack.c.l.b16 %v1929
    %v2266 = vunpack.c.l.b16 %v1930
    %v2267 = vunpack.c.h.b16 %v1930
    %v2268 = vunpack.c.l.b16 %v1931
    %v2269 = vpack.c.b16 %v2080, %v2077
    %v2270 = vpack.c.b16 %v2081, %v2078
    %v2271 = vpack.c.b16 %v2082, %v2079
    %v2272 = vpack.c.b16 %v2086, %v2083
    %v2273 = vpack.c.b16 %v2087, %v2084
    %v2274 = vpack.c.b16 %v2088, %v2085
    %v2275 = vpack.c.b16 %v2092, %v2089
    %v2276 = vpack.c.b16 %v2093, %v2090
    %v2277 = vpack.c.b16 %v2094, %v2091
    %v2278 = vpack.c.b16 %v2098, %v2095
    %v2279 = vpack.c.b16 %v2099, %v2096
    %v2280 = vpack.c.b16 %v2100, %v2097
    %v2281 = vpack.c.b16 %v2104, %v2101
    %v2282 = vpack.c.b16 %v2105, %v2102
    %v2283 = vpack.c.b16 %v2106, %v2103
    %v2284 = vpack.c.b16 %v2110, %v2107
    %v2285 = vpack.c.b16 %v2111, %v2108
    %v2286 = vpack.c.b16 %v2112, %v2109
    %v2287 = vpack.c.b16 %v2116, %v2113
    %v2288 = vpack.c.b16 %v2117, %v2114
    %v2289 = vpack.c.b16 %v2118, %v2115
    %v2290 = vpack.c.b16 %v2122, %v2119
    %v2291 = vpack.c.b16 %v2123, %v2120
    %v2292 = vpack.c.b16 %v2124, %v2121
    %v2293 = vpack.c.b16 %v2128, %v2125
    %v2294 = vpack.c.b16 %v2129, %v2126
    %v2295 = vpack.c.b16 %v2130, %v2127
    %v2296 = vpack.c.b16 %v2134, %v2131
    %v2297 = vpack.c.b16 %v2135, %v2132
    %v2298 = vpack.c.b16 %v2136, %v2133
    %v2299 = vpack.c.b16 %v2140, %v2137
    %v2300 = vpack.c.b16 %v2141, %v2138
    %v2301 = vpack.c.b16 %v2142, %v2139
    %v2302 = vpack.c.b16 %v2146, %v2143
    %v2303 = vpack.c.b16 %v2147, %v2144
    %v2304 = vpack.c.b16 %v2148, %v2145
    %v2305 = vpack.c.b16 %v2152, %v2149
    %v2306 = vpack.c.b16 %v2153, %v2150
    %v2307 = vpack.c.b16 %v2154, %v2151
    %v2308 = vpack.c.b16 %v2158, %v2155
    %v2309 = vpack.c.b16 %v2159, %v2156
    %v2310 = vpack.c.b16 %v2160, %v2157
    %v2311 = vpack.c.b16 %v2164, %v2161
    %v2312 = vpack.c.b16 %v2165, %v2162
    %v2313 = vpack.c.b16 %v2166, %v2163
    %v2314 = vpack.c.b16 %v2170, %v2167
    %v2315 = vpack.c.b16 %v2171, %v2168
    %v2316 = vpack.c.b16 %v2172, %v2169
    %v2317 = vpack.c.b16 %v2176, %v2173
    %v2318 = vpack.c.b16 %v2177, %v2174
    %v2319 = vpack.c.b16 %v2178, %v2175
    %v2320 = vpack.c.b16 %v2182, %v2179
    %v2321 = vpack.c.b16 %v2183, %v2180
    %v2322 = vpack.c.b16 %v2184, %v2181
    %v2323 = vpack.c.b16 %v2188, %v2185
    %v2324 = vpack.c.b16 %v2189, %v2186
    %v2325 = vpack.c.b16 %v2190, %v2187
    %v2326 = vpack.c.b16 %v2194, %v2191
    %v2327 = vpack.c.b16 %v2195, %v2192
    %v2328 = vpack.c.b16 %v2196, %v2193
    %v2329 = vpack.c.b16 %v2200, %v2197
    %v2330 = vpack.c.b16 %v2201, %v2198
    %v2331 = vpack.c.b16 %v2202, %v2199
    %v2332 = vpack.c.b16 %v2206, %v2203
    %v2333 = vpack.c.b16 %v2207, %v2204
    %v2334 = vpack.c.b16 %v2208, %v2205
    %v2335 = vpack.c.b16 %v2212, %v2209
    %v2336 = vpack.c.b16 %v2213, %v2210
    %v2337 = vpack.c.b16 %v2214, %v2211
    %v2338 = vpack.c.b16 %v2218, %v2215
    %v2339 = vpack.c.b16 %v2219, %v2216
    %v2340 = vpack.c.b16 %v2220, %v2217
    %v2341 = vpack.c.b16 %v2224, %v2221
    %v2342 = vpack.c.b16 %v2225, %v2222
    %v2343 = vpack.c.b16 %v2226, %v2223
    %v2344 = vpack.c.b16 %v2230, %v2227
    %v2345 = vpack.c.b16 %v2231, %v2228
    %v2346 = vpack.c.b16 %v2232, %v2229
    %v2347 = vpack.c.b16 %v2236, %v2233
    %v2348 = vpack.c.b16 %v2237, %v2234
    %v2349 = vpack.c.b16 %v2238, %v2235
    %v2350 = vpack.c.b16 %v2242, %v2239
    %v2351 = vpack.c.b16 %v2243, %v2240
    %v2352 = vpack.c.b16 %v2244, %v2241
    %v2353 = vpack.c.b16 %v2248, %v2245
    %v2354 = vpack.c.b16 %v2249, %v2246
    %v2355 = vpack.c.b16 %v2250, %v2247
    %v2356 = vpack.c.b16 %v2254, %v2251
    %v2357 = vpack.c.b16 %v2255, %v2252
    %v2358 = vpack.c.b16 %v2256, %v2253
    %v2359 = vpack.c.b16 %v2260, %v2257
    %v2360 = vpack.c.b16 %v2261, %v2258
    %v2361 = vpack.c.b16 %v2262, %v2259
    %v2362 = vpack.c.b16 %v2266, %v2263
    %v2363 = vpack.c.b16 %v2267, %v2264
    %v2364 = vpack.c.b16 %v2268, %v2265
    %2461 = vmatprep.subr.bf16.mxu0 %v2270
    %2462 = vmatpush1.bf16.msra.mxu0 %v2269
    %2463 = vmatprep.subr.bf16.mxu0 %v2273
    %2464 = vmatpush1.bf16.msra.mxu0 %v2272
    %2465 = vmatprep.subr.bf16.mxu0 %v2276
    %2466 = vmatpush1.bf16.msra.mxu0 %v2275
    %2467 = vmatprep.subr.bf16.mxu0 %v2279
    %2468 = vmatpush1.bf16.msra.mxu0 %v2278
    %2469 = vmatprep.subr.bf16.mxu0 %v2282
    %2470 = vmatpush1.bf16.msra.mxu0 %v2281
    %2471 = vmatprep.subr.bf16.mxu0 %v2285
    %2472 = vmatpush1.bf16.msra.mxu0 %v2284
    %2473 = vmatprep.subr.bf16.mxu0 %v2288
    %2474 = vmatpush1.bf16.msra.mxu0 %v2287
    %2475 = vmatprep.subr.bf16.mxu0 %v2291
    %2476 = vmatpush1.bf16.msra.mxu0 %v2290
    %2477 = vmatprep.subr.bf16.mxu0 %v2294
    %2478 = vmatpush1.bf16.msra.mxu0 %v2293
    %2479 = vmatprep.subr.bf16.mxu0 %v2297
    %2480 = vmatpush1.bf16.msra.mxu0 %v2296
    %2481 = vmatprep.subr.bf16.mxu0 %v2300
    %2482 = vmatpush1.bf16.msra.mxu0 %v2299
    %2483 = vmatprep.subr.bf16.mxu0 %v2303
    %2484 = vmatpush1.bf16.msra.mxu0 %v2302
    %2485 = vmatprep.subr.bf16.mxu0 %v2306
    %2486 = vmatpush1.bf16.msra.mxu0 %v2305
    %2487 = vmatprep.subr.bf16.mxu0 %v2309
    %2488 = vmatpush1.bf16.msra.mxu0 %v2308
    %2489 = vmatprep.subr.bf16.mxu0 %v2312
    %2490 = vmatpush1.bf16.msra.mxu0 %v2311
    %2491 = vmatprep.subr.bf16.mxu0 %v2315
    %2492 = vmatpush1.bf16.msra.mxu0 %v2314
    %2493 = vmatprep.mubr.bf16.mxu0 %v1801
    %2494 = vmatmul.mubr.bf16.gmra.mrb[0].mxu0 %v1800
    %v2495 = vpop.f32.mrb[0].mxu0
    %v2496 = vadd.f32 %v1937, %v2495
    %v2497 = vpop.f32.mrb[0].mxu0
    %v2498 = vadd.f32 %v1941, %v2497
    %v2499 = vpop.f32.mrb[0].mxu0
    %v2500 = vpop.f32.mrb[0].mxu0
    %2501 = vdwg.mxu0
    %2502 = vmatprep.subr.bf16.mxu0 %v2318
    %2503 = vmatpush1.bf16.msra.mxu0 %v2317
    %2504 = vmatprep.subr.bf16.mxu0 %v2321
    %2505 = vmatpush1.bf16.msra.mxu0 %v2320
    %2506 = vmatprep.subr.bf16.mxu0 %v2324
    %2507 = vmatpush1.bf16.msra.mxu0 %v2323
    %2508 = vmatprep.subr.bf16.mxu0 %v2327
    %2509 = vmatpush1.bf16.msra.mxu0 %v2326
    %2510 = vmatprep.subr.bf16.mxu0 %v2330
    %2511 = vmatpush1.bf16.msra.mxu0 %v2329
    %2512 = vmatprep.subr.bf16.mxu0 %v2333
    %2513 = vmatpush1.bf16.msra.mxu0 %v2332
    %2514 = vmatprep.subr.bf16.mxu0 %v2336
    %2515 = vmatpush1.bf16.msra.mxu0 %v2335
    %2516 = vmatprep.subr.bf16.mxu0 %v2339
    %2517 = vmatpush1.bf16.msra.mxu0 %v2338
    %2518 = vmatprep.subr.bf16.mxu0 %v2342
    %2519 = vmatpush1.bf16.msra.mxu0 %v2341
    %2520 = vmatprep.subr.bf16.mxu0 %v2345
    %2521 = vmatpush1.bf16.msra.mxu0 %v2344
    %2522 = vmatprep.subr.bf16.mxu0 %v2348
    %2523 = vmatpush1.bf16.msra.mxu0 %v2347
    %2524 = vmatprep.subr.bf16.mxu0 %v2351
    %2525 = vmatpush1.bf16.msra.mxu0 %v2350
    %2526 = vmatprep.subr.bf16.mxu0 %v2354
    %2527 = vmatpush1.bf16.msra.mxu0 %v2353
    %2528 = vmatprep.subr.bf16.mxu0 %v2357
    %2529 = vmatpush1.bf16.msra.mxu0 %v2356
    %2530 = vmatprep.subr.bf16.mxu0 %v2360
    %2531 = vmatpush1.bf16.msra.mxu0 %v2359
    %2532 = vmatprep.subr.bf16.mxu0 %v2363
    %2533 = vmatpush1.bf16.msra.mxu0 %v2362
    %2534 = vmatprep.mubr.bf16.mxu0 %v1803
    %2535 = vmatmul.mubr.bf16.gmra.mrb[0].mxu0 %v1802
    %v2536 = vpop.f32.mrb[0].mxu0
    %v2537 = vadd.f32 %v2496, %v2536
    %v2538 = vpop.f32.mrb[0].mxu0
    %v2539 = vadd.f32 %v2498, %v2538
    %v2540 = vpop.f32.mrb[0].mxu0
    %v2541 = vpop.f32.mrb[0].mxu0
    %2542 = vdwg.mxu0
    %2543 = vmatprep.subr.bf16.mxu0 0
    %2544 = vmatpush1.bf16.msra.mxu0 %v2271
    %2545 = vmatprep.subr.bf16.mxu0 0
    %2546 = vmatpush1.bf16.msra.mxu0 %v2274
    %2547 = vmatprep.subr.bf16.mxu0 0
    %2548 = vmatpush1.bf16.msra.mxu0 %v2277
    %2549 = vmatprep.subr.bf16.mxu0 0
    %2550 = vmatpush1.bf16.msra.mxu0 %v2280
    %2551 = vmatprep.subr.bf16.mxu0 0
    %2552 = vmatpush1.bf16.msra.mxu0 %v2283
    %2553 = vmatprep.subr.bf16.mxu0 0
    %2554 = vmatpush1.bf16.msra.mxu0 %v2286
    %2555 = vmatprep.subr.bf16.mxu0 0
    %2556 = vmatpush1.bf16.msra.mxu0 %v2289
    %2557 = vmatprep.subr.bf16.mxu0 0
    %2558 = vmatpush1.bf16.msra.mxu0 %v2292
    %2559 = vmatprep.subr.bf16.mxu0 0
    %2560 = vmatpush1.bf16.msra.mxu0 %v2295
    %2561 = vmatprep.subr.bf16.mxu0 0
    %2562 = vmatpush1.bf16.msra.mxu0 %v2298
    %2563 = vmatprep.subr.bf16.mxu0 0
    %2564 = vmatpush1.bf16.msra.mxu0 %v2301
    %2565 = vmatprep.subr.bf16.mxu0 0
    %2566 = vmatpush1.bf16.msra.mxu0 %v2304
    %2567 = vmatprep.subr.bf16.mxu0 0
    %2568 = vmatpush1.bf16.msra.mxu0 %v2307
    %2569 = vmatprep.subr.bf16.mxu0 0
    %2570 = vmatpush1.bf16.msra.mxu0 %v2310
    %2571 = vmatprep.subr.bf16.mxu0 0
    %2572 = vmatpush1.bf16.msra.mxu0 %v2313
    %2573 = vmatprep.subr.bf16.mxu0 0
    %2574 = vmatpush1.bf16.msra.mxu0 %v2316
    %2575 = vmatprep.mubr.bf16.mxu0 %v1801
    %2576 = vmatmul.mubr.bf16.gmra.mrb[0].mxu0 %v1800
    %v2577 = vpop.f32.mrb[0].mxu0
    %v2578 = vadd.f32 %v1945, %v2577
    %v2579 = vpop.f32.mrb[0].mxu0
    %v2580 = vpop.f32.mrb[0].mxu0
    %v2581 = vpop.f32.mrb[0].mxu0
    %2582 = vdwg.mxu0
    %2583 = vmatprep.subr.bf16.mxu0 0
    %2584 = vmatpush1.bf16.msra.mxu0 %v2319
    %2585 = vmatprep.subr.bf16.mxu0 0
    %2586 = vmatpush1.bf16.msra.mxu0 %v2322
    %2587 = vmatprep.subr.bf16.mxu0 0
    %2588 = vmatpush1.bf16.msra.mxu0 %v2325
    %2589 = vmatprep.subr.bf16.mxu0 0
    %2590 = vmatpush1.bf16.msra.mxu0 %v2328
    %2591 = vmatprep.subr.bf16.mxu0 0
    %2592 = vmatpush1.bf16.msra.mxu0 %v2331
    %2593 = vmatprep.subr.bf16.mxu0 0
    %2594 = vmatpush1.bf16.msra.mxu0 %v2334
    %2595 = vmatprep.subr.bf16.mxu0 0
    %2596 = vmatpush1.bf16.msra.mxu0 %v2337
    %2597 = vmatprep.subr.bf16.mxu0 0
    %2598 = vmatpush1.bf16.msra.mxu0 %v2340
    %2599 = vmatprep.subr.bf16.mxu0 0
    %2600 = vmatpush1.bf16.msra.mxu0 %v2343
    %2601 = vmatprep.subr.bf16.mxu0 0
    %2602 = vmatpush1.bf16.msra.mxu0 %v2346
    %2603 = vmatprep.subr.bf16.mxu0 0
    %2604 = vmatpush1.bf16.msra.mxu0 %v2349
    %2605 = vmatprep.subr.bf16.mxu0 0
    %2606 = vmatpush1.bf16.msra.mxu0 %v2352
    %2607 = vmatprep.subr.bf16.mxu0 0
    %2608 = vmatpush1.bf16.msra.mxu0 %v2355
    %2609 = vmatprep.subr.bf16.mxu0 0
    %2610 = vmatpush1.bf16.msra.mxu0 %v2358
    %2611 = vmatprep.subr.bf16.mxu0 0
    %2612 = vmatpush1.bf16.msra.mxu0 %v2361
    %2613 = vmatprep.subr.bf16.mxu0 0
    %2614 = vmatpush1.bf16.msra.mxu0 %v2364
    %2615 = vmatprep.mubr.bf16.mxu0 %v1803
    %2616 = vmatmul.mubr.bf16.gmra.mrb[0].mxu0 %v1802
    %v2617 = vpop.f32.mrb[0].mxu0
    %v2618 = vadd.f32 %v2578, %v2617
    %v2619 = vpop.f32.mrb[0].mxu0
    %v2620 = vpop.f32.mrb[0].mxu0
    %v2621 = vpop.f32.mrb[0].mxu0
    %2622 = vdwg.mxu0
    %v2626 = vcombine.low %v2537, %v2539
    %v2628 = vunpack.c.l.s4 1983009808
    %v2629 = vunpack.c.0.s8 %v2628
    %v2630 = vlaneseq
    %v2631 = vshrl.u32 %v2630, 7
    %v2632 = vsub.s32 %v2629, %v2631
    %v2633 = vrot.slane %v2626, %v2632
    %v2635 = vunpack.c.l.s4 1983009808
    %v2636 = vunpack.c.0.s8 %v2635
    %v2637 = vlaneseq
    %v2638 = vshrl.u32 %v2637, 7
    %v2639 = vsub.s32 %v2636, %v2638
    %v2640 = vrot.slane %v2618, %v2639
    %v2641 = vcombine.low %v2633, %v2640
    %s2643 = scalar_lea.vmem [#allocation2], 12
    %2644 = vst [vmem:[%s2643] sm:$0x3f] %v2641
    %s2645 = scalar_lea.vmem %s0, 24
    %v2646 = vld [vmem:[%s2645] sm:$0xff]
    %v2648 = vcombine.high %v2646, %v2646
    %v2650 = vunpack.c.l.s4 1983009808
    %v2651 = vunpack.c.0.s8 %v2650
    %v2652 = vlaneseq
    %v2653 = vshrl.u32 %v2652, 7
    %v2654 = vsub.s32 %v2651, %v2653
    %v2655 = vrot.slane %v2646, %v2654
    %v2657 = vunpack.c.l.s4 1983009808
    %v2658 = vunpack.c.0.s8 %v2657
    %v2659 = vlaneseq
    %v2660 = vshrl.u32 %v2659, 7
    %v2661 = vsub.s32 %v2658, %v2660
    %v2662 = vrot.slane %v2648, %v2661
    %v2663 = vcombine.high %v2655, %v2655
    %v2664 = vcombine.high %v2662, %v2662
    %v2669 = vpack.c.bf16 %v2655, %v2655
    %v2670 = vpack.c.bf16 %v2663, %v2663
    %v2671 = vpack.c.bf16 %v2662, %v2662
    %v2672 = vpack.c.bf16 %v2664, %v2664
    %v2673 = vld [vmem:[%s1] sm:$0xff]
    %v2674 = vld [vmem:[%s1 + $0x8] sm:$0xf]
    %v2675 = vld [vmem:[%s1 + $0xc] sm:$0xff]
    %v2676 = vld [vmem:[%s1 + $0x14] sm:$0xf]
    %v2677 = vld [vmem:[%s1 + $0x18] sm:$0xff]
    %v2678 = vld [vmem:[%s1 + $0x20] sm:$0xf]
    %v2679 = vld [vmem:[%s1 + $0x24] sm:$0xff]
    %v2680 = vld [vmem:[%s1 + $0x2c] sm:$0xf]
    %v2681 = vld [vmem:[%s1 + $0x30] sm:$0xff]
    %v2682 = vld [vmem:[%s1 + $0x38] sm:$0xf]
    %v2683 = vld [vmem:[%s1 + $0x3c] sm:$0xff]
    %v2684 = vld [vmem:[%s1 + $0x44] sm:$0xf]
    %v2685 = vld [vmem:[%s1 + $0x48] sm:$0xff]
    %v2686 = vld [vmem:[%s1 + $0x50] sm:$0xf]
    %v2687 = vld [vmem:[%s1 + $0x54] sm:$0xff]
    %v2688 = vld [vmem:[%s1 + $0x5c] sm:$0xf]
    %v2689 = vld [vmem:[%s1 + $0x60] sm:$0xff]
    %v2690 = vld [vmem:[%s1 + $0x68] sm:$0xf]
    %v2691 = vld [vmem:[%s1 + $0x6c] sm:$0xff]
    %v2692 = vld [vmem:[%s1 + $0x74] sm:$0xf]
    %v2693 = vld [vmem:[%s1 + $0x78] sm:$0xff]
    %v2694 = vld [vmem:[%s1 + $0x80] sm:$0xf]
    %v2695 = vld [vmem:[%s1 + $0x84] sm:$0xff]
    %v2696 = vld [vmem:[%s1 + $0x8c] sm:$0xf]
    %v2697 = vld [vmem:[%s1 + $0x90] sm:$0xff]
    %v2698 = vld [vmem:[%s1 + $0x98] sm:$0xf]
    %v2699 = vld [vmem:[%s1 + $0x9c] sm:$0xff]
    %v2700 = vld [vmem:[%s1 + $0xa4] sm:$0xf]
    %v2701 = vld [vmem:[%s1 + $0xa8] sm:$0xff]
    %v2702 = vld [vmem:[%s1 + $0xb0] sm:$0xf]
    %v2703 = vld [vmem:[%s1 + $0xb4] sm:$0xff]
    %v2704 = vld [vmem:[%s1 + $0xbc] sm:$0xf]
    %v2705 = vld [vmem:[%s1 + $0xc0] sm:$0xff]
    %v2706 = vld [vmem:[%s1 + $0xc8] sm:$0xf]
    %v2707 = vld [vmem:[%s1 + $0xcc] sm:$0xff]
    %v2708 = vld [vmem:[%s1 + $0xd4] sm:$0xf]
    %v2709 = vld [vmem:[%s1 + $0xd8] sm:$0xff]
    %v2710 = vld [vmem:[%s1 + $0xe0] sm:$0xf]
    %v2711 = vld [vmem:[%s1 + $0xe4] sm:$0xff]
    %v2712 = vld [vmem:[%s1 + $0xec] sm:$0xf]
    %v2713 = vld [vmem:[%s1 + $0xf0] sm:$0xff]
    %v2714 = vld [vmem:[%s1 + $0xf8] sm:$0xf]
    %v2715 = vld [vmem:[%s1 + $0xfc] sm:$0xff]
    %v2716 = vld [vmem:[%s1 + $0x104] sm:$0xf]
    %v2717 = vld [vmem:[%s1 + $0x108] sm:$0xff]
    %v2718 = vld [vmem:[%s1 + $0x110] sm:$0xf]
    %v2719 = vld [vmem:[%s1 + $0x114] sm:$0xff]
    %v2720 = vld [vmem:[%s1 + $0x11c] sm:$0xf]
    %v2721 = vld [vmem:[%s1 + $0x120] sm:$0xff]
    %v2722 = vld [vmem:[%s1 + $0x128] sm:$0xf]
    %v2723 = vld [vmem:[%s1 + $0x12c] sm:$0xff]
    %v2724 = vld [vmem:[%s1 + $0x134] sm:$0xf]
    %v2725 = vld [vmem:[%s1 + $0x138] sm:$0xff]
    %v2726 = vld [vmem:[%s1 + $0x140] sm:$0xf]
    %v2727 = vld [vmem:[%s1 + $0x144] sm:$0xff]
    %v2728 = vld [vmem:[%s1 + $0x14c] sm:$0xf]
    %v2729 = vld [vmem:[%s1 + $0x150] sm:$0xff]
    %v2730 = vld [vmem:[%s1 + $0x158] sm:$0xf]
    %v2731 = vld [vmem:[%s1 + $0x15c] sm:$0xff]
    %v2732 = vld [vmem:[%s1 + $0x164] sm:$0xf]
    %v2733 = vld [vmem:[%s1 + $0x168] sm:$0xff]
    %v2734 = vld [vmem:[%s1 + $0x170] sm:$0xf]
    %v2735 = vld [vmem:[%s1 + $0x174] sm:$0xff]
    %v2736 = vld [vmem:[%s1 + $0x17c] sm:$0xf]
    %v2737 = vld [vmem:[%s1 + $0x180] sm:$0xff]
    %v2738 = vld [vmem:[%s1 + $0x188] sm:$0xf]
    %v2739 = vld [vmem:[%s1 + $0x18c] sm:$0xff]
    %v2740 = vld [vmem:[%s1 + $0x194] sm:$0xf]
    %v2741 = vld [vmem:[%s1 + $0x198] sm:$0xff]
    %v2742 = vld [vmem:[%s1 + $0x1a0] sm:$0xf]
    %v2743 = vld [vmem:[%s1 + $0x1a4] sm:$0xff]
    %v2744 = vld [vmem:[%s1 + $0x1ac] sm:$0xf]
    %v2745 = vld [vmem:[%s1 + $0x1b0] sm:$0xff]
    %v2746 = vld [vmem:[%s1 + $0x1b8] sm:$0xf]
    %v2747 = vld [vmem:[%s1 + $0x1bc] sm:$0xff]
    %v2748 = vld [vmem:[%s1 + $0x1c4] sm:$0xf]
    %v2749 = vld [vmem:[%s1 + $0x1c8] sm:$0xff]
    %v2750 = vld [vmem:[%s1 + $0x1d0] sm:$0xf]
    %v2751 = vld [vmem:[%s1 + $0x1d4] sm:$0xff]
    %v2752 = vld [vmem:[%s1 + $0x1dc] sm:$0xf]
    %v2753 = vld [vmem:[%s1 + $0x1e0] sm:$0xff]
    %v2754 = vld [vmem:[%s1 + $0x1e8] sm:$0xf]
    %v2755 = vld [vmem:[%s1 + $0x1ec] sm:$0xff]
    %v2756 = vld [vmem:[%s1 + $0x1f4] sm:$0xf]
    %v2757 = vld [vmem:[%s1 + $0x1f8] sm:$0xff]
    %v2758 = vld [vmem:[%s1 + $0x200] sm:$0xf]
    %v2759 = vld [vmem:[%s1 + $0x204] sm:$0xff]
    %v2760 = vld [vmem:[%s1 + $0x20c] sm:$0xf]
    %v2761 = vld [vmem:[%s1 + $0x210] sm:$0xff]
    %v2762 = vld [vmem:[%s1 + $0x218] sm:$0xf]
    %v2763 = vld [vmem:[%s1 + $0x21c] sm:$0xff]
    %v2764 = vld [vmem:[%s1 + $0x224] sm:$0xf]
    %v2765 = vld [vmem:[%s1 + $0x228] sm:$0xff]
    %v2766 = vld [vmem:[%s1 + $0x230] sm:$0xf]
    %v2767 = vld [vmem:[%s1 + $0x234] sm:$0xff]
    %v2768 = vld [vmem:[%s1 + $0x23c] sm:$0xf]
    %v2769 = vld [vmem:[%s1 + $0x240] sm:$0xff]
    %v2770 = vld [vmem:[%s1 + $0x248] sm:$0xf]
    %v2771 = vld [vmem:[%s1 + $0x24c] sm:$0xff]
    %v2772 = vld [vmem:[%s1 + $0x254] sm:$0xf]
    %v2773 = vld [vmem:[%s1 + $0x258] sm:$0xff]
    %v2774 = vld [vmem:[%s1 + $0x260] sm:$0xf]
    %v2775 = vld [vmem:[%s1 + $0x264] sm:$0xff]
    %v2776 = vld [vmem:[%s1 + $0x26c] sm:$0xf]
    %v2777 = vld [vmem:[%s1 + $0x270] sm:$0xff]
    %v2778 = vld [vmem:[%s1 + $0x278] sm:$0xf]
    %v2779 = vld [vmem:[%s1 + $0x27c] sm:$0xff]
    %v2780 = vld [vmem:[%s1 + $0x284] sm:$0xf]
    %v2781 = vld [vmem:[%s1 + $0x288] sm:$0xff]
    %v2782 = vld [vmem:[%s1 + $0x290] sm:$0xf]
    %v2783 = vld [vmem:[%s1 + $0x294] sm:$0xff]
    %v2784 = vld [vmem:[%s1 + $0x29c] sm:$0xf]
    %v2785 = vld [vmem:[%s1 + $0x2a0] sm:$0xff]
    %v2786 = vld [vmem:[%s1 + $0x2a8] sm:$0xf]
    %v2787 = vld [vmem:[%s1 + $0x2ac] sm:$0xff]
    %v2788 = vld [vmem:[%s1 + $0x2b4] sm:$0xf]
    %v2789 = vld [vmem:[%s1 + $0x2b8] sm:$0xff]
    %v2790 = vld [vmem:[%s1 + $0x2c0] sm:$0xf]
    %v2791 = vld [vmem:[%s1 + $0x2c4] sm:$0xff]
    %v2792 = vld [vmem:[%s1 + $0x2cc] sm:$0xf]
    %v2793 = vld [vmem:[%s1 + $0x2d0] sm:$0xff]
    %v2794 = vld [vmem:[%s1 + $0x2d8] sm:$0xf]
    %v2795 = vld [vmem:[%s1 + $0x2dc] sm:$0xff]
    %v2796 = vld [vmem:[%s1 + $0x2e4] sm:$0xf]
    %v2797 = vld [vmem:[%s1 + $0x2e8] sm:$0xff]
    %v2798 = vld [vmem:[%s1 + $0x2f0] sm:$0xf]
    %v2799 = vld [vmem:[%s1 + $0x2f4] sm:$0xff]
    %v2800 = vld [vmem:[%s1 + $0x2fc] sm:$0xf]
    %v2801 = vld [vmem:[%s2] sm:$0x7]
    %v2803 = vlaneseq
    %v2804 = vshrl.u32 %v2803, 7
    %v2805 = vsub.s32 0, %v2804
    %v2806 = vrot.slane %v2801, %v2805
    %v2807 = vlaneseq
    %v2808 = vshrl.u32 %v2807, 7
    %v2809 = vsub.s32 1, %v2808
    %v2810 = vrot.slane %v2801, %v2809
    %v2811 = vlaneseq
    %v2812 = vshrl.u32 %v2811, 7
    %v2813 = vsub.s32 2, %v2812
    %v2814 = vrot.slane %v2801, %v2813
    %v2946 = vunpack.c.l.b16 %v2673
    %v2947 = vunpack.c.h.b16 %v2673
    %v2948 = vunpack.c.l.b16 %v2674
    %v2949 = vunpack.c.l.b16 %v2675
    %v2950 = vunpack.c.h.b16 %v2675
    %v2951 = vunpack.c.l.b16 %v2676
    %v2952 = vunpack.c.l.b16 %v2677
    %v2953 = vunpack.c.h.b16 %v2677
    %v2954 = vunpack.c.l.b16 %v2678
    %v2955 = vunpack.c.l.b16 %v2679
    %v2956 = vunpack.c.h.b16 %v2679
    %v2957 = vunpack.c.l.b16 %v2680
    %v2958 = vunpack.c.l.b16 %v2681
    %v2959 = vunpack.c.h.b16 %v2681
    %v2960 = vunpack.c.l.b16 %v2682
    %v2961 = vunpack.c.l.b16 %v2683
    %v2962 = vunpack.c.h.b16 %v2683
    %v2963 = vunpack.c.l.b16 %v2684
    %v2964 = vunpack.c.l.b16 %v2685
    %v2965 = vunpack.c.h.b16 %v2685
    %v2966 = vunpack.c.l.b16 %v2686
    %v2967 = vunpack.c.l.b16 %v2687
    %v2968 = vunpack.c.h.b16 %v2687
    %v2969 = vunpack.c.l.b16 %v2688
    %v2970 = vunpack.c.l.b16 %v2689
    %v2971 = vunpack.c.h.b16 %v2689
    %v2972 = vunpack.c.l.b16 %v2690
    %v2973 = vunpack.c.l.b16 %v2691
    %v2974 = vunpack.c.h.b16 %v2691
    %v2975 = vunpack.c.l.b16 %v2692
    %v2976 = vunpack.c.l.b16 %v2693
    %v2977 = vunpack.c.h.b16 %v2693
    %v2978 = vunpack.c.l.b16 %v2694
    %v2979 = vunpack.c.l.b16 %v2695
    %v2980 = vunpack.c.h.b16 %v2695
    %v2981 = vunpack.c.l.b16 %v2696
    %v2982 = vunpack.c.l.b16 %v2697
    %v2983 = vunpack.c.h.b16 %v2697
    %v2984 = vunpack.c.l.b16 %v2698
    %v2985 = vunpack.c.l.b16 %v2699
    %v2986 = vunpack.c.h.b16 %v2699
    %v2987 = vunpack.c.l.b16 %v2700
    %v2988 = vunpack.c.l.b16 %v2701
    %v2989 = vunpack.c.h.b16 %v2701
    %v2990 = vunpack.c.l.b16 %v2702
    %v2991 = vunpack.c.l.b16 %v2703
    %v2992 = vunpack.c.h.b16 %v2703
    %v2993 = vunpack.c.l.b16 %v2704
    %v2994 = vunpack.c.l.b16 %v2705
    %v2995 = vunpack.c.h.b16 %v2705
    %v2996 = vunpack.c.l.b16 %v2706
    %v2997 = vunpack.c.l.b16 %v2707
    %v2998 = vunpack.c.h.b16 %v2707
    %v2999 = vunpack.c.l.b16 %v2708
    %v3000 = vunpack.c.l.b16 %v2709
    %v3001 = vunpack.c.h.b16 %v2709
    %v3002 = vunpack.c.l.b16 %v2710
    %v3003 = vunpack.c.l.b16 %v2711
    %v3004 = vunpack.c.h.b16 %v2711
    %v3005 = vunpack.c.l.b16 %v2712
    %v3006 = vunpack.c.l.b16 %v2713
    %v3007 = vunpack.c.h.b16 %v2713
    %v3008 = vunpack.c.l.b16 %v2714
    %v3009 = vunpack.c.l.b16 %v2715
    %v3010 = vunpack.c.h.b16 %v2715
    %v3011 = vunpack.c.l.b16 %v2716
    %v3012 = vunpack.c.l.b16 %v2717
    %v3013 = vunpack.c.h.b16 %v2717
    %v3014 = vunpack.c.l.b16 %v2718
    %v3015 = vunpack.c.l.b16 %v2719
    %v3016 = vunpack.c.h.b16 %v2719
    %v3017 = vunpack.c.l.b16 %v2720
    %v3018 = vunpack.c.l.b16 %v2721
    %v3019 = vunpack.c.h.b16 %v2721
    %v3020 = vunpack.c.l.b16 %v2722
    %v3021 = vunpack.c.l.b16 %v2723
    %v3022 = vunpack.c.h.b16 %v2723
    %v3023 = vunpack.c.l.b16 %v2724
    %v3024 = vunpack.c.l.b16 %v2725
    %v3025 = vunpack.c.h.b16 %v2725
    %v3026 = vunpack.c.l.b16 %v2726
    %v3027 = vunpack.c.l.b16 %v2727
    %v3028 = vunpack.c.h.b16 %v2727
    %v3029 = vunpack.c.l.b16 %v2728
    %v3030 = vunpack.c.l.b16 %v2729
    %v3031 = vunpack.c.h.b16 %v2729
    %v3032 = vunpack.c.l.b16 %v2730
    %v3033 = vunpack.c.l.b16 %v2731
    %v3034 = vunpack.c.h.b16 %v2731
    %v3035 = vunpack.c.l.b16 %v2732
    %v3036 = vunpack.c.l.b16 %v2733
    %v3037 = vunpack.c.h.b16 %v2733
    %v3038 = vunpack.c.l.b16 %v2734
    %v3039 = vunpack.c.l.b16 %v2735
    %v3040 = vunpack.c.h.b16 %v2735
    %v3041 = vunpack.c.l.b16 %v2736
    %v3042 = vunpack.c.l.b16 %v2737
    %v3043 = vunpack.c.h.b16 %v2737
    %v3044 = vunpack.c.l.b16 %v2738
    %v3045 = vunpack.c.l.b16 %v2739
    %v3046 = vunpack.c.h.b16 %v2739
    %v3047 = vunpack.c.l.b16 %v2740
    %v3048 = vunpack.c.l.b16 %v2741
    %v3049 = vunpack.c.h.b16 %v2741
    %v3050 = vunpack.c.l.b16 %v2742
    %v3051 = vunpack.c.l.b16 %v2743
    %v3052 = vunpack.c.h.b16 %v2743
    %v3053 = vunpack.c.l.b16 %v2744
    %v3054 = vunpack.c.l.b16 %v2745
    %v3055 = vunpack.c.h.b16 %v2745
    %v3056 = vunpack.c.l.b16 %v2746
    %v3057 = vunpack.c.l.b16 %v2747
    %v3058 = vunpack.c.h.b16 %v2747
    %v3059 = vunpack.c.l.b16 %v2748
    %v3060 = vunpack.c.l.b16 %v2749
    %v3061 = vunpack.c.h.b16 %v2749
    %v3062 = vunpack.c.l.b16 %v2750
    %v3063 = vunpack.c.l.b16 %v2751
    %v3064 = vunpack.c.h.b16 %v2751
    %v3065 = vunpack.c.l.b16 %v2752
    %v3066 = vunpack.c.l.b16 %v2753
    %v3067 = vunpack.c.h.b16 %v2753
    %v3068 = vunpack.c.l.b16 %v2754
    %v3069 = vunpack.c.l.b16 %v2755
    %v3070 = vunpack.c.h.b16 %v2755
    %v3071 = vunpack.c.l.b16 %v2756
    %v3072 = vunpack.c.l.b16 %v2757
    %v3073 = vunpack.c.h.b16 %v2757
    %v3074 = vunpack.c.l.b16 %v2758
    %v3075 = vunpack.c.l.b16 %v2759
    %v3076 = vunpack.c.h.b16 %v2759
    %v3077 = vunpack.c.l.b16 %v2760
    %v3078 = vunpack.c.l.b16 %v2761
    %v3079 = vunpack.c.h.b16 %v2761
    %v3080 = vunpack.c.l.b16 %v2762
    %v3081 = vunpack.c.l.b16 %v2763
    %v3082 = vunpack.c.h.b16 %v2763
    %v3083 = vunpack.c.l.b16 %v2764
    %v3084 = vunpack.c.l.b16 %v2765
    %v3085 = vunpack.c.h.b16 %v2765
    %v3086 = vunpack.c.l.b16 %v2766
    %v3087 = vunpack.c.l.b16 %v2767
    %v3088 = vunpack.c.h.b16 %v2767
    %v3089 = vunpack.c.l.b16 %v2768
    %v3090 = vunpack.c.l.b16 %v2769
    %v3091 = vunpack.c.h.b16 %v2769
    %v3092 = vunpack.c.l.b16 %v2770
    %v3093 = vunpack.c.l.b16 %v2771
    %v3094 = vunpack.c.h.b16 %v2771
    %v3095 = vunpack.c.l.b16 %v2772
    %v3096 = vunpack.c.l.b16 %v2773
    %v3097 = vunpack.c.h.b16 %v2773
    %v3098 = vunpack.c.l.b16 %v2774
    %v3099 = vunpack.c.l.b16 %v2775
    %v3100 = vunpack.c.h.b16 %v2775
    %v3101 = vunpack.c.l.b16 %v2776
    %v3102 = vunpack.c.l.b16 %v2777
    %v3103 = vunpack.c.h.b16 %v2777
    %v3104 = vunpack.c.l.b16 %v2778
    %v3105 = vunpack.c.l.b16 %v2779
    %v3106 = vunpack.c.h.b16 %v2779
    %v3107 = vunpack.c.l.b16 %v2780
    %v3108 = vunpack.c.l.b16 %v2781
    %v3109 = vunpack.c.h.b16 %v2781
    %v3110 = vunpack.c.l.b16 %v2782
    %v3111 = vunpack.c.l.b16 %v2783
    %v3112 = vunpack.c.h.b16 %v2783
    %v3113 = vunpack.c.l.b16 %v2784
    %v3114 = vunpack.c.l.b16 %v2785
    %v3115 = vunpack.c.h.b16 %v2785
    %v3116 = vunpack.c.l.b16 %v2786
    %v3117 = vunpack.c.l.b16 %v2787
    %v3118 = vunpack.c.h.b16 %v2787
    %v3119 = vunpack.c.l.b16 %v2788
    %v3120 = vunpack.c.l.b16 %v2789
    %v3121 = vunpack.c.h.b16 %v2789
    %v3122 = vunpack.c.l.b16 %v2790
    %v3123 = vunpack.c.l.b16 %v2791
    %v3124 = vunpack.c.h.b16 %v2791
    %v3125 = vunpack.c.l.b16 %v2792
    %v3126 = vunpack.c.l.b16 %v2793
    %v3127 = vunpack.c.h.b16 %v2793
    %v3128 = vunpack.c.l.b16 %v2794
    %v3129 = vunpack.c.l.b16 %v2795
    %v3130 = vunpack.c.h.b16 %v2795
    %v3131 = vunpack.c.l.b16 %v2796
    %v3132 = vunpack.c.l.b16 %v2797
    %v3133 = vunpack.c.h.b16 %v2797
    %v3134 = vunpack.c.l.b16 %v2798
    %v3135 = vunpack.c.l.b16 %v2799
    %v3136 = vunpack.c.h.b16 %v2799
    %v3137 = vunpack.c.l.b16 %v2800
    %v3138 = vpack.c.b16 %v2949, %v2946
    %v3139 = vpack.c.b16 %v2950, %v2947
    %v3140 = vpack.c.b16 %v2951, %v2948
    %v3141 = vpack.c.b16 %v2955, %v2952
    %v3142 = vpack.c.b16 %v2956, %v2953
    %v3143 = vpack.c.b16 %v2957, %v2954
    %v3144 = vpack.c.b16 %v2961, %v2958
    %v3145 = vpack.c.b16 %v2962, %v2959
    %v3146 = vpack.c.b16 %v2963, %v2960
    %v3147 = vpack.c.b16 %v2967, %v2964
    %v3148 = vpack.c.b16 %v2968, %v2965
    %v3149 = vpack.c.b16 %v2969, %v2966
    %v3150 = vpack.c.b16 %v2973, %v2970
    %v3151 = vpack.c.b16 %v2974, %v2971
    %v3152 = vpack.c.b16 %v2975, %v2972
    %v3153 = vpack.c.b16 %v2979, %v2976
    %v3154 = vpack.c.b16 %v2980, %v2977
    %v3155 = vpack.c.b16 %v2981, %v2978
    %v3156 = vpack.c.b16 %v2985, %v2982
    %v3157 = vpack.c.b16 %v2986, %v2983
    %v3158 = vpack.c.b16 %v2987, %v2984
    %v3159 = vpack.c.b16 %v2991, %v2988
    %v3160 = vpack.c.b16 %v2992, %v2989
    %v3161 = vpack.c.b16 %v2993, %v2990
    %v3162 = vpack.c.b16 %v2997, %v2994
    %v3163 = vpack.c.b16 %v2998, %v2995
    %v3164 = vpack.c.b16 %v2999, %v2996
    %v3165 = vpack.c.b16 %v3003, %v3000
    %v3166 = vpack.c.b16 %v3004, %v3001
    %v3167 = vpack.c.b16 %v3005, %v3002
    %v3168 = vpack.c.b16 %v3009, %v3006
    %v3169 = vpack.c.b16 %v3010, %v3007
    %v3170 = vpack.c.b16 %v3011, %v3008
    %v3171 = vpack.c.b16 %v3015, %v3012
    %v3172 = vpack.c.b16 %v3016, %v3013
    %v3173 = vpack.c.b16 %v3017, %v3014
    %v3174 = vpack.c.b16 %v3021, %v3018
    %v3175 = vpack.c.b16 %v3022, %v3019
    %v3176 = vpack.c.b16 %v3023, %v3020
    %v3177 = vpack.c.b16 %v3027, %v3024
    %v3178 = vpack.c.b16 %v3028, %v3025
    %v3179 = vpack.c.b16 %v3029, %v3026
    %v3180 = vpack.c.b16 %v3033, %v3030
    %v3181 = vpack.c.b16 %v3034, %v3031
    %v3182 = vpack.c.b16 %v3035, %v3032
    %v3183 = vpack.c.b16 %v3039, %v3036
    %v3184 = vpack.c.b16 %v3040, %v3037
    %v3185 = vpack.c.b16 %v3041, %v3038
    %v3186 = vpack.c.b16 %v3045, %v3042
    %v3187 = vpack.c.b16 %v3046, %v3043
    %v3188 = vpack.c.b16 %v3047, %v3044
    %v3189 = vpack.c.b16 %v3051, %v3048
    %v3190 = vpack.c.b16 %v3052, %v3049
    %v3191 = vpack.c.b16 %v3053, %v3050
    %v3192 = vpack.c.b16 %v3057, %v3054
    %v3193 = vpack.c.b16 %v3058, %v3055
    %v3194 = vpack.c.b16 %v3059, %v3056
    %v3195 = vpack.c.b16 %v3063, %v3060
    %v3196 = vpack.c.b16 %v3064, %v3061
    %v3197 = vpack.c.b16 %v3065, %v3062
    %v3198 = vpack.c.b16 %v3069, %v3066
    %v3199 = vpack.c.b16 %v3070, %v3067
    %v3200 = vpack.c.b16 %v3071, %v3068
    %v3201 = vpack.c.b16 %v3075, %v3072
    %v3202 = vpack.c.b16 %v3076, %v3073
    %v3203 = vpack.c.b16 %v3077, %v3074
    %v3204 = vpack.c.b16 %v3081, %v3078
    %v3205 = vpack.c.b16 %v3082, %v3079
    %v3206 = vpack.c.b16 %v3083, %v3080
    %v3207 = vpack.c.b16 %v3087, %v3084
    %v3208 = vpack.c.b16 %v3088, %v3085
    %v3209 = vpack.c.b16 %v3089, %v3086
    %v3210 = vpack.c.b16 %v3093, %v3090
    %v3211 = vpack.c.b16 %v3094, %v3091
    %v3212 = vpack.c.b16 %v3095, %v3092
    %v3213 = vpack.c.b16 %v3099, %v3096
    %v3214 = vpack.c.b16 %v3100, %v3097
    %v3215 = vpack.c.b16 %v3101, %v3098
    %v3216 = vpack.c.b16 %v3105, %v3102
    %v3217 = vpack.c.b16 %v3106, %v3103
    %v3218 = vpack.c.b16 %v3107, %v3104
    %v3219 = vpack.c.b16 %v3111, %v3108
    %v3220 = vpack.c.b16 %v3112, %v3109
    %v3221 = vpack.c.b16 %v3113, %v3110
    %v3222 = vpack.c.b16 %v3117, %v3114
    %v3223 = vpack.c.b16 %v3118, %v3115
    %v3224 = vpack.c.b16 %v3119, %v3116
    %v3225 = vpack.c.b16 %v3123, %v3120
    %v3226 = vpack.c.b16 %v3124, %v3121
    %v3227 = vpack.c.b16 %v3125, %v3122
    %v3228 = vpack.c.b16 %v3129, %v3126
    %v3229 = vpack.c.b16 %v3130, %v3127
    %v3230 = vpack.c.b16 %v3131, %v3128
    %v3231 = vpack.c.b16 %v3135, %v3132
    %v3232 = vpack.c.b16 %v3136, %v3133
    %v3233 = vpack.c.b16 %v3137, %v3134
    %3330 = vmatprep.subr.bf16.mxu0 %v3139
    %3331 = vmatpush1.bf16.msra.mxu0 %v3138
    %3332 = vmatprep.subr.bf16.mxu0 %v3142
    %3333 = vmatpush1.bf16.msra.mxu0 %v3141
    %3334 = vmatprep.subr.bf16.mxu0 %v3145
    %3335 = vmatpush1.bf16.msra.mxu0 %v3144
    %3336 = vmatprep.subr.bf16.mxu0 %v3148
    %3337 = vmatpush1.bf16.msra.mxu0 %v3147
    %3338 = vmatprep.subr.bf16.mxu0 %v3151
    %3339 = vmatpush1.bf16.msra.mxu0 %v3150
    %3340 = vmatprep.subr.bf16.mxu0 %v3154
    %3341 = vmatpush1.bf16.msra.mxu0 %v3153
    %3342 = vmatprep.subr.bf16.mxu0 %v3157
    %3343 = vmatpush1.bf16.msra.mxu0 %v3156
    %3344 = vmatprep.subr.bf16.mxu0 %v3160
    %3345 = vmatpush1.bf16.msra.mxu0 %v3159
    %3346 = vmatprep.subr.bf16.mxu0 %v3163
    %3347 = vmatpush1.bf16.msra.mxu0 %v3162
    %3348 = vmatprep.subr.bf16.mxu0 %v3166
    %3349 = vmatpush1.bf16.msra.mxu0 %v3165
    %3350 = vmatprep.subr.bf16.mxu0 %v3169
    %3351 = vmatpush1.bf16.msra.mxu0 %v3168
    %3352 = vmatprep.subr.bf16.mxu0 %v3172
    %3353 = vmatpush1.bf16.msra.mxu0 %v3171
    %3354 = vmatprep.subr.bf16.mxu0 %v3175
    %3355 = vmatpush1.bf16.msra.mxu0 %v3174
    %3356 = vmatprep.subr.bf16.mxu0 %v3178
    %3357 = vmatpush1.bf16.msra.mxu0 %v3177
    %3358 = vmatprep.subr.bf16.mxu0 %v3181
    %3359 = vmatpush1.bf16.msra.mxu0 %v3180
    %3360 = vmatprep.subr.bf16.mxu0 %v3184
    %3361 = vmatpush1.bf16.msra.mxu0 %v3183
    %3362 = vmatprep.mubr.bf16.mxu0 %v2670
    %3363 = vmatmul.mubr.bf16.gmra.mrb[0].mxu0 %v2669
    %v3364 = vpop.f32.mrb[0].mxu0
    %v3365 = vadd.f32 %v2806, %v3364
    %v3366 = vpop.f32.mrb[0].mxu0
    %v3367 = vadd.f32 %v2810, %v3366
    %v3368 = vpop.f32.mrb[0].mxu0
    %v3369 = vpop.f32.mrb[0].mxu0
    %3370 = vdwg.mxu0
    %3371 = vmatprep.subr.bf16.mxu0 %v3187
    %3372 = vmatpush1.bf16.msra.mxu0 %v3186
    %3373 = vmatprep.subr.bf16.mxu0 %v3190
    %3374 = vmatpush1.bf16.msra.mxu0 %v3189
    %3375 = vmatprep.subr.bf16.mxu0 %v3193
    %3376 = vmatpush1.bf16.msra.mxu0 %v3192
    %3377 = vmatprep.subr.bf16.mxu0 %v3196
    %3378 = vmatpush1.bf16.msra.mxu0 %v3195
    %3379 = vmatprep.subr.bf16.mxu0 %v3199
    %3380 = vmatpush1.bf16.msra.mxu0 %v3198
    %3381 = vmatprep.subr.bf16.mxu0 %v3202
    %3382 = vmatpush1.bf16.msra.mxu0 %v3201
    %3383 = vmatprep.subr.bf16.mxu0 %v3205
    %3384 = vmatpush1.bf16.msra.mxu0 %v3204
    %3385 = vmatprep.subr.bf16.mxu0 %v3208
    %3386 = vmatpush1.bf16.msra.mxu0 %v3207
    %3387 = vmatprep.subr.bf16.mxu0 %v3211
    %3388 = vmatpush1.bf16.msra.mxu0 %v3210
    %3389 = vmatprep.subr.bf16.mxu0 %v3214
    %3390 = vmatpush1.bf16.msra.mxu0 %v3213
    %3391 = vmatprep.subr.bf16.mxu0 %v3217
    %3392 = vmatpush1.bf16.msra.mxu0 %v3216
    %3393 = vmatprep.subr.bf16.mxu0 %v3220
    %3394 = vmatpush1.bf16.msra.mxu0 %v3219
    %3395 = vmatprep.subr.bf16.mxu0 %v3223
    %3396 = vmatpush1.bf16.msra.mxu0 %v3222
    %3397 = vmatprep.subr.bf16.mxu0 %v3226
    %3398 = vmatpush1.bf16.msra.mxu0 %v3225
    %3399 = vmatprep.subr.bf16.mxu0 %v3229
    %3400 = vmatpush1.bf16.msra.mxu0 %v3228
    %3401 = vmatprep.subr.bf16.mxu0 %v3232
    %3402 = vmatpush1.bf16.msra.mxu0 %v3231
    %3403 = vmatprep.mubr.bf16.mxu0 %v2672
    %3404 = vmatmul.mubr.bf16.gmra.mrb[0].mxu0 %v2671
    %v3405 = vpop.f32.mrb[0].mxu0
    %v3406 = vadd.f32 %v3365, %v3405
    %v3407 = vpop.f32.mrb[0].mxu0
    %v3408 = vadd.f32 %v3367, %v3407
    %v3409 = vpop.f32.mrb[0].mxu0
    %v3410 = vpop.f32.mrb[0].mxu0
    %3411 = vdwg.mxu0
    %3412 = vmatprep.subr.bf16.mxu0 0
    %3413 = vmatpush1.bf16.msra.mxu0 %v3140
    %3414 = vmatprep.subr.bf16.mxu0 0
    %3415 = vmatpush1.bf16.msra.mxu0 %v3143
    %3416 = vmatprep.subr.bf16.mxu0 0
    %3417 = vmatpush1.bf16.msra.mxu0 %v3146
    %3418 = vmatprep.subr.bf16.mxu0 0
    %3419 = vmatpush1.bf16.msra.mxu0 %v3149
    %3420 = vmatprep.subr.bf16.mxu0 0
    %3421 = vmatpush1.bf16.msra.mxu0 %v3152
    %3422 = vmatprep.subr.bf16.mxu0 0
    %3423 = vmatpush1.bf16.msra.mxu0 %v3155
    %3424 = vmatprep.subr.bf16.mxu0 0
    %3425 = vmatpush1.bf16.msra.mxu0 %v3158
    %3426 = vmatprep.subr.bf16.mxu0 0
    %3427 = vmatpush1.bf16.msra.mxu0 %v3161
    %3428 = vmatprep.subr.bf16.mxu0 0
    %3429 = vmatpush1.bf16.msra.mxu0 %v3164
    %3430 = vmatprep.subr.bf16.mxu0 0
    %3431 = vmatpush1.bf16.msra.mxu0 %v3167
    %3432 = vmatprep.subr.bf16.mxu0 0
    %3433 = vmatpush1.bf16.msra.mxu0 %v3170
    %3434 = vmatprep.subr.bf16.mxu0 0
    %3435 = vmatpush1.bf16.msra.mxu0 %v3173
    %3436 = vmatprep.subr.bf16.mxu0 0
    %3437 = vmatpush1.bf16.msra.mxu0 %v3176
    %3438 = vmatprep.subr.bf16.mxu0 0
    %3439 = vmatpush1.bf16.msra.mxu0 %v3179
    %3440 = vmatprep.subr.bf16.mxu0 0
    %3441 = vmatpush1.bf16.msra.mxu0 %v3182
    %3442 = vmatprep.subr.bf16.mxu0 0
    %3443 = vmatpush1.bf16.msra.mxu0 %v3185
    %3444 = vmatprep.mubr.bf16.mxu0 %v2670
    %3445 = vmatmul.mubr.bf16.gmra.mrb[0].mxu0 %v2669
    %v3446 = vpop.f32.mrb[0].mxu0
    %v3447 = vadd.f32 %v2814, %v3446
    %v3448 = vpop.f32.mrb[0].mxu0
    %v3449 = vpop.f32.mrb[0].mxu0
    %v3450 = vpop.f32.mrb[0].mxu0
    %3451 = vdwg.mxu0
    %3452 = vmatprep.subr.bf16.mxu0 0
    %3453 = vmatpush1.bf16.msra.mxu0 %v3188
    %3454 = vmatprep.subr.bf16.mxu0 0
    %3455 = vmatpush1.bf16.msra.mxu0 %v3191
    %3456 = vmatprep.subr.bf16.mxu0 0
    %3457 = vmatpush1.bf16.msra.mxu0 %v3194
    %3458 = vmatprep.subr.bf16.mxu0 0
    %3459 = vmatpush1.bf16.msra.mxu0 %v3197
    %3460 = vmatprep.subr.bf16.mxu0 0
    %3461 = vmatpush1.bf16.msra.mxu0 %v3200
    %3462 = vmatprep.subr.bf16.mxu0 0
    %3463 = vmatpush1.bf16.msra.mxu0 %v3203
    %3464 = vmatprep.subr.bf16.mxu0 0
    %3465 = vmatpush1.bf16.msra.mxu0 %v3206
    %3466 = vmatprep.subr.bf16.mxu0 0
    %3467 = vmatpush1.bf16.msra.mxu0 %v3209
    %3468 = vmatprep.subr.bf16.mxu0 0
    %3469 = vmatpush1.bf16.msra.mxu0 %v3212
    %3470 = vmatprep.subr.bf16.mxu0 0
    %3471 = vmatpush1.bf16.msra.mxu0 %v3215
    %3472 = vmatprep.subr.bf16.mxu0 0
    %3473 = vmatpush1.bf16.msra.mxu0 %v3218
    %3474 = vmatprep.subr.bf16.mxu0 0
    %3475 = vmatpush1.bf16.msra.mxu0 %v3221
    %3476 = vmatprep.subr.bf16.mxu0 0
    %3477 = vmatpush1.bf16.msra.mxu0 %v3224
    %3478 = vmatprep.subr.bf16.mxu0 0
    %3479 = vmatpush1.bf16.msra.mxu0 %v3227
    %3480 = vmatprep.subr.bf16.mxu0 0
    %3481 = vmatpush1.bf16.msra.mxu0 %v3230
    %3482 = vmatprep.subr.bf16.mxu0 0
    %3483 = vmatpush1.bf16.msra.mxu0 %v3233
    %3484 = vmatprep.mubr.bf16.mxu0 %v2672
    %3485 = vmatmul.mubr.bf16.gmra.mrb[0].mxu0 %v2671
    %v3486 = vpop.f32.mrb[0].mxu0
    %v3487 = vadd.f32 %v3447, %v3486
    %v3488 = vpop.f32.mrb[0].mxu0
    %v3489 = vpop.f32.mrb[0].mxu0
    %v3490 = vpop.f32.mrb[0].mxu0
    %3491 = vdwg.mxu0
    %v3495 = vcombine.low %v3406, %v3408
    %v3497 = vunpack.c.l.s4 1983009808
    %v3498 = vunpack.c.0.s8 %v3497
    %v3499 = vlaneseq
    %v3500 = vshrl.u32 %v3499, 7
    %v3501 = vsub.s32 %v3498, %v3500
    %v3502 = vrot.slane %v3495, %v3501
    %v3504 = vunpack.c.l.s4 1983009808
    %v3505 = vunpack.c.0.s8 %v3504
    %v3506 = vlaneseq
    %v3507 = vshrl.u32 %v3506, 7
    %v3508 = vsub.s32 %v3505, %v3507
    %v3509 = vrot.slane %v3487, %v3508
    %v3510 = vcombine.low %v3502, %v3509
    %s3512 = scalar_lea.vmem [#allocation2], 18
    %3513 = vst [vmem:[%s3512] sm:$0x3f] %v3510
    loop: start=0, step=1, limit=4
    $region46: #{cnn_net_forward.5} parent=1 // loop_pre_header
      _
    $region47: #{cnn_net_forward.5} parent=1 // loop_header
      %s3515 = sphi 0, %s3519
      %p3516 = scmp.ge.s32.totalorder %s3515, 4
      %v3520 = vphi 0.0, %v4329
      %v3521 = vphi 0.0, %v4609
      %v3522 = vphi 0.0, %v4891
    $region48: #{cnn_net_forward.5} parent=1 // loop_header_branch
      %3518 = sbr.rel (%p3516) target = $region52
    $region49: #{cnn_net_forward.5} parent=1 // loop_body
      %v3523 = vpack.c.bf16 %v3520, %v3520
      %v3524 = vpack.c.bf16 %v3521, %v3521
      %v3525 = vpack.c.bf16 %v3522, %v3522
      %v3526 = vld [vmem:[%s5] sm:$0xff]
      %v3527 = vld [vmem:[%s5 + $0x8] sm:$0xf]
      %v3528 = vld [vmem:[%s5 + $0xc] sm:$0xff]
      %v3529 = vld [vmem:[%s5 + $0x14] sm:$0xf]
      %v3530 = vld [vmem:[%s5 + $0x18] sm:$0xff]
      %v3531 = vld [vmem:[%s5 + $0x20] sm:$0xf]
      %v3532 = vld [vmem:[%s5 + $0x24] sm:$0xff]
      %v3533 = vld [vmem:[%s5 + $0x2c] sm:$0xf]
      %v3534 = vld [vmem:[%s5 + $0x30] sm:$0xff]
      %v3535 = vld [vmem:[%s5 + $0x38] sm:$0xf]
      %v3536 = vld [vmem:[%s5 + $0x3c] sm:$0xff]
      %v3537 = vld [vmem:[%s5 + $0x44] sm:$0xf]
      %v3538 = vld [vmem:[%s5 + $0x48] sm:$0xff]
      %v3539 = vld [vmem:[%s5 + $0x50] sm:$0xf]
      %v3540 = vld [vmem:[%s5 + $0x54] sm:$0xff]
      %v3541 = vld [vmem:[%s5 + $0x5c] sm:$0xf]
      %v3542 = vld [vmem:[%s5 + $0x60] sm:$0xff]
      %v3543 = vld [vmem:[%s5 + $0x68] sm:$0xf]
      %v3544 = vld [vmem:[%s5 + $0x6c] sm:$0xff]
      %v3545 = vld [vmem:[%s5 + $0x74] sm:$0xf]
      %v3546 = vld [vmem:[%s5 + $0x78] sm:$0xff]
      %v3547 = vld [vmem:[%s5 + $0x80] sm:$0xf]
      %v3548 = vld [vmem:[%s5 + $0x84] sm:$0xff]
      %v3549 = vld [vmem:[%s5 + $0x8c] sm:$0xf]
      %v3550 = vld [vmem:[%s5 + $0x90] sm:$0xff]
      %v3551 = vld [vmem:[%s5 + $0x98] sm:$0xf]
      %v3552 = vld [vmem:[%s5 + $0x9c] sm:$0xff]
      %v3553 = vld [vmem:[%s5 + $0xa4] sm:$0xf]
      %v3554 = vld [vmem:[%s5 + $0xa8] sm:$0xff]
      %v3555 = vld [vmem:[%s5 + $0xb0] sm:$0xf]
      %v3556 = vld [vmem:[%s5 + $0xb4] sm:$0xff]
      %v3557 = vld [vmem:[%s5 + $0xbc] sm:$0xf]
      %v3558 = vld [vmem:[%s5 + $0xc0] sm:$0xff]
      %v3559 = vld [vmem:[%s5 + $0xc8] sm:$0xf]
      %v3560 = vld [vmem:[%s5 + $0xcc] sm:$0xff]
      %v3561 = vld [vmem:[%s5 + $0xd4] sm:$0xf]
      %v3562 = vld [vmem:[%s5 + $0xd8] sm:$0xff]
      %v3563 = vld [vmem:[%s5 + $0xe0] sm:$0xf]
      %v3564 = vld [vmem:[%s5 + $0xe4] sm:$0xff]
      %v3565 = vld [vmem:[%s5 + $0xec] sm:$0xf]
      %v3566 = vld [vmem:[%s5 + $0xf0] sm:$0xff]
      %v3567 = vld [vmem:[%s5 + $0xf8] sm:$0xf]
      %v3568 = vld [vmem:[%s5 + $0xfc] sm:$0xff]
      %v3569 = vld [vmem:[%s5 + $0x104] sm:$0xf]
      %v3570 = vld [vmem:[%s5 + $0x108] sm:$0xff]
      %v3571 = vld [vmem:[%s5 + $0x110] sm:$0xf]
      %v3572 = vld [vmem:[%s5 + $0x114] sm:$0xff]
      %v3573 = vld [vmem:[%s5 + $0x11c] sm:$0xf]
      %v3574 = vld [vmem:[%s5 + $0x120] sm:$0xff]
      %v3575 = vld [vmem:[%s5 + $0x128] sm:$0xf]
      %v3576 = vld [vmem:[%s5 + $0x12c] sm:$0xff]
      %v3577 = vld [vmem:[%s5 + $0x134] sm:$0xf]
      %v3578 = vld [vmem:[%s5 + $0x138] sm:$0xff]
      %v3579 = vld [vmem:[%s5 + $0x140] sm:$0xf]
      %v3580 = vld [vmem:[%s5 + $0x144] sm:$0xff]
      %v3581 = vld [vmem:[%s5 + $0x14c] sm:$0xf]
      %v3582 = vld [vmem:[%s5 + $0x150] sm:$0xff]
      %v3583 = vld [vmem:[%s5 + $0x158] sm:$0xf]
      %v3584 = vld [vmem:[%s5 + $0x15c] sm:$0xff]
      %v3585 = vld [vmem:[%s5 + $0x164] sm:$0xf]
      %v3586 = vld [vmem:[%s5 + $0x168] sm:$0xff]
      %v3587 = vld [vmem:[%s5 + $0x170] sm:$0xf]
      %v3588 = vld [vmem:[%s5 + $0x174] sm:$0xff]
      %v3589 = vld [vmem:[%s5 + $0x17c] sm:$0xf]
      %v3590 = vld [vmem:[%s5 + $0x180] sm:$0xff]
      %v3591 = vld [vmem:[%s5 + $0x188] sm:$0xf]
      %v3592 = vld [vmem:[%s5 + $0x18c] sm:$0xff]
      %v3593 = vld [vmem:[%s5 + $0x194] sm:$0xf]
      %v3594 = vld [vmem:[%s5 + $0x198] sm:$0xff]
      %v3595 = vld [vmem:[%s5 + $0x1a0] sm:$0xf]
      %v3596 = vld [vmem:[%s5 + $0x1a4] sm:$0xff]
      %v3597 = vld [vmem:[%s5 + $0x1ac] sm:$0xf]
      %v3598 = vld [vmem:[%s5 + $0x1b0] sm:$0xff]
      %v3599 = vld [vmem:[%s5 + $0x1b8] sm:$0xf]
      %v3600 = vld [vmem:[%s5 + $0x1bc] sm:$0xff]
      %v3601 = vld [vmem:[%s5 + $0x1c4] sm:$0xf]
      %v3602 = vld [vmem:[%s5 + $0x1c8] sm:$0xff]
      %v3603 = vld [vmem:[%s5 + $0x1d0] sm:$0xf]
      %v3604 = vld [vmem:[%s5 + $0x1d4] sm:$0xff]
      %v3605 = vld [vmem:[%s5 + $0x1dc] sm:$0xf]
      %v3606 = vld [vmem:[%s5 + $0x1e0] sm:$0xff]
      %v3607 = vld [vmem:[%s5 + $0x1e8] sm:$0xf]
      %v3608 = vld [vmem:[%s5 + $0x1ec] sm:$0xff]
      %v3609 = vld [vmem:[%s5 + $0x1f4] sm:$0xf]
      %v3610 = vld [vmem:[%s5 + $0x1f8] sm:$0xff]
      %v3611 = vld [vmem:[%s5 + $0x200] sm:$0xf]
      %v3612 = vld [vmem:[%s5 + $0x204] sm:$0xff]
      %v3613 = vld [vmem:[%s5 + $0x20c] sm:$0xf]
      %v3614 = vld [vmem:[%s5 + $0x210] sm:$0xff]
      %v3615 = vld [vmem:[%s5 + $0x218] sm:$0xf]
      %v3616 = vld [vmem:[%s5 + $0x21c] sm:$0xff]
      %v3617 = vld [vmem:[%s5 + $0x224] sm:$0xf]
      %v3618 = vld [vmem:[%s5 + $0x228] sm:$0xff]
      %v3619 = vld [vmem:[%s5 + $0x230] sm:$0xf]
      %v3620 = vld [vmem:[%s5 + $0x234] sm:$0xff]
      %v3621 = vld [vmem:[%s5 + $0x23c] sm:$0xf]
      %v3622 = vld [vmem:[%s6] sm:$0x7]
      %v3623 = vld [vmem:[%s6 + $0x3] sm:$0x7]
      %v3624 = vld [vmem:[%s6 + $0x6] sm:$0x7]
      %v3628 = vlaneseq
      %v3629 = vshrl.u32 %v3628, 7
      %v3630 = vsub.s32 0, %v3629
      %v3631 = vrot.slane %v3622, %v3630
      %v3632 = vlaneseq
      %v3633 = vshrl.u32 %v3632, 7
      %v3634 = vsub.s32 1, %v3633
      %v3635 = vrot.slane %v3622, %v3634
      %v3636 = vlaneseq
      %v3637 = vshrl.u32 %v3636, 7
      %v3638 = vsub.s32 2, %v3637
      %v3639 = vrot.slane %v3622, %v3638
      %v3640 = vlaneseq
      %v3641 = vshrl.u32 %v3640, 7
      %v3642 = vsub.s32 0, %v3641
      %v3643 = vrot.slane %v3623, %v3642
      %v3644 = vlaneseq
      %v3645 = vshrl.u32 %v3644, 7
      %v3646 = vsub.s32 1, %v3645
      %v3647 = vrot.slane %v3623, %v3646
      %v3648 = vlaneseq
      %v3649 = vshrl.u32 %v3648, 7
      %v3650 = vsub.s32 2, %v3649
      %v3651 = vrot.slane %v3623, %v3650
      %v3652 = vlaneseq
      %v3653 = vshrl.u32 %v3652, 7
      %v3654 = vsub.s32 0, %v3653
      %v3655 = vrot.slane %v3624, %v3654
      %v3656 = vlaneseq
      %v3657 = vshrl.u32 %v3656, 7
      %v3658 = vsub.s32 1, %v3657
      %v3659 = vrot.slane %v3624, %v3658
      %v3660 = vlaneseq
      %v3661 = vshrl.u32 %v3660, 7
      %v3662 = vsub.s32 2, %v3661
      %v3663 = vrot.slane %v3624, %v3662
      %v3705 = vunpack.c.l.b16 %v3526
      %v3706 = vunpack.c.h.b16 %v3526
      %v3707 = vunpack.c.l.b16 %v3527
      %v3708 = vunpack.c.l.b16 %v3528
      %v3709 = vunpack.c.h.b16 %v3528
      %v3710 = vunpack.c.l.b16 %v3529
      %v3711 = vunpack.c.l.b16 %v3530
      %v3712 = vunpack.c.h.b16 %v3530
      %v3713 = vunpack.c.l.b16 %v3531
      %v3714 = vunpack.c.l.b16 %v3532
      %v3715 = vunpack.c.h.b16 %v3532
      %v3716 = vunpack.c.l.b16 %v3533
      %v3717 = vunpack.c.l.b16 %v3534
      %v3718 = vunpack.c.h.b16 %v3534
      %v3719 = vunpack.c.l.b16 %v3535
      %v3720 = vunpack.c.l.b16 %v3536
      %v3721 = vunpack.c.h.b16 %v3536
      %v3722 = vunpack.c.l.b16 %v3537
      %v3723 = vunpack.c.l.b16 %v3538
      %v3724 = vunpack.c.h.b16 %v3538
      %v3725 = vunpack.c.l.b16 %v3539
      %v3726 = vunpack.c.l.b16 %v3540
      %v3727 = vunpack.c.h.b16 %v3540
      %v3728 = vunpack.c.l.b16 %v3541
      %v3729 = vunpack.c.l.b16 %v3542
      %v3730 = vunpack.c.h.b16 %v3542
      %v3731 = vunpack.c.l.b16 %v3543
      %v3732 = vunpack.c.l.b16 %v3544
      %v3733 = vunpack.c.h.b16 %v3544
      %v3734 = vunpack.c.l.b16 %v3545
      %v3735 = vunpack.c.l.b16 %v3546
      %v3736 = vunpack.c.h.b16 %v3546
      %v3737 = vunpack.c.l.b16 %v3547
      %v3738 = vunpack.c.l.b16 %v3548
      %v3739 = vunpack.c.h.b16 %v3548
      %v3740 = vunpack.c.l.b16 %v3549
      %v3741 = vunpack.c.l.b16 %v3550
      %v3742 = vunpack.c.h.b16 %v3550
      %v3743 = vunpack.c.l.b16 %v3551
      %v3744 = vunpack.c.l.b16 %v3552
      %v3745 = vunpack.c.h.b16 %v3552
      %v3746 = vunpack.c.l.b16 %v3553
      %v3747 = vunpack.c.l.b16 %v3554
      %v3748 = vunpack.c.h.b16 %v3554
      %v3749 = vunpack.c.l.b16 %v3555
      %v3750 = vunpack.c.l.b16 %v3556
      %v3751 = vunpack.c.h.b16 %v3556
      %v3752 = vunpack.c.l.b16 %v3557
      %v3753 = vpack.c.b16 %v3708, %v3705
      %v3754 = vpack.c.b16 %v3709, %v3706
      %v3755 = vpack.c.b16 %v3710, %v3707
      %v3756 = vpack.c.b16 %v3714, %v3711
      %v3757 = vpack.c.b16 %v3715, %v3712
      %v3758 = vpack.c.b16 %v3716, %v3713
      %v3759 = vpack.c.b16 %v3720, %v3717
      %v3760 = vpack.c.b16 %v3721, %v3718
      %v3761 = vpack.c.b16 %v3722, %v3719
      %v3762 = vpack.c.b16 %v3726, %v3723
      %v3763 = vpack.c.b16 %v3727, %v3724
      %v3764 = vpack.c.b16 %v3728, %v3725
      %v3765 = vpack.c.b16 %v3732, %v3729
      %v3766 = vpack.c.b16 %v3733, %v3730
      %v3767 = vpack.c.b16 %v3734, %v3731
      %v3768 = vpack.c.b16 %v3738, %v3735
      %v3769 = vpack.c.b16 %v3739, %v3736
      %v3770 = vpack.c.b16 %v3740, %v3737
      %v3771 = vpack.c.b16 %v3744, %v3741
      %v3772 = vpack.c.b16 %v3745, %v3742
      %v3773 = vpack.c.b16 %v3746, %v3743
      %v3774 = vpack.c.b16 %v3750, %v3747
      %v3775 = vpack.c.b16 %v3751, %v3748
      %v3776 = vpack.c.b16 %v3752, %v3749
      %3801 = vmatprep.subr.bf16.mxu0 %v3754
      %3802 = vmatpush1.bf16.msra.mxu0 %v3753
      %3803 = vmatprep.subr.bf16.mxu0 %v3757
      %3804 = vmatpush1.bf16.msra.mxu0 %v3756
      %3805 = vmatprep.subr.bf16.mxu0 %v3760
      %3806 = vmatpush1.bf16.msra.mxu0 %v3759
      %3807 = vmatprep.subr.bf16.mxu0 %v3763
      %3808 = vmatpush1.bf16.msra.mxu0 %v3762
      %3809 = vmatprep.subr.bf16.mxu0 %v3766
      %3810 = vmatpush1.bf16.msra.mxu0 %v3765
      %3811 = vmatprep.subr.bf16.mxu0 %v3769
      %3812 = vmatpush1.bf16.msra.mxu0 %v3768
      %3813 = vmatprep.subr.bf16.mxu0 %v3772
      %3814 = vmatpush1.bf16.msra.mxu0 %v3771
      %3815 = vmatprep.subr.bf16.mxu0 %v3775
      %3816 = vmatpush1.bf16.msra.mxu0 %v3774
      %3817 = vmatprep.subr.bf16.mxu0 0
      %3818 = vmatpush1.bf16.msra.mxu0 0
      %3819 = vmatprep.subr.bf16.mxu0 0
      %3820 = vmatpush1.bf16.msra.mxu0 0
      %3821 = vmatprep.subr.bf16.mxu0 0
      %3822 = vmatpush1.bf16.msra.mxu0 0
      %3823 = vmatprep.subr.bf16.mxu0 0
      %3824 = vmatpush1.bf16.msra.mxu0 0
      %3825 = vmatprep.subr.bf16.mxu0 0
      %3826 = vmatpush1.bf16.msra.mxu0 0
      %3827 = vmatprep.subr.bf16.mxu0 0
      %3828 = vmatpush1.bf16.msra.mxu0 0
      %3829 = vmatprep.subr.bf16.mxu0 0
      %3830 = vmatpush1.bf16.msra.mxu0 0
      %3831 = vmatprep.subr.bf16.mxu0 0
      %3832 = vmatpush1.bf16.msra.mxu0 0
      %3833 = vmatprep.mubr.bf16.mxu0 0
      %3834 = vmatmul.mubr.bf16.gmra.mrb[0].mxu0 %v3523
      %v3835 = vpop.f32.mrb[0].mxu0
      %v3836 = vadd.f32 %v3631, %v3835
      %v3837 = vpop.f32.mrb[0].mxu0
      %v3838 = vadd.f32 %v3635, %v3837
      %v3839 = vpop.f32.mrb[0].mxu0
      %v3840 = vpop.f32.mrb[0].mxu0
      %3841 = vdwg.mxu0
      %3842 = vmatprep.subr.bf16.mxu0 0
      %3843 = vmatpush1.bf16.msra.mxu0 %v3755
      %3844 = vmatprep.subr.bf16.mxu0 0
      %3845 = vmatpush1.bf16.msra.mxu0 %v3758
      %3846 = vmatprep.subr.bf16.mxu0 0
      %3847 = vmatpush1.bf16.msra.mxu0 %v3761
      %3848 = vmatprep.subr.bf16.mxu0 0
      %3849 = vmatpush1.bf16.msra.mxu0 %v3764
      %3850 = vmatprep.subr.bf16.mxu0 0
      %3851 = vmatpush1.bf16.msra.mxu0 %v3767
      %3852 = vmatprep.subr.bf16.mxu0 0
      %3853 = vmatpush1.bf16.msra.mxu0 %v3770
      %3854 = vmatprep.subr.bf16.mxu0 0
      %3855 = vmatpush1.bf16.msra.mxu0 %v3773
      %3856 = vmatprep.subr.bf16.mxu0 0
      %3857 = vmatpush1.bf16.msra.mxu0 %v3776
      %3858 = vmatprep.subr.bf16.mxu0 0
      %3859 = vmatpush1.bf16.msra.mxu0 0
      %3860 = vmatprep.subr.bf16.mxu0 0
      %3861 = vmatpush1.bf16.msra.mxu0 0
      %3862 = vmatprep.subr.bf16.mxu0 0
      %3863 = vmatpush1.bf16.msra.mxu0 0
      %3864 = vmatprep.subr.bf16.mxu0 0
      %3865 = vmatpush1.bf16.msra.mxu0 0
      %3866 = vmatprep.subr.bf16.mxu0 0
      %3867 = vmatpush1.bf16.msra.mxu0 0
      %3868 = vmatprep.subr.bf16.mxu0 0
      %3869 = vmatpush1.bf16.msra.mxu0 0
      %3870 = vmatprep.subr.bf16.mxu0 0
      %3871 = vmatpush1.bf16.msra.mxu0 0
      %3872 = vmatprep.subr.bf16.mxu0 0
      %3873 = vmatpush1.bf16.msra.mxu0 0
      %3874 = vmatprep.mubr.bf16.mxu0 0
      %3875 = vmatmul.mubr.bf16.gmra.mrb[0].mxu0 %v3523
      %v3876 = vpop.f32.mrb[0].mxu0
      %v3877 = vadd.f32 %v3639, %v3876
      %v3878 = vpop.f32.mrb[0].mxu0
      %v3879 = vpop.f32.mrb[0].mxu0
      %v3880 = vpop.f32.mrb[0].mxu0
      %3881 = vdwg.mxu0
      %v3914 = vunpack.c.l.b16 %v3558
      %v3915 = vunpack.c.h.b16 %v3558
      %v3916 = vunpack.c.l.b16 %v3559
      %v3917 = vunpack.c.l.b16 %v3560
      %v3918 = vunpack.c.h.b16 %v3560
      %v3919 = vunpack.c.l.b16 %v3561
      %v3920 = vunpack.c.l.b16 %v3562
      %v3921 = vunpack.c.h.b16 %v3562
      %v3922 = vunpack.c.l.b16 %v3563
      %v3923 = vunpack.c.l.b16 %v3564
      %v3924 = vunpack.c.h.b16 %v3564
      %v3925 = vunpack.c.l.b16 %v3565
      %v3926 = vunpack.c.l.b16 %v3566
      %v3927 = vunpack.c.h.b16 %v3566
      %v3928 = vunpack.c.l.b16 %v3567
      %v3929 = vunpack.c.l.b16 %v3568
      %v3930 = vunpack.c.h.b16 %v3568
      %v3931 = vunpack.c.l.b16 %v3569
      %v3932 = vunpack.c.l.b16 %v3570
      %v3933 = vunpack.c.h.b16 %v3570
      %v3934 = vunpack.c.l.b16 %v3571
      %v3935 = vunpack.c.l.b16 %v3572
      %v3936 = vunpack.c.h.b16 %v3572
      %v3937 = vunpack.c.l.b16 %v3573
      %v3938 = vunpack.c.l.b16 %v3574
      %v3939 = vunpack.c.h.b16 %v3574
      %v3940 = vunpack.c.l.b16 %v3575
      %v3941 = vunpack.c.l.b16 %v3576
      %v3942 = vunpack.c.h.b16 %v3576
      %v3943 = vunpack.c.l.b16 %v3577
      %v3944 = vunpack.c.l.b16 %v3578
      %v3945 = vunpack.c.h.b16 %v3578
      %v3946 = vunpack.c.l.b16 %v3579
      %v3947 = vunpack.c.l.b16 %v3580
      %v3948 = vunpack.c.h.b16 %v3580
      %v3949 = vunpack.c.l.b16 %v3581
      %v3950 = vunpack.c.l.b16 %v3582
      %v3951 = vunpack.c.h.b16 %v3582
      %v3952 = vunpack.c.l.b16 %v3583
      %v3953 = vunpack.c.l.b16 %v3584
      %v3954 = vunpack.c.h.b16 %v3584
      %v3955 = vunpack.c.l.b16 %v3585
      %v3956 = vunpack.c.l.b16 %v3586
      %v3957 = vunpack.c.h.b16 %v3586
      %v3958 = vunpack.c.l.b16 %v3587
      %v3959 = vunpack.c.l.b16 %v3588
      %v3960 = vunpack.c.h.b16 %v3588
      %v3961 = vunpack.c.l.b16 %v3589
      %v3962 = vpack.c.b16 %v3917, %v3914
      %v3963 = vpack.c.b16 %v3918, %v3915
      %v3964 = vpack.c.b16 %v3919, %v3916
      %v3965 = vpack.c.b16 %v3923, %v3920
      %v3966 = vpack.c.b16 %v3924, %v3921
      %v3967 = vpack.c.b16 %v3925, %v3922
      %v3968 = vpack.c.b16 %v3929, %v3926
      %v3969 = vpack.c.b16 %v3930, %v3927
      %v3970 = vpack.c.b16 %v3931, %v3928
      %v3971 = vpack.c.b16 %v3935, %v3932
      %v3972 = vpack.c.b16 %v3936, %v3933
      %v3973 = vpack.c.b16 %v3937, %v3934
      %v3974 = vpack.c.b16 %v3941, %v3938
      %v3975 = vpack.c.b16 %v3942, %v3939
      %v3976 = vpack.c.b16 %v3943, %v3940
      %v3977 = vpack.c.b16 %v3947, %v3944
      %v3978 = vpack.c.b16 %v3948, %v3945
      %v3979 = vpack.c.b16 %v3949, %v3946
      %v3980 = vpack.c.b16 %v3953, %v3950
      %v3981 = vpack.c.b16 %v3954, %v3951
      %v3982 = vpack.c.b16 %v3955, %v3952
      %v3983 = vpack.c.b16 %v3959, %v3956
      %v3984 = vpack.c.b16 %v3960, %v3957
      %v3985 = vpack.c.b16 %v3961, %v3958
      %4010 = vmatprep.subr.bf16.mxu0 %v3963
      %4011 = vmatpush1.bf16.msra.mxu0 %v3962
      %4012 = vmatprep.subr.bf16.mxu0 %v3966
      %4013 = vmatpush1.bf16.msra.mxu0 %v3965
      %4014 = vmatprep.subr.bf16.mxu0 %v3969
      %4015 = vmatpush1.bf16.msra.mxu0 %v3968
      %4016 = vmatprep.subr.bf16.mxu0 %v3972
      %4017 = vmatpush1.bf16.msra.mxu0 %v3971
      %4018 = vmatprep.subr.bf16.mxu0 %v3975
      %4019 = vmatpush1.bf16.msra.mxu0 %v3974
      %4020 = vmatprep.subr.bf16.mxu0 %v3978
      %4021 = vmatpush1.bf16.msra.mxu0 %v3977
      %4022 = vmatprep.subr.bf16.mxu0 %v3981
      %4023 = vmatpush1.bf16.msra.mxu0 %v3980
      %4024 = vmatprep.subr.bf16.mxu0 %v3984
      %4025 = vmatpush1.bf16.msra.mxu0 %v3983
      %4026 = vmatprep.subr.bf16.mxu0 0
      %4027 = vmatpush1.bf16.msra.mxu0 0
      %4028 = vmatprep.subr.bf16.mxu0 0
      %4029 = vmatpush1.bf16.msra.mxu0 0
      %4030 = vmatprep.subr.bf16.mxu0 0
      %4031 = vmatpush1.bf16.msra.mxu0 0
      %4032 = vmatprep.subr.bf16.mxu0 0
      %4033 = vmatpush1.bf16.msra.mxu0 0
      %4034 = vmatprep.subr.bf16.mxu0 0
      %4035 = vmatpush1.bf16.msra.mxu0 0
      %4036 = vmatprep.subr.bf16.mxu0 0
      %4037 = vmatpush1.bf16.msra.mxu0 0
      %4038 = vmatprep.subr.bf16.mxu0 0
      %4039 = vmatpush1.bf16.msra.mxu0 0
      %4040 = vmatprep.subr.bf16.mxu0 0
      %4041 = vmatpush1.bf16.msra.mxu0 0
      %4042 = vmatprep.mubr.bf16.mxu0 0
      %4043 = vmatmul.mubr.bf16.gmra.mrb[0].mxu0 %v3524
      %v4044 = vpop.f32.mrb[0].mxu0
      %v4045 = vadd.f32 %v3643, %v4044
      %v4046 = vpop.f32.mrb[0].mxu0
      %v4047 = vadd.f32 %v3647, %v4046
      %v4048 = vpop.f32.mrb[0].mxu0
      %v4049 = vpop.f32.mrb[0].mxu0
      %4050 = vdwg.mxu0
      %4051 = vmatprep.subr.bf16.mxu0 0
      %4052 = vmatpush1.bf16.msra.mxu0 %v3964
      %4053 = vmatprep.subr.bf16.mxu0 0
      %4054 = vmatpush1.bf16.msra.mxu0 %v3967
      %4055 = vmatprep.subr.bf16.mxu0 0
      %4056 = vmatpush1.bf16.msra.mxu0 %v3970
      %4057 = vmatprep.subr.bf16.mxu0 0
      %4058 = vmatpush1.bf16.msra.mxu0 %v3973
      %4059 = vmatprep.subr.bf16.mxu0 0
      %4060 = vmatpush1.bf16.msra.mxu0 %v3976
      %4061 = vmatprep.subr.bf16.mxu0 0
      %4062 = vmatpush1.bf16.msra.mxu0 %v3979
      %4063 = vmatprep.subr.bf16.mxu0 0
      %4064 = vmatpush1.bf16.msra.mxu0 %v3982
      %4065 = vmatprep.subr.bf16.mxu0 0
      %4066 = vmatpush1.bf16.msra.mxu0 %v3985
      %4067 = vmatprep.subr.bf16.mxu0 0
      %4068 = vmatpush1.bf16.msra.mxu0 0
      %4069 = vmatprep.subr.bf16.mxu0 0
      %4070 = vmatpush1.bf16.msra.mxu0 0
      %4071 = vmatprep.subr.bf16.mxu0 0
      %4072 = vmatpush1.bf16.msra.mxu0 0
      %4073 = vmatprep.subr.bf16.mxu0 0
      %4074 = vmatpush1.bf16.msra.mxu0 0
      %4075 = vmatprep.subr.bf16.mxu0 0
      %4076 = vmatpush1.bf16.msra.mxu0 0
      %4077 = vmatprep.subr.bf16.mxu0 0
      %4078 = vmatpush1.bf16.msra.mxu0 0
      %4079 = vmatprep.subr.bf16.mxu0 0
      %4080 = vmatpush1.bf16.msra.mxu0 0
      %4081 = vmatprep.subr.bf16.mxu0 0
      %4082 = vmatpush1.bf16.msra.mxu0 0
      %4083 = vmatprep.mubr.bf16.mxu0 0
      %4084 = vmatmul.mubr.bf16.gmra.mrb[0].mxu0 %v3524
      %v4085 = vpop.f32.mrb[0].mxu0
      %v4086 = vadd.f32 %v3651, %v4085
      %v4087 = vpop.f32.mrb[0].mxu0
      %v4088 = vpop.f32.mrb[0].mxu0
      %v4089 = vpop.f32.mrb[0].mxu0
      %4090 = vdwg.mxu0
      %v4123 = vunpack.c.l.b16 %v3590
      %v4124 = vunpack.c.h.b16 %v3590
      %v4125 = vunpack.c.l.b16 %v3591
      %v4126 = vunpack.c.l.b16 %v3592
      %v4127 = vunpack.c.h.b16 %v3592
      %v4128 = vunpack.c.l.b16 %v3593
      %v4129 = vunpack.c.l.b16 %v3594
      %v4130 = vunpack.c.h.b16 %v3594
      %v4131 = vunpack.c.l.b16 %v3595
      %v4132 = vunpack.c.l.b16 %v3596
      %v4133 = vunpack.c.h.b16 %v3596
      %v4134 = vunpack.c.l.b16 %v3597
      %v4135 = vunpack.c.l.b16 %v3598
      %v4136 = vunpack.c.h.b16 %v3598
      %v4137 = vunpack.c.l.b16 %v3599
      %v4138 = vunpack.c.l.b16 %v3600
      %v4139 = vunpack.c.h.b16 %v3600
      %v4140 = vunpack.c.l.b16 %v3601
      %v4141 = vunpack.c.l.b16 %v3602
      %v4142 = vunpack.c.h.b16 %v3602
      %v4143 = vunpack.c.l.b16 %v3603
      %v4144 = vunpack.c.l.b16 %v3604
      %v4145 = vunpack.c.h.b16 %v3604
      %v4146 = vunpack.c.l.b16 %v3605
      %v4147 = vunpack.c.l.b16 %v3606
      %v4148 = vunpack.c.h.b16 %v3606
      %v4149 = vunpack.c.l.b16 %v3607
      %v4150 = vunpack.c.l.b16 %v3608
      %v4151 = vunpack.c.h.b16 %v3608
      %v4152 = vunpack.c.l.b16 %v3609
      %v4153 = vunpack.c.l.b16 %v3610
      %v4154 = vunpack.c.h.b16 %v3610
      %v4155 = vunpack.c.l.b16 %v3611
      %v4156 = vunpack.c.l.b16 %v3612
      %v4157 = vunpack.c.h.b16 %v3612
      %v4158 = vunpack.c.l.b16 %v3613
      %v4159 = vunpack.c.l.b16 %v3614
      %v4160 = vunpack.c.h.b16 %v3614
      %v4161 = vunpack.c.l.b16 %v3615
      %v4162 = vunpack.c.l.b16 %v3616
      %v4163 = vunpack.c.h.b16 %v3616
      %v4164 = vunpack.c.l.b16 %v3617
      %v4165 = vunpack.c.l.b16 %v3618
      %v4166 = vunpack.c.h.b16 %v3618
      %v4167 = vunpack.c.l.b16 %v3619
      %v4168 = vunpack.c.l.b16 %v3620
      %v4169 = vunpack.c.h.b16 %v3620
      %v4170 = vunpack.c.l.b16 %v3621
      %v4171 = vpack.c.b16 %v4126, %v4123
      %v4172 = vpack.c.b16 %v4127, %v4124
      %v4173 = vpack.c.b16 %v4128, %v4125
      %v4174 = vpack.c.b16 %v4132, %v4129
      %v4175 = vpack.c.b16 %v4133, %v4130
      %v4176 = vpack.c.b16 %v4134, %v4131
      %v4177 = vpack.c.b16 %v4138, %v4135
      %v4178 = vpack.c.b16 %v4139, %v4136
      %v4179 = vpack.c.b16 %v4140, %v4137
      %v4180 = vpack.c.b16 %v4144, %v4141
      %v4181 = vpack.c.b16 %v4145, %v4142
      %v4182 = vpack.c.b16 %v4146, %v4143
      %v4183 = vpack.c.b16 %v4150, %v4147
      %v4184 = vpack.c.b16 %v4151, %v4148
      %v4185 = vpack.c.b16 %v4152, %v4149
      %v4186 = vpack.c.b16 %v4156, %v4153
      %v4187 = vpack.c.b16 %v4157, %v4154
      %v4188 = vpack.c.b16 %v4158, %v4155
      %v4189 = vpack.c.b16 %v4162, %v4159
      %v4190 = vpack.c.b16 %v4163, %v4160
      %v4191 = vpack.c.b16 %v4164, %v4161
      %v4192 = vpack.c.b16 %v4168, %v4165
      %v4193 = vpack.c.b16 %v4169, %v4166
      %v4194 = vpack.c.b16 %v4170, %v4167
      %4219 = vmatprep.subr.bf16.mxu0 %v4172
      %4220 = vmatpush1.bf16.msra.mxu0 %v4171
      %4221 = vmatprep.subr.bf16.mxu0 %v4175
      %4222 = vmatpush1.bf16.msra.mxu0 %v4174
      %4223 = vmatprep.subr.bf16.mxu0 %v4178
      %4224 = vmatpush1.bf16.msra.mxu0 %v4177
      %4225 = vmatprep.subr.bf16.mxu0 %v4181
      %4226 = vmatpush1.bf16.msra.mxu0 %v4180
      %4227 = vmatprep.subr.bf16.mxu0 %v4184
      %4228 = vmatpush1.bf16.msra.mxu0 %v4183
      %4229 = vmatprep.subr.bf16.mxu0 %v4187
      %4230 = vmatpush1.bf16.msra.mxu0 %v4186
      %4231 = vmatprep.subr.bf16.mxu0 %v4190
      %4232 = vmatpush1.bf16.msra.mxu0 %v4189
      %4233 = vmatprep.subr.bf16.mxu0 %v4193
      %4234 = vmatpush1.bf16.msra.mxu0 %v4192
      %4235 = vmatprep.subr.bf16.mxu0 0
      %4236 = vmatpush1.bf16.msra.mxu0 0
      %4237 = vmatprep.subr.bf16.mxu0 0
      %4238 = vmatpush1.bf16.msra.mxu0 0
      %4239 = vmatprep.subr.bf16.mxu0 0
      %4240 = vmatpush1.bf16.msra.mxu0 0
      %4241 = vmatprep.subr.bf16.mxu0 0
      %4242 = vmatpush1.bf16.msra.mxu0 0
      %4243 = vmatprep.subr.bf16.mxu0 0
      %4244 = vmatpush1.bf16.msra.mxu0 0
      %4245 = vmatprep.subr.bf16.mxu0 0
      %4246 = vmatpush1.bf16.msra.mxu0 0
      %4247 = vmatprep.subr.bf16.mxu0 0
      %4248 = vmatpush1.bf16.msra.mxu0 0
      %4249 = vmatprep.subr.bf16.mxu0 0
      %4250 = vmatpush1.bf16.msra.mxu0 0
      %4251 = vmatprep.mubr.bf16.mxu0 0
      %4252 = vmatmul.mubr.bf16.gmra.mrb[0].mxu0 %v3525
      %v4253 = vpop.f32.mrb[0].mxu0
      %v4254 = vadd.f32 %v3655, %v4253
      %v4255 = vpop.f32.mrb[0].mxu0
      %v4256 = vadd.f32 %v3659, %v4255
      %v4257 = vpop.f32.mrb[0].mxu0
      %v4258 = vpop.f32.mrb[0].mxu0
      %4259 = vdwg.mxu0
      %4260 = vmatprep.subr.bf16.mxu0 0
      %4261 = vmatpush1.bf16.msra.mxu0 %v4173
      %4262 = vmatprep.subr.bf16.mxu0 0
      %4263 = vmatpush1.bf16.msra.mxu0 %v4176
      %4264 = vmatprep.subr.bf16.mxu0 0
      %4265 = vmatpush1.bf16.msra.mxu0 %v4179
      %4266 = vmatprep.subr.bf16.mxu0 0
      %4267 = vmatpush1.bf16.msra.mxu0 %v4182
      %4268 = vmatprep.subr.bf16.mxu0 0
      %4269 = vmatpush1.bf16.msra.mxu0 %v4185
      %4270 = vmatprep.subr.bf16.mxu0 0
      %4271 = vmatpush1.bf16.msra.mxu0 %v4188
      %4272 = vmatprep.subr.bf16.mxu0 0
      %4273 = vmatpush1.bf16.msra.mxu0 %v4191
      %4274 = vmatprep.subr.bf16.mxu0 0
      %4275 = vmatpush1.bf16.msra.mxu0 %v4194
      %4276 = vmatprep.subr.bf16.mxu0 0
      %4277 = vmatpush1.bf16.msra.mxu0 0
      %4278 = vmatprep.subr.bf16.mxu0 0
      %4279 = vmatpush1.bf16.msra.mxu0 0
      %4280 = vmatprep.subr.bf16.mxu0 0
      %4281 = vmatpush1.bf16.msra.mxu0 0
      %4282 = vmatprep.subr.bf16.mxu0 0
      %4283 = vmatpush1.bf16.msra.mxu0 0
      %4284 = vmatprep.subr.bf16.mxu0 0
      %4285 = vmatpush1.bf16.msra.mxu0 0
      %4286 = vmatprep.subr.bf16.mxu0 0
      %4287 = vmatpush1.bf16.msra.mxu0 0
      %4288 = vmatprep.subr.bf16.mxu0 0
      %4289 = vmatpush1.bf16.msra.mxu0 0
      %4290 = vmatprep.subr.bf16.mxu0 0
      %4291 = vmatpush1.bf16.msra.mxu0 0
      %4292 = vmatprep.mubr.bf16.mxu0 0
      %4293 = vmatmul.mubr.bf16.gmra.mrb[0].mxu0 %v3525
      %v4294 = vpop.f32.mrb[0].mxu0
      %v4295 = vadd.f32 %v3663, %v4294
      %v4296 = vpop.f32.mrb[0].mxu0
      %v4297 = vpop.f32.mrb[0].mxu0
      %v4298 = vpop.f32.mrb[0].mxu0
      %4299 = vdwg.mxu0
      %s4300 = smul.u32 %s3515, 3
      %s4301 = smul.addr %s4300, 2
      %s4302 = scalar_lea.vmem [#allocation2], %s4301
      %v4303 = vld [vmem:[%s4302] sm:$0x3f]
      %v4304 = vadd.f32 %v4303, %v3836
      %v4305 = vxor.u32 %v4304, 2147483648
      %v4306 = vmul.f32 %v4305, 1.442695
      %v4307 = vpow.pop %v4306
      %v4308 = vadd.f32 %v4307, 1.0
      %v4309 = vrcp.pop %v4308
      %v4310 = vmul.f32 1.0, %v4309
      %v4312 = vrot.slane %v4303, 2
      %v4314 = vadd.f32 %v4312, %v3838
      %v4315 = vxor.u32 %v4314, 2147483648
      %v4316 = vmul.f32 %v4315, 1.442695
      %v4317 = vpow.pop %v4316
      %v4318 = vadd.f32 %v4317, 1.0
      %v4319 = vrcp.pop %v4318
      %v4320 = vmul.f32 1.0, %v4319
      %v4321 = vmul.f32 %v4310, %v3877
      %v4322 = vrot.slane %v4303, 4
      %v4324 = vadd.f32 %v4322, %v4321
      %v4325 = vtanh.pop %v4324
      %v4326 = vsub.f32 1.0, %v4320
      %v4327 = vmul.f32 %v4326, %v4325
      %v4328 = vmul.f32 %v4320, %v3520
      %v4329 = vadd.f32 %v4327, %v4328
      %v4330 = vpack.c.bf16 %v4329, %v4329
      %v4331 = vld [vmem:[%s3] sm:$0xff]
      %v4332 = vld [vmem:[%s3 + $0x8] sm:$0xf]
      %v4333 = vld [vmem:[%s3 + $0xc] sm:$0xff]
      %v4334 = vld [vmem:[%s3 + $0x14] sm:$0xf]
      %v4335 = vld [vmem:[%s3 + $0x18] sm:$0xff]
      %v4336 = vld [vmem:[%s3 + $0x20] sm:$0xf]
      %v4337 = vld [vmem:[%s3 + $0x24] sm:$0xff]
      %v4338 = vld [vmem:[%s3 + $0x2c] sm:$0xf]
      %v4339 = vld [vmem:[%s3 + $0x30] sm:$0xff]
      %v4340 = vld [vmem:[%s3 + $0x38] sm:$0xf]
      %v4341 = vld [vmem:[%s3 + $0x3c] sm:$0xff]
      %v4342 = vld [vmem:[%s3 + $0x44] sm:$0xf]
      %v4343 = vld [vmem:[%s3 + $0x48] sm:$0xff]
      %v4344 = vld [vmem:[%s3 + $0x50] sm:$0xf]
      %v4345 = vld [vmem:[%s3 + $0x54] sm:$0xff]
      %v4346 = vld [vmem:[%s3 + $0x5c] sm:$0xf]
      %v4347 = vld [vmem:[%s3 + $0x60] sm:$0xff]
      %v4348 = vld [vmem:[%s3 + $0x68] sm:$0xf]
      %v4349 = vld [vmem:[%s3 + $0x6c] sm:$0xff]
      %v4350 = vld [vmem:[%s3 + $0x74] sm:$0xf]
      %v4351 = vld [vmem:[%s3 + $0x78] sm:$0xff]
      %v4352 = vld [vmem:[%s3 + $0x80] sm:$0xf]
      %v4353 = vld [vmem:[%s3 + $0x84] sm:$0xff]
      %v4354 = vld [vmem:[%s3 + $0x8c] sm:$0xf]
      %v4355 = vld [vmem:[%s3 + $0x90] sm:$0xff]
      %v4356 = vld [vmem:[%s3 + $0x98] sm:$0xf]
      %v4357 = vld [vmem:[%s3 + $0x9c] sm:$0xff]
      %v4358 = vld [vmem:[%s3 + $0xa4] sm:$0xf]
      %v4359 = vld [vmem:[%s3 + $0xa8] sm:$0xff]
      %v4360 = vld [vmem:[%s3 + $0xb0] sm:$0xf]
      %v4361 = vld [vmem:[%s3 + $0xb4] sm:$0xff]
      %v4362 = vld [vmem:[%s3 + $0xbc] sm:$0xf]
      %v4363 = vld [vmem:[%s4] sm:$0x7]
      %v4365 = vlaneseq
      %v4366 = vshrl.u32 %v4365, 7
      %v4367 = vsub.s32 0, %v4366
      %v4368 = vrot.slane %v4363, %v4367
      %v4369 = vlaneseq
      %v4370 = vshrl.u32 %v4369, 7
      %v4371 = vsub.s32 1, %v4370
      %v4372 = vrot.slane %v4363, %v4371
      %v4373 = vlaneseq
      %v4374 = vshrl.u32 %v4373, 7
      %v4375 = vsub.s32 2, %v4374
      %v4376 = vrot.slane %v4363, %v4375
      %v4412 = vunpack.c.l.b16 %v4331
      %v4413 = vunpack.c.h.b16 %v4331
      %v4414 = vunpack.c.l.b16 %v4332
      %v4415 = vunpack.c.l.b16 %v4333
      %v4416 = vunpack.c.h.b16 %v4333
      %v4417 = vunpack.c.l.b16 %v4334
      %v4418 = vunpack.c.l.b16 %v4335
      %v4419 = vunpack.c.h.b16 %v4335
      %v4420 = vunpack.c.l.b16 %v4336
      %v4421 = vunpack.c.l.b16 %v4337
      %v4422 = vunpack.c.h.b16 %v4337
      %v4423 = vunpack.c.l.b16 %v4338
      %v4424 = vunpack.c.l.b16 %v4339
      %v4425 = vunpack.c.h.b16 %v4339
      %v4426 = vunpack.c.l.b16 %v4340
      %v4427 = vunpack.c.l.b16 %v4341
      %v4428 = vunpack.c.h.b16 %v4341
      %v4429 = vunpack.c.l.b16 %v4342
      %v4430 = vunpack.c.l.b16 %v4343
      %v4431 = vunpack.c.h.b16 %v4343
      %v4432 = vunpack.c.l.b16 %v4344
      %v4433 = vunpack.c.l.b16 %v4345
      %v4434 = vunpack.c.h.b16 %v4345
      %v4435 = vunpack.c.l.b16 %v4346
      %v4436 = vunpack.c.l.b16 %v4347
      %v4437 = vunpack.c.h.b16 %v4347
      %v4438 = vunpack.c.l.b16 %v4348
      %v4439 = vunpack.c.l.b16 %v4349
      %v4440 = vunpack.c.h.b16 %v4349
      %v4441 = vunpack.c.l.b16 %v4350
      %v4442 = vunpack.c.l.b16 %v4351
      %v4443 = vunpack.c.h.b16 %v4351
      %v4444 = vunpack.c.l.b16 %v4352
      %v4445 = vunpack.c.l.b16 %v4353
      %v4446 = vunpack.c.h.b16 %v4353
      %v4447 = vunpack.c.l.b16 %v4354
      %v4448 = vunpack.c.l.b16 %v4355
      %v4449 = vunpack.c.h.b16 %v4355
      %v4450 = vunpack.c.l.b16 %v4356
      %v4451 = vunpack.c.l.b16 %v4357
      %v4452 = vunpack.c.h.b16 %v4357
      %v4453 = vunpack.c.l.b16 %v4358
      %v4454 = vunpack.c.l.b16 %v4359
      %v4455 = vunpack.c.h.b16 %v4359
      %v4456 = vunpack.c.l.b16 %v4360
      %v4457 = vunpack.c.l.b16 %v4361
      %v4458 = vunpack.c.h.b16 %v4361
      %v4459 = vunpack.c.l.b16 %v4362
      %v4460 = vpack.c.b16 %v4415, %v4412
      %v4461 = vpack.c.b16 %v4416, %v4413
      %v4462 = vpack.c.b16 %v4417, %v4414
      %v4463 = vpack.c.b16 %v4421, %v4418
      %v4464 = vpack.c.b16 %v4422, %v4419
      %v4465 = vpack.c.b16 %v4423, %v4420
      %v4466 = vpack.c.b16 %v4427, %v4424
      %v4467 = vpack.c.b16 %v4428, %v4425
      %v4468 = vpack.c.b16 %v4429, %v4426
      %v4469 = vpack.c.b16 %v4433, %v4430
      %v4470 = vpack.c.b16 %v4434, %v4431
      %v4471 = vpack.c.b16 %v4435, %v4432
      %v4472 = vpack.c.b16 %v4439, %v4436
      %v4473 = vpack.c.b16 %v4440, %v4437
      %v4474 = vpack.c.b16 %v4441, %v4438
      %v4475 = vpack.c.b16 %v4445, %v4442
      %v4476 = vpack.c.b16 %v4446, %v4443
      %v4477 = vpack.c.b16 %v4447, %v4444
      %v4478 = vpack.c.b16 %v4451, %v4448
      %v4479 = vpack.c.b16 %v4452, %v4449
      %v4480 = vpack.c.b16 %v4453, %v4450
      %v4481 = vpack.c.b16 %v4457, %v4454
      %v4482 = vpack.c.b16 %v4458, %v4455
      %v4483 = vpack.c.b16 %v4459, %v4456
      %4508 = vmatprep.subr.bf16.mxu0 %v4461
      %4509 = vmatpush1.bf16.msra.mxu0 %v4460
      %4510 = vmatprep.subr.bf16.mxu0 %v4464
      %4511 = vmatpush1.bf16.msra.mxu0 %v4463
      %4512 = vmatprep.subr.bf16.mxu0 %v4467
      %4513 = vmatpush1.bf16.msra.mxu0 %v4466
      %4514 = vmatprep.subr.bf16.mxu0 %v4470
      %4515 = vmatpush1.bf16.msra.mxu0 %v4469
      %4516 = vmatprep.subr.bf16.mxu0 %v4473
      %4517 = vmatpush1.bf16.msra.mxu0 %v4472
      %4518 = vmatprep.subr.bf16.mxu0 %v4476
      %4519 = vmatpush1.bf16.msra.mxu0 %v4475
      %4520 = vmatprep.subr.bf16.mxu0 %v4479
      %4521 = vmatpush1.bf16.msra.mxu0 %v4478
      %4522 = vmatprep.subr.bf16.mxu0 %v4482
      %4523 = vmatpush1.bf16.msra.mxu0 %v4481
      %4524 = vmatprep.subr.bf16.mxu0 0
      %4525 = vmatpush1.bf16.msra.mxu0 0
      %4526 = vmatprep.subr.bf16.mxu0 0
      %4527 = vmatpush1.bf16.msra.mxu0 0
      %4528 = vmatprep.subr.bf16.mxu0 0
      %4529 = vmatpush1.bf16.msra.mxu0 0
      %4530 = vmatprep.subr.bf16.mxu0 0
      %4531 = vmatpush1.bf16.msra.mxu0 0
      %4532 = vmatprep.subr.bf16.mxu0 0
      %4533 = vmatpush1.bf16.msra.mxu0 0
      %4534 = vmatprep.subr.bf16.mxu0 0
      %4535 = vmatpush1.bf16.msra.mxu0 0
      %4536 = vmatprep.subr.bf16.mxu0 0
      %4537 = vmatpush1.bf16.msra.mxu0 0
      %4538 = vmatprep.subr.bf16.mxu0 0
      %4539 = vmatpush1.bf16.msra.mxu0 0
      %4540 = vmatprep.mubr.bf16.mxu0 0
      %4541 = vmatmul.mubr.bf16.gmra.mrb[0].mxu0 %v4330
      %v4542 = vpop.f32.mrb[0].mxu0
      %v4543 = vadd.f32 %v4368, %v4542
      %v4544 = vpop.f32.mrb[0].mxu0
      %v4545 = vadd.f32 %v4372, %v4544
      %v4546 = vpop.f32.mrb[0].mxu0
      %v4547 = vpop.f32.mrb[0].mxu0
      %4548 = vdwg.mxu0
      %4549 = vmatprep.subr.bf16.mxu0 0
      %4550 = vmatpush1.bf16.msra.mxu0 %v4462
      %4551 = vmatprep.subr.bf16.mxu0 0
      %4552 = vmatpush1.bf16.msra.mxu0 %v4465
      %4553 = vmatprep.subr.bf16.mxu0 0
      %4554 = vmatpush1.bf16.msra.mxu0 %v4468
      %4555 = vmatprep.subr.bf16.mxu0 0
      %4556 = vmatpush1.bf16.msra.mxu0 %v4471
      %4557 = vmatprep.subr.bf16.mxu0 0
      %4558 = vmatpush1.bf16.msra.mxu0 %v4474
      %4559 = vmatprep.subr.bf16.mxu0 0
      %4560 = vmatpush1.bf16.msra.mxu0 %v4477
      %4561 = vmatprep.subr.bf16.mxu0 0
      %4562 = vmatpush1.bf16.msra.mxu0 %v4480
      %4563 = vmatprep.subr.bf16.mxu0 0
      %4564 = vmatpush1.bf16.msra.mxu0 %v4483
      %4565 = vmatprep.subr.bf16.mxu0 0
      %4566 = vmatpush1.bf16.msra.mxu0 0
      %4567 = vmatprep.subr.bf16.mxu0 0
      %4568 = vmatpush1.bf16.msra.mxu0 0
      %4569 = vmatprep.subr.bf16.mxu0 0
      %4570 = vmatpush1.bf16.msra.mxu0 0
      %4571 = vmatprep.subr.bf16.mxu0 0
      %4572 = vmatpush1.bf16.msra.mxu0 0
      %4573 = vmatprep.subr.bf16.mxu0 0
      %4574 = vmatpush1.bf16.msra.mxu0 0
      %4575 = vmatprep.subr.bf16.mxu0 0
      %4576 = vmatpush1.bf16.msra.mxu0 0
      %4577 = vmatprep.subr.bf16.mxu0 0
      %4578 = vmatpush1.bf16.msra.mxu0 0
      %4579 = vmatprep.subr.bf16.mxu0 0
      %4580 = vmatpush1.bf16.msra.mxu0 0
      %4581 = vmatprep.mubr.bf16.mxu0 0
      %4582 = vmatmul.mubr.bf16.gmra.mrb[0].mxu0 %v4330
      %v4583 = vpop.f32.mrb[0].mxu0
      %v4584 = vadd.f32 %v4376, %v4583
      %v4585 = vpop.f32.mrb[0].mxu0
      %v4586 = vpop.f32.mrb[0].mxu0
      %v4587 = vpop.f32.mrb[0].mxu0
      %4588 = vdwg.mxu0
      %v4589 = vadd.f32 %v4543, %v4045
      %v4590 = vxor.u32 %v4589, 2147483648
      %v4591 = vmul.f32 %v4590, 1.442695
      %v4592 = vpow.pop %v4591
      %v4593 = vadd.f32 %v4592, 1.0
      %v4594 = vrcp.pop %v4593
      %v4595 = vmul.f32 1.0, %v4594
      %v4596 = vadd.f32 %v4545, %v4047
      %v4597 = vxor.u32 %v4596, 2147483648
      %v4598 = vmul.f32 %v4597, 1.442695
      %v4599 = vpow.pop %v4598
      %v4600 = vadd.f32 %v4599, 1.0
      %v4601 = vrcp.pop %v4600
      %v4602 = vmul.f32 1.0, %v4601
      %v4603 = vmul.f32 %v4595, %v4086
      %v4604 = vadd.f32 %v4584, %v4603
      %v4605 = vtanh.pop %v4604
      %v4606 = vsub.f32 1.0, %v4602
      %v4607 = vmul.f32 %v4606, %v4605
      %v4608 = vmul.f32 %v4602, %v3521
      %v4609 = vadd.f32 %v4607, %v4608
      %v4610 = vpack.c.bf16 %v4609, %v4609
      %s4611 = scalar_lea.vmem %s3, 192
      %v4612 = vld [vmem:[%s4611] sm:$0xff]
      %v4613 = vld [vmem:[%s4611 + $0x8] sm:$0xf]
      %v4614 = vld [vmem:[%s4611 + $0xc] sm:$0xff]
      %v4615 = vld [vmem:[%s4611 + $0x14] sm:$0xf]
      %v4616 = vld [vmem:[%s4611 + $0x18] sm:$0xff]
      %v4617 = vld [vmem:[%s4611 + $0x20] sm:$0xf]
      %v4618 = vld [vmem:[%s4611 + $0x24] sm:$0xff]
      %v4619 = vld [vmem:[%s4611 + $0x2c] sm:$0xf]
      %v4620 = vld [vmem:[%s4611 + $0x30] sm:$0xff]
      %v4621 = vld [vmem:[%s4611 + $0x38] sm:$0xf]
      %v4622 = vld [vmem:[%s4611 + $0x3c] sm:$0xff]
      %v4623 = vld [vmem:[%s4611 + $0x44] sm:$0xf]
      %v4624 = vld [vmem:[%s4611 + $0x48] sm:$0xff]
      %v4625 = vld [vmem:[%s4611 + $0x50] sm:$0xf]
      %v4626 = vld [vmem:[%s4611 + $0x54] sm:$0xff]
      %v4627 = vld [vmem:[%s4611 + $0x5c] sm:$0xf]
      %v4628 = vld [vmem:[%s4611 + $0x60] sm:$0xff]
      %v4629 = vld [vmem:[%s4611 + $0x68] sm:$0xf]
      %v4630 = vld [vmem:[%s4611 + $0x6c] sm:$0xff]
      %v4631 = vld [vmem:[%s4611 + $0x74] sm:$0xf]
      %v4632 = vld [vmem:[%s4611 + $0x78] sm:$0xff]
      %v4633 = vld [vmem:[%s4611 + $0x80] sm:$0xf]
      %v4634 = vld [vmem:[%s4611 + $0x84] sm:$0xff]
      %v4635 = vld [vmem:[%s4611 + $0x8c] sm:$0xf]
      %v4636 = vld [vmem:[%s4611 + $0x90] sm:$0xff]
      %v4637 = vld [vmem:[%s4611 + $0x98] sm:$0xf]
      %v4638 = vld [vmem:[%s4611 + $0x9c] sm:$0xff]
      %v4639 = vld [vmem:[%s4611 + $0xa4] sm:$0xf]
      %v4640 = vld [vmem:[%s4611 + $0xa8] sm:$0xff]
      %v4641 = vld [vmem:[%s4611 + $0xb0] sm:$0xf]
      %v4642 = vld [vmem:[%s4611 + $0xb4] sm:$0xff]
      %v4643 = vld [vmem:[%s4611 + $0xbc] sm:$0xf]
      %s4644 = scalar_lea.vmem %s4, 3
      %v4645 = vld [vmem:[%s4644] sm:$0x7]
      %v4647 = vlaneseq
      %v4648 = vshrl.u32 %v4647, 7
      %v4649 = vsub.s32 0, %v4648
      %v4650 = vrot.slane %v4645, %v4649
      %v4651 = vlaneseq
      %v4652 = vshrl.u32 %v4651, 7
      %v4653 = vsub.s32 1, %v4652
      %v4654 = vrot.slane %v4645, %v4653
      %v4655 = vlaneseq
      %v4656 = vshrl.u32 %v4655, 7
      %v4657 = vsub.s32 2, %v4656
      %v4658 = vrot.slane %v4645, %v4657
      %v4694 = vunpack.c.l.b16 %v4612
      %v4695 = vunpack.c.h.b16 %v4612
      %v4696 = vunpack.c.l.b16 %v4613
      %v4697 = vunpack.c.l.b16 %v4614
      %v4698 = vunpack.c.h.b16 %v4614
      %v4699 = vunpack.c.l.b16 %v4615
      %v4700 = vunpack.c.l.b16 %v4616
      %v4701 = vunpack.c.h.b16 %v4616
      %v4702 = vunpack.c.l.b16 %v4617
      %v4703 = vunpack.c.l.b16 %v4618
      %v4704 = vunpack.c.h.b16 %v4618
      %v4705 = vunpack.c.l.b16 %v4619
      %v4706 = vunpack.c.l.b16 %v4620
      %v4707 = vunpack.c.h.b16 %v4620
      %v4708 = vunpack.c.l.b16 %v4621
      %v4709 = vunpack.c.l.b16 %v4622
      %v4710 = vunpack.c.h.b16 %v4622
      %v4711 = vunpack.c.l.b16 %v4623
      %v4712 = vunpack.c.l.b16 %v4624
      %v4713 = vunpack.c.h.b16 %v4624
      %v4714 = vunpack.c.l.b16 %v4625
      %v4715 = vunpack.c.l.b16 %v4626
      %v4716 = vunpack.c.h.b16 %v4626
      %v4717 = vunpack.c.l.b16 %v4627
      %v4718 = vunpack.c.l.b16 %v4628
      %v4719 = vunpack.c.h.b16 %v4628
      %v4720 = vunpack.c.l.b16 %v4629
      %v4721 = vunpack.c.l.b16 %v4630
      %v4722 = vunpack.c.h.b16 %v4630
      %v4723 = vunpack.c.l.b16 %v4631
      %v4724 = vunpack.c.l.b16 %v4632
      %v4725 = vunpack.c.h.b16 %v4632
      %v4726 = vunpack.c.l.b16 %v4633
      %v4727 = vunpack.c.l.b16 %v4634
      %v4728 = vunpack.c.h.b16 %v4634
      %v4729 = vunpack.c.l.b16 %v4635
      %v4730 = vunpack.c.l.b16 %v4636
      %v4731 = vunpack.c.h.b16 %v4636
      %v4732 = vunpack.c.l.b16 %v4637
      %v4733 = vunpack.c.l.b16 %v4638
      %v4734 = vunpack.c.h.b16 %v4638
      %v4735 = vunpack.c.l.b16 %v4639
      %v4736 = vunpack.c.l.b16 %v4640
      %v4737 = vunpack.c.h.b16 %v4640
      %v4738 = vunpack.c.l.b16 %v4641
      %v4739 = vunpack.c.l.b16 %v4642
      %v4740 = vunpack.c.h.b16 %v4642
      %v4741 = vunpack.c.l.b16 %v4643
      %v4742 = vpack.c.b16 %v4697, %v4694
      %v4743 = vpack.c.b16 %v4698, %v4695
      %v4744 = vpack.c.b16 %v4699, %v4696
      %v4745 = vpack.c.b16 %v4703, %v4700
      %v4746 = vpack.c.b16 %v4704, %v4701
      %v4747 = vpack.c.b16 %v4705, %v4702
      %v4748 = vpack.c.b16 %v4709, %v4706
      %v4749 = vpack.c.b16 %v4710, %v4707
      %v4750 = vpack.c.b16 %v4711, %v4708
      %v4751 = vpack.c.b16 %v4715, %v4712
      %v4752 = vpack.c.b16 %v4716, %v4713
      %v4753 = vpack.c.b16 %v4717, %v4714
      %v4754 = vpack.c.b16 %v4721, %v4718
      %v4755 = vpack.c.b16 %v4722, %v4719
      %v4756 = vpack.c.b16 %v4723, %v4720
      %v4757 = vpack.c.b16 %v4727, %v4724
      %v4758 = vpack.c.b16 %v4728, %v4725
      %v4759 = vpack.c.b16 %v4729, %v4726
      %v4760 = vpack.c.b16 %v4733, %v4730
      %v4761 = vpack.c.b16 %v4734, %v4731
      %v4762 = vpack.c.b16 %v4735, %v4732
      %v4763 = vpack.c.b16 %v4739, %v4736
      %v4764 = vpack.c.b16 %v4740, %v4737
      %v4765 = vpack.c.b16 %v4741, %v4738
      %4790 = vmatprep.subr.bf16.mxu0 %v4743
      %4791 = vmatpush1.bf16.msra.mxu0 %v4742
      %4792 = vmatprep.subr.bf16.mxu0 %v4746
      %4793 = vmatpush1.bf16.msra.mxu0 %v4745
      %4794 = vmatprep.subr.bf16.mxu0 %v4749
      %4795 = vmatpush1.bf16.msra.mxu0 %v4748
      %4796 = vmatprep.subr.bf16.mxu0 %v4752
      %4797 = vmatpush1.bf16.msra.mxu0 %v4751
      %4798 = vmatprep.subr.bf16.mxu0 %v4755
      %4799 = vmatpush1.bf16.msra.mxu0 %v4754
      %4800 = vmatprep.subr.bf16.mxu0 %v4758
      %4801 = vmatpush1.bf16.msra.mxu0 %v4757
      %4802 = vmatprep.subr.bf16.mxu0 %v4761
      %4803 = vmatpush1.bf16.msra.mxu0 %v4760
      %4804 = vmatprep.subr.bf16.mxu0 %v4764
      %4805 = vmatpush1.bf16.msra.mxu0 %v4763
      %4806 = vmatprep.subr.bf16.mxu0 0
      %4807 = vmatpush1.bf16.msra.mxu0 0
      %4808 = vmatprep.subr.bf16.mxu0 0
      %4809 = vmatpush1.bf16.msra.mxu0 0
      %4810 = vmatprep.subr.bf16.mxu0 0
      %4811 = vmatpush1.bf16.msra.mxu0 0
      %4812 = vmatprep.subr.bf16.mxu0 0
      %4813 = vmatpush1.bf16.msra.mxu0 0
      %4814 = vmatprep.subr.bf16.mxu0 0
      %4815 = vmatpush1.bf16.msra.mxu0 0
      %4816 = vmatprep.subr.bf16.mxu0 0
      %4817 = vmatpush1.bf16.msra.mxu0 0
      %4818 = vmatprep.subr.bf16.mxu0 0
      %4819 = vmatpush1.bf16.msra.mxu0 0
      %4820 = vmatprep.subr.bf16.mxu0 0
      %4821 = vmatpush1.bf16.msra.mxu0 0
      %4822 = vmatprep.mubr.bf16.mxu0 0
      %4823 = vmatmul.mubr.bf16.gmra.mrb[0].mxu0 %v4610
      %v4824 = vpop.f32.mrb[0].mxu0
      %v4825 = vadd.f32 %v4650, %v4824
      %v4826 = vpop.f32.mrb[0].mxu0
      %v4827 = vadd.f32 %v4654, %v4826
      %v4828 = vpop.f32.mrb[0].mxu0
      %v4829 = vpop.f32.mrb[0].mxu0
      %4830 = vdwg.mxu0
      %4831 = vmatprep.subr.bf16.mxu0 0
      %4832 = vmatpush1.bf16.msra.mxu0 %v4744
      %4833 = vmatprep.subr.bf16.mxu0 0
      %4834 = vmatpush1.bf16.msra.mxu0 %v4747
      %4835 = vmatprep.subr.bf16.mxu0 0
      %4836 = vmatpush1.bf16.msra.mxu0 %v4750
      %4837 = vmatprep.subr.bf16.mxu0 0
      %4838 = vmatpush1.bf16.msra.mxu0 %v4753
      %4839 = vmatprep.subr.bf16.mxu0 0
      %4840 = vmatpush1.bf16.msra.mxu0 %v4756
      %4841 = vmatprep.subr.bf16.mxu0 0
      %4842 = vmatpush1.bf16.msra.mxu0 %v4759
      %4843 = vmatprep.subr.bf16.mxu0 0
      %4844 = vmatpush1.bf16.msra.mxu0 %v4762
      %4845 = vmatprep.subr.bf16.mxu0 0
      %4846 = vmatpush1.bf16.msra.mxu0 %v4765
      %4847 = vmatprep.subr.bf16.mxu0 0
      %4848 = vmatpush1.bf16.msra.mxu0 0
      %4849 = vmatprep.subr.bf16.mxu0 0
      %4850 = vmatpush1.bf16.msra.mxu0 0
      %4851 = vmatprep.subr.bf16.mxu0 0
      %4852 = vmatpush1.bf16.msra.mxu0 0
      %4853 = vmatprep.subr.bf16.mxu0 0
      %4854 = vmatpush1.bf16.msra.mxu0 0
      %4855 = vmatprep.subr.bf16.mxu0 0
      %4856 = vmatpush1.bf16.msra.mxu0 0
      %4857 = vmatprep.subr.bf16.mxu0 0
      %4858 = vmatpush1.bf16.msra.mxu0 0
      %4859 = vmatprep.subr.bf16.mxu0 0
      %4860 = vmatpush1.bf16.msra.mxu0 0
      %4861 = vmatprep.subr.bf16.mxu0 0
      %4862 = vmatpush1.bf16.msra.mxu0 0
      %4863 = vmatprep.mubr.bf16.mxu0 0
      %4864 = vmatmul.mubr.bf16.gmra.mrb[0].mxu0 %v4610
      %v4865 = vpop.f32.mrb[0].mxu0
      %v4866 = vadd.f32 %v4658, %v4865
      %v4867 = vpop.f32.mrb[0].mxu0
      %v4868 = vpop.f32.mrb[0].mxu0
      %v4869 = vpop.f32.mrb[0].mxu0
      %4870 = vdwg.mxu0
      %v4871 = vadd.f32 %v4825, %v4254
      %v4872 = vxor.u32 %v4871, 2147483648
      %v4873 = vmul.f32 %v4872, 1.442695
      %v4874 = vpow.pop %v4873
      %v4875 = vadd.f32 %v4874, 1.0
      %v4876 = vrcp.pop %v4875
      %v4877 = vmul.f32 1.0, %v4876
      %v4878 = vadd.f32 %v4827, %v4256
      %v4879 = vxor.u32 %v4878, 2147483648
      %v4880 = vmul.f32 %v4879, 1.442695
      %v4881 = vpow.pop %v4880
      %v4882 = vadd.f32 %v4881, 1.0
      %v4883 = vrcp.pop %v4882
      %v4884 = vmul.f32 1.0, %v4883
      %v4885 = vmul.f32 %v4877, %v4295
      %v4886 = vadd.f32 %v4866, %v4885
      %v4887 = vtanh.pop %v4886
      %v4888 = vsub.f32 1.0, %v4884
      %v4889 = vmul.f32 %v4888, %v4887
      %v4890 = vmul.f32 %v4884, %v3522
      %v4891 = vadd.f32 %v4889, %v4890
    $region50: #{cnn_net_forward.5} parent=1 // loop_footer
      %s3519 = sadd.s32 1, %s3515
    $region51: #{cnn_net_forward.5} parent=1 // loop_footer_branch
      %3514 = sbr.rel target = $region47
    $region52: #{cnn_net_forward.5} parent=1 // loop_exit
      _
    %v4892 = vpack.c.bf16 %v3522, %v3522
    %v4893 = vld [vmem:[%s7] sm:$0xf]
    %v4894 = vld [vmem:[%s7 + $0x4] sm:$0xf]
    %v4895 = vld [vmem:[%s7 + $0x8] sm:$0xf]
    %v4896 = vld [vmem:[%s7 + $0xc] sm:$0xf]
    %v4897 = vld [vmem:[%s7 + $0x10] sm:$0xf]
    %v4898 = vld [vmem:[%s7 + $0x14] sm:$0xf]
    %v4899 = vld [vmem:[%s7 + $0x18] sm:$0xf]
    %v4900 = vld [vmem:[%s7 + $0x1c] sm:$0xf]
    %v4901 = vld [vmem:[%s7 + $0x20] sm:$0xf]
    %v4902 = vld [vmem:[%s7 + $0x24] sm:$0xf]
    %v4903 = vld [vmem:[%s7 + $0x28] sm:$0xf]
    %v4904 = vld [vmem:[%s7 + $0x2c] sm:$0xf]
    %v4905 = vld [vmem:[%s7 + $0x30] sm:$0xf]
    %v4906 = vld [vmem:[%s7 + $0x34] sm:$0xf]
    %v4907 = vld [vmem:[%s7 + $0x38] sm:$0xf]
    %v4908 = vld [vmem:[%s7 + $0x3c] sm:$0xf]
    %v4909 = vld [vmem:[%s8] sm:$0x1]
    %v4911 = vlaneseq
    %v4912 = vshrl.u32 %v4911, 7
    %v4913 = vsub.s32 0, %v4912
    %v4914 = vrot.slane %v4909, %v4913
    %v4932 = vunpack.c.l.b16 %v4893
    %v4933 = vunpack.c.l.b16 %v4894
    %v4934 = vunpack.c.l.b16 %v4895
    %v4935 = vunpack.c.l.b16 %v4896
    %v4936 = vunpack.c.l.b16 %v4897
    %v4937 = vunpack.c.l.b16 %v4898
    %v4938 = vunpack.c.l.b16 %v4899
    %v4939 = vunpack.c.l.b16 %v4900
    %v4940 = vunpack.c.l.b16 %v4901
    %v4941 = vunpack.c.l.b16 %v4902
    %v4942 = vunpack.c.l.b16 %v4903
    %v4943 = vunpack.c.l.b16 %v4904
    %v4944 = vunpack.c.l.b16 %v4905
    %v4945 = vunpack.c.l.b16 %v4906
    %v4946 = vunpack.c.l.b16 %v4907
    %v4947 = vunpack.c.l.b16 %v4908
    %v4948 = vpack.c.b16 %v4933, %v4932
    %v4949 = vpack.c.b16 %v4935, %v4934
    %v4950 = vpack.c.b16 %v4937, %v4936
    %v4951 = vpack.c.b16 %v4939, %v4938
    %v4952 = vpack.c.b16 %v4941, %v4940
    %v4953 = vpack.c.b16 %v4943, %v4942
    %v4954 = vpack.c.b16 %v4945, %v4944
    %v4955 = vpack.c.b16 %v4947, %v4946
    %4964 = vmatprep.subr.bf16.mxu0 0
    %4965 = vmatpush1.bf16.msra.mxu0 %v4948
    %4966 = vmatprep.subr.bf16.mxu0 0
    %4967 = vmatpush1.bf16.msra.mxu0 %v4949
    %4968 = vmatprep.subr.bf16.mxu0 0
    %4969 = vmatpush1.bf16.msra.mxu0 %v4950
    %4970 = vmatprep.subr.bf16.mxu0 0
    %4971 = vmatpush1.bf16.msra.mxu0 %v4951
    %4972 = vmatprep.subr.bf16.mxu0 0
    %4973 = vmatpush1.bf16.msra.mxu0 %v4952
    %4974 = vmatprep.subr.bf16.mxu0 0
    %4975 = vmatpush1.bf16.msra.mxu0 %v4953
    %4976 = vmatprep.subr.bf16.mxu0 0
    %4977 = vmatpush1.bf16.msra.mxu0 %v4954
    %4978 = vmatprep.subr.bf16.mxu0 0
    %4979 = vmatpush1.bf16.msra.mxu0 %v4955
    %4980 = vmatprep.subr.bf16.mxu0 0
    %4981 = vmatpush1.bf16.msra.mxu0 0
    %4982 = vmatprep.subr.bf16.mxu0 0
    %4983 = vmatpush1.bf16.msra.mxu0 0
    %4984 = vmatprep.subr.bf16.mxu0 0
    %4985 = vmatpush1.bf16.msra.mxu0 0
    %4986 = vmatprep.subr.bf16.mxu0 0
    %4987 = vmatpush1.bf16.msra.mxu0 0
    %4988 = vmatprep.subr.bf16.mxu0 0
    %4989 = vmatpush1.bf16.msra.mxu0 0
    %4990 = vmatprep.subr.bf16.mxu0 0
    %4991 = vmatpush1.bf16.msra.mxu0 0
    %4992 = vmatprep.subr.bf16.mxu0 0
    %4993 = vmatpush1.bf16.msra.mxu0 0
    %4994 = vmatprep.subr.bf16.mxu0 0
    %4995 = vmatpush1.bf16.msra.mxu0 0
    %4996 = vmatprep.mubr.bf16.mxu0 0
    %4997 = vmatmul.mubr.bf16.gmra.mrb[0].mxu0 %v4892
    %v4998 = vpop.f32.mrb[0].mxu0
    %v4999 = vadd.f32 %v4914, %v4998
    %v5000 = vpop.f32.mrb[0].mxu0
    %v5001 = vpop.f32.mrb[0].mxu0
    %v5002 = vpop.f32.mrb[0].mxu0
    %5003 = vdwg.mxu0
    %v5004 = vmax.f32 %v4999, 0.0
    %v5005 = vpack.c.bf16 %v5004, %v5004
    %v5006 = vld [vmem:[%s9] sm:$0xf]
    %v5007 = vld [vmem:[%s9 + $0x4] sm:$0xf]
    %v5008 = vld [vmem:[%s9 + $0x8] sm:$0xf]
    %v5009 = vld [vmem:[%s9 + $0xc] sm:$0xf]
    %v5010 = vld [vmem:[%s9 + $0x10] sm:$0xf]
    %v5011 = vld [vmem:[%s9 + $0x14] sm:$0xf]
    %v5012 = vld [vmem:[%s9 + $0x18] sm:$0xf]
    %v5013 = vld [vmem:[%s9 + $0x1c] sm:$0xf]
    %v5014 = vld [vmem:[%s9 + $0x20] sm:$0xf]
    %v5015 = vld [vmem:[%s9 + $0x24] sm:$0xf]
    %v5016 = vld [vmem:[%s9 + $0x28] sm:$0xf]
    %v5017 = vld [vmem:[%s9 + $0x2c] sm:$0xf]
    %v5018 = vld [vmem:[%s9 + $0x30] sm:$0xf]
    %v5019 = vld [vmem:[%s9 + $0x34] sm:$0xf]
    %v5020 = vld [vmem:[%s9 + $0x38] sm:$0xf]
    %v5021 = vld [vmem:[%s9 + $0x3c] sm:$0xf]
    %v5022 = vld [vmem:[%s10] sm:$0x1]
    %v5024 = vlaneseq
    %v5025 = vshrl.u32 %v5024, 7
    %v5026 = vsub.s32 0, %v5025
    %v5027 = vrot.slane %v5022, %v5026
    %v5045 = vunpack.c.l.b16 %v5006
    %v5046 = vunpack.c.l.b16 %v5007
    %v5047 = vunpack.c.l.b16 %v5008
    %v5048 = vunpack.c.l.b16 %v5009
    %v5049 = vunpack.c.l.b16 %v5010
    %v5050 = vunpack.c.l.b16 %v5011
    %v5051 = vunpack.c.l.b16 %v5012
    %v5052 = vunpack.c.l.b16 %v5013
    %v5053 = vunpack.c.l.b16 %v5014
    %v5054 = vunpack.c.l.b16 %v5015
    %v5055 = vunpack.c.l.b16 %v5016
    %v5056 = vunpack.c.l.b16 %v5017
    %v5057 = vunpack.c.l.b16 %v5018
    %v5058 = vunpack.c.l.b16 %v5019
    %v5059 = vunpack.c.l.b16 %v5020
    %v5060 = vunpack.c.l.b16 %v5021
    %v5061 = vpack.c.b16 %v5046, %v5045
    %v5062 = vpack.c.b16 %v5048, %v5047
    %v5063 = vpack.c.b16 %v5050, %v5049
    %v5064 = vpack.c.b16 %v5052, %v5051
    %v5065 = vpack.c.b16 %v5054, %v5053
    %v5066 = vpack.c.b16 %v5056, %v5055
    %v5067 = vpack.c.b16 %v5058, %v5057
    %v5068 = vpack.c.b16 %v5060, %v5059
    %5077 = vmatprep.subr.bf16.mxu0 0
    %5078 = vmatpush1.bf16.msra.mxu0 %v5061
    %5079 = vmatprep.subr.bf16.mxu0 0
    %5080 = vmatpush1.bf16.msra.mxu0 %v5062
    %5081 = vmatprep.subr.bf16.mxu0 0
    %5082 = vmatpush1.bf16.msra.mxu0 %v5063
    %5083 = vmatprep.subr.bf16.mxu0 0
    %5084 = vmatpush1.bf16.msra.mxu0 %v5064
    %5085 = vmatprep.subr.bf16.mxu0 0
    %5086 = vmatpush1.bf16.msra.mxu0 %v5065
    %5087 = vmatprep.subr.bf16.mxu0 0
    %5088 = vmatpush1.bf16.msra.mxu0 %v5066
    %5089 = vmatprep.subr.bf16.mxu0 0
    %5090 = vmatpush1.bf16.msra.mxu0 %v5067
    %5091 = vmatprep.subr.bf16.mxu0 0
    %5092 = vmatpush1.bf16.msra.mxu0 %v5068
    %5093 = vmatprep.subr.bf16.mxu0 0
    %5094 = vmatpush1.bf16.msra.mxu0 0
    %5095 = vmatprep.subr.bf16.mxu0 0
    %5096 = vmatpush1.bf16.msra.mxu0 0
    %5097 = vmatprep.subr.bf16.mxu0 0
    %5098 = vmatpush1.bf16.msra.mxu0 0
    %5099 = vmatprep.subr.bf16.mxu0 0
    %5100 = vmatpush1.bf16.msra.mxu0 0
    %5101 = vmatprep.subr.bf16.mxu0 0
    %5102 = vmatpush1.bf16.msra.mxu0 0
    %5103 = vmatprep.subr.bf16.mxu0 0
    %5104 = vmatpush1.bf16.msra.mxu0 0
    %5105 = vmatprep.subr.bf16.mxu0 0
    %5106 = vmatpush1.bf16.msra.mxu0 0
    %5107 = vmatprep.subr.bf16.mxu0 0
    %5108 = vmatpush1.bf16.msra.mxu0 0
    %5109 = vmatprep.mubr.bf16.mxu0 0
    %5110 = vmatmul.mubr.bf16.gmra.mrb[0].mxu0 %v5005
    %v5111 = vpop.f32.mrb[0].mxu0
    %v5112 = vadd.f32 %v5027, %v5111
    %v5113 = vpop.f32.mrb[0].mxu0
    %v5114 = vpop.f32.mrb[0].mxu0
    %v5115 = vpop.f32.mrb[0].mxu0
    %5116 = vdwg.mxu0
    %vm5117 = vcmask 9216
    %5118 = vst.msk [vmem:[#allocation3] sm:$0x3] %vm5117, %v5112
    // Predicated region
    $region53: #{cnn_net_forward.5} parent=1 // pred_check
      _
    $region54: #{cnn_net_forward.5} parent=1 // pred_check_branch
      %5120 = sbr.rel (0) target = $region56
    $region55: #{cnn_net_forward.5} parent=1 // pred_region
      %s5122 = ssub.s32 32, 32
      %5123 = vsyncadd [#allocation4], %s5122
      %s5125 = sshll.u32 [#allocation3], 4
      %s5126 = int_to_ptr.vmem [resolvable:$true] %s5125
      %5128 = dma.vmem_to_hbm [thread:$0]  %s5126, 32, %s11, [#allocation4]
    $region56: #{cnn_net_forward.5} parent=1 // pred_fallthru
      _
    // Predicated region
    $region57: #{cnn_net_forward.5} parent=1 // pred_check
      _
    $region58: #{cnn_net_forward.5} parent=1 // pred_check_branch
      %5130 = sbr.rel (0) target = $region60
    $region59: #{cnn_net_forward.5} parent=1 // pred_region
      %5131 = dma.done [#allocation4], 32
    $region60: #{cnn_net_forward.5} parent=1 // pred_fallthru
      _
    %5132 = vsyncpa [#allocation4], 1

</llo_original>
